<compile_context>
chip_gen: v5e
topology: v5e:2x2
jax: 0.10.0
libtpu: 0.0.40
codegen_flags: <defaults>
</compile_context>

<pallas_src>
import functools
import math

import numpy as np
import jax
import jax.numpy as jnp
from jax.experimental import pallas as pl
from jax.experimental.pallas import tpu as pltpu

# Mirrors args.fixed / args.iwidth / args.aprec (default: quant() disabled).
FIXED = False
IWIDTH = 4
APREC = 8
BN_EPS = 1e-5


def _quant(x, intbit, fracbit):
    # TODO(synk): jnp.round is round-half-to-even; verify against torch.round before
    # enabling FIXED=True.
    x = jnp.round(x * (2.0 ** fracbit)) / (2.0 ** fracbit)
    return jnp.clip(x, -(2.0 ** intbit), 2.0 ** intbit - 2.0 ** (-fracbit))


def _bn_train(y, gamma, beta, mask=None, count=None):
    """Training-mode BatchNorm over rows (axis 0): biased variance, eps=1e-5.

    If `mask` (rows x 1, 0/1) is given, statistics are taken only over masked rows
    (used to exclude the conv zero-padding halo from the stats)."""
    if mask is None:
        mean = jnp.mean(y, axis=0, keepdims=True)
        var = jnp.mean(jnp.square(y - mean), axis=0, keepdims=True)
    else:
        inv = jnp.float32(1.0 / count)
        mean = jnp.sum(y * mask, axis=0, keepdims=True) * inv
        d = (y - mean) * mask
        var = jnp.sum(d * d, axis=0, keepdims=True) * inv
    return (y - mean) * jax.lax.rsqrt(var + BN_EPS) * gamma + beta


# ------------------------------ fused block kernel ------------------------------

def _inverted_residual_kernel(*refs, N, H, W, Cin, Ch, Cout, stride, expand, identity):
    Hp, Wp = H + 2, W + 2
    Ho = (H - 1) // stride + 1
    Wo = (W - 1) // stride + 1
    Mp = N * Hp * Wp
    Mo = N * Ho * Wo

    if expand:
        (xp_ref, mask_ref, pw1_w_ref, pw1_g_ref, pw1_b_ref,
         dw_w_ref, dw_g_ref, dw_b_ref,
         pw2_w_ref, pw2_g_ref, pw2_b_ref,
         out_ref, hid_ref) = refs
    else:
        (xp_ref,
         dw_w_ref, dw_g_ref, dw_b_ref,
         pw2_w_ref, pw2_g_ref, pw2_b_ref,
         out_ref) = refs

    # ---- stage 1: 1x1 expansion conv + BN + ReLU6, result kept in VMEM scratch ----
    if expand:
        x2d = xp_ref[...].reshape(Mp, Cin)
        y = jnp.dot(x2d.astype(jnp.bfloat16), pw1_w_ref[...],      # bf16 in, f32 acc (MXU)
                    preferred_element_type=jnp.float32)             # (Mp, Ch)
        if FIXED:
            y = _quant(y, IWIDTH, APREC)
        mask = mask_ref[...]                                        # (Mp, 1): 1 on real pixels
        y = _bn_train(y, pw1_g_ref[...], pw1_b_ref[...], mask=mask, count=N * H * W)
        if FIXED:
            y = _quant(y, IWIDTH, APREC)
        # ReLU6, then force the halo back to the depthwise conv's zero padding.
        y = jnp.clip(y, 0.0, 6.0) * mask
        hid_ref[...] = y.reshape(N, Hp, Wp, Ch)
        src_ref = hid_ref
    else:
        # expand_ratio == 1: depthwise conv acts directly on the zero-padded input.
        src_ref = xp_ref

    # ---- stage 2: depthwise 3x3 conv (stride 1 or 2) + BN + ReLU6 ------------------
    wd = dw_w_ref[...]                                              # (9, Ch), t = ki*3 + kj
    acc = jnp.zeros((N, Ho, Wo, Ch), jnp.float32)
    for ki in range(3):
        for kj in range(3):
            if stride == 1:
                tap = src_ref[:, ki:ki + Ho, kj:kj + Wo, :]
            else:
                tap = src_ref[:, pl.ds(ki, Ho, stride), pl.ds(kj, Wo, stride), :]
            t = ki * 3 + kj
            acc = acc + tap * wd[t:t + 1, :].reshape(1, 1, 1, Ch)
    z = acc.reshape(Mo, Ch)
    if FIXED:
        z = _quant(z, IWIDTH, APREC)
    z = _bn_train(z, dw_g_ref[...], dw_b_ref[...])
    if FIXED:
        z = _quant(z, IWIDTH, APREC)
    z = jnp.clip(z, 0.0, 6.0)

    # ---- stage 3: 1x1 projection conv + BN (+ identity residual) -------------------
    o = jnp.dot(z.astype(jnp.bfloat16), pw2_w_ref[...],
                preferred_element_type=jnp.float32)                 # (Mo, Cout)
    if FIXED:
        o = _quant(o, IWIDTH, APREC)
    o = _bn_train(o, pw2_g_ref[...], pw2_b_ref[...])
    if FIXED:
        o = _quant(o, IWIDTH, APREC)
    if identity:
        # residual: interior (un-padded) of x, Cin == Cout here.
        o = o + xp_ref[:, 1:H + 1, 1:W + 1, :].reshape(Mo, Cin)
    out_ref[...] = o


@functools.lru_cache(maxsize=None)
def _build_block(N, H, W, Cin, Ch, Cout, stride, expand, identity):
    Hp, Wp = H + 2, W + 2
    Ho = (H - 1) // stride + 1
    Wo = (W - 1) // stride + 1
    Mp, Mo = N * Hp * Wp, N * Ho * Wo

    kernel = functools.partial(
        _inverted_residual_kernel,
        N=N, H=H, W=W, Cin=Cin, Ch=Ch, Cout=Cout,
        stride=stride, expand=expand, identity=identity)

    vmem = pl.BlockSpec(memory_space=pltpu.MemorySpace.VMEM)
    n_in = 11 if expand else 7

    flops = ((2 * Mp * Cin * Ch if expand else 0)          # 1x1 expand matmul
             + 18 * Mo * Ch                                # depthwise 3x3
             + 2 * Mo * Ch * Cout                          # 1x1 project matmul
             + 10 * ((Mp * Ch if expand else 0) + 2 * Mo * Ch + Mo * Cout))  # BN/ReLU6
    bytes_accessed = (4 * (Mp * Cin + Mo * Cout + 9 * Ch + 4 * Ch + 2 * Cout)
                      + 2 * (Cin * Ch + Ch * Cout)
                      + (4 * Mp if expand else 0))

    return pl.pallas_call(
        kernel,
        in_specs=[vmem] * n_in,
        out_specs=vmem,
        out_shape=jax.ShapeDtypeStruct((Mo, Cout), jnp.float32),
        scratch_shapes=([pltpu.VMEM((N, Hp, Wp, Ch), jnp.float32)] if expand else []),
        compiler_params=pltpu.CompilerParams(
            # Tiny at these shapes; set explicitly so the same kernel stays valid on
            # v7x (64 MiB physical VMEM) before adding M-tiling for larger batches.
            vmem_limit_bytes=32 * 1024 * 1024),
        cost_estimate=pl.CostEstimate(
            flops=int(flops),
            transcendentals=int((2 if expand else 1) * Ch + Cout),
            bytes_accessed=int(bytes_accessed)),
    )


# ------------------------------ parameters (PyTorch layouts) ------------------------------

def init_torch_params(key, inp, oup, expand_ratio):
    """Random parameters in the *PyTorch* layouts of the original module:
    Conv2d weight (Cout, Cin/groups, kh, kw) with bias=False, BatchNorm weight/bias (C,)."""
    ch = int(round(inp * expand_ratio))
    ks = jax.random.split(key, 9)
    f32 = jnp.float32
    p = {}
    if expand_ratio != 1:
        p['pw1_w'] = math.sqrt(2.0 / inp) * jax.random.normal(ks[0], (ch, inp, 1, 1), f32)
        p['pw1_bn_w'] = 1.0 + 0.1 * jax.random.normal(ks[1], (ch,), f32)
        p['pw1_bn_b'] = 0.1 * jax.random.normal(ks[2], (ch,), f32)
    p['dw_w'] = math.sqrt(2.0 / 9.0) * jax.random.normal(ks[3], (ch, 1, 3, 3), f32)
    p['dw_bn_w'] = 1.0 + 0.1 * jax.random.normal(ks[4], (ch,), f32)
    p['dw_bn_b'] = 0.1 * jax.random.normal(ks[5], (ch,), f32)
    p['pw2_w'] = math.sqrt(2.0 / ch) * jax.random.normal(ks[6], (oup, ch, 1, 1), f32)
    p['pw2_bn_w'] = 1.0 + 0.1 * jax.random.normal(ks[7], (oup,), f32)
    p['pw2_bn_b'] = 0.1 * jax.random.normal(ks[8], (oup,), f32)
    return p


def to_kernel_params(tp, expand_ratio):
    """One-time conversion PyTorch layout -> kernel layout:
       1x1 conv (Cout,Cin,1,1) -> (Cin,Cout) bf16; depthwise (Ch,1,3,3) -> (9,Ch) f32
       with tap index t = ki*3 + kj; BN gamma/beta -> (1,C) f32."""
    f32, bf16 = jnp.float32, jnp.bfloat16
    kp = {}
    if expand_ratio != 1:
        ch, cin = tp['pw1_w'].shape[0], tp['pw1_w'].shape[1]
        kp['pw1_w'] = jnp.transpose(tp['pw1_w'].reshape(ch, cin)).astype(bf16)
        kp['pw1_g'] = tp['pw1_bn_w'].reshape(1, -1).astype(f32)
        kp['pw1_b'] = tp['pw1_bn_b'].reshape(1, -1).astype(f32)
    ch = tp['dw_w'].shape[0]
    kp['dw_w'] = jnp.transpose(tp['dw_w'].reshape(ch, 9)).astype(f32)
    kp['dw_g'] = tp['dw_bn_w'].reshape(1, -1).astype(f32)
    kp['dw_b'] = tp['dw_bn_b'].reshape(1, -1).astype(f32)
    cout = tp['pw2_w'].shape[0]
    kp['pw2_w'] = jnp.transpose(tp['pw2_w'].reshape(cout, ch)).astype(bf16)
    kp['pw2_g'] = tp['pw2_bn_w'].reshape(1, -1).astype(f32)
    kp['pw2_b'] = tp['pw2_bn_b'].reshape(1, -1).astype(f32)
    return kp


# ------------------------------ forward wrapper ------------------------------

@functools.partial(jax.jit, static_argnames=("stride", "expand_ratio"))
def inverted_residual_forward(kparams, x_nchw, *, stride, expand_ratio):
    """InvertedResidual forward. x_nchw: (N, C, H, W) like PyTorch; returns NCHW."""
    x = jnp.transpose(x_nchw, (0, 2, 3, 1)).astype(jnp.float32)     # NCHW -> NHWC
    N, H, W, Cin = x.shape
    expand = expand_ratio != 1
    Ch = kparams['dw_w'].shape[1]
    Cout = kparams['pw2_w'].shape[1]
    identity = (stride == 1 and Cin == Cout)

    # Zero-pad once in the wrapper; inside the kernel the 9 depthwise taps are slices of
    # the VMEM-resident padded activation (no 9x im2col copy through HBM).
    xp = jnp.pad(x, ((0, 0), (1, 1), (1, 1), (0, 0)))

    args = [xp]
    if expand:
        # Interior mask: keeps the halo out of the pw1 BatchNorm statistics and zeroes
        # the halo of the hidden activation (= the depthwise conv's zero padding).
        mask = jnp.pad(jnp.ones((N, H, W), jnp.float32),
                       ((0, 0), (1, 1), (1, 1))).reshape(-1, 1)
        args += [mask, kparams['pw1_w'], kparams['pw1_g'], kparams['pw1_b']]
    args += [kparams['dw_w'], kparams['dw_g'], kparams['dw_b'],
             kparams['pw2_w'], kparams['pw2_g'], kparams['pw2_b']]

    fn = _build_block(N, H, W, Cin, Ch, Cout, stride, expand, identity)
    Ho = (H - 1) // stride + 1
    Wo = (W - 1) // stride + 1
    out = fn(*args).reshape(N, Ho, Wo, Cout)
    return jnp.transpose(out, (0, 3, 1, 2))                         # NHWC -> NCHW


# ------------------------------ pure-JAX reference ------------------------------

def _bn_ref(y, gamma, beta):
    mean = jnp.mean(y, axis=(0, 1, 2), keepdims=True)
    var = jnp.mean(jnp.square(y - mean), axis=(0, 1, 2), keepdims=True)
    yhat = (y - mean) * jax.lax.rsqrt(var + BN_EPS)
    return yhat * gamma.reshape(1, 1, 1, -1) + beta.reshape(1, 1, 1, -1)


def _bf(a):
    return a.astype(jnp.bfloat16).astype(jnp.float32)


def inverted_residual_ref(tp, x_nchw, *, stride, expand_ratio):
    """lax.conv reference for the PyTorch forward (train-mode BN, args.fixed == 0),
    with the 1x1-conv operands rounded through bf16 to match the kernel's MXU inputs."""
    dn = ('NHWC', 'HWIO', 'NHWC')
    x = jnp.transpose(x_nchw, (0, 2, 3, 1)).astype(jnp.float32)
    y = x
    if expand_ratio != 1:
        w = jnp.transpose(tp['pw1_w'], (2, 3, 1, 0))
        y = jax.lax.conv_general_dilated(_bf(y), _bf(w), (1, 1), 'VALID',
                                         dimension_numbers=dn)
        y = jnp.clip(_bn_ref(y, tp['pw1_bn_w'], tp['pw1_bn_b']), 0.0, 6.0)
    ch = tp['dw_w'].shape[0]
    wd = jnp.transpose(tp['dw_w'], (2, 3, 1, 0))
    y = jax.lax.conv_general_dilated(y, wd, (stride, stride), [(1, 1), (1, 1)],
                                     dimension_numbers=dn, feature_group_count=ch)
    y = jnp.clip(_bn_ref(y, tp['dw_bn_w'], tp['dw_bn_b']), 0.0, 6.0)
    w2 = jnp.transpose(tp['pw2_w'], (2, 3, 1, 0))
    y = jax.lax.conv_general_dilated(_bf(y), _bf(w2), (1, 1), 'VALID',
                                     dimension_numbers=dn)
    y = _bn_ref(y, tp['pw2_bn_w'], tp['pw2_bn_b'])
    if stride == 1 and x.shape[-1] == y.shape[-1]:
        y = y + x
    return jnp.transpose(y, (0, 3, 1, 2))


# ------------------------------ main ------------------------------

if __name__ == "__main__":
    root = jax.random.PRNGKey(0)
    kx, k1, k2, k3 = jax.random.split(root, 4)
    # Small CIFAR-stage feature map, NCHW as in PyTorch.
    x = jax.random.normal(kx, (2, 8, 16, 16), jnp.float32)

    configs = [
        # (inp, oup, stride, expand_ratio)
        (8, 8, 1, 6),    # expansion + identity residual
        (8, 16, 2, 6),   # expansion + stride-2 downsample
        (8, 8, 1, 1),    # no expansion (expand_ratio == 1) + identity residual
    ]
    for (inp, oup, stride, t), kk in zip(configs, (k1, k2, k3)):
        tp = init_torch_params(kk, inp, oup, t)
        kp = to_kernel_params(tp, t)
        out = inverted_residual_forward(kp, x, stride=stride, expand_ratio=t)
        out = jax.block_until_ready(out)
        assert out.shape == (2, oup, 16 // stride, 16 // stride)
        assert out.dtype == jnp.float32
        ref = inverted_residual_ref(tp, x, stride=stride, expand_ratio=t)
        np.testing.assert_allclose(np.asarray(out), np.asarray(ref),
                                   rtol=5e-2, atol=5e-2)
    print("KERNEL_OK")
</pallas_src>

<mosaic_0001>
module attributes {stable_mosaic.version = 11 : i64} {
  func.func @_inverted_residual_kernel(%arg0: memref<2x18x18x8xf32, #tpu.memory_space<vmem>>, %arg1: memref<648x1xf32, #tpu.memory_space<vmem>>, %arg2: memref<8x48xbf16, #tpu.memory_space<vmem>>, %arg3: memref<1x48xf32, #tpu.memory_space<vmem>>, %arg4: memref<1x48xf32, #tpu.memory_space<vmem>>, %arg5: memref<9x48xf32, #tpu.memory_space<vmem>>, %arg6: memref<1x48xf32, #tpu.memory_space<vmem>>, %arg7: memref<1x48xf32, #tpu.memory_space<vmem>>, %arg8: memref<48x8xbf16, #tpu.memory_space<vmem>>, %arg9: memref<1x8xf32, #tpu.memory_space<vmem>>, %arg10: memref<1x8xf32, #tpu.memory_space<vmem>>, %arg11: memref<512x8xf32, #tpu.memory_space<vmem>>, %arg12: memref<2x18x18x48xf32, #tpu.memory_space<vmem>>) attributes {dimension_semantics = [], scalar_prefetch = 0 : i64, scratch_operands = 1 : i64, tpu.core_type = #tpu.core_type<tc>} {
    %c0 = arith.constant 0 : index
    %c0_0 = arith.constant 0 : index
    %c0_1 = arith.constant 0 : index
    %c0_2 = arith.constant 0 : index
    %0 = vector.load %arg0[%c0, %c0_0, %c0_1, %c0_2] : memref<2x18x18x8xf32, #tpu.memory_space<vmem>>, vector<2x18x18x8xf32>
    %1 = vector.shape_cast %0 : vector<2x18x18x8xf32> to vector<648x8xf32>
    %2 = arith.truncf %1 : vector<648x8xf32> to vector<648x8xbf16>
    %c0_3 = arith.constant 0 : index
    %c0_4 = arith.constant 0 : index
    %3 = vector.load %arg2[%c0_3, %c0_4] : memref<8x48xbf16, #tpu.memory_space<vmem>>, vector<8x48xbf16>
    %cst = arith.constant dense<0.000000e+00> : vector<648x48xf32>
    %4 = tpu.matmul %2, %3, %cst {dimension_numbers = #tpu.dot_dimension_numbers<[1], [0], [0], [1], [0, 0, 1, 1], [], []>} : vector<648x8xbf16>, vector<8x48xbf16>, vector<648x48xf32> -> vector<648x48xf32>
    %c0_5 = arith.constant 0 : index
    %c0_6 = arith.constant 0 : index
    %5 = vector.load %arg1[%c0_5, %c0_6] : memref<648x1xf32, #tpu.memory_space<vmem>>, vector<648x1xf32>
    %c0_7 = arith.constant 0 : index
    %c0_8 = arith.constant 0 : index
    %6 = vector.load %arg3[%c0_7, %c0_8] : memref<1x48xf32, #tpu.memory_space<vmem>>, vector<1x48xf32>
    %c0_9 = arith.constant 0 : index
    %c0_10 = arith.constant 0 : index
    %7 = vector.load %arg4[%c0_9, %c0_10] : memref<1x48xf32, #tpu.memory_space<vmem>>, vector<1x48xf32>
    %8 = vector.broadcast %5 : vector<648x1xf32> to vector<648x48xf32>
    %9 = arith.mulf %4, %8 : vector<648x48xf32>
    %cst_11 = arith.constant dense<0.000000e+00> : vector<48xf32>
    %10 = vector.multi_reduction <add>, %9, %cst_11 [0] : vector<648x48xf32> to vector<48xf32>
    %11 = vector.shape_cast %10 : vector<48xf32> to vector<1x48xf32>
    %cst_12 = arith.constant 0.001953125 : f32
    %12 = vector.broadcast %cst_12 : f32 to vector<1x48xf32>
    %13 = arith.mulf %11, %12 : vector<1x48xf32>
    %14 = vector.broadcast %13 : vector<1x48xf32> to vector<648x48xf32>
    %15 = arith.subf %4, %14 : vector<648x48xf32>
    %16 = vector.broadcast %5 : vector<648x1xf32> to vector<648x48xf32>
    %17 = arith.mulf %15, %16 : vector<648x48xf32>
    %18 = arith.mulf %17, %17 : vector<648x48xf32>
    %cst_13 = arith.constant dense<0.000000e+00> : vector<48xf32>
    %19 = vector.multi_reduction <add>, %18, %cst_13 [0] : vector<648x48xf32> to vector<48xf32>
    %20 = vector.shape_cast %19 : vector<48xf32> to vector<1x48xf32>
    %cst_14 = arith.constant 0.001953125 : f32
    %21 = vector.broadcast %cst_14 : f32 to vector<1x48xf32>
    %22 = arith.mulf %20, %21 : vector<1x48xf32>
    %23 = vector.broadcast %13 : vector<1x48xf32> to vector<648x48xf32>
    %24 = arith.subf %4, %23 : vector<648x48xf32>
    %cst_15 = arith.constant 9.99999974E-6 : f32
    %25 = vector.broadcast %cst_15 : f32 to vector<1x48xf32>
    %26 = arith.addf %22, %25 : vector<1x48xf32>
    %27 = math.rsqrt %26 : vector<1x48xf32>
    %28 = vector.broadcast %27 : vector<1x48xf32> to vector<648x48xf32>
    %29 = arith.mulf %24, %28 : vector<648x48xf32>
    %30 = vector.broadcast %6 : vector<1x48xf32> to vector<648x48xf32>
    %31 = arith.mulf %29, %30 : vector<648x48xf32>
    %32 = vector.broadcast %7 : vector<1x48xf32> to vector<648x48xf32>
    %33 = arith.addf %31, %32 : vector<648x48xf32>
    %cst_16 = arith.constant 0.000000e+00 : f32
    %cst_17 = arith.constant 6.000000e+00 : f32
    %34 = vector.broadcast %cst_16 : f32 to vector<648x48xf32>
    %35 = arith.maximumf %34, %33 : vector<648x48xf32>
    %36 = vector.broadcast %cst_17 : f32 to vector<648x48xf32>
    %37 = arith.minimumf %36, %35 : vector<648x48xf32>
    %38 = vector.broadcast %5 : vector<648x1xf32> to vector<648x48xf32>
    %39 = arith.mulf %37, %38 : vector<648x48xf32>
    %40 = vector.shape_cast %39 : vector<648x48xf32> to vector<2x18x18x48xf32>
    %c0_18 = arith.constant 0 : index
    %c0_19 = arith.constant 0 : index
    %c0_20 = arith.constant 0 : index
    %c0_21 = arith.constant 0 : index
    %41 = vector.load %arg12[%c0_18, %c0_19, %c0_20, %c0_21] : memref<2x18x18x48xf32, #tpu.memory_space<vmem>>, vector<2x18x18x48xf32>
    tpu.vector_store %arg12[%c0_18, %c0_19, %c0_20, %c0_21], %40 {strides = array<i32>} : memref<2x18x18x48xf32, #tpu.memory_space<vmem>>, vector<2x18x18x48xf32>,
    %c0_22 = arith.constant 0 : index
    %c0_23 = arith.constant 0 : index
    %42 = vector.load %arg5[%c0_22, %c0_23] : memref<9x48xf32, #tpu.memory_space<vmem>>, vector<9x48xf32>
    %cst_24 = arith.constant 0.000000e+00 : f32
    %43 = vector.broadcast %cst_24 : f32 to vector<2x16x16x48xf32>
    %c0_25 = arith.constant 0 : index
    %c0_26 = arith.constant 0 : index
    %c0_27 = arith.constant 0 : index
    %c0_28 = arith.constant 0 : index
    %44 = vector.load %arg12[%c0_25, %c0_26, %c0_27, %c0_28] : memref<2x18x18x48xf32, #tpu.memory_space<vmem>>, vector<2x16x16x48xf32>
    %45 = vector.extract_strided_slice %42 {offsets = [0, 0], sizes = [1, 48], strides = [1, 1]} : vector<9x48xf32> to vector<1x48xf32>
    %46 = vector.shape_cast %45 : vector<1x48xf32> to vector<1x1x1x48xf32>
    %47 = vector.broadcast %46 : vector<1x1x1x48xf32> to vector<2x16x16x48xf32>
    %48 = arith.mulf %44, %47 : vector<2x16x16x48xf32>
    %49 = arith.addf %43, %48 : vector<2x16x16x48xf32>
    %c0_29 = arith.constant 0 : index
    %c0_30 = arith.constant 0 : index
    %c1 = arith.constant 1 : index
    %c0_31 = arith.constant 0 : index
    %50 = vector.load %arg12[%c0_29, %c0_30, %c1, %c0_31] : memref<2x18x18x48xf32, #tpu.memory_space<vmem>>, vector<2x16x16x48xf32>
    %51 = vector.extract_strided_slice %42 {offsets = [1, 0], sizes = [1, 48], strides = [1, 1]} : vector<9x48xf32> to vector<1x48xf32>
    %52 = vector.shape_cast %51 : vector<1x48xf32> to vector<1x1x1x48xf32>
    %53 = vector.broadcast %52 : vector<1x1x1x48xf32> to vector<2x16x16x48xf32>
    %54 = arith.mulf %50, %53 : vector<2x16x16x48xf32>
    %55 = arith.addf %49, %54 : vector<2x16x16x48xf32>
    %c0_32 = arith.constant 0 : index
    %c0_33 = arith.constant 0 : index
    %c2 = arith.constant 2 : index
    %c0_34 = arith.constant 0 : index
    %56 = vector.load %arg12[%c0_32, %c0_33, %c2, %c0_34] : memref<2x18x18x48xf32, #tpu.memory_space<vmem>>, vector<2x16x16x48xf32>
    %57 = vector.extract_strided_slice %42 {offsets = [2, 0], sizes = [1, 48], strides = [1, 1]} : vector<9x48xf32> to vector<1x48xf32>
    %58 = vector.shape_cast %57 : vector<1x48xf32> to vector<1x1x1x48xf32>
    %59 = vector.broadcast %58 : vector<1x1x1x48xf32> to vector<2x16x16x48xf32>
    %60 = arith.mulf %56, %59 : vector<2x16x16x48xf32>
    %61 = arith.addf %55, %60 : vector<2x16x16x48xf32>
    %c0_35 = arith.constant 0 : index
    %c1_36 = arith.constant 1 : index
    %c0_37 = arith.constant 0 : index
    %c0_38 = arith.constant 0 : index
    %62 = vector.load %arg12[%c0_35, %c1_36, %c0_37, %c0_38] : memref<2x18x18x48xf32, #tpu.memory_space<vmem>>, vector<2x16x16x48xf32>
    %63 = vector.extract_strided_slice %42 {offsets = [3, 0], sizes = [1, 48], strides = [1, 1]} : vector<9x48xf32> to vector<1x48xf32>
    %64 = vector.shape_cast %63 : vector<1x48xf32> to vector<1x1x1x48xf32>
    %65 = vector.broadcast %64 : vector<1x1x1x48xf32> to vector<2x16x16x48xf32>
    %66 = arith.mulf %62, %65 : vector<2x16x16x48xf32>
    %67 = arith.addf %61, %66 : vector<2x16x16x48xf32>
    %c0_39 = arith.constant 0 : index
    %c1_40 = arith.constant 1 : index
    %c1_41 = arith.constant 1 : index
    %c0_42 = arith.constant 0 : index
    %68 = vector.load %arg12[%c0_39, %c1_40, %c1_41, %c0_42] : memref<2x18x18x48xf32, #tpu.memory_space<vmem>>, vector<2x16x16x48xf32>
    %69 = vector.extract_strided_slice %42 {offsets = [4, 0], sizes = [1, 48], strides = [1, 1]} : vector<9x48xf32> to vector<1x48xf32>
    %70 = vector.shape_cast %69 : vector<1x48xf32> to vector<1x1x1x48xf32>
    %71 = vector.broadcast %70 : vector<1x1x1x48xf32> to vector<2x16x16x48xf32>
    %72 = arith.mulf %68, %71 : vector<2x16x16x48xf32>
    %73 = arith.addf %67, %72 : vector<2x16x16x48xf32>
    %c0_43 = arith.constant 0 : index
    %c1_44 = arith.constant 1 : index
    %c2_45 = arith.constant 2 : index
    %c0_46 = arith.constant 0 : index
    %74 = vector.load %arg12[%c0_43, %c1_44, %c2_45, %c0_46] : memref<2x18x18x48xf32, #tpu.memory_space<vmem>>, vector<2x16x16x48xf32>
    %75 = vector.extract_strided_slice %42 {offsets = [5, 0], sizes = [1, 48], strides = [1, 1]} : vector<9x48xf32> to vector<1x48xf32>
    %76 = vector.shape_cast %75 : vector<1x48xf32> to vector<1x1x1x48xf32>
    %77 = vector.broadcast %76 : vector<1x1x1x48xf32> to vector<2x16x16x48xf32>
    %78 = arith.mulf %74, %77 : vector<2x16x16x48xf32>
    %79 = arith.addf %73, %78 : vector<2x16x16x48xf32>
    %c0_47 = arith.constant 0 : index
    %c2_48 = arith.constant 2 : index
    %c0_49 = arith.constant 0 : index
    %c0_50 = arith.constant 0 : index
    %80 = vector.load %arg12[%c0_47, %c2_48, %c0_49, %c0_50] : memref<2x18x18x48xf32, #tpu.memory_space<vmem>>, vector<2x16x16x48xf32>
    %81 = vector.extract_strided_slice %42 {offsets = [6, 0], sizes = [1, 48], strides = [1, 1]} : vector<9x48xf32> to vector<1x48xf32>
    %82 = vector.shape_cast %81 : vector<1x48xf32> to vector<1x1x1x48xf32>
    %83 = vector.broadcast %82 : vector<1x1x1x48xf32> to vector<2x16x16x48xf32>
    %84 = arith.mulf %80, %83 : vector<2x16x16x48xf32>
    %85 = arith.addf %79, %84 : vector<2x16x16x48xf32>
    %c0_51 = arith.constant 0 : index
    %c2_52 = arith.constant 2 : index
    %c1_53 = arith.constant 1 : index
    %c0_54 = arith.constant 0 : index
    %86 = vector.load %arg12[%c0_51, %c2_52, %c1_53, %c0_54] : memref<2x18x18x48xf32, #tpu.memory_space<vmem>>, vector<2x16x16x48xf32>
    %87 = vector.extract_strided_slice %42 {offsets = [7, 0], sizes = [1, 48], strides = [1, 1]} : vector<9x48xf32> to vector<1x48xf32>
    %88 = vector.shape_cast %87 : vector<1x48xf32> to vector<1x1x1x48xf32>
    %89 = vector.broadcast %88 : vector<1x1x1x48xf32> to vector<2x16x16x48xf32>
    %90 = arith.mulf %86, %89 : vector<2x16x16x48xf32>
    %91 = arith.addf %85, %90 : vector<2x16x16x48xf32>
    %c0_55 = arith.constant 0 : index
    %c2_56 = arith.constant 2 : index
    %c2_57 = arith.constant 2 : index
    %c0_58 = arith.constant 0 : index
    %92 = vector.load %arg12[%c0_55, %c2_56, %c2_57, %c0_58] : memref<2x18x18x48xf32, #tpu.memory_space<vmem>>, vector<2x16x16x48xf32>
    %93 = vector.extract_strided_slice %42 {offsets = [8, 0], sizes = [1, 48], strides = [1, 1]} : vector<9x48xf32> to vector<1x48xf32>
    %94 = vector.shape_cast %93 : vector<1x48xf32> to vector<1x1x1x48xf32>
    %95 = vector.broadcast %94 : vector<1x1x1x48xf32> to vector<2x16x16x48xf32>
    %96 = arith.mulf %92, %95 : vector<2x16x16x48xf32>
    %97 = arith.addf %91, %96 : vector<2x16x16x48xf32>
    %98 = vector.shape_cast %97 : vector<2x16x16x48xf32> to vector<512x48xf32>
    %c0_59 = arith.constant 0 : index
    %c0_60 = arith.constant 0 : index
    %99 = vector.load %arg6[%c0_59, %c0_60] : memref<1x48xf32, #tpu.memory_space<vmem>>, vector<1x48xf32>
    %c0_61 = arith.constant 0 : index
    %c0_62 = arith.constant 0 : index
    %100 = vector.load %arg7[%c0_61, %c0_62] : memref<1x48xf32, #tpu.memory_space<vmem>>, vector<1x48xf32>
    %cst_63 = arith.constant dense<0.000000e+00> : vector<48xf32>
    %101 = vector.multi_reduction <add>, %98, %cst_63 [0] : vector<512x48xf32> to vector<48xf32>
    %102 = vector.shape_cast %101 : vector<48xf32> to vector<1x48xf32>
    %cst_64 = arith.constant 5.120000e+02 : f32
    %103 = vector.broadcast %cst_64 : f32 to vector<1x48xf32>
    %104 = arith.divf %102, %103 : vector<1x48xf32>
    %105 = vector.broadcast %104 : vector<1x48xf32> to vector<512x48xf32>
    %106 = arith.subf %98, %105 : vector<512x48xf32>
    %107 = arith.mulf %106, %106 : vector<512x48xf32>
    %cst_65 = arith.constant dense<0.000000e+00> : vector<48xf32>
    %108 = vector.multi_reduction <add>, %107, %cst_65 [0] : vector<512x48xf32> to vector<48xf32>
    %109 = vector.shape_cast %108 : vector<48xf32> to vector<1x48xf32>
    %cst_66 = arith.constant 5.120000e+02 : f32
    %110 = vector.broadcast %cst_66 : f32 to vector<1x48xf32>
    %111 = arith.divf %109, %110 : vector<1x48xf32>
    %112 = vector.broadcast %104 : vector<1x48xf32> to vector<512x48xf32>
    %113 = arith.subf %98, %112 : vector<512x48xf32>
    %cst_67 = arith.constant 9.99999974E-6 : f32
    %114 = vector.broadcast %cst_67 : f32 to vector<1x48xf32>
    %115 = arith.addf %111, %114 : vector<1x48xf32>
    %116 = math.rsqrt %115 : vector<1x48xf32>
    %117 = vector.broadcast %116 : vector<1x48xf32> to vector<512x48xf32>
    %118 = arith.mulf %113, %117 : vector<512x48xf32>
    %119 = vector.broadcast %99 : vector<1x48xf32> to vector<512x48xf32>
    %120 = arith.mulf %118, %119 : vector<512x48xf32>
    %121 = vector.broadcast %100 : vector<1x48xf32> to vector<512x48xf32>
    %122 = arith.addf %120, %121 : vector<512x48xf32>
    %cst_68 = arith.constant 0.000000e+00 : f32
    %cst_69 = arith.constant 6.000000e+00 : f32
    %123 = vector.broadcast %cst_68 : f32 to vector<512x48xf32>
    %124 = arith.maximumf %123, %122 : vector<512x48xf32>
    %125 = vector.broadcast %cst_69 : f32 to vector<512x48xf32>
    %126 = arith.minimumf %125, %124 : vector<512x48xf32>
    %127 = arith.truncf %126 : vector<512x48xf32> to vector<512x48xbf16>
    %c0_70 = arith.constant 0 : index
    %c0_71 = arith.constant 0 : index
    %128 = vector.load %arg8[%c0_70, %c0_71] : memref<48x8xbf16, #tpu.memory_space<vmem>>, vector<48x8xbf16>
    %cst_72 = arith.constant dense<0.000000e+00> : vector<512x8xf32>
    %129 = tpu.matmul %127, %128, %cst_72 {dimension_numbers = #tpu.dot_dimension_numbers<[1], [0], [0], [1], [0, 0, 1, 1], [], []>} : vector<512x48xbf16>, vector<48x8xbf16>, vector<512x8xf32> -> vector<512x8xf32>
    %c0_73 = arith.constant 0 : index
    %c0_74 = arith.constant 0 : index
    %130 = vector.load %arg9[%c0_73, %c0_74] : memref<1x8xf32, #tpu.memory_space<vmem>>, vector<1x8xf32>
    %c0_75 = arith.constant 0 : index
    %c0_76 = arith.constant 0 : index
    %131 = vector.load %arg10[%c0_75, %c0_76] : memref<1x8xf32, #tpu.memory_space<vmem>>, vector<1x8xf32>
    %cst_77 = arith.constant dense<0.000000e+00> : vector<8xf32>
    %132 = vector.multi_reduction <add>, %129, %cst_77 [0] : vector<512x8xf32> to vector<8xf32>
    %133 = vector.shape_cast %132 : vector<8xf32> to vector<1x8xf32>
    %cst_78 = arith.constant 5.120000e+02 : f32
    %134 = vector.broadcast %cst_78 : f32 to vector<1x8xf32>
    %135 = arith.divf %133, %134 : vector<1x8xf32>
    %136 = vector.broadcast %135 : vector<1x8xf32> to vector<512x8xf32>
    %137 = arith.subf %129, %136 : vector<512x8xf32>
    %138 = arith.mulf %137, %137 : vector<512x8xf32>
    %cst_79 = arith.constant dense<0.000000e+00> : vector<8xf32>
    %139 = vector.multi_reduction <add>, %138, %cst_79 [0] : vector<512x8xf32> to vector<8xf32>
    %140 = vector.shape_cast %139 : vector<8xf32> to vector<1x8xf32>
    %cst_80 = arith.constant 5.120000e+02 : f32
    %141 = vector.broadcast %cst_80 : f32 to vector<1x8xf32>
    %142 = arith.divf %140, %141 : vector<1x8xf32>
    %143 = vector.broadcast %135 : vector<1x8xf32> to vector<512x8xf32>
    %144 = arith.subf %129, %143 : vector<512x8xf32>
    %cst_81 = arith.constant 9.99999974E-6 : f32
    %145 = vector.broadcast %cst_81 : f32 to vector<1x8xf32>
    %146 = arith.addf %142, %145 : vector<1x8xf32>
    %147 = math.rsqrt %146 : vector<1x8xf32>
    %148 = vector.broadcast %147 : vector<1x8xf32> to vector<512x8xf32>
    %149 = arith.mulf %144, %148 : vector<512x8xf32>
    %150 = vector.broadcast %130 : vector<1x8xf32> to vector<512x8xf32>
    %151 = arith.mulf %149, %150 : vector<512x8xf32>
    %152 = vector.broadcast %131 : vector<1x8xf32> to vector<512x8xf32>
    %153 = arith.addf %151, %152 : vector<512x8xf32>
    %c0_82 = arith.constant 0 : index
    %c1_83 = arith.constant 1 : index
    %c1_84 = arith.constant 1 : index
    %c0_85 = arith.constant 0 : index
    %154 = vector.load %arg0[%c0_82, %c1_83, %c1_84, %c0_85] : memref<2x18x18x8xf32, #tpu.memory_space<vmem>>, vector<2x16x16x8xf32>
    %155 = vector.shape_cast %154 : vector<2x16x16x8xf32> to vector<512x8xf32>
    %156 = arith.addf %153, %155 : vector<512x8xf32>
    %c0_86 = arith.constant 0 : index
    %c0_87 = arith.constant 0 : index
    %157 = vector.load %arg11[%c0_86, %c0_87] : memref<512x8xf32, #tpu.memory_space<vmem>>, vector<512x8xf32>
    tpu.vector_store %arg11[%c0_86, %c0_87], %156 {strides = array<i32>} : memref<512x8xf32, #tpu.memory_space<vmem>>, vector<512x8xf32>,
    return
  }
}

</mosaic_0001>

<llo_original>
// kernel: inverted_residual_forward.1
$region0: #{inverted_residual_forward.1}
  #allocation0 [shape = 'u32[]', space=smem, size = 0x4, offset = 0x4, fixed_abs, tag = 'smem constant byte address 0x4 - core index']
  #allocation1 [shape = 'u32[72,128]{1,0:T(1,128)}', space=vmem, size = 0x9000, scoped, tag = 'internal scratch']
  #allocation2 [shape = 'f32[2,18,18,48]{3,2,1,0:T(8,128)}', space=vmem, size = 0x6c000, scoped, tag = 'scratch operand']
  %s0 = inlined_call_operand.vmem [shape: f32[2,18,18,8], index: 0, kind: input, shape index: {}]
  %s1 = inlined_call_operand.vmem [shape: f32[648,1], index: 1, kind: input, shape index: {}]
  %s2 = inlined_call_operand.vmem [shape: bf16[8,48], index: 2, kind: input, shape index: {}]
  %s3 = inlined_call_operand.vmem [shape: f32[1,48], index: 3, kind: input, shape index: {}]
  %s4 = inlined_call_operand.vmem [shape: f32[1,48], index: 4, kind: input, shape index: {}]
  %s5 = inlined_call_operand.vmem [shape: f32[9,48], index: 5, kind: input, shape index: {}]
  %s6 = inlined_call_operand.vmem [shape: f32[1,48], index: 6, kind: input, shape index: {}]
  %s7 = inlined_call_operand.vmem [shape: f32[1,48], index: 7, kind: input, shape index: {}]
  %s8 = inlined_call_operand.vmem [shape: bf16[48,8], index: 8, kind: input, shape index: {}]
  %s9 = inlined_call_operand.vmem [shape: f32[1,8], index: 9, kind: input, shape index: {}]
  %s10 = inlined_call_operand.vmem [shape: f32[1,8], index: 10, kind: input, shape index: {}]
  %s11 = inlined_call_operand.vmem [shape: f32[512,8], index: 11, kind: output, shape index: {}]
  %s12 = sld [smem:[#allocation0]]
  $region54: #{inverted_residual_forward.1} parent=0
    _
  %s14 = ssub.s32 1, %s12
  %s15 = scalar_select 0, %s14, %s12
  // Predicated region
  $region2: #{inverted_residual_forward.1} parent=0 // pred_check
    _
  $region3: #{inverted_residual_forward.1} parent=0 // pred_check_branch
    %17 = sbr.rel (0) target = $region5
  $region4: #{inverted_residual_forward.1} parent=0 // pred_region
    _
  $region5: #{inverted_residual_forward.1} parent=0 // pred_fallthru
    _
  // Predicated region
  $region6: #{inverted_residual_forward.1} parent=0 // pred_check
    _
  $region7: #{inverted_residual_forward.1} parent=0 // pred_check_branch
    %19 = sbr.rel (0) target = $region9
  $region8: #{inverted_residual_forward.1} parent=0 // pred_region
    _
  $region9: #{inverted_residual_forward.1} parent=0 // pred_fallthru
    _
  // Predicated region
  $region10: #{inverted_residual_forward.1} parent=0 // pred_check
    _
  $region11: #{inverted_residual_forward.1} parent=0 // pred_check_branch
    %21 = sbr.rel (0) target = $region13
  $region12: #{inverted_residual_forward.1} parent=0 // pred_region
    _
  $region13: #{inverted_residual_forward.1} parent=0 // pred_fallthru
    _
  // Predicated region
  $region14: #{inverted_residual_forward.1} parent=0 // pred_check
    _
  $region15: #{inverted_residual_forward.1} parent=0 // pred_check_branch
    %23 = sbr.rel (0) target = $region17
  $region16: #{inverted_residual_forward.1} parent=0 // pred_region
    _
  $region17: #{inverted_residual_forward.1} parent=0 // pred_fallthru
    _
  // Predicated region
  $region18: #{inverted_residual_forward.1} parent=0 // pred_check
    _
  $region19: #{inverted_residual_forward.1} parent=0 // pred_check_branch
    %25 = sbr.rel (0) target = $region21
  $region20: #{inverted_residual_forward.1} parent=0 // pred_region
    _
  $region21: #{inverted_residual_forward.1} parent=0 // pred_fallthru
    _
  // Predicated region
  $region22: #{inverted_residual_forward.1} parent=0 // pred_check
    _
  $region23: #{inverted_residual_forward.1} parent=0 // pred_check_branch
    %27 = sbr.rel (0) target = $region25
  $region24: #{inverted_residual_forward.1} parent=0 // pred_region
    _
  $region25: #{inverted_residual_forward.1} parent=0 // pred_fallthru
    _
  // Predicated region
  $region26: #{inverted_residual_forward.1} parent=0 // pred_check
    _
  $region27: #{inverted_residual_forward.1} parent=0 // pred_check_branch
    %29 = sbr.rel (0) target = $region29
  $region28: #{inverted_residual_forward.1} parent=0 // pred_region
    _
  $region29: #{inverted_residual_forward.1} parent=0 // pred_fallthru
    _
  // Predicated region
  $region30: #{inverted_residual_forward.1} parent=0 // pred_check
    _
  $region31: #{inverted_residual_forward.1} parent=0 // pred_check_branch
    %31 = sbr.rel (0) target = $region33
  $region32: #{inverted_residual_forward.1} parent=0 // pred_region
    _
  $region33: #{inverted_residual_forward.1} parent=0 // pred_fallthru
    _
  // Predicated region
  $region34: #{inverted_residual_forward.1} parent=0 // pred_check
    _
  $region35: #{inverted_residual_forward.1} parent=0 // pred_check_branch
    %33 = sbr.rel (0) target = $region37
  $region36: #{inverted_residual_forward.1} parent=0 // pred_region
    _
  $region37: #{inverted_residual_forward.1} parent=0 // pred_fallthru
    _
  // Predicated region
  $region38: #{inverted_residual_forward.1} parent=0 // pred_check
    _
  $region39: #{inverted_residual_forward.1} parent=0 // pred_check_branch
    %35 = sbr.rel (0) target = $region41
  $region40: #{inverted_residual_forward.1} parent=0 // pred_region
    _
  $region41: #{inverted_residual_forward.1} parent=0 // pred_fallthru
    _
  // Predicated region
  $region42: #{inverted_residual_forward.1} parent=0 // pred_check
    _
  $region43: #{inverted_residual_forward.1} parent=0 // pred_check_branch
    %37 = sbr.rel (0) target = $region45
  $region44: #{inverted_residual_forward.1} parent=0 // pred_region
    _
  $region45: #{inverted_residual_forward.1} parent=0 // pred_fallthru
    _
  %v39 = vld [vmem:[%s0] sm:$0xff]
  %v40 = vld [vmem:[%s0 + $0x8] sm:$0xff]
  %v41 = vld [vmem:[%s0 + $0x10] sm:$0x3]
  %v42 = vld [vmem:[%s0 + $0x18] sm:$0xff]
  %v43 = vld [vmem:[%s0 + $0x20] sm:$0xff]
  %v44 = vld [vmem:[%s0 + $0x28] sm:$0x3]
  %v45 = vld [vmem:[%s0 + $0x30] sm:$0xff]
  %v46 = vld [vmem:[%s0 + $0x38] sm:$0xff]
  %v47 = vld [vmem:[%s0 + $0x40] sm:$0x3]
  %v48 = vld [vmem:[%s0 + $0x48] sm:$0xff]
  %v49 = vld [vmem:[%s0 + $0x50] sm:$0xff]
  %v50 = vld [vmem:[%s0 + $0x58] sm:$0x3]
  %v51 = vld [vmem:[%s0 + $0x60] sm:$0xff]
  %v52 = vld [vmem:[%s0 + $0x68] sm:$0xff]
  %v53 = vld [vmem:[%s0 + $0x70] sm:$0x3]
  %v54 = vld [vmem:[%s0 + $0x78] sm:$0xff]
  %v55 = vld [vmem:[%s0 + $0x80] sm:$0xff]
  %v56 = vld [vmem:[%s0 + $0x88] sm:$0x3]
  %v57 = vld [vmem:[%s0 + $0x90] sm:$0xff]
  %v58 = vld [vmem:[%s0 + $0x98] sm:$0xff]
  %v59 = vld [vmem:[%s0 + $0xa0] sm:$0x3]
  %v60 = vld [vmem:[%s0 + $0xa8] sm:$0xff]
  %v61 = vld [vmem:[%s0 + $0xb0] sm:$0xff]
  %v62 = vld [vmem:[%s0 + $0xb8] sm:$0x3]
  %v63 = vld [vmem:[%s0 + $0xc0] sm:$0xff]
  %v64 = vld [vmem:[%s0 + $0xc8] sm:$0xff]
  %v65 = vld [vmem:[%s0 + $0xd0] sm:$0x3]
  %v66 = vld [vmem:[%s0 + $0xd8] sm:$0xff]
  %v67 = vld [vmem:[%s0 + $0xe0] sm:$0xff]
  %v68 = vld [vmem:[%s0 + $0xe8] sm:$0x3]
  %v69 = vld [vmem:[%s0 + $0xf0] sm:$0xff]
  %v70 = vld [vmem:[%s0 + $0xf8] sm:$0xff]
  %v71 = vld [vmem:[%s0 + $0x100] sm:$0x3]
  %v72 = vld [vmem:[%s0 + $0x108] sm:$0xff]
  %v73 = vld [vmem:[%s0 + $0x110] sm:$0xff]
  %v74 = vld [vmem:[%s0 + $0x118] sm:$0x3]
  %v75 = vld [vmem:[%s0 + $0x120] sm:$0xff]
  %v76 = vld [vmem:[%s0 + $0x128] sm:$0xff]
  %v77 = vld [vmem:[%s0 + $0x130] sm:$0x3]
  %v78 = vld [vmem:[%s0 + $0x138] sm:$0xff]
  %v79 = vld [vmem:[%s0 + $0x140] sm:$0xff]
  %v80 = vld [vmem:[%s0 + $0x148] sm:$0x3]
  %v81 = vld [vmem:[%s0 + $0x150] sm:$0xff]
  %v82 = vld [vmem:[%s0 + $0x158] sm:$0xff]
  %v83 = vld [vmem:[%s0 + $0x160] sm:$0x3]
  %v84 = vld [vmem:[%s0 + $0x168] sm:$0xff]
  %v85 = vld [vmem:[%s0 + $0x170] sm:$0xff]
  %v86 = vld [vmem:[%s0 + $0x178] sm:$0x3]
  %v87 = vld [vmem:[%s0 + $0x180] sm:$0xff]
  %v88 = vld [vmem:[%s0 + $0x188] sm:$0xff]
  %v89 = vld [vmem:[%s0 + $0x190] sm:$0x3]
  %v90 = vld [vmem:[%s0 + $0x198] sm:$0xff]
  %v91 = vld [vmem:[%s0 + $0x1a0] sm:$0xff]
  %v92 = vld [vmem:[%s0 + $0x1a8] sm:$0x3]
  %v93 = vld [vmem:[%s0 + $0x1b0] sm:$0xff]
  %v94 = vld [vmem:[%s0 + $0x1b8] sm:$0xff]
  %v95 = vld [vmem:[%s0 + $0x1c0] sm:$0x3]
  %v96 = vld [vmem:[%s0 + $0x1c8] sm:$0xff]
  %v97 = vld [vmem:[%s0 + $0x1d0] sm:$0xff]
  %v98 = vld [vmem:[%s0 + $0x1d8] sm:$0x3]
  %v99 = vld [vmem:[%s0 + $0x1e0] sm:$0xff]
  %v100 = vld [vmem:[%s0 + $0x1e8] sm:$0xff]
  %v101 = vld [vmem:[%s0 + $0x1f0] sm:$0x3]
  %v102 = vld [vmem:[%s0 + $0x1f8] sm:$0xff]
  %v103 = vld [vmem:[%s0 + $0x200] sm:$0xff]
  %v104 = vld [vmem:[%s0 + $0x208] sm:$0x3]
  %v105 = vld [vmem:[%s0 + $0x210] sm:$0xff]
  %v106 = vld [vmem:[%s0 + $0x218] sm:$0xff]
  %v107 = vld [vmem:[%s0 + $0x220] sm:$0x3]
  %v108 = vld [vmem:[%s0 + $0x228] sm:$0xff]
  %v109 = vld [vmem:[%s0 + $0x230] sm:$0xff]
  %v110 = vld [vmem:[%s0 + $0x238] sm:$0x3]
  %v111 = vld [vmem:[%s0 + $0x240] sm:$0xff]
  %v112 = vld [vmem:[%s0 + $0x248] sm:$0xff]
  %v113 = vld [vmem:[%s0 + $0x250] sm:$0x3]
  %v114 = vld [vmem:[%s0 + $0x258] sm:$0xff]
  %v115 = vld [vmem:[%s0 + $0x260] sm:$0xff]
  %v116 = vld [vmem:[%s0 + $0x268] sm:$0x3]
  %v117 = vld [vmem:[%s0 + $0x270] sm:$0xff]
  %v118 = vld [vmem:[%s0 + $0x278] sm:$0xff]
  %v119 = vld [vmem:[%s0 + $0x280] sm:$0x3]
  %v120 = vld [vmem:[%s0 + $0x288] sm:$0xff]
  %v121 = vld [vmem:[%s0 + $0x290] sm:$0xff]
  %v122 = vld [vmem:[%s0 + $0x298] sm:$0x3]
  %v123 = vld [vmem:[%s0 + $0x2a0] sm:$0xff]
  %v124 = vld [vmem:[%s0 + $0x2a8] sm:$0xff]
  %v125 = vld [vmem:[%s0 + $0x2b0] sm:$0x3]
  %v126 = vld [vmem:[%s0 + $0x2b8] sm:$0xff]
  %v127 = vld [vmem:[%s0 + $0x2c0] sm:$0xff]
  %v128 = vld [vmem:[%s0 + $0x2c8] sm:$0x3]
  %v129 = vld [vmem:[%s0 + $0x2d0] sm:$0xff]
  %v130 = vld [vmem:[%s0 + $0x2d8] sm:$0xff]
  %v131 = vld [vmem:[%s0 + $0x2e0] sm:$0x3]
  %v132 = vld [vmem:[%s0 + $0x2e8] sm:$0xff]
  %v133 = vld [vmem:[%s0 + $0x2f0] sm:$0xff]
  %v134 = vld [vmem:[%s0 + $0x2f8] sm:$0x3]
  %v135 = vld [vmem:[%s0 + $0x300] sm:$0xff]
  %v136 = vld [vmem:[%s0 + $0x308] sm:$0xff]
  %v137 = vld [vmem:[%s0 + $0x310] sm:$0x3]
  %v138 = vld [vmem:[%s0 + $0x318] sm:$0xff]
  %v139 = vld [vmem:[%s0 + $0x320] sm:$0xff]
  %v140 = vld [vmem:[%s0 + $0x328] sm:$0x3]
  %v141 = vld [vmem:[%s0 + $0x330] sm:$0xff]
  %v142 = vld [vmem:[%s0 + $0x338] sm:$0xff]
  %v143 = vld [vmem:[%s0 + $0x340] sm:$0x3]
  %v144 = vld [vmem:[%s0 + $0x348] sm:$0xff]
  %v145 = vld [vmem:[%s0 + $0x350] sm:$0xff]
  %v146 = vld [vmem:[%s0 + $0x358] sm:$0x3]
  %v255 = vrot.slane %v39, 2
  %v256 = vrot.slane %v39, 4
  %v257 = vrot.slane %v39, 6
  %v258 = vrot.slane %v40, 2
  %v259 = vrot.slane %v40, 4
  %v260 = vrot.slane %v40, 6
  %v261 = vrot.slane %v42, 2
  %v262 = vrot.slane %v42, 4
  %v263 = vrot.slane %v42, 6
  %v264 = vrot.slane %v43, 2
  %v265 = vrot.slane %v43, 4
  %v266 = vrot.slane %v43, 6
  %v267 = vrot.slane %v45, 2
  %v268 = vrot.slane %v45, 4
  %v269 = vrot.slane %v45, 6
  %v270 = vrot.slane %v46, 2
  %v271 = vrot.slane %v46, 4
  %v272 = vrot.slane %v46, 6
  %v273 = vrot.slane %v48, 2
  %v274 = vrot.slane %v48, 4
  %v275 = vrot.slane %v48, 6
  %v276 = vrot.slane %v49, 2
  %v277 = vrot.slane %v49, 4
  %v278 = vrot.slane %v49, 6
  %v279 = vrot.slane %v51, 2
  %v280 = vrot.slane %v51, 4
  %v281 = vrot.slane %v51, 6
  %v282 = vrot.slane %v52, 2
  %v283 = vrot.slane %v52, 4
  %v284 = vrot.slane %v52, 6
  %v285 = vrot.slane %v54, 2
  %v286 = vrot.slane %v54, 4
  %v287 = vrot.slane %v54, 6
  %v288 = vrot.slane %v55, 2
  %v289 = vrot.slane %v55, 4
  %v290 = vrot.slane %v55, 6
  %v291 = vrot.slane %v57, 2
  %v292 = vrot.slane %v57, 4
  %v293 = vrot.slane %v57, 6
  %v294 = vrot.slane %v58, 2
  %v295 = vrot.slane %v58, 4
  %v296 = vrot.slane %v58, 6
  %v297 = vrot.slane %v60, 2
  %v298 = vrot.slane %v60, 4
  %v299 = vrot.slane %v60, 6
  %v300 = vrot.slane %v61, 2
  %v301 = vrot.slane %v61, 4
  %v302 = vrot.slane %v61, 6
  %v303 = vrot.slane %v63, 2
  %v304 = vrot.slane %v63, 4
  %v305 = vrot.slane %v63, 6
  %v306 = vrot.slane %v64, 2
  %v307 = vrot.slane %v64, 4
  %v308 = vrot.slane %v64, 6
  %v309 = vrot.slane %v66, 2
  %v310 = vrot.slane %v66, 4
  %v311 = vrot.slane %v66, 6
  %v312 = vrot.slane %v67, 2
  %v313 = vrot.slane %v67, 4
  %v314 = vrot.slane %v67, 6
  %v315 = vrot.slane %v69, 2
  %v316 = vrot.slane %v69, 4
  %v317 = vrot.slane %v69, 6
  %v318 = vrot.slane %v70, 2
  %v319 = vrot.slane %v70, 4
  %v320 = vrot.slane %v70, 6
  %v321 = vrot.slane %v72, 2
  %v322 = vrot.slane %v72, 4
  %v323 = vrot.slane %v72, 6
  %v324 = vrot.slane %v73, 2
  %v325 = vrot.slane %v73, 4
  %v326 = vrot.slane %v73, 6
  %v327 = vrot.slane %v75, 2
  %v328 = vrot.slane %v75, 4
  %v329 = vrot.slane %v75, 6
  %v330 = vrot.slane %v76, 2
  %v331 = vrot.slane %v76, 4
  %v332 = vrot.slane %v76, 6
  %v333 = vrot.slane %v78, 2
  %v334 = vrot.slane %v78, 4
  %v335 = vrot.slane %v78, 6
  %v336 = vrot.slane %v79, 2
  %v337 = vrot.slane %v79, 4
  %v338 = vrot.slane %v79, 6
  %v339 = vrot.slane %v81, 2
  %v340 = vrot.slane %v81, 4
  %v341 = vrot.slane %v81, 6
  %v342 = vrot.slane %v82, 2
  %v343 = vrot.slane %v82, 4
  %v344 = vrot.slane %v82, 6
  %v345 = vrot.slane %v84, 2
  %v346 = vrot.slane %v84, 4
  %v347 = vrot.slane %v84, 6
  %v348 = vrot.slane %v85, 2
  %v349 = vrot.slane %v85, 4
  %v350 = vrot.slane %v85, 6
  %v351 = vrot.slane %v87, 2
  %v352 = vrot.slane %v87, 4
  %v353 = vrot.slane %v87, 6
  %v354 = vrot.slane %v88, 2
  %v355 = vrot.slane %v88, 4
  %v356 = vrot.slane %v88, 6
  %v357 = vrot.slane %v90, 2
  %v358 = vrot.slane %v90, 4
  %v359 = vrot.slane %v90, 6
  %v360 = vrot.slane %v91, 2
  %v361 = vrot.slane %v91, 4
  %v362 = vrot.slane %v91, 6
  %v363 = vrot.slane %v93, 2
  %v364 = vrot.slane %v93, 4
  %v365 = vrot.slane %v93, 6
  %v366 = vrot.slane %v94, 2
  %v367 = vrot.slane %v94, 4
  %v368 = vrot.slane %v94, 6
  %v369 = vrot.slane %v96, 2
  %v370 = vrot.slane %v96, 4
  %v371 = vrot.slane %v96, 6
  %v372 = vrot.slane %v97, 2
  %v373 = vrot.slane %v97, 4
  %v374 = vrot.slane %v97, 6
  %v375 = vrot.slane %v99, 2
  %v376 = vrot.slane %v99, 4
  %v377 = vrot.slane %v99, 6
  %v378 = vrot.slane %v100, 2
  %v379 = vrot.slane %v100, 4
  %v380 = vrot.slane %v100, 6
  %v381 = vrot.slane %v102, 2
  %v382 = vrot.slane %v102, 4
  %v383 = vrot.slane %v102, 6
  %v384 = vrot.slane %v103, 2
  %v385 = vrot.slane %v103, 4
  %v386 = vrot.slane %v103, 6
  %v387 = vrot.slane %v105, 2
  %v388 = vrot.slane %v105, 4
  %v389 = vrot.slane %v105, 6
  %v390 = vrot.slane %v106, 2
  %v391 = vrot.slane %v106, 4
  %v392 = vrot.slane %v106, 6
  %v393 = vrot.slane %v108, 2
  %v394 = vrot.slane %v108, 4
  %v395 = vrot.slane %v108, 6
  %v396 = vrot.slane %v109, 2
  %v397 = vrot.slane %v109, 4
  %v398 = vrot.slane %v109, 6
  %v399 = vrot.slane %v111, 2
  %v400 = vrot.slane %v111, 4
  %v401 = vrot.slane %v111, 6
  %v402 = vrot.slane %v112, 2
  %v403 = vrot.slane %v112, 4
  %v404 = vrot.slane %v112, 6
  %v405 = vrot.slane %v114, 2
  %v406 = vrot.slane %v114, 4
  %v407 = vrot.slane %v114, 6
  %v408 = vrot.slane %v115, 2
  %v409 = vrot.slane %v115, 4
  %v410 = vrot.slane %v115, 6
  %v411 = vrot.slane %v117, 2
  %v412 = vrot.slane %v117, 4
  %v413 = vrot.slane %v117, 6
  %v414 = vrot.slane %v118, 2
  %v415 = vrot.slane %v118, 4
  %v416 = vrot.slane %v118, 6
  %v417 = vrot.slane %v120, 2
  %v418 = vrot.slane %v120, 4
  %v419 = vrot.slane %v120, 6
  %v420 = vrot.slane %v121, 2
  %v421 = vrot.slane %v121, 4
  %v422 = vrot.slane %v121, 6
  %v423 = vrot.slane %v123, 2
  %v424 = vrot.slane %v123, 4
  %v425 = vrot.slane %v123, 6
  %v426 = vrot.slane %v124, 2
  %v427 = vrot.slane %v124, 4
  %v428 = vrot.slane %v124, 6
  %v429 = vrot.slane %v126, 2
  %v430 = vrot.slane %v126, 4
  %v431 = vrot.slane %v126, 6
  %v432 = vrot.slane %v127, 2
  %v433 = vrot.slane %v127, 4
  %v434 = vrot.slane %v127, 6
  %v435 = vrot.slane %v129, 2
  %v436 = vrot.slane %v129, 4
  %v437 = vrot.slane %v129, 6
  %v438 = vrot.slane %v130, 2
  %v439 = vrot.slane %v130, 4
  %v440 = vrot.slane %v130, 6
  %v441 = vrot.slane %v132, 2
  %v442 = vrot.slane %v132, 4
  %v443 = vrot.slane %v132, 6
  %v444 = vrot.slane %v133, 2
  %v445 = vrot.slane %v133, 4
  %v446 = vrot.slane %v133, 6
  %v447 = vrot.slane %v135, 2
  %v448 = vrot.slane %v135, 4
  %v449 = vrot.slane %v135, 6
  %v450 = vrot.slane %v136, 2
  %v451 = vrot.slane %v136, 4
  %v452 = vrot.slane %v136, 6
  %v453 = vrot.slane %v138, 2
  %v454 = vrot.slane %v138, 4
  %v455 = vrot.slane %v138, 6
  %v456 = vrot.slane %v139, 2
  %v457 = vrot.slane %v139, 4
  %v458 = vrot.slane %v139, 6
  %v459 = vrot.slane %v141, 2
  %v460 = vrot.slane %v141, 4
  %v461 = vrot.slane %v141, 6
  %v462 = vrot.slane %v142, 2
  %v463 = vrot.slane %v142, 4
  %v464 = vrot.slane %v142, 6
  %v465 = vrot.slane %v144, 2
  %v466 = vrot.slane %v144, 4
  %v467 = vrot.slane %v144, 6
  %v468 = vrot.slane %v145, 2
  %v469 = vrot.slane %v145, 4
  %v470 = vrot.slane %v145, 6
  %471 = vst [vmem:[#allocation1] ss:$4 sm:$0xff] %v39
  %s472 = scalar_lea.vmem [#allocation1], 1
  %473 = vst [vmem:[%s472] ss:$4 sm:$0xff] %v255
  %s474 = scalar_lea.vmem [#allocation1], 2
  %475 = vst [vmem:[%s474] ss:$4 sm:$0xff] %v256
  %s476 = scalar_lea.vmem [#allocation1], 3
  %477 = vst [vmem:[%s476] ss:$4 sm:$0xff] %v257
  %s478 = scalar_lea.vmem [#allocation1], 32
  %479 = vst [vmem:[%s478] ss:$4 sm:$0xff] %v40
  %s480 = scalar_lea.vmem [#allocation1], 33
  %481 = vst [vmem:[%s480] ss:$4 sm:$0xff] %v258
  %s482 = scalar_lea.vmem [#allocation1], 34
  %483 = vst [vmem:[%s482] ss:$4 sm:$0xff] %v259
  %s484 = scalar_lea.vmem [#allocation1], 35
  %485 = vst [vmem:[%s484] ss:$4 sm:$0xff] %v260
  %v486 = vld.sshfl [vmem:[#allocation1] sm:$0xff pattern:$0x73625140]
  %v487 = vld.sshfl [vmem:[#allocation1 + $0x20] sm:$0xff pattern:$0x73625140]
  %488 = vst [vmem:[#allocation1] ss:$4 sm:$0xff] %v41
  %489 = vst [vmem:[%s472] ss:$4 sm:$0xff] %v42
  %490 = vst [vmem:[%s474] ss:$4 sm:$0xff] %v261
  %491 = vst [vmem:[%s476] ss:$4 sm:$0xff] %v262
  %492 = vst [vmem:[%s478] ss:$4 sm:$0xff] %v263
  %493 = vst [vmem:[%s480] ss:$4 sm:$0xff] %v43
  %494 = vst [vmem:[%s482] ss:$4 sm:$0xff] %v264
  %495 = vst [vmem:[%s484] ss:$4 sm:$0xff] %v265
  %v496 = vld.sshfl [vmem:[#allocation1] sm:$0xff pattern:$0x73625140]
  %v497 = vld.sshfl [vmem:[#allocation1 + $0x20] sm:$0xff pattern:$0x73625140]
  %498 = vst [vmem:[#allocation1] ss:$4 sm:$0xff] %v266
  %499 = vst [vmem:[%s472] ss:$4 sm:$0xff] %v44
  %500 = vst [vmem:[%s474] ss:$4 sm:$0xff] %v45
  %501 = vst [vmem:[%s476] ss:$4 sm:$0xff] %v267
  %502 = vst [vmem:[%s478] ss:$4 sm:$0xff] %v268
  %503 = vst [vmem:[%s480] ss:$4 sm:$0xff] %v269
  %504 = vst [vmem:[%s482] ss:$4 sm:$0xff] %v46
  %505 = vst [vmem:[%s484] ss:$4 sm:$0xff] %v270
  %v506 = vld.sshfl [vmem:[#allocation1] sm:$0xff pattern:$0x73625140]
  %v507 = vld.sshfl [vmem:[#allocation1 + $0x20] sm:$0xff pattern:$0x73625140]
  %508 = vst [vmem:[#allocation1] ss:$4 sm:$0xff] %v271
  %509 = vst [vmem:[%s472] ss:$4 sm:$0xff] %v272
  %510 = vst [vmem:[%s474] ss:$4 sm:$0xff] %v47
  %511 = vst [vmem:[%s476] ss:$4 sm:$0xff] %v48
  %512 = vst [vmem:[%s478] ss:$4 sm:$0xff] %v273
  %513 = vst [vmem:[%s480] ss:$4 sm:$0xff] %v274
  %514 = vst [vmem:[%s482] ss:$4 sm:$0xff] %v275
  %515 = vst [vmem:[%s484] ss:$4 sm:$0xff] %v49
  %v516 = vld.sshfl [vmem:[#allocation1] sm:$0xff pattern:$0x73625140]
  %v517 = vld.sshfl [vmem:[#allocation1 + $0x20] sm:$0xff pattern:$0x73625140]
  %518 = vst [vmem:[#allocation1] ss:$4 sm:$0xff] %v276
  %519 = vst [vmem:[%s472] ss:$4 sm:$0xff] %v277
  %520 = vst [vmem:[%s474] ss:$4 sm:$0xff] %v278
  %521 = vst [vmem:[%s476] ss:$4 sm:$0xff] %v50
  %522 = vst [vmem:[%s478] ss:$4 sm:$0xff] %v51
  %523 = vst [vmem:[%s480] ss:$4 sm:$0xff] %v279
  %524 = vst [vmem:[%s482] ss:$4 sm:$0xff] %v280
  %525 = vst [vmem:[%s484] ss:$4 sm:$0xff] %v281
  %v526 = vld.sshfl [vmem:[#allocation1] sm:$0xff pattern:$0x73625140]
  %v527 = vld.sshfl [vmem:[#allocation1 + $0x20] sm:$0xff pattern:$0x73625140]
  %528 = vst [vmem:[#allocation1] ss:$4 sm:$0xff] %v52
  %529 = vst [vmem:[%s472] ss:$4 sm:$0xff] %v282
  %530 = vst [vmem:[%s474] ss:$4 sm:$0xff] %v283
  %531 = vst [vmem:[%s476] ss:$4 sm:$0xff] %v284
  %532 = vst [vmem:[%s478] ss:$4 sm:$0xff] %v53
  %533 = vst [vmem:[%s480] ss:$4 sm:$0xff] %v54
  %534 = vst [vmem:[%s482] ss:$4 sm:$0xff] %v285
  %535 = vst [vmem:[%s484] ss:$4 sm:$0xff] %v286
  %v536 = vld.sshfl [vmem:[#allocation1] sm:$0xff pattern:$0x73625140]
  %v537 = vld.sshfl [vmem:[#allocation1 + $0x20] sm:$0xff pattern:$0x73625140]
  %538 = vst [vmem:[#allocation1] ss:$4 sm:$0xff] %v287
  %539 = vst [vmem:[%s472] ss:$4 sm:$0xff] %v55
  %540 = vst [vmem:[%s474] ss:$4 sm:$0xff] %v288
  %541 = vst [vmem:[%s476] ss:$4 sm:$0xff] %v289
  %542 = vst [vmem:[%s478] ss:$4 sm:$0xff] %v290
  %543 = vst [vmem:[%s480] ss:$4 sm:$0xff] %v56
  %544 = vst [vmem:[%s482] ss:$4 sm:$0xff] %v57
  %545 = vst [vmem:[%s484] ss:$4 sm:$0xff] %v291
  %v546 = vld.sshfl [vmem:[#allocation1] sm:$0xff pattern:$0x73625140]
  %v547 = vld.sshfl [vmem:[#allocation1 + $0x20] sm:$0xff pattern:$0x73625140]
  %548 = vst [vmem:[#allocation1] ss:$4 sm:$0xff] %v292
  %549 = vst [vmem:[%s472] ss:$4 sm:$0xff] %v293
  %550 = vst [vmem:[%s474] ss:$4 sm:$0xff] %v58
  %551 = vst [vmem:[%s476] ss:$4 sm:$0xff] %v294
  %552 = vst [vmem:[%s478] ss:$4 sm:$0xff] %v295
  %553 = vst [vmem:[%s480] ss:$4 sm:$0xff] %v296
  %554 = vst [vmem:[%s482] ss:$4 sm:$0xff] %v59
  %555 = vst [vmem:[%s484] ss:$4 sm:$0xff] %v60
  %v556 = vld.sshfl [vmem:[#allocation1] sm:$0xff pattern:$0x73625140]
  %v557 = vld.sshfl [vmem:[#allocation1 + $0x20] sm:$0xff pattern:$0x73625140]
  %558 = vst [vmem:[#allocation1] ss:$4 sm:$0xff] %v297
  %559 = vst [vmem:[%s472] ss:$4 sm:$0xff] %v298
  %560 = vst [vmem:[%s474] ss:$4 sm:$0xff] %v299
  %561 = vst [vmem:[%s476] ss:$4 sm:$0xff] %v61
  %562 = vst [vmem:[%s478] ss:$4 sm:$0xff] %v300
  %563 = vst [vmem:[%s480] ss:$4 sm:$0xff] %v301
  %564 = vst [vmem:[%s482] ss:$4 sm:$0xff] %v302
  %565 = vst [vmem:[%s484] ss:$4 sm:$0xff] %v62
  %v566 = vld.sshfl [vmem:[#allocation1] sm:$0xff pattern:$0x73625140]
  %v567 = vld.sshfl [vmem:[#allocation1 + $0x20] sm:$0xff pattern:$0x73625140]
  %568 = vst [vmem:[#allocation1] ss:$4 sm:$0xff] %v63
  %569 = vst [vmem:[%s472] ss:$4 sm:$0xff] %v303
  %570 = vst [vmem:[%s474] ss:$4 sm:$0xff] %v304
  %571 = vst [vmem:[%s476] ss:$4 sm:$0xff] %v305
  %572 = vst [vmem:[%s478] ss:$4 sm:$0xff] %v64
  %573 = vst [vmem:[%s480] ss:$4 sm:$0xff] %v306
  %574 = vst [vmem:[%s482] ss:$4 sm:$0xff] %v307
  %575 = vst [vmem:[%s484] ss:$4 sm:$0xff] %v308
  %v576 = vld.sshfl [vmem:[#allocation1] sm:$0xff pattern:$0x73625140]
  %v577 = vld.sshfl [vmem:[#allocation1 + $0x20] sm:$0xff pattern:$0x73625140]
  %578 = vst [vmem:[#allocation1] ss:$4 sm:$0xff] %v65
  %579 = vst [vmem:[%s472] ss:$4 sm:$0xff] %v66
  %580 = vst [vmem:[%s474] ss:$4 sm:$0xff] %v309
  %581 = vst [vmem:[%s476] ss:$4 sm:$0xff] %v310
  %582 = vst [vmem:[%s478] ss:$4 sm:$0xff] %v311
  %583 = vst [vmem:[%s480] ss:$4 sm:$0xff] %v67
  %584 = vst [vmem:[%s482] ss:$4 sm:$0xff] %v312
  %585 = vst [vmem:[%s484] ss:$4 sm:$0xff] %v313
  %v586 = vld.sshfl [vmem:[#allocation1] sm:$0xff pattern:$0x73625140]
  %v587 = vld.sshfl [vmem:[#allocation1 + $0x20] sm:$0xff pattern:$0x73625140]
  %588 = vst [vmem:[#allocation1] ss:$4 sm:$0xff] %v314
  %589 = vst [vmem:[%s472] ss:$4 sm:$0xff] %v68
  %590 = vst [vmem:[%s474] ss:$4 sm:$0xff] %v69
  %591 = vst [vmem:[%s476] ss:$4 sm:$0xff] %v315
  %592 = vst [vmem:[%s478] ss:$4 sm:$0xff] %v316
  %593 = vst [vmem:[%s480] ss:$4 sm:$0xff] %v317
  %594 = vst [vmem:[%s482] ss:$4 sm:$0xff] %v70
  %595 = vst [vmem:[%s484] ss:$4 sm:$0xff] %v318
  %v596 = vld.sshfl [vmem:[#allocation1] sm:$0xff pattern:$0x73625140]
  %v597 = vld.sshfl [vmem:[#allocation1 + $0x20] sm:$0xff pattern:$0x73625140]
  %598 = vst [vmem:[#allocation1] ss:$4 sm:$0xff] %v319
  %599 = vst [vmem:[%s472] ss:$4 sm:$0xff] %v320
  %600 = vst [vmem:[%s474] ss:$4 sm:$0xff] %v71
  %601 = vst [vmem:[%s476] ss:$4 sm:$0xff] %v72
  %602 = vst [vmem:[%s478] ss:$4 sm:$0xff] %v321
  %603 = vst [vmem:[%s480] ss:$4 sm:$0xff] %v322
  %604 = vst [vmem:[%s482] ss:$4 sm:$0xff] %v323
  %605 = vst [vmem:[%s484] ss:$4 sm:$0xff] %v73
  %v606 = vld.sshfl [vmem:[#allocation1] sm:$0xff pattern:$0x73625140]
  %v607 = vld.sshfl [vmem:[#allocation1 + $0x20] sm:$0xff pattern:$0x73625140]
  %608 = vst [vmem:[#allocation1] ss:$4 sm:$0xff] %v324
  %609 = vst [vmem:[%s472] ss:$4 sm:$0xff] %v325
  %610 = vst [vmem:[%s474] ss:$4 sm:$0xff] %v326
  %611 = vst [vmem:[%s476] ss:$4 sm:$0xff] %v74
  %612 = vst [vmem:[%s478] ss:$4 sm:$0xff] %v75
  %613 = vst [vmem:[%s480] ss:$4 sm:$0xff] %v327
  %614 = vst [vmem:[%s482] ss:$4 sm:$0xff] %v328
  %615 = vst [vmem:[%s484] ss:$4 sm:$0xff] %v329
  %v616 = vld.sshfl [vmem:[#allocation1] sm:$0xff pattern:$0x73625140]
  %v617 = vld.sshfl [vmem:[#allocation1 + $0x20] sm:$0xff pattern:$0x73625140]
  %618 = vst [vmem:[#allocation1] ss:$4 sm:$0xff] %v76
  %619 = vst [vmem:[%s472] ss:$4 sm:$0xff] %v330
  %620 = vst [vmem:[%s474] ss:$4 sm:$0xff] %v331
  %621 = vst [vmem:[%s476] ss:$4 sm:$0xff] %v332
  %622 = vst [vmem:[%s478] ss:$4 sm:$0xff] %v77
  %623 = vst [vmem:[%s480] ss:$4 sm:$0xff] %v78
  %624 = vst [vmem:[%s482] ss:$4 sm:$0xff] %v333
  %625 = vst [vmem:[%s484] ss:$4 sm:$0xff] %v334
  %v626 = vld.sshfl [vmem:[#allocation1] sm:$0xff pattern:$0x73625140]
  %v627 = vld.sshfl [vmem:[#allocation1 + $0x20] sm:$0xff pattern:$0x73625140]
  %628 = vst [vmem:[#allocation1] ss:$4 sm:$0xff] %v335
  %629 = vst [vmem:[%s472] ss:$4 sm:$0xff] %v79
  %630 = vst [vmem:[%s474] ss:$4 sm:$0xff] %v336
  %631 = vst [vmem:[%s476] ss:$4 sm:$0xff] %v337
  %632 = vst [vmem:[%s478] ss:$4 sm:$0xff] %v338
  %633 = vst [vmem:[%s480] ss:$4 sm:$0xff] %v80
  %634 = vst [vmem:[%s482] ss:$4 sm:$0xff] %v81
  %635 = vst [vmem:[%s484] ss:$4 sm:$0xff] %v339
  %v636 = vld.sshfl [vmem:[#allocation1] sm:$0xff pattern:$0x73625140]
  %v637 = vld.sshfl [vmem:[#allocation1 + $0x20] sm:$0xff pattern:$0x73625140]
  %638 = vst [vmem:[#allocation1] ss:$4 sm:$0xff] %v340
  %639 = vst [vmem:[%s472] ss:$4 sm:$0xff] %v341
  %640 = vst [vmem:[%s474] ss:$4 sm:$0xff] %v82
  %641 = vst [vmem:[%s476] ss:$4 sm:$0xff] %v342
  %642 = vst [vmem:[%s478] ss:$4 sm:$0xff] %v343
  %643 = vst [vmem:[%s480] ss:$4 sm:$0xff] %v344
  %644 = vst [vmem:[%s482] ss:$4 sm:$0xff] %v83
  %645 = vst [vmem:[%s484] ss:$4 sm:$0xff] %v84
  %v646 = vld.sshfl [vmem:[#allocation1] sm:$0xff pattern:$0x73625140]
  %v647 = vld.sshfl [vmem:[#allocation1 + $0x20] sm:$0xff pattern:$0x73625140]
  %648 = vst [vmem:[#allocation1] ss:$4 sm:$0xff] %v345
  %649 = vst [vmem:[%s472] ss:$4 sm:$0xff] %v346
  %650 = vst [vmem:[%s474] ss:$4 sm:$0xff] %v347
  %651 = vst [vmem:[%s476] ss:$4 sm:$0xff] %v85
  %652 = vst [vmem:[%s478] ss:$4 sm:$0xff] %v348
  %653 = vst [vmem:[%s480] ss:$4 sm:$0xff] %v349
  %654 = vst [vmem:[%s482] ss:$4 sm:$0xff] %v350
  %655 = vst [vmem:[%s484] ss:$4 sm:$0xff] %v86
  %v656 = vld.sshfl [vmem:[#allocation1] sm:$0xff pattern:$0x73625140]
  %v657 = vld.sshfl [vmem:[#allocation1 + $0x20] sm:$0xff pattern:$0x73625140]
  %658 = vst [vmem:[#allocation1] ss:$4 sm:$0xff] %v87
  %659 = vst [vmem:[%s472] ss:$4 sm:$0xff] %v351
  %660 = vst [vmem:[%s474] ss:$4 sm:$0xff] %v352
  %661 = vst [vmem:[%s476] ss:$4 sm:$0xff] %v353
  %662 = vst [vmem:[%s478] ss:$4 sm:$0xff] %v88
  %663 = vst [vmem:[%s480] ss:$4 sm:$0xff] %v354
  %664 = vst [vmem:[%s482] ss:$4 sm:$0xff] %v355
  %665 = vst [vmem:[%s484] ss:$4 sm:$0xff] %v356
  %v666 = vld.sshfl [vmem:[#allocation1] sm:$0xff pattern:$0x73625140]
  %v667 = vld.sshfl [vmem:[#allocation1 + $0x20] sm:$0xff pattern:$0x73625140]
  %668 = vst [vmem:[#allocation1] ss:$4 sm:$0xff] %v89
  %669 = vst [vmem:[%s472] ss:$4 sm:$0xff] %v90
  %670 = vst [vmem:[%s474] ss:$4 sm:$0xff] %v357
  %671 = vst [vmem:[%s476] ss:$4 sm:$0xff] %v358
  %672 = vst [vmem:[%s478] ss:$4 sm:$0xff] %v359
  %673 = vst [vmem:[%s480] ss:$4 sm:$0xff] %v91
  %674 = vst [vmem:[%s482] ss:$4 sm:$0xff] %v360
  %675 = vst [vmem:[%s484] ss:$4 sm:$0xff] %v361
  %v676 = vld.sshfl [vmem:[#allocation1] sm:$0xff pattern:$0x73625140]
  %v677 = vld.sshfl [vmem:[#allocation1 + $0x20] sm:$0xff pattern:$0x73625140]
  %678 = vst [vmem:[#allocation1] ss:$4 sm:$0xff] %v362
  %679 = vst [vmem:[%s472] ss:$4 sm:$0xff] %v92
  %680 = vst [vmem:[%s474] ss:$4 sm:$0xff] %v93
  %681 = vst [vmem:[%s476] ss:$4 sm:$0xff] %v363
  %682 = vst [vmem:[%s478] ss:$4 sm:$0xff] %v364
  %683 = vst [vmem:[%s480] ss:$4 sm:$0xff] %v365
  %684 = vst [vmem:[%s482] ss:$4 sm:$0xff] %v94
  %685 = vst [vmem:[%s484] ss:$4 sm:$0xff] %v366
  %v686 = vld.sshfl [vmem:[#allocation1] sm:$0xff pattern:$0x73625140]
  %v687 = vld.sshfl [vmem:[#allocation1 + $0x20] sm:$0xff pattern:$0x73625140]
  %688 = vst [vmem:[#allocation1] ss:$4 sm:$0xff] %v367
  %689 = vst [vmem:[%s472] ss:$4 sm:$0xff] %v368
  %690 = vst [vmem:[%s474] ss:$4 sm:$0xff] %v95
  %691 = vst [vmem:[%s476] ss:$4 sm:$0xff] %v96
  %692 = vst [vmem:[%s478] ss:$4 sm:$0xff] %v369
  %693 = vst [vmem:[%s480] ss:$4 sm:$0xff] %v370
  %694 = vst [vmem:[%s482] ss:$4 sm:$0xff] %v371
  %695 = vst [vmem:[%s484] ss:$4 sm:$0xff] %v97
  %v696 = vld.sshfl [vmem:[#allocation1] sm:$0xff pattern:$0x73625140]
  %v697 = vld.sshfl [vmem:[#allocation1 + $0x20] sm:$0xff pattern:$0x73625140]
  %698 = vst [vmem:[#allocation1] ss:$4 sm:$0xff] %v372
  %699 = vst [vmem:[%s472] ss:$4 sm:$0xff] %v373
  %700 = vst [vmem:[%s474] ss:$4 sm:$0xff] %v374
  %701 = vst [vmem:[%s476] ss:$4 sm:$0xff] %v98
  %702 = vst [vmem:[%s478] ss:$4 sm:$0xff] %v99
  %703 = vst [vmem:[%s480] ss:$4 sm:$0xff] %v375
  %704 = vst [vmem:[%s482] ss:$4 sm:$0xff] %v376
  %705 = vst [vmem:[%s484] ss:$4 sm:$0xff] %v377
  %v706 = vld.sshfl [vmem:[#allocation1] sm:$0xff pattern:$0x73625140]
  %v707 = vld.sshfl [vmem:[#allocation1 + $0x20] sm:$0xff pattern:$0x73625140]
  %708 = vst [vmem:[#allocation1] ss:$4 sm:$0xff] %v100
  %709 = vst [vmem:[%s472] ss:$4 sm:$0xff] %v378
  %710 = vst [vmem:[%s474] ss:$4 sm:$0xff] %v379
  %711 = vst [vmem:[%s476] ss:$4 sm:$0xff] %v380
  %712 = vst [vmem:[%s478] ss:$4 sm:$0xff] %v101
  %713 = vst [vmem:[%s480] ss:$4 sm:$0xff] %v102
  %714 = vst [vmem:[%s482] ss:$4 sm:$0xff] %v381
  %715 = vst [vmem:[%s484] ss:$4 sm:$0xff] %v382
  %v716 = vld.sshfl [vmem:[#allocation1] sm:$0xff pattern:$0x73625140]
  %v717 = vld.sshfl [vmem:[#allocation1 + $0x20] sm:$0xff pattern:$0x73625140]
  %718 = vst [vmem:[#allocation1] ss:$4 sm:$0xff] %v383
  %719 = vst [vmem:[%s472] ss:$4 sm:$0xff] %v103
  %720 = vst [vmem:[%s474] ss:$4 sm:$0xff] %v384
  %721 = vst [vmem:[%s476] ss:$4 sm:$0xff] %v385
  %722 = vst [vmem:[%s478] ss:$4 sm:$0xff] %v386
  %723 = vst [vmem:[%s480] ss:$4 sm:$0xff] %v104
  %724 = vst [vmem:[%s482] ss:$4 sm:$0xff] %v105
  %725 = vst [vmem:[%s484] ss:$4 sm:$0xff] %v387
  %v726 = vld.sshfl [vmem:[#allocation1] sm:$0xff pattern:$0x73625140]
  %v727 = vld.sshfl [vmem:[#allocation1 + $0x20] sm:$0xff pattern:$0x73625140]
  %728 = vst [vmem:[#allocation1] ss:$4 sm:$0xff] %v388
  %729 = vst [vmem:[%s472] ss:$4 sm:$0xff] %v389
  %730 = vst [vmem:[%s474] ss:$4 sm:$0xff] %v106
  %731 = vst [vmem:[%s476] ss:$4 sm:$0xff] %v390
  %732 = vst [vmem:[%s478] ss:$4 sm:$0xff] %v391
  %733 = vst [vmem:[%s480] ss:$4 sm:$0xff] %v392
  %734 = vst [vmem:[%s482] ss:$4 sm:$0xff] %v107
  %735 = vst [vmem:[%s484] ss:$4 sm:$0xff] %v108
  %v736 = vld.sshfl [vmem:[#allocation1] sm:$0xff pattern:$0x73625140]
  %v737 = vld.sshfl [vmem:[#allocation1 + $0x20] sm:$0xff pattern:$0x73625140]
  %738 = vst [vmem:[#allocation1] ss:$4 sm:$0xff] %v393
  %739 = vst [vmem:[%s472] ss:$4 sm:$0xff] %v394
  %740 = vst [vmem:[%s474] ss:$4 sm:$0xff] %v395
  %741 = vst [vmem:[%s476] ss:$4 sm:$0xff] %v109
  %742 = vst [vmem:[%s478] ss:$4 sm:$0xff] %v396
  %743 = vst [vmem:[%s480] ss:$4 sm:$0xff] %v397
  %744 = vst [vmem:[%s482] ss:$4 sm:$0xff] %v398
  %745 = vst [vmem:[%s484] ss:$4 sm:$0xff] %v110
  %v746 = vld.sshfl [vmem:[#allocation1] sm:$0xff pattern:$0x73625140]
  %v747 = vld.sshfl [vmem:[#allocation1 + $0x20] sm:$0xff pattern:$0x73625140]
  %748 = vst [vmem:[#allocation1] ss:$4 sm:$0xff] %v111
  %749 = vst [vmem:[%s472] ss:$4 sm:$0xff] %v399
  %750 = vst [vmem:[%s474] ss:$4 sm:$0xff] %v400
  %751 = vst [vmem:[%s476] ss:$4 sm:$0xff] %v401
  %752 = vst [vmem:[%s478] ss:$4 sm:$0xff] %v112
  %753 = vst [vmem:[%s480] ss:$4 sm:$0xff] %v402
  %754 = vst [vmem:[%s482] ss:$4 sm:$0xff] %v403
  %755 = vst [vmem:[%s484] ss:$4 sm:$0xff] %v404
  %v756 = vld.sshfl [vmem:[#allocation1] sm:$0xff pattern:$0x73625140]
  %v757 = vld.sshfl [vmem:[#allocation1 + $0x20] sm:$0xff pattern:$0x73625140]
  %758 = vst [vmem:[#allocation1] ss:$4 sm:$0xff] %v113
  %759 = vst [vmem:[%s472] ss:$4 sm:$0xff] %v114
  %760 = vst [vmem:[%s474] ss:$4 sm:$0xff] %v405
  %761 = vst [vmem:[%s476] ss:$4 sm:$0xff] %v406
  %762 = vst [vmem:[%s478] ss:$4 sm:$0xff] %v407
  %763 = vst [vmem:[%s480] ss:$4 sm:$0xff] %v115
  %764 = vst [vmem:[%s482] ss:$4 sm:$0xff] %v408
  %765 = vst [vmem:[%s484] ss:$4 sm:$0xff] %v409
  %v766 = vld.sshfl [vmem:[#allocation1] sm:$0xff pattern:$0x73625140]
  %v767 = vld.sshfl [vmem:[#allocation1 + $0x20] sm:$0xff pattern:$0x73625140]
  %768 = vst [vmem:[#allocation1] ss:$4 sm:$0xff] %v410
  %769 = vst [vmem:[%s472] ss:$4 sm:$0xff] %v116
  %770 = vst [vmem:[%s474] ss:$4 sm:$0xff] %v117
  %771 = vst [vmem:[%s476] ss:$4 sm:$0xff] %v411
  %772 = vst [vmem:[%s478] ss:$4 sm:$0xff] %v412
  %773 = vst [vmem:[%s480] ss:$4 sm:$0xff] %v413
  %774 = vst [vmem:[%s482] ss:$4 sm:$0xff] %v118
  %775 = vst [vmem:[%s484] ss:$4 sm:$0xff] %v414
  %v776 = vld.sshfl [vmem:[#allocation1] sm:$0xff pattern:$0x73625140]
  %v777 = vld.sshfl [vmem:[#allocation1 + $0x20] sm:$0xff pattern:$0x73625140]
  %778 = vst [vmem:[#allocation1] ss:$4 sm:$0xff] %v415
  %779 = vst [vmem:[%s472] ss:$4 sm:$0xff] %v416
  %780 = vst [vmem:[%s474] ss:$4 sm:$0xff] %v119
  %781 = vst [vmem:[%s476] ss:$4 sm:$0xff] %v120
  %782 = vst [vmem:[%s478] ss:$4 sm:$0xff] %v417
  %783 = vst [vmem:[%s480] ss:$4 sm:$0xff] %v418
  %784 = vst [vmem:[%s482] ss:$4 sm:$0xff] %v419
  %785 = vst [vmem:[%s484] ss:$4 sm:$0xff] %v121
  %v786 = vld.sshfl [vmem:[#allocation1] sm:$0xff pattern:$0x73625140]
  %v787 = vld.sshfl [vmem:[#allocation1 + $0x20] sm:$0xff pattern:$0x73625140]
  %788 = vst [vmem:[#allocation1] ss:$4 sm:$0xff] %v420
  %789 = vst [vmem:[%s472] ss:$4 sm:$0xff] %v421
  %790 = vst [vmem:[%s474] ss:$4 sm:$0xff] %v422
  %791 = vst [vmem:[%s476] ss:$4 sm:$0xff] %v122
  %792 = vst [vmem:[%s478] ss:$4 sm:$0xff] %v123
  %793 = vst [vmem:[%s480] ss:$4 sm:$0xff] %v423
  %794 = vst [vmem:[%s482] ss:$4 sm:$0xff] %v424
  %795 = vst [vmem:[%s484] ss:$4 sm:$0xff] %v425
  %v796 = vld.sshfl [vmem:[#allocation1] sm:$0xff pattern:$0x73625140]
  %v797 = vld.sshfl [vmem:[#allocation1 + $0x20] sm:$0xff pattern:$0x73625140]
  %798 = vst [vmem:[#allocation1] ss:$4 sm:$0xff] %v124
  %799 = vst [vmem:[%s472] ss:$4 sm:$0xff] %v426
  %800 = vst [vmem:[%s474] ss:$4 sm:$0xff] %v427
  %801 = vst [vmem:[%s476] ss:$4 sm:$0xff] %v428
  %802 = vst [vmem:[%s478] ss:$4 sm:$0xff] %v125
  %803 = vst [vmem:[%s480] ss:$4 sm:$0xff] %v126
  %804 = vst [vmem:[%s482] ss:$4 sm:$0xff] %v429
  %805 = vst [vmem:[%s484] ss:$4 sm:$0xff] %v430
  %v806 = vld.sshfl [vmem:[#allocation1] sm:$0xff pattern:$0x73625140]
  %v807 = vld.sshfl [vmem:[#allocation1 + $0x20] sm:$0xff pattern:$0x73625140]
  %808 = vst [vmem:[#allocation1] ss:$4 sm:$0xff] %v431
  %809 = vst [vmem:[%s472] ss:$4 sm:$0xff] %v127
  %810 = vst [vmem:[%s474] ss:$4 sm:$0xff] %v432
  %811 = vst [vmem:[%s476] ss:$4 sm:$0xff] %v433
  %812 = vst [vmem:[%s478] ss:$4 sm:$0xff] %v434
  %813 = vst [vmem:[%s480] ss:$4 sm:$0xff] %v128
  %814 = vst [vmem:[%s482] ss:$4 sm:$0xff] %v129
  %815 = vst [vmem:[%s484] ss:$4 sm:$0xff] %v435
  %v816 = vld.sshfl [vmem:[#allocation1] sm:$0xff pattern:$0x73625140]
  %v817 = vld.sshfl [vmem:[#allocation1 + $0x20] sm:$0xff pattern:$0x73625140]
  %818 = vst [vmem:[#allocation1] ss:$4 sm:$0xff] %v436
  %819 = vst [vmem:[%s472] ss:$4 sm:$0xff] %v437
  %820 = vst [vmem:[%s474] ss:$4 sm:$0xff] %v130
  %821 = vst [vmem:[%s476] ss:$4 sm:$0xff] %v438
  %822 = vst [vmem:[%s478] ss:$4 sm:$0xff] %v439
  %823 = vst [vmem:[%s480] ss:$4 sm:$0xff] %v440
  %824 = vst [vmem:[%s482] ss:$4 sm:$0xff] %v131
  %825 = vst [vmem:[%s484] ss:$4 sm:$0xff] %v132
  %v826 = vld.sshfl [vmem:[#allocation1] sm:$0xff pattern:$0x73625140]
  %v827 = vld.sshfl [vmem:[#allocation1 + $0x20] sm:$0xff pattern:$0x73625140]
  %828 = vst [vmem:[#allocation1] ss:$4 sm:$0xff] %v441
  %829 = vst [vmem:[%s472] ss:$4 sm:$0xff] %v442
  %830 = vst [vmem:[%s474] ss:$4 sm:$0xff] %v443
  %831 = vst [vmem:[%s476] ss:$4 sm:$0xff] %v133
  %832 = vst [vmem:[%s478] ss:$4 sm:$0xff] %v444
  %833 = vst [vmem:[%s480] ss:$4 sm:$0xff] %v445
  %834 = vst [vmem:[%s482] ss:$4 sm:$0xff] %v446
  %835 = vst [vmem:[%s484] ss:$4 sm:$0xff] %v134
  %v836 = vld.sshfl [vmem:[#allocation1] sm:$0xff pattern:$0x73625140]
  %v837 = vld.sshfl [vmem:[#allocation1 + $0x20] sm:$0xff pattern:$0x73625140]
  %838 = vst [vmem:[#allocation1] ss:$4 sm:$0xff] %v135
  %839 = vst [vmem:[%s472] ss:$4 sm:$0xff] %v447
  %840 = vst [vmem:[%s474] ss:$4 sm:$0xff] %v448
  %841 = vst [vmem:[%s476] ss:$4 sm:$0xff] %v449
  %842 = vst [vmem:[%s478] ss:$4 sm:$0xff] %v136
  %843 = vst [vmem:[%s480] ss:$4 sm:$0xff] %v450
  %844 = vst [vmem:[%s482] ss:$4 sm:$0xff] %v451
  %845 = vst [vmem:[%s484] ss:$4 sm:$0xff] %v452
  %v846 = vld.sshfl [vmem:[#allocation1] sm:$0xff pattern:$0x73625140]
  %v847 = vld.sshfl [vmem:[#allocation1 + $0x20] sm:$0xff pattern:$0x73625140]
  %848 = vst [vmem:[#allocation1] ss:$4 sm:$0xff] %v137
  %849 = vst [vmem:[%s472] ss:$4 sm:$0xff] %v138
  %850 = vst [vmem:[%s474] ss:$4 sm:$0xff] %v453
  %851 = vst [vmem:[%s476] ss:$4 sm:$0xff] %v454
  %852 = vst [vmem:[%s478] ss:$4 sm:$0xff] %v455
  %853 = vst [vmem:[%s480] ss:$4 sm:$0xff] %v139
  %854 = vst [vmem:[%s482] ss:$4 sm:$0xff] %v456
  %855 = vst [vmem:[%s484] ss:$4 sm:$0xff] %v457
  %v856 = vld.sshfl [vmem:[#allocation1] sm:$0xff pattern:$0x73625140]
  %v857 = vld.sshfl [vmem:[#allocation1 + $0x20] sm:$0xff pattern:$0x73625140]
  %858 = vst [vmem:[#allocation1] ss:$4 sm:$0xff] %v458
  %859 = vst [vmem:[%s472] ss:$4 sm:$0xff] %v140
  %860 = vst [vmem:[%s474] ss:$4 sm:$0xff] %v141
  %861 = vst [vmem:[%s476] ss:$4 sm:$0xff] %v459
  %862 = vst [vmem:[%s478] ss:$4 sm:$0xff] %v460
  %863 = vst [vmem:[%s480] ss:$4 sm:$0xff] %v461
  %864 = vst [vmem:[%s482] ss:$4 sm:$0xff] %v142
  %865 = vst [vmem:[%s484] ss:$4 sm:$0xff] %v462
  %v866 = vld.sshfl [vmem:[#allocation1] sm:$0xff pattern:$0x73625140]
  %v867 = vld.sshfl [vmem:[#allocation1 + $0x20] sm:$0xff pattern:$0x73625140]
  %868 = vst [vmem:[#allocation1] ss:$4 sm:$0xff] %v463
  %869 = vst [vmem:[%s472] ss:$4 sm:$0xff] %v464
  %870 = vst [vmem:[%s474] ss:$4 sm:$0xff] %v143
  %871 = vst [vmem:[%s476] ss:$4 sm:$0xff] %v144
  %872 = vst [vmem:[%s478] ss:$4 sm:$0xff] %v465
  %873 = vst [vmem:[%s480] ss:$4 sm:$0xff] %v466
  %874 = vst [vmem:[%s482] ss:$4 sm:$0xff] %v467
  %875 = vst [vmem:[%s484] ss:$4 sm:$0xff] %v145
  %v876 = vld.sshfl [vmem:[#allocation1] sm:$0xff pattern:$0x73625140]
  %v877 = vld.sshfl [vmem:[#allocation1 + $0x20] sm:$0xff pattern:$0x73625140]
  %878 = vst [vmem:[#allocation1] ss:$4 sm:$0xff] %v468
  %879 = vst [vmem:[%s472] ss:$4 sm:$0xff] %v469
  %880 = vst [vmem:[%s474] ss:$4 sm:$0xff] %v470
  %881 = vst [vmem:[%s476] ss:$4 sm:$0xff] %v146
  %v882 = vld.sshfl [vmem:[#allocation1] sm:$0xff pattern:$0x73625140]
  %v964 = vpack.c.bf16 %v487, %v486
  %v965 = vpack.c.bf16 %v497, %v496
  %v966 = vpack.c.bf16 %v507, %v506
  %v967 = vpack.c.bf16 %v517, %v516
  %v968 = vpack.c.bf16 %v527, %v526
  %v969 = vpack.c.bf16 %v537, %v536
  %v970 = vpack.c.bf16 %v547, %v546
  %v971 = vpack.c.bf16 %v557, %v556
  %v972 = vpack.c.bf16 %v567, %v566
  %v973 = vpack.c.bf16 %v577, %v576
  %v974 = vpack.c.bf16 %v587, %v586
  %v975 = vpack.c.bf16 %v597, %v596
  %v976 = vpack.c.bf16 %v607, %v606
  %v977 = vpack.c.bf16 %v617, %v616
  %v978 = vpack.c.bf16 %v627, %v626
  %v979 = vpack.c.bf16 %v637, %v636
  %v980 = vpack.c.bf16 %v647, %v646
  %v981 = vpack.c.bf16 %v657, %v656
  %v982 = vpack.c.bf16 %v667, %v666
  %v983 = vpack.c.bf16 %v677, %v676
  %v984 = vpack.c.bf16 %v687, %v686
  %v985 = vpack.c.bf16 %v697, %v696
  %v986 = vpack.c.bf16 %v707, %v706
  %v987 = vpack.c.bf16 %v717, %v716
  %v988 = vpack.c.bf16 %v727, %v726
  %v989 = vpack.c.bf16 %v737, %v736
  %v990 = vpack.c.bf16 %v747, %v746
  %v991 = vpack.c.bf16 %v757, %v756
  %v992 = vpack.c.bf16 %v767, %v766
  %v993 = vpack.c.bf16 %v777, %v776
  %v994 = vpack.c.bf16 %v787, %v786
  %v995 = vpack.c.bf16 %v797, %v796
  %v996 = vpack.c.bf16 %v807, %v806
  %v997 = vpack.c.bf16 %v817, %v816
  %v998 = vpack.c.bf16 %v827, %v826
  %v999 = vpack.c.bf16 %v837, %v836
  %v1000 = vpack.c.bf16 %v847, %v846
  %v1001 = vpack.c.bf16 %v857, %v856
  %v1002 = vpack.c.bf16 %v867, %v866
  %v1003 = vpack.c.bf16 %v877, %v876
  %v1004 = vpack.c.bf16 %v882, %v882
  %v1005 = vld [vmem:[%s2] sm:$0xf]
  %vm1006 = vcmask 64512
  %v1008 = vsel %vm1006, %v964, 0
  %v1011 = vsel %vm1006, %v965, 0
  %v1014 = vsel %vm1006, %v966, 0
  %v1017 = vsel %vm1006, %v967, 0
  %v1020 = vsel %vm1006, %v968, 0
  %v1023 = vsel %vm1006, %v969, 0
  %v1026 = vsel %vm1006, %v970, 0
  %v1029 = vsel %vm1006, %v971, 0
  %v1032 = vsel %vm1006, %v972, 0
  %v1035 = vsel %vm1006, %v973, 0
  %v1038 = vsel %vm1006, %v974, 0
  %v1041 = vsel %vm1006, %v975, 0
  %v1044 = vsel %vm1006, %v976, 0
  %v1047 = vsel %vm1006, %v977, 0
  %v1050 = vsel %vm1006, %v978, 0
  %v1053 = vsel %vm1006, %v979, 0
  %v1056 = vsel %vm1006, %v980, 0
  %v1059 = vsel %vm1006, %v981, 0
  %v1062 = vsel %vm1006, %v982, 0
  %v1065 = vsel %vm1006, %v983, 0
  %v1068 = vsel %vm1006, %v984, 0
  %v1071 = vsel %vm1006, %v985, 0
  %v1074 = vsel %vm1006, %v986, 0
  %v1077 = vsel %vm1006, %v987, 0
  %v1080 = vsel %vm1006, %v988, 0
  %v1083 = vsel %vm1006, %v989, 0
  %v1086 = vsel %vm1006, %v990, 0
  %v1089 = vsel %vm1006, %v991, 0
  %v1092 = vsel %vm1006, %v992, 0
  %v1095 = vsel %vm1006, %v993, 0
  %v1098 = vsel %vm1006, %v994, 0
  %v1101 = vsel %vm1006, %v995, 0
  %v1104 = vsel %vm1006, %v996, 0
  %v1107 = vsel %vm1006, %v997, 0
  %v1110 = vsel %vm1006, %v998, 0
  %v1113 = vsel %vm1006, %v999, 0
  %v1116 = vsel %vm1006, %v1000, 0
  %v1119 = vsel %vm1006, %v1001, 0
  %v1122 = vsel %vm1006, %v1002, 0
  %v1125 = vsel %vm1006, %v1003, 0
  %v1128 = vsel %vm1006, %v1004, 0
  %vm1130 = vcmask 1043456
  %v1132 = vsel %vm1130, %v1005, 0
  %1134 = vmatpush.bf16.msra.mxu0 0
  %1135 = vmatpush.bf16.msra.mxu0 0
  %1136 = vmatpush.bf16.msra.mxu0 0
  %1137 = vmatpush.bf16.msra.mxu0 0
  %1138 = vmatpush.bf16.msra.mxu0 0
  %1139 = vmatpush.bf16.msra.mxu0 0
  %1140 = vmatpush.bf16.msra.mxu0 0
  %1141 = vmatpush.bf16.msra.mxu0 %v1132
  %1142 = vmatmul.bf16.gmra.mxu0 %v1008
  %v1143 = vpop.f32.mrf.mxu0
  %v1144 = vadd.f32 0.0, %v1143
  %v1145 = vpop.f32.mrf.mxu0
  %v1146 = vadd.f32 0.0, %v1145
  %1147 = vmatmul.bf16.gmra.mxu0 %v1011
  %v1148 = vpop.f32.mrf.mxu0
  %v1149 = vadd.f32 0.0, %v1148
  %v1150 = vpop.f32.mrf.mxu0
  %v1151 = vadd.f32 0.0, %v1150
  %1152 = vmatmul.bf16.gmra.mxu0 %v1014
  %v1153 = vpop.f32.mrf.mxu0
  %v1154 = vadd.f32 0.0, %v1153
  %v1155 = vpop.f32.mrf.mxu0
  %v1156 = vadd.f32 0.0, %v1155
  %1157 = vmatmul.bf16.gmra.mxu0 %v1017
  %v1158 = vpop.f32.mrf.mxu0
  %v1159 = vadd.f32 0.0, %v1158
  %v1160 = vpop.f32.mrf.mxu0
  %v1161 = vadd.f32 0.0, %v1160
  %1162 = vmatmul.bf16.gmra.mxu0 %v1020
  %v1163 = vpop.f32.mrf.mxu0
  %v1164 = vadd.f32 0.0, %v1163
  %v1165 = vpop.f32.mrf.mxu0
  %v1166 = vadd.f32 0.0, %v1165
  %1167 = vmatmul.bf16.gmra.mxu0 %v1023
  %v1168 = vpop.f32.mrf.mxu0
  %v1169 = vadd.f32 0.0, %v1168
  %v1170 = vpop.f32.mrf.mxu0
  %v1171 = vadd.f32 0.0, %v1170
  %1172 = vmatmul.bf16.gmra.mxu0 %v1026
  %v1173 = vpop.f32.mrf.mxu0
  %v1174 = vadd.f32 0.0, %v1173
  %v1175 = vpop.f32.mrf.mxu0
  %v1176 = vadd.f32 0.0, %v1175
  %1177 = vmatmul.bf16.gmra.mxu0 %v1029
  %v1178 = vpop.f32.mrf.mxu0
  %v1179 = vadd.f32 0.0, %v1178
  %v1180 = vpop.f32.mrf.mxu0
  %v1181 = vadd.f32 0.0, %v1180
  %1182 = vmatmul.bf16.gmra.mxu0 %v1032
  %v1183 = vpop.f32.mrf.mxu0
  %v1184 = vadd.f32 0.0, %v1183
  %v1185 = vpop.f32.mrf.mxu0
  %v1186 = vadd.f32 0.0, %v1185
  %1187 = vmatmul.bf16.gmra.mxu0 %v1035
  %v1188 = vpop.f32.mrf.mxu0
  %v1189 = vadd.f32 0.0, %v1188
  %v1190 = vpop.f32.mrf.mxu0
  %v1191 = vadd.f32 0.0, %v1190
  %1192 = vmatmul.bf16.gmra.mxu0 %v1038
  %v1193 = vpop.f32.mrf.mxu0
  %v1194 = vadd.f32 0.0, %v1193
  %v1195 = vpop.f32.mrf.mxu0
  %v1196 = vadd.f32 0.0, %v1195
  %1197 = vmatmul.bf16.gmra.mxu0 %v1041
  %v1198 = vpop.f32.mrf.mxu0
  %v1199 = vadd.f32 0.0, %v1198
  %v1200 = vpop.f32.mrf.mxu0
  %v1201 = vadd.f32 0.0, %v1200
  %1202 = vmatmul.bf16.gmra.mxu0 %v1044
  %v1203 = vpop.f32.mrf.mxu0
  %v1204 = vadd.f32 0.0, %v1203
  %v1205 = vpop.f32.mrf.mxu0
  %v1206 = vadd.f32 0.0, %v1205
  %1207 = vmatmul.bf16.gmra.mxu0 %v1047
  %v1208 = vpop.f32.mrf.mxu0
  %v1209 = vadd.f32 0.0, %v1208
  %v1210 = vpop.f32.mrf.mxu0
  %v1211 = vadd.f32 0.0, %v1210
  %1212 = vmatmul.bf16.gmra.mxu0 %v1050
  %v1213 = vpop.f32.mrf.mxu0
  %v1214 = vadd.f32 0.0, %v1213
  %v1215 = vpop.f32.mrf.mxu0
  %v1216 = vadd.f32 0.0, %v1215
  %1217 = vmatmul.bf16.gmra.mxu0 %v1053
  %v1218 = vpop.f32.mrf.mxu0
  %v1219 = vadd.f32 0.0, %v1218
  %v1220 = vpop.f32.mrf.mxu0
  %v1221 = vadd.f32 0.0, %v1220
  %1222 = vmatmul.bf16.gmra.mxu0 %v1056
  %v1223 = vpop.f32.mrf.mxu0
  %v1224 = vadd.f32 0.0, %v1223
  %v1225 = vpop.f32.mrf.mxu0
  %v1226 = vadd.f32 0.0, %v1225
  %1227 = vmatmul.bf16.gmra.mxu0 %v1059
  %v1228 = vpop.f32.mrf.mxu0
  %v1229 = vadd.f32 0.0, %v1228
  %v1230 = vpop.f32.mrf.mxu0
  %v1231 = vadd.f32 0.0, %v1230
  %1232 = vmatmul.bf16.gmra.mxu0 %v1062
  %v1233 = vpop.f32.mrf.mxu0
  %v1234 = vadd.f32 0.0, %v1233
  %v1235 = vpop.f32.mrf.mxu0
  %v1236 = vadd.f32 0.0, %v1235
  %1237 = vmatmul.bf16.gmra.mxu0 %v1065
  %v1238 = vpop.f32.mrf.mxu0
  %v1239 = vadd.f32 0.0, %v1238
  %v1240 = vpop.f32.mrf.mxu0
  %v1241 = vadd.f32 0.0, %v1240
  %1242 = vmatmul.bf16.gmra.mxu0 %v1068
  %v1243 = vpop.f32.mrf.mxu0
  %v1244 = vadd.f32 0.0, %v1243
  %v1245 = vpop.f32.mrf.mxu0
  %v1246 = vadd.f32 0.0, %v1245
  %1247 = vmatmul.bf16.gmra.mxu0 %v1071
  %v1248 = vpop.f32.mrf.mxu0
  %v1249 = vadd.f32 0.0, %v1248
  %v1250 = vpop.f32.mrf.mxu0
  %v1251 = vadd.f32 0.0, %v1250
  %1252 = vmatmul.bf16.gmra.mxu0 %v1074
  %v1253 = vpop.f32.mrf.mxu0
  %v1254 = vadd.f32 0.0, %v1253
  %v1255 = vpop.f32.mrf.mxu0
  %v1256 = vadd.f32 0.0, %v1255
  %1257 = vmatmul.bf16.gmra.mxu0 %v1077
  %v1258 = vpop.f32.mrf.mxu0
  %v1259 = vadd.f32 0.0, %v1258
  %v1260 = vpop.f32.mrf.mxu0
  %v1261 = vadd.f32 0.0, %v1260
  %1262 = vmatmul.bf16.gmra.mxu0 %v1080
  %v1263 = vpop.f32.mrf.mxu0
  %v1264 = vadd.f32 0.0, %v1263
  %v1265 = vpop.f32.mrf.mxu0
  %v1266 = vadd.f32 0.0, %v1265
  %1267 = vmatmul.bf16.gmra.mxu0 %v1083
  %v1268 = vpop.f32.mrf.mxu0
  %v1269 = vadd.f32 0.0, %v1268
  %v1270 = vpop.f32.mrf.mxu0
  %v1271 = vadd.f32 0.0, %v1270
  %1272 = vmatmul.bf16.gmra.mxu0 %v1086
  %v1273 = vpop.f32.mrf.mxu0
  %v1274 = vadd.f32 0.0, %v1273
  %v1275 = vpop.f32.mrf.mxu0
  %v1276 = vadd.f32 0.0, %v1275
  %1277 = vmatmul.bf16.gmra.mxu0 %v1089
  %v1278 = vpop.f32.mrf.mxu0
  %v1279 = vadd.f32 0.0, %v1278
  %v1280 = vpop.f32.mrf.mxu0
  %v1281 = vadd.f32 0.0, %v1280
  %1282 = vmatmul.bf16.gmra.mxu0 %v1092
  %v1283 = vpop.f32.mrf.mxu0
  %v1284 = vadd.f32 0.0, %v1283
  %v1285 = vpop.f32.mrf.mxu0
  %v1286 = vadd.f32 0.0, %v1285
  %1287 = vmatmul.bf16.gmra.mxu0 %v1095
  %v1288 = vpop.f32.mrf.mxu0
  %v1289 = vadd.f32 0.0, %v1288
  %v1290 = vpop.f32.mrf.mxu0
  %v1291 = vadd.f32 0.0, %v1290
  %1292 = vmatmul.bf16.gmra.mxu0 %v1098
  %v1293 = vpop.f32.mrf.mxu0
  %v1294 = vadd.f32 0.0, %v1293
  %v1295 = vpop.f32.mrf.mxu0
  %v1296 = vadd.f32 0.0, %v1295
  %1297 = vmatmul.bf16.gmra.mxu0 %v1101
  %v1298 = vpop.f32.mrf.mxu0
  %v1299 = vadd.f32 0.0, %v1298
  %v1300 = vpop.f32.mrf.mxu0
  %v1301 = vadd.f32 0.0, %v1300
  %1302 = vmatmul.bf16.gmra.mxu0 %v1104
  %v1303 = vpop.f32.mrf.mxu0
  %v1304 = vadd.f32 0.0, %v1303
  %v1305 = vpop.f32.mrf.mxu0
  %v1306 = vadd.f32 0.0, %v1305
  %1307 = vmatmul.bf16.gmra.mxu0 %v1107
  %v1308 = vpop.f32.mrf.mxu0
  %v1309 = vadd.f32 0.0, %v1308
  %v1310 = vpop.f32.mrf.mxu0
  %v1311 = vadd.f32 0.0, %v1310
  %1312 = vmatmul.bf16.gmra.mxu0 %v1110
  %v1313 = vpop.f32.mrf.mxu0
  %v1314 = vadd.f32 0.0, %v1313
  %v1315 = vpop.f32.mrf.mxu0
  %v1316 = vadd.f32 0.0, %v1315
  %1317 = vmatmul.bf16.gmra.mxu0 %v1113
  %v1318 = vpop.f32.mrf.mxu0
  %v1319 = vadd.f32 0.0, %v1318
  %v1320 = vpop.f32.mrf.mxu0
  %v1321 = vadd.f32 0.0, %v1320
  %1322 = vmatmul.bf16.gmra.mxu0 %v1116
  %v1323 = vpop.f32.mrf.mxu0
  %v1324 = vadd.f32 0.0, %v1323
  %v1325 = vpop.f32.mrf.mxu0
  %v1326 = vadd.f32 0.0, %v1325
  %1327 = vmatmul.bf16.gmra.mxu0 %v1119
  %v1328 = vpop.f32.mrf.mxu0
  %v1329 = vadd.f32 0.0, %v1328
  %v1330 = vpop.f32.mrf.mxu0
  %v1331 = vadd.f32 0.0, %v1330
  %1332 = vmatmul.bf16.gmra.mxu0 %v1122
  %v1333 = vpop.f32.mrf.mxu0
  %v1334 = vadd.f32 0.0, %v1333
  %v1335 = vpop.f32.mrf.mxu0
  %v1336 = vadd.f32 0.0, %v1335
  %1337 = vmatmul.bf16.gmra.mxu0 %v1125
  %v1338 = vpop.f32.mrf.mxu0
  %v1339 = vadd.f32 0.0, %v1338
  %v1340 = vpop.f32.mrf.mxu0
  %v1341 = vadd.f32 0.0, %v1340
  %1342 = vmatmul.bf16.gmra.mxu0 %v1128
  %v1343 = vpop.f32.mrf.mxu0
  %v1344 = vadd.f32 0.0, %v1343
  %v1345 = vpop.f32.mrf.mxu0
  %1346 = vdwg.mxu0
  %v1347 = vld [vmem:[%s1] sm:$0xff]
  %v1348 = vld [vmem:[%s1 + $0x8] sm:$0xff]
  %v1349 = vld [vmem:[%s1 + $0x10] sm:$0xff]
  %v1350 = vld [vmem:[%s1 + $0x18] sm:$0xff]
  %v1351 = vld [vmem:[%s1 + $0x20] sm:$0xff]
  %v1352 = vld [vmem:[%s1 + $0x28] sm:$0xff]
  %v1353 = vld [vmem:[%s1 + $0x30] sm:$0xff]
  %v1354 = vld [vmem:[%s1 + $0x38] sm:$0xff]
  %v1355 = vld [vmem:[%s1 + $0x40] sm:$0xff]
  %v1356 = vld [vmem:[%s1 + $0x48] sm:$0xff]
  %v1357 = vld [vmem:[%s1 + $0x50] sm:$0xff]
  %v1358 = vld [vmem:[%s1 + $0x58] sm:$0xff]
  %v1359 = vld [vmem:[%s1 + $0x60] sm:$0xff]
  %v1360 = vld [vmem:[%s1 + $0x68] sm:$0xff]
  %v1361 = vld [vmem:[%s1 + $0x70] sm:$0xff]
  %v1362 = vld [vmem:[%s1 + $0x78] sm:$0xff]
  %v1363 = vld [vmem:[%s1 + $0x80] sm:$0xff]
  %v1364 = vld [vmem:[%s1 + $0x88] sm:$0xff]
  %v1365 = vld [vmem:[%s1 + $0x90] sm:$0xff]
  %v1366 = vld [vmem:[%s1 + $0x98] sm:$0xff]
  %v1367 = vld [vmem:[%s1 + $0xa0] sm:$0xff]
  %v1368 = vld [vmem:[%s1 + $0xa8] sm:$0xff]
  %v1369 = vld [vmem:[%s1 + $0xb0] sm:$0xff]
  %v1370 = vld [vmem:[%s1 + $0xb8] sm:$0xff]
  %v1371 = vld [vmem:[%s1 + $0xc0] sm:$0xff]
  %v1372 = vld [vmem:[%s1 + $0xc8] sm:$0xff]
  %v1373 = vld [vmem:[%s1 + $0xd0] sm:$0xff]
  %v1374 = vld [vmem:[%s1 + $0xd8] sm:$0xff]
  %v1375 = vld [vmem:[%s1 + $0xe0] sm:$0xff]
  %v1376 = vld [vmem:[%s1 + $0xe8] sm:$0xff]
  %v1377 = vld [vmem:[%s1 + $0xf0] sm:$0xff]
  %v1378 = vld [vmem:[%s1 + $0xf8] sm:$0xff]
  %v1379 = vld [vmem:[%s1 + $0x100] sm:$0xff]
  %v1380 = vld [vmem:[%s1 + $0x108] sm:$0xff]
  %v1381 = vld [vmem:[%s1 + $0x110] sm:$0xff]
  %v1382 = vld [vmem:[%s1 + $0x118] sm:$0xff]
  %v1383 = vld [vmem:[%s1 + $0x120] sm:$0xff]
  %v1384 = vld [vmem:[%s1 + $0x128] sm:$0xff]
  %v1385 = vld [vmem:[%s1 + $0x130] sm:$0xff]
  %v1386 = vld [vmem:[%s1 + $0x138] sm:$0xff]
  %v1387 = vld [vmem:[%s1 + $0x140] sm:$0xff]
  %v1388 = vld [vmem:[%s1 + $0x148] sm:$0xff]
  %v1389 = vld [vmem:[%s1 + $0x150] sm:$0xff]
  %v1390 = vld [vmem:[%s1 + $0x158] sm:$0xff]
  %v1391 = vld [vmem:[%s1 + $0x160] sm:$0xff]
  %v1392 = vld [vmem:[%s1 + $0x168] sm:$0xff]
  %v1393 = vld [vmem:[%s1 + $0x170] sm:$0xff]
  %v1394 = vld [vmem:[%s1 + $0x178] sm:$0xff]
  %v1395 = vld [vmem:[%s1 + $0x180] sm:$0xff]
  %v1396 = vld [vmem:[%s1 + $0x188] sm:$0xff]
  %v1397 = vld [vmem:[%s1 + $0x190] sm:$0xff]
  %v1398 = vld [vmem:[%s1 + $0x198] sm:$0xff]
  %v1399 = vld [vmem:[%s1 + $0x1a0] sm:$0xff]
  %v1400 = vld [vmem:[%s1 + $0x1a8] sm:$0xff]
  %v1401 = vld [vmem:[%s1 + $0x1b0] sm:$0xff]
  %v1402 = vld [vmem:[%s1 + $0x1b8] sm:$0xff]
  %v1403 = vld [vmem:[%s1 + $0x1c0] sm:$0xff]
  %v1404 = vld [vmem:[%s1 + $0x1c8] sm:$0xff]
  %v1405 = vld [vmem:[%s1 + $0x1d0] sm:$0xff]
  %v1406 = vld [vmem:[%s1 + $0x1d8] sm:$0xff]
  %v1407 = vld [vmem:[%s1 + $0x1e0] sm:$0xff]
  %v1408 = vld [vmem:[%s1 + $0x1e8] sm:$0xff]
  %v1409 = vld [vmem:[%s1 + $0x1f0] sm:$0xff]
  %v1410 = vld [vmem:[%s1 + $0x1f8] sm:$0xff]
  %v1411 = vld [vmem:[%s1 + $0x200] sm:$0xff]
  %v1412 = vld [vmem:[%s1 + $0x208] sm:$0xff]
  %v1413 = vld [vmem:[%s1 + $0x210] sm:$0xff]
  %v1414 = vld [vmem:[%s1 + $0x218] sm:$0xff]
  %v1415 = vld [vmem:[%s1 + $0x220] sm:$0xff]
  %v1416 = vld [vmem:[%s1 + $0x228] sm:$0xff]
  %v1417 = vld [vmem:[%s1 + $0x230] sm:$0xff]
  %v1418 = vld [vmem:[%s1 + $0x238] sm:$0xff]
  %v1419 = vld [vmem:[%s1 + $0x240] sm:$0xff]
  %v1420 = vld [vmem:[%s1 + $0x248] sm:$0xff]
  %v1421 = vld [vmem:[%s1 + $0x250] sm:$0xff]
  %v1422 = vld [vmem:[%s1 + $0x258] sm:$0xff]
  %v1423 = vld [vmem:[%s1 + $0x260] sm:$0xff]
  %v1424 = vld [vmem:[%s1 + $0x268] sm:$0xff]
  %v1425 = vld [vmem:[%s1 + $0x270] sm:$0xff]
  %v1426 = vld [vmem:[%s1 + $0x278] sm:$0xff]
  %v1427 = vld [vmem:[%s1 + $0x280] sm:$0xff]
  %v1428 = vld [vmem:[%s3] sm:$0x1]
  %v1429 = vld [vmem:[%s4] sm:$0x1]
  %1431 = vset.pattern.permute.xlu0 0
  %1432 = vperm.xlu0 %1431, %v1347
  %v1433 = vpop.permute.xlu0 %1432
  %1436 = vset.pattern.permute.xlu0 0
  %1437 = vperm.xlu0 %1436, %v1348
  %v1438 = vpop.permute.xlu0 %1437
  %1441 = vset.pattern.permute.xlu0 0
  %1442 = vperm.xlu0 %1441, %v1349
  %v1443 = vpop.permute.xlu0 %1442
  %1446 = vset.pattern.permute.xlu0 0
  %1447 = vperm.xlu0 %1446, %v1350
  %v1448 = vpop.permute.xlu0 %1447
  %1451 = vset.pattern.permute.xlu0 0
  %1452 = vperm.xlu0 %1451, %v1351
  %v1453 = vpop.permute.xlu0 %1452
  %1456 = vset.pattern.permute.xlu0 0
  %1457 = vperm.xlu0 %1456, %v1352
  %v1458 = vpop.permute.xlu0 %1457
  %1461 = vset.pattern.permute.xlu0 0
  %1462 = vperm.xlu0 %1461, %v1353
  %v1463 = vpop.permute.xlu0 %1462
  %1466 = vset.pattern.permute.xlu0 0
  %1467 = vperm.xlu0 %1466, %v1354
  %v1468 = vpop.permute.xlu0 %1467
  %1471 = vset.pattern.permute.xlu0 0
  %1472 = vperm.xlu0 %1471, %v1355
  %v1473 = vpop.permute.xlu0 %1472
  %1476 = vset.pattern.permute.xlu0 0
  %1477 = vperm.xlu0 %1476, %v1356
  %v1478 = vpop.permute.xlu0 %1477
  %1481 = vset.pattern.permute.xlu0 0
  %1482 = vperm.xlu0 %1481, %v1357
  %v1483 = vpop.permute.xlu0 %1482
  %1486 = vset.pattern.permute.xlu0 0
  %1487 = vperm.xlu0 %1486, %v1358
  %v1488 = vpop.permute.xlu0 %1487
  %1491 = vset.pattern.permute.xlu0 0
  %1492 = vperm.xlu0 %1491, %v1359
  %v1493 = vpop.permute.xlu0 %1492
  %1496 = vset.pattern.permute.xlu0 0
  %1497 = vperm.xlu0 %1496, %v1360
  %v1498 = vpop.permute.xlu0 %1497
  %1501 = vset.pattern.permute.xlu0 0
  %1502 = vperm.xlu0 %1501, %v1361
  %v1503 = vpop.permute.xlu0 %1502
  %1506 = vset.pattern.permute.xlu0 0
  %1507 = vperm.xlu0 %1506, %v1362
  %v1508 = vpop.permute.xlu0 %1507
  %1511 = vset.pattern.permute.xlu0 0
  %1512 = vperm.xlu0 %1511, %v1363
  %v1513 = vpop.permute.xlu0 %1512
  %1516 = vset.pattern.permute.xlu0 0
  %1517 = vperm.xlu0 %1516, %v1364
  %v1518 = vpop.permute.xlu0 %1517
  %1521 = vset.pattern.permute.xlu0 0
  %1522 = vperm.xlu0 %1521, %v1365
  %v1523 = vpop.permute.xlu0 %1522
  %1526 = vset.pattern.permute.xlu0 0
  %1527 = vperm.xlu0 %1526, %v1366
  %v1528 = vpop.permute.xlu0 %1527
  %1531 = vset.pattern.permute.xlu0 0
  %1532 = vperm.xlu0 %1531, %v1367
  %v1533 = vpop.permute.xlu0 %1532
  %1536 = vset.pattern.permute.xlu0 0
  %1537 = vperm.xlu0 %1536, %v1368
  %v1538 = vpop.permute.xlu0 %1537
  %1541 = vset.pattern.permute.xlu0 0
  %1542 = vperm.xlu0 %1541, %v1369
  %v1543 = vpop.permute.xlu0 %1542
  %1546 = vset.pattern.permute.xlu0 0
  %1547 = vperm.xlu0 %1546, %v1370
  %v1548 = vpop.permute.xlu0 %1547
  %1551 = vset.pattern.permute.xlu0 0
  %1552 = vperm.xlu0 %1551, %v1371
  %v1553 = vpop.permute.xlu0 %1552
  %1556 = vset.pattern.permute.xlu0 0
  %1557 = vperm.xlu0 %1556, %v1372
  %v1558 = vpop.permute.xlu0 %1557
  %1561 = vset.pattern.permute.xlu0 0
  %1562 = vperm.xlu0 %1561, %v1373
  %v1563 = vpop.permute.xlu0 %1562
  %1566 = vset.pattern.permute.xlu0 0
  %1567 = vperm.xlu0 %1566, %v1374
  %v1568 = vpop.permute.xlu0 %1567
  %1571 = vset.pattern.permute.xlu0 0
  %1572 = vperm.xlu0 %1571, %v1375
  %v1573 = vpop.permute.xlu0 %1572
  %1576 = vset.pattern.permute.xlu0 0
  %1577 = vperm.xlu0 %1576, %v1376
  %v1578 = vpop.permute.xlu0 %1577
  %1581 = vset.pattern.permute.xlu0 0
  %1582 = vperm.xlu0 %1581, %v1377
  %v1583 = vpop.permute.xlu0 %1582
  %1586 = vset.pattern.permute.xlu0 0
  %1587 = vperm.xlu0 %1586, %v1378
  %v1588 = vpop.permute.xlu0 %1587
  %1591 = vset.pattern.permute.xlu0 0
  %1592 = vperm.xlu0 %1591, %v1379
  %v1593 = vpop.permute.xlu0 %1592
  %1596 = vset.pattern.permute.xlu0 0
  %1597 = vperm.xlu0 %1596, %v1380
  %v1598 = vpop.permute.xlu0 %1597
  %1601 = vset.pattern.permute.xlu0 0
  %1602 = vperm.xlu0 %1601, %v1381
  %v1603 = vpop.permute.xlu0 %1602
  %1606 = vset.pattern.permute.xlu0 0
  %1607 = vperm.xlu0 %1606, %v1382
  %v1608 = vpop.permute.xlu0 %1607
  %1611 = vset.pattern.permute.xlu0 0
  %1612 = vperm.xlu0 %1611, %v1383
  %v1613 = vpop.permute.xlu0 %1612
  %1616 = vset.pattern.permute.xlu0 0
  %1617 = vperm.xlu0 %1616, %v1384
  %v1618 = vpop.permute.xlu0 %1617
  %1621 = vset.pattern.permute.xlu0 0
  %1622 = vperm.xlu0 %1621, %v1385
  %v1623 = vpop.permute.xlu0 %1622
  %1626 = vset.pattern.permute.xlu0 0
  %1627 = vperm.xlu0 %1626, %v1386
  %v1628 = vpop.permute.xlu0 %1627
  %1631 = vset.pattern.permute.xlu0 0
  %1632 = vperm.xlu0 %1631, %v1387
  %v1633 = vpop.permute.xlu0 %1632
  %1636 = vset.pattern.permute.xlu0 0
  %1637 = vperm.xlu0 %1636, %v1388
  %v1638 = vpop.permute.xlu0 %1637
  %1641 = vset.pattern.permute.xlu0 0
  %1642 = vperm.xlu0 %1641, %v1389
  %v1643 = vpop.permute.xlu0 %1642
  %1646 = vset.pattern.permute.xlu0 0
  %1647 = vperm.xlu0 %1646, %v1390
  %v1648 = vpop.permute.xlu0 %1647
  %1651 = vset.pattern.permute.xlu0 0
  %1652 = vperm.xlu0 %1651, %v1391
  %v1653 = vpop.permute.xlu0 %1652
  %1656 = vset.pattern.permute.xlu0 0
  %1657 = vperm.xlu0 %1656, %v1392
  %v1658 = vpop.permute.xlu0 %1657
  %1661 = vset.pattern.permute.xlu0 0
  %1662 = vperm.xlu0 %1661, %v1393
  %v1663 = vpop.permute.xlu0 %1662
  %1666 = vset.pattern.permute.xlu0 0
  %1667 = vperm.xlu0 %1666, %v1394
  %v1668 = vpop.permute.xlu0 %1667
  %1671 = vset.pattern.permute.xlu0 0
  %1672 = vperm.xlu0 %1671, %v1395
  %v1673 = vpop.permute.xlu0 %1672
  %1676 = vset.pattern.permute.xlu0 0
  %1677 = vperm.xlu0 %1676, %v1396
  %v1678 = vpop.permute.xlu0 %1677
  %1681 = vset.pattern.permute.xlu0 0
  %1682 = vperm.xlu0 %1681, %v1397
  %v1683 = vpop.permute.xlu0 %1682
  %1686 = vset.pattern.permute.xlu0 0
  %1687 = vperm.xlu0 %1686, %v1398
  %v1688 = vpop.permute.xlu0 %1687
  %1691 = vset.pattern.permute.xlu0 0
  %1692 = vperm.xlu0 %1691, %v1399
  %v1693 = vpop.permute.xlu0 %1692
  %1696 = vset.pattern.permute.xlu0 0
  %1697 = vperm.xlu0 %1696, %v1400
  %v1698 = vpop.permute.xlu0 %1697
  %1701 = vset.pattern.permute.xlu0 0
  %1702 = vperm.xlu0 %1701, %v1401
  %v1703 = vpop.permute.xlu0 %1702
  %1706 = vset.pattern.permute.xlu0 0
  %1707 = vperm.xlu0 %1706, %v1402
  %v1708 = vpop.permute.xlu0 %1707
  %1711 = vset.pattern.permute.xlu0 0
  %1712 = vperm.xlu0 %1711, %v1403
  %v1713 = vpop.permute.xlu0 %1712
  %1716 = vset.pattern.permute.xlu0 0
  %1717 = vperm.xlu0 %1716, %v1404
  %v1718 = vpop.permute.xlu0 %1717
  %1721 = vset.pattern.permute.xlu0 0
  %1722 = vperm.xlu0 %1721, %v1405
  %v1723 = vpop.permute.xlu0 %1722
  %1726 = vset.pattern.permute.xlu0 0
  %1727 = vperm.xlu0 %1726, %v1406
  %v1728 = vpop.permute.xlu0 %1727
  %1731 = vset.pattern.permute.xlu0 0
  %1732 = vperm.xlu0 %1731, %v1407
  %v1733 = vpop.permute.xlu0 %1732
  %1736 = vset.pattern.permute.xlu0 0
  %1737 = vperm.xlu0 %1736, %v1408
  %v1738 = vpop.permute.xlu0 %1737
  %1741 = vset.pattern.permute.xlu0 0
  %1742 = vperm.xlu0 %1741, %v1409
  %v1743 = vpop.permute.xlu0 %1742
  %1746 = vset.pattern.permute.xlu0 0
  %1747 = vperm.xlu0 %1746, %v1410
  %v1748 = vpop.permute.xlu0 %1747
  %1751 = vset.pattern.permute.xlu0 0
  %1752 = vperm.xlu0 %1751, %v1411
  %v1753 = vpop.permute.xlu0 %1752
  %1756 = vset.pattern.permute.xlu0 0
  %1757 = vperm.xlu0 %1756, %v1412
  %v1758 = vpop.permute.xlu0 %1757
  %1761 = vset.pattern.permute.xlu0 0
  %1762 = vperm.xlu0 %1761, %v1413
  %v1763 = vpop.permute.xlu0 %1762
  %1766 = vset.pattern.permute.xlu0 0
  %1767 = vperm.xlu0 %1766, %v1414
  %v1768 = vpop.permute.xlu0 %1767
  %1771 = vset.pattern.permute.xlu0 0
  %1772 = vperm.xlu0 %1771, %v1415
  %v1773 = vpop.permute.xlu0 %1772
  %1776 = vset.pattern.permute.xlu0 0
  %1777 = vperm.xlu0 %1776, %v1416
  %v1778 = vpop.permute.xlu0 %1777
  %1781 = vset.pattern.permute.xlu0 0
  %1782 = vperm.xlu0 %1781, %v1417
  %v1783 = vpop.permute.xlu0 %1782
  %1786 = vset.pattern.permute.xlu0 0
  %1787 = vperm.xlu0 %1786, %v1418
  %v1788 = vpop.permute.xlu0 %1787
  %1791 = vset.pattern.permute.xlu0 0
  %1792 = vperm.xlu0 %1791, %v1419
  %v1793 = vpop.permute.xlu0 %1792
  %1796 = vset.pattern.permute.xlu0 0
  %1797 = vperm.xlu0 %1796, %v1420
  %v1798 = vpop.permute.xlu0 %1797
  %1801 = vset.pattern.permute.xlu0 0
  %1802 = vperm.xlu0 %1801, %v1421
  %v1803 = vpop.permute.xlu0 %1802
  %1806 = vset.pattern.permute.xlu0 0
  %1807 = vperm.xlu0 %1806, %v1422
  %v1808 = vpop.permute.xlu0 %1807
  %1811 = vset.pattern.permute.xlu0 0
  %1812 = vperm.xlu0 %1811, %v1423
  %v1813 = vpop.permute.xlu0 %1812
  %1816 = vset.pattern.permute.xlu0 0
  %1817 = vperm.xlu0 %1816, %v1424
  %v1818 = vpop.permute.xlu0 %1817
  %1821 = vset.pattern.permute.xlu0 0
  %1822 = vperm.xlu0 %1821, %v1425
  %v1823 = vpop.permute.xlu0 %1822
  %1826 = vset.pattern.permute.xlu0 0
  %1827 = vperm.xlu0 %1826, %v1426
  %v1828 = vpop.permute.xlu0 %1827
  %1831 = vset.pattern.permute.xlu0 0
  %1832 = vperm.xlu0 %1831, %v1427
  %v1833 = vpop.permute.xlu0 %1832
  %v1835 = vmul.f32 %v1144, %v1433
  %v1836 = vmul.f32 %v1146, %v1438
  %v1837 = vmul.f32 %v1149, %v1443
  %v1838 = vmul.f32 %v1151, %v1448
  %v1839 = vmul.f32 %v1154, %v1453
  %v1840 = vmul.f32 %v1156, %v1458
  %v1841 = vmul.f32 %v1159, %v1463
  %v1842 = vmul.f32 %v1161, %v1468
  %v1843 = vmul.f32 %v1164, %v1473
  %v1844 = vmul.f32 %v1166, %v1478
  %v1845 = vmul.f32 %v1169, %v1483
  %v1846 = vmul.f32 %v1171, %v1488
  %v1847 = vmul.f32 %v1174, %v1493
  %v1848 = vmul.f32 %v1176, %v1498
  %v1849 = vmul.f32 %v1179, %v1503
  %v1850 = vmul.f32 %v1181, %v1508
  %v1851 = vmul.f32 %v1184, %v1513
  %v1852 = vmul.f32 %v1186, %v1518
  %v1853 = vmul.f32 %v1189, %v1523
  %v1854 = vmul.f32 %v1191, %v1528
  %v1855 = vmul.f32 %v1194, %v1533
  %v1856 = vmul.f32 %v1196, %v1538
  %v1857 = vmul.f32 %v1199, %v1543
  %v1858 = vmul.f32 %v1201, %v1548
  %v1859 = vmul.f32 %v1204, %v1553
  %v1860 = vmul.f32 %v1206, %v1558
  %v1861 = vmul.f32 %v1209, %v1563
  %v1862 = vmul.f32 %v1211, %v1568
  %v1863 = vmul.f32 %v1214, %v1573
  %v1864 = vmul.f32 %v1216, %v1578
  %v1865 = vmul.f32 %v1219, %v1583
  %v1866 = vmul.f32 %v1221, %v1588
  %v1867 = vmul.f32 %v1224, %v1593
  %v1868 = vmul.f32 %v1226, %v1598
  %v1869 = vmul.f32 %v1229, %v1603
  %v1870 = vmul.f32 %v1231, %v1608
  %v1871 = vmul.f32 %v1234, %v1613
  %v1872 = vmul.f32 %v1236, %v1618
  %v1873 = vmul.f32 %v1239, %v1623
  %v1874 = vmul.f32 %v1241, %v1628
  %v1875 = vmul.f32 %v1244, %v1633
  %v1876 = vmul.f32 %v1246, %v1638
  %v1877 = vmul.f32 %v1249, %v1643
  %v1878 = vmul.f32 %v1251, %v1648
  %v1879 = vmul.f32 %v1254, %v1653
  %v1880 = vmul.f32 %v1256, %v1658
  %v1881 = vmul.f32 %v1259, %v1663
  %v1882 = vmul.f32 %v1261, %v1668
  %v1883 = vmul.f32 %v1264, %v1673
  %v1884 = vmul.f32 %v1266, %v1678
  %v1885 = vmul.f32 %v1269, %v1683
  %v1886 = vmul.f32 %v1271, %v1688
  %v1887 = vmul.f32 %v1274, %v1693
  %v1888 = vmul.f32 %v1276, %v1698
  %v1889 = vmul.f32 %v1279, %v1703
  %v1890 = vmul.f32 %v1281, %v1708
  %v1891 = vmul.f32 %v1284, %v1713
  %v1892 = vmul.f32 %v1286, %v1718
  %v1893 = vmul.f32 %v1289, %v1723
  %v1894 = vmul.f32 %v1291, %v1728
  %v1895 = vmul.f32 %v1294, %v1733
  %v1896 = vmul.f32 %v1296, %v1738
  %v1897 = vmul.f32 %v1299, %v1743
  %v1898 = vmul.f32 %v1301, %v1748
  %v1899 = vmul.f32 %v1304, %v1753
  %v1900 = vmul.f32 %v1306, %v1758
  %v1901 = vmul.f32 %v1309, %v1763
  %v1902 = vmul.f32 %v1311, %v1768
  %v1903 = vmul.f32 %v1314, %v1773
  %v1904 = vmul.f32 %v1316, %v1778
  %v1905 = vmul.f32 %v1319, %v1783
  %v1906 = vmul.f32 %v1321, %v1788
  %v1907 = vmul.f32 %v1324, %v1793
  %v1908 = vmul.f32 %v1326, %v1798
  %v1909 = vmul.f32 %v1329, %v1803
  %v1910 = vmul.f32 %v1331, %v1808
  %v1911 = vmul.f32 %v1334, %v1813
  %v1912 = vmul.f32 %v1336, %v1818
  %v1913 = vmul.f32 %v1339, %v1823
  %v1914 = vmul.f32 %v1341, %v1828
  %v1915 = vmul.f32 %v1344, %v1833
  %vm1916 = vcmask 392192
  %v1917 = vsel %vm1916, %v1835, 0.0
  %v1918 = vsel %vm1916, %v1836, 0.0
  %v1919 = vadd.f32 %v1917, %v1918
  %v1920 = vsel %vm1916, %v1837, 0.0
  %v1921 = vadd.f32 %v1919, %v1920
  %v1922 = vsel %vm1916, %v1838, 0.0
  %v1923 = vadd.f32 %v1921, %v1922
  %v1924 = vsel %vm1916, %v1839, 0.0
  %v1925 = vadd.f32 %v1923, %v1924
  %v1926 = vsel %vm1916, %v1840, 0.0
  %v1927 = vadd.f32 %v1925, %v1926
  %v1928 = vsel %vm1916, %v1841, 0.0
  %v1929 = vadd.f32 %v1927, %v1928
  %v1930 = vsel %vm1916, %v1842, 0.0
  %v1931 = vadd.f32 %v1929, %v1930
  %v1932 = vsel %vm1916, %v1843, 0.0
  %v1933 = vadd.f32 %v1931, %v1932
  %v1934 = vsel %vm1916, %v1844, 0.0
  %v1935 = vadd.f32 %v1933, %v1934
  %v1936 = vsel %vm1916, %v1845, 0.0
  %v1937 = vadd.f32 %v1935, %v1936
  %v1938 = vsel %vm1916, %v1846, 0.0
  %v1939 = vadd.f32 %v1937, %v1938
  %v1940 = vsel %vm1916, %v1847, 0.0
  %v1941 = vadd.f32 %v1939, %v1940
  %v1942 = vsel %vm1916, %v1848, 0.0
  %v1943 = vadd.f32 %v1941, %v1942
  %v1944 = vsel %vm1916, %v1849, 0.0
  %v1945 = vadd.f32 %v1943, %v1944
  %v1946 = vsel %vm1916, %v1850, 0.0
  %v1947 = vadd.f32 %v1945, %v1946
  %v1948 = vsel %vm1916, %v1851, 0.0
  %v1949 = vadd.f32 %v1947, %v1948
  %v1950 = vsel %vm1916, %v1852, 0.0
  %v1951 = vadd.f32 %v1949, %v1950
  %v1952 = vsel %vm1916, %v1853, 0.0
  %v1953 = vadd.f32 %v1951, %v1952
  %v1954 = vsel %vm1916, %v1854, 0.0
  %v1955 = vadd.f32 %v1953, %v1954
  %v1956 = vsel %vm1916, %v1855, 0.0
  %v1957 = vadd.f32 %v1955, %v1956
  %v1958 = vsel %vm1916, %v1856, 0.0
  %v1959 = vadd.f32 %v1957, %v1958
  %v1960 = vsel %vm1916, %v1857, 0.0
  %v1961 = vadd.f32 %v1959, %v1960
  %v1962 = vsel %vm1916, %v1858, 0.0
  %v1963 = vadd.f32 %v1961, %v1962
  %v1964 = vsel %vm1916, %v1859, 0.0
  %v1965 = vadd.f32 %v1963, %v1964
  %v1966 = vsel %vm1916, %v1860, 0.0
  %v1967 = vadd.f32 %v1965, %v1966
  %v1968 = vsel %vm1916, %v1861, 0.0
  %v1969 = vadd.f32 %v1967, %v1968
  %v1970 = vsel %vm1916, %v1862, 0.0
  %v1971 = vadd.f32 %v1969, %v1970
  %v1972 = vsel %vm1916, %v1863, 0.0
  %v1973 = vadd.f32 %v1971, %v1972
  %v1974 = vsel %vm1916, %v1864, 0.0
  %v1975 = vadd.f32 %v1973, %v1974
  %v1976 = vsel %vm1916, %v1865, 0.0
  %v1977 = vadd.f32 %v1975, %v1976
  %v1978 = vsel %vm1916, %v1866, 0.0
  %v1979 = vadd.f32 %v1977, %v1978
  %v1980 = vsel %vm1916, %v1867, 0.0
  %v1981 = vadd.f32 %v1979, %v1980
  %v1982 = vsel %vm1916, %v1868, 0.0
  %v1983 = vadd.f32 %v1981, %v1982
  %v1984 = vsel %vm1916, %v1869, 0.0
  %v1985 = vadd.f32 %v1983, %v1984
  %v1986 = vsel %vm1916, %v1870, 0.0
  %v1987 = vadd.f32 %v1985, %v1986
  %v1988 = vsel %vm1916, %v1871, 0.0
  %v1989 = vadd.f32 %v1987, %v1988
  %v1990 = vsel %vm1916, %v1872, 0.0
  %v1991 = vadd.f32 %v1989, %v1990
  %v1992 = vsel %vm1916, %v1873, 0.0
  %v1993 = vadd.f32 %v1991, %v1992
  %v1994 = vsel %vm1916, %v1874, 0.0
  %v1995 = vadd.f32 %v1993, %v1994
  %v1996 = vsel %vm1916, %v1875, 0.0
  %v1997 = vadd.f32 %v1995, %v1996
  %v1998 = vsel %vm1916, %v1876, 0.0
  %v1999 = vadd.f32 %v1997, %v1998
  %v2000 = vsel %vm1916, %v1877, 0.0
  %v2001 = vadd.f32 %v1999, %v2000
  %v2002 = vsel %vm1916, %v1878, 0.0
  %v2003 = vadd.f32 %v2001, %v2002
  %v2004 = vsel %vm1916, %v1879, 0.0
  %v2005 = vadd.f32 %v2003, %v2004
  %v2006 = vsel %vm1916, %v1880, 0.0
  %v2007 = vadd.f32 %v2005, %v2006
  %v2008 = vsel %vm1916, %v1881, 0.0
  %v2009 = vadd.f32 %v2007, %v2008
  %v2010 = vsel %vm1916, %v1882, 0.0
  %v2011 = vadd.f32 %v2009, %v2010
  %v2012 = vsel %vm1916, %v1883, 0.0
  %v2013 = vadd.f32 %v2011, %v2012
  %v2014 = vsel %vm1916, %v1884, 0.0
  %v2015 = vadd.f32 %v2013, %v2014
  %v2016 = vsel %vm1916, %v1885, 0.0
  %v2017 = vadd.f32 %v2015, %v2016
  %v2018 = vsel %vm1916, %v1886, 0.0
  %v2019 = vadd.f32 %v2017, %v2018
  %v2020 = vsel %vm1916, %v1887, 0.0
  %v2021 = vadd.f32 %v2019, %v2020
  %v2022 = vsel %vm1916, %v1888, 0.0
  %v2023 = vadd.f32 %v2021, %v2022
  %v2024 = vsel %vm1916, %v1889, 0.0
  %v2025 = vadd.f32 %v2023, %v2024
  %v2026 = vsel %vm1916, %v1890, 0.0
  %v2027 = vadd.f32 %v2025, %v2026
  %v2028 = vsel %vm1916, %v1891, 0.0
  %v2029 = vadd.f32 %v2027, %v2028
  %v2030 = vsel %vm1916, %v1892, 0.0
  %v2031 = vadd.f32 %v2029, %v2030
  %v2032 = vsel %vm1916, %v1893, 0.0
  %v2033 = vadd.f32 %v2031, %v2032
  %v2034 = vsel %vm1916, %v1894, 0.0
  %v2035 = vadd.f32 %v2033, %v2034
  %v2036 = vsel %vm1916, %v1895, 0.0
  %v2037 = vadd.f32 %v2035, %v2036
  %v2038 = vsel %vm1916, %v1896, 0.0
  %v2039 = vadd.f32 %v2037, %v2038
  %v2040 = vsel %vm1916, %v1897, 0.0
  %v2041 = vadd.f32 %v2039, %v2040
  %v2042 = vsel %vm1916, %v1898, 0.0
  %v2043 = vadd.f32 %v2041, %v2042
  %v2044 = vsel %vm1916, %v1899, 0.0
  %v2045 = vadd.f32 %v2043, %v2044
  %v2046 = vsel %vm1916, %v1900, 0.0
  %v2047 = vadd.f32 %v2045, %v2046
  %v2048 = vsel %vm1916, %v1901, 0.0
  %v2049 = vadd.f32 %v2047, %v2048
  %v2050 = vsel %vm1916, %v1902, 0.0
  %v2051 = vadd.f32 %v2049, %v2050
  %v2052 = vsel %vm1916, %v1903, 0.0
  %v2053 = vadd.f32 %v2051, %v2052
  %v2054 = vsel %vm1916, %v1904, 0.0
  %v2055 = vadd.f32 %v2053, %v2054
  %v2056 = vsel %vm1916, %v1905, 0.0
  %v2057 = vadd.f32 %v2055, %v2056
  %v2058 = vsel %vm1916, %v1906, 0.0
  %v2059 = vadd.f32 %v2057, %v2058
  %v2060 = vsel %vm1916, %v1907, 0.0
  %v2061 = vadd.f32 %v2059, %v2060
  %v2062 = vsel %vm1916, %v1908, 0.0
  %v2063 = vadd.f32 %v2061, %v2062
  %v2064 = vsel %vm1916, %v1909, 0.0
  %v2065 = vadd.f32 %v2063, %v2064
  %v2066 = vsel %vm1916, %v1910, 0.0
  %v2067 = vadd.f32 %v2065, %v2066
  %v2068 = vsel %vm1916, %v1911, 0.0
  %v2069 = vadd.f32 %v2067, %v2068
  %v2070 = vsel %vm1916, %v1912, 0.0
  %v2071 = vadd.f32 %v2069, %v2070
  %v2072 = vsel %vm1916, %v1913, 0.0
  %v2073 = vadd.f32 %v2071, %v2072
  %v2074 = vsel %vm1916, %v1914, 0.0
  %v2075 = vadd.f32 %v2073, %v2074
  %v2076 = vsel %vm1916, %v1915, 0.0
  %v2077 = vadd.f32 %v2075, %v2076
  %v2078 = vrot.slane %v2077, 4
  %v2079 = vadd.f32 %v2077, %v2078
  %v2080 = vrot.slane %v2079, 2
  %v2081 = vadd.f32 %v2079, %v2080
  %v2082 = vrot.slane %v2081, 1
  %v2083 = vadd.f32 %v2081, %v2082
  %v2084 = vmul.f32 %v2083, 0.001953125
  %v2085 = vsub.f32 %v1144, %v2084
  %v2086 = vsub.f32 %v1146, %v2084
  %v2087 = vsub.f32 %v1149, %v2084
  %v2088 = vsub.f32 %v1151, %v2084
  %v2089 = vsub.f32 %v1154, %v2084
  %v2090 = vsub.f32 %v1156, %v2084
  %v2091 = vsub.f32 %v1159, %v2084
  %v2092 = vsub.f32 %v1161, %v2084
  %v2093 = vsub.f32 %v1164, %v2084
  %v2094 = vsub.f32 %v1166, %v2084
  %v2095 = vsub.f32 %v1169, %v2084
  %v2096 = vsub.f32 %v1171, %v2084
  %v2097 = vsub.f32 %v1174, %v2084
  %v2098 = vsub.f32 %v1176, %v2084
  %v2099 = vsub.f32 %v1179, %v2084
  %v2100 = vsub.f32 %v1181, %v2084
  %v2101 = vsub.f32 %v1184, %v2084
  %v2102 = vsub.f32 %v1186, %v2084
  %v2103 = vsub.f32 %v1189, %v2084
  %v2104 = vsub.f32 %v1191, %v2084
  %v2105 = vsub.f32 %v1194, %v2084
  %v2106 = vsub.f32 %v1196, %v2084
  %v2107 = vsub.f32 %v1199, %v2084
  %v2108 = vsub.f32 %v1201, %v2084
  %v2109 = vsub.f32 %v1204, %v2084
  %v2110 = vsub.f32 %v1206, %v2084
  %v2111 = vsub.f32 %v1209, %v2084
  %v2112 = vsub.f32 %v1211, %v2084
  %v2113 = vsub.f32 %v1214, %v2084
  %v2114 = vsub.f32 %v1216, %v2084
  %v2115 = vsub.f32 %v1219, %v2084
  %v2116 = vsub.f32 %v1221, %v2084
  %v2117 = vsub.f32 %v1224, %v2084
  %v2118 = vsub.f32 %v1226, %v2084
  %v2119 = vsub.f32 %v1229, %v2084
  %v2120 = vsub.f32 %v1231, %v2084
  %v2121 = vsub.f32 %v1234, %v2084
  %v2122 = vsub.f32 %v1236, %v2084
  %v2123 = vsub.f32 %v1239, %v2084
  %v2124 = vsub.f32 %v1241, %v2084
  %v2125 = vsub.f32 %v1244, %v2084
  %v2126 = vsub.f32 %v1246, %v2084
  %v2127 = vsub.f32 %v1249, %v2084
  %v2128 = vsub.f32 %v1251, %v2084
  %v2129 = vsub.f32 %v1254, %v2084
  %v2130 = vsub.f32 %v1256, %v2084
  %v2131 = vsub.f32 %v1259, %v2084
  %v2132 = vsub.f32 %v1261, %v2084
  %v2133 = vsub.f32 %v1264, %v2084
  %v2134 = vsub.f32 %v1266, %v2084
  %v2135 = vsub.f32 %v1269, %v2084
  %v2136 = vsub.f32 %v1271, %v2084
  %v2137 = vsub.f32 %v1274, %v2084
  %v2138 = vsub.f32 %v1276, %v2084
  %v2139 = vsub.f32 %v1279, %v2084
  %v2140 = vsub.f32 %v1281, %v2084
  %v2141 = vsub.f32 %v1284, %v2084
  %v2142 = vsub.f32 %v1286, %v2084
  %v2143 = vsub.f32 %v1289, %v2084
  %v2144 = vsub.f32 %v1291, %v2084
  %v2145 = vsub.f32 %v1294, %v2084
  %v2146 = vsub.f32 %v1296, %v2084
  %v2147 = vsub.f32 %v1299, %v2084
  %v2148 = vsub.f32 %v1301, %v2084
  %v2149 = vsub.f32 %v1304, %v2084
  %v2150 = vsub.f32 %v1306, %v2084
  %v2151 = vsub.f32 %v1309, %v2084
  %v2152 = vsub.f32 %v1311, %v2084
  %v2153 = vsub.f32 %v1314, %v2084
  %v2154 = vsub.f32 %v1316, %v2084
  %v2155 = vsub.f32 %v1319, %v2084
  %v2156 = vsub.f32 %v1321, %v2084
  %v2157 = vsub.f32 %v1324, %v2084
  %v2158 = vsub.f32 %v1326, %v2084
  %v2159 = vsub.f32 %v1329, %v2084
  %v2160 = vsub.f32 %v1331, %v2084
  %v2161 = vsub.f32 %v1334, %v2084
  %v2162 = vsub.f32 %v1336, %v2084
  %v2163 = vsub.f32 %v1339, %v2084
  %v2164 = vsub.f32 %v1341, %v2084
  %v2165 = vsub.f32 %v1344, %v2084
  %v2166 = vmul.f32 %v2085, %v1433
  %v2167 = vmul.f32 %v2086, %v1438
  %v2168 = vmul.f32 %v2087, %v1443
  %v2169 = vmul.f32 %v2088, %v1448
  %v2170 = vmul.f32 %v2089, %v1453
  %v2171 = vmul.f32 %v2090, %v1458
  %v2172 = vmul.f32 %v2091, %v1463
  %v2173 = vmul.f32 %v2092, %v1468
  %v2174 = vmul.f32 %v2093, %v1473
  %v2175 = vmul.f32 %v2094, %v1478
  %v2176 = vmul.f32 %v2095, %v1483
  %v2177 = vmul.f32 %v2096, %v1488
  %v2178 = vmul.f32 %v2097, %v1493
  %v2179 = vmul.f32 %v2098, %v1498
  %v2180 = vmul.f32 %v2099, %v1503
  %v2181 = vmul.f32 %v2100, %v1508
  %v2182 = vmul.f32 %v2101, %v1513
  %v2183 = vmul.f32 %v2102, %v1518
  %v2184 = vmul.f32 %v2103, %v1523
  %v2185 = vmul.f32 %v2104, %v1528
  %v2186 = vmul.f32 %v2105, %v1533
  %v2187 = vmul.f32 %v2106, %v1538
  %v2188 = vmul.f32 %v2107, %v1543
  %v2189 = vmul.f32 %v2108, %v1548
  %v2190 = vmul.f32 %v2109, %v1553
  %v2191 = vmul.f32 %v2110, %v1558
  %v2192 = vmul.f32 %v2111, %v1563
  %v2193 = vmul.f32 %v2112, %v1568
  %v2194 = vmul.f32 %v2113, %v1573
  %v2195 = vmul.f32 %v2114, %v1578
  %v2196 = vmul.f32 %v2115, %v1583
  %v2197 = vmul.f32 %v2116, %v1588
  %v2198 = vmul.f32 %v2117, %v1593
  %v2199 = vmul.f32 %v2118, %v1598
  %v2200 = vmul.f32 %v2119, %v1603
  %v2201 = vmul.f32 %v2120, %v1608
  %v2202 = vmul.f32 %v2121, %v1613
  %v2203 = vmul.f32 %v2122, %v1618
  %v2204 = vmul.f32 %v2123, %v1623
  %v2205 = vmul.f32 %v2124, %v1628
  %v2206 = vmul.f32 %v2125, %v1633
  %v2207 = vmul.f32 %v2126, %v1638
  %v2208 = vmul.f32 %v2127, %v1643
  %v2209 = vmul.f32 %v2128, %v1648
  %v2210 = vmul.f32 %v2129, %v1653
  %v2211 = vmul.f32 %v2130, %v1658
  %v2212 = vmul.f32 %v2131, %v1663
  %v2213 = vmul.f32 %v2132, %v1668
  %v2214 = vmul.f32 %v2133, %v1673
  %v2215 = vmul.f32 %v2134, %v1678
  %v2216 = vmul.f32 %v2135, %v1683
  %v2217 = vmul.f32 %v2136, %v1688
  %v2218 = vmul.f32 %v2137, %v1693
  %v2219 = vmul.f32 %v2138, %v1698
  %v2220 = vmul.f32 %v2139, %v1703
  %v2221 = vmul.f32 %v2140, %v1708
  %v2222 = vmul.f32 %v2141, %v1713
  %v2223 = vmul.f32 %v2142, %v1718
  %v2224 = vmul.f32 %v2143, %v1723
  %v2225 = vmul.f32 %v2144, %v1728
  %v2226 = vmul.f32 %v2145, %v1733
  %v2227 = vmul.f32 %v2146, %v1738
  %v2228 = vmul.f32 %v2147, %v1743
  %v2229 = vmul.f32 %v2148, %v1748
  %v2230 = vmul.f32 %v2149, %v1753
  %v2231 = vmul.f32 %v2150, %v1758
  %v2232 = vmul.f32 %v2151, %v1763
  %v2233 = vmul.f32 %v2152, %v1768
  %v2234 = vmul.f32 %v2153, %v1773
  %v2235 = vmul.f32 %v2154, %v1778
  %v2236 = vmul.f32 %v2155, %v1783
  %v2237 = vmul.f32 %v2156, %v1788
  %v2238 = vmul.f32 %v2157, %v1793
  %v2239 = vmul.f32 %v2158, %v1798
  %v2240 = vmul.f32 %v2159, %v1803
  %v2241 = vmul.f32 %v2160, %v1808
  %v2242 = vmul.f32 %v2161, %v1813
  %v2243 = vmul.f32 %v2162, %v1818
  %v2244 = vmul.f32 %v2163, %v1823
  %v2245 = vmul.f32 %v2164, %v1828
  %v2246 = vmul.f32 %v2165, %v1833
  %v2247 = vmul.f32 %v2166, %v2166
  %v2248 = vmul.f32 %v2167, %v2167
  %v2249 = vmul.f32 %v2168, %v2168
  %v2250 = vmul.f32 %v2169, %v2169
  %v2251 = vmul.f32 %v2170, %v2170
  %v2252 = vmul.f32 %v2171, %v2171
  %v2253 = vmul.f32 %v2172, %v2172
  %v2254 = vmul.f32 %v2173, %v2173
  %v2255 = vmul.f32 %v2174, %v2174
  %v2256 = vmul.f32 %v2175, %v2175
  %v2257 = vmul.f32 %v2176, %v2176
  %v2258 = vmul.f32 %v2177, %v2177
  %v2259 = vmul.f32 %v2178, %v2178
  %v2260 = vmul.f32 %v2179, %v2179
  %v2261 = vmul.f32 %v2180, %v2180
  %v2262 = vmul.f32 %v2181, %v2181
  %v2263 = vmul.f32 %v2182, %v2182
  %v2264 = vmul.f32 %v2183, %v2183
  %v2265 = vmul.f32 %v2184, %v2184
  %v2266 = vmul.f32 %v2185, %v2185
  %v2267 = vmul.f32 %v2186, %v2186
  %v2268 = vmul.f32 %v2187, %v2187
  %v2269 = vmul.f32 %v2188, %v2188
  %v2270 = vmul.f32 %v2189, %v2189
  %v2271 = vmul.f32 %v2190, %v2190
  %v2272 = vmul.f32 %v2191, %v2191
  %v2273 = vmul.f32 %v2192, %v2192
  %v2274 = vmul.f32 %v2193, %v2193
  %v2275 = vmul.f32 %v2194, %v2194
  %v2276 = vmul.f32 %v2195, %v2195
  %v2277 = vmul.f32 %v2196, %v2196
  %v2278 = vmul.f32 %v2197, %v2197
  %v2279 = vmul.f32 %v2198, %v2198
  %v2280 = vmul.f32 %v2199, %v2199
  %v2281 = vmul.f32 %v2200, %v2200
  %v2282 = vmul.f32 %v2201, %v2201
  %v2283 = vmul.f32 %v2202, %v2202
  %v2284 = vmul.f32 %v2203, %v2203
  %v2285 = vmul.f32 %v2204, %v2204
  %v2286 = vmul.f32 %v2205, %v2205
  %v2287 = vmul.f32 %v2206, %v2206
  %v2288 = vmul.f32 %v2207, %v2207
  %v2289 = vmul.f32 %v2208, %v2208
  %v2290 = vmul.f32 %v2209, %v2209
  %v2291 = vmul.f32 %v2210, %v2210
  %v2292 = vmul.f32 %v2211, %v2211
  %v2293 = vmul.f32 %v2212, %v2212
  %v2294 = vmul.f32 %v2213, %v2213
  %v2295 = vmul.f32 %v2214, %v2214
  %v2296 = vmul.f32 %v2215, %v2215
  %v2297 = vmul.f32 %v2216, %v2216
  %v2298 = vmul.f32 %v2217, %v2217
  %v2299 = vmul.f32 %v2218, %v2218
  %v2300 = vmul.f32 %v2219, %v2219
  %v2301 = vmul.f32 %v2220, %v2220
  %v2302 = vmul.f32 %v2221, %v2221
  %v2303 = vmul.f32 %v2222, %v2222
  %v2304 = vmul.f32 %v2223, %v2223
  %v2305 = vmul.f32 %v2224, %v2224
  %v2306 = vmul.f32 %v2225, %v2225
  %v2307 = vmul.f32 %v2226, %v2226
  %v2308 = vmul.f32 %v2227, %v2227
  %v2309 = vmul.f32 %v2228, %v2228
  %v2310 = vmul.f32 %v2229, %v2229
  %v2311 = vmul.f32 %v2230, %v2230
  %v2312 = vmul.f32 %v2231, %v2231
  %v2313 = vmul.f32 %v2232, %v2232
  %v2314 = vmul.f32 %v2233, %v2233
  %v2315 = vmul.f32 %v2234, %v2234
  %v2316 = vmul.f32 %v2235, %v2235
  %v2317 = vmul.f32 %v2236, %v2236
  %v2318 = vmul.f32 %v2237, %v2237
  %v2319 = vmul.f32 %v2238, %v2238
  %v2320 = vmul.f32 %v2239, %v2239
  %v2321 = vmul.f32 %v2240, %v2240
  %v2322 = vmul.f32 %v2241, %v2241
  %v2323 = vmul.f32 %v2242, %v2242
  %v2324 = vmul.f32 %v2243, %v2243
  %v2325 = vmul.f32 %v2244, %v2244
  %v2326 = vmul.f32 %v2245, %v2245
  %v2327 = vmul.f32 %v2246, %v2246
  %v2328 = vsel %vm1916, %v2247, 0.0
  %v2329 = vsel %vm1916, %v2248, 0.0
  %v2330 = vadd.f32 %v2328, %v2329
  %v2331 = vsel %vm1916, %v2249, 0.0
  %v2332 = vadd.f32 %v2330, %v2331
  %v2333 = vsel %vm1916, %v2250, 0.0
  %v2334 = vadd.f32 %v2332, %v2333
  %v2335 = vsel %vm1916, %v2251, 0.0
  %v2336 = vadd.f32 %v2334, %v2335
  %v2337 = vsel %vm1916, %v2252, 0.0
  %v2338 = vadd.f32 %v2336, %v2337
  %v2339 = vsel %vm1916, %v2253, 0.0
  %v2340 = vadd.f32 %v2338, %v2339
  %v2341 = vsel %vm1916, %v2254, 0.0
  %v2342 = vadd.f32 %v2340, %v2341
  %v2343 = vsel %vm1916, %v2255, 0.0
  %v2344 = vadd.f32 %v2342, %v2343
  %v2345 = vsel %vm1916, %v2256, 0.0
  %v2346 = vadd.f32 %v2344, %v2345
  %v2347 = vsel %vm1916, %v2257, 0.0
  %v2348 = vadd.f32 %v2346, %v2347
  %v2349 = vsel %vm1916, %v2258, 0.0
  %v2350 = vadd.f32 %v2348, %v2349
  %v2351 = vsel %vm1916, %v2259, 0.0
  %v2352 = vadd.f32 %v2350, %v2351
  %v2353 = vsel %vm1916, %v2260, 0.0
  %v2354 = vadd.f32 %v2352, %v2353
  %v2355 = vsel %vm1916, %v2261, 0.0
  %v2356 = vadd.f32 %v2354, %v2355
  %v2357 = vsel %vm1916, %v2262, 0.0
  %v2358 = vadd.f32 %v2356, %v2357
  %v2359 = vsel %vm1916, %v2263, 0.0
  %v2360 = vadd.f32 %v2358, %v2359
  %v2361 = vsel %vm1916, %v2264, 0.0
  %v2362 = vadd.f32 %v2360, %v2361
  %v2363 = vsel %vm1916, %v2265, 0.0
  %v2364 = vadd.f32 %v2362, %v2363
  %v2365 = vsel %vm1916, %v2266, 0.0
  %v2366 = vadd.f32 %v2364, %v2365
  %v2367 = vsel %vm1916, %v2267, 0.0
  %v2368 = vadd.f32 %v2366, %v2367
  %v2369 = vsel %vm1916, %v2268, 0.0
  %v2370 = vadd.f32 %v2368, %v2369
  %v2371 = vsel %vm1916, %v2269, 0.0
  %v2372 = vadd.f32 %v2370, %v2371
  %v2373 = vsel %vm1916, %v2270, 0.0
  %v2374 = vadd.f32 %v2372, %v2373
  %v2375 = vsel %vm1916, %v2271, 0.0
  %v2376 = vadd.f32 %v2374, %v2375
  %v2377 = vsel %vm1916, %v2272, 0.0
  %v2378 = vadd.f32 %v2376, %v2377
  %v2379 = vsel %vm1916, %v2273, 0.0
  %v2380 = vadd.f32 %v2378, %v2379
  %v2381 = vsel %vm1916, %v2274, 0.0
  %v2382 = vadd.f32 %v2380, %v2381
  %v2383 = vsel %vm1916, %v2275, 0.0
  %v2384 = vadd.f32 %v2382, %v2383
  %v2385 = vsel %vm1916, %v2276, 0.0
  %v2386 = vadd.f32 %v2384, %v2385
  %v2387 = vsel %vm1916, %v2277, 0.0
  %v2388 = vadd.f32 %v2386, %v2387
  %v2389 = vsel %vm1916, %v2278, 0.0
  %v2390 = vadd.f32 %v2388, %v2389
  %v2391 = vsel %vm1916, %v2279, 0.0
  %v2392 = vadd.f32 %v2390, %v2391
  %v2393 = vsel %vm1916, %v2280, 0.0
  %v2394 = vadd.f32 %v2392, %v2393
  %v2395 = vsel %vm1916, %v2281, 0.0
  %v2396 = vadd.f32 %v2394, %v2395
  %v2397 = vsel %vm1916, %v2282, 0.0
  %v2398 = vadd.f32 %v2396, %v2397
  %v2399 = vsel %vm1916, %v2283, 0.0
  %v2400 = vadd.f32 %v2398, %v2399
  %v2401 = vsel %vm1916, %v2284, 0.0
  %v2402 = vadd.f32 %v2400, %v2401
  %v2403 = vsel %vm1916, %v2285, 0.0
  %v2404 = vadd.f32 %v2402, %v2403
  %v2405 = vsel %vm1916, %v2286, 0.0
  %v2406 = vadd.f32 %v2404, %v2405
  %v2407 = vsel %vm1916, %v2287, 0.0
  %v2408 = vadd.f32 %v2406, %v2407
  %v2409 = vsel %vm1916, %v2288, 0.0
  %v2410 = vadd.f32 %v2408, %v2409
  %v2411 = vsel %vm1916, %v2289, 0.0
  %v2412 = vadd.f32 %v2410, %v2411
  %v2413 = vsel %vm1916, %v2290, 0.0
  %v2414 = vadd.f32 %v2412, %v2413
  %v2415 = vsel %vm1916, %v2291, 0.0
  %v2416 = vadd.f32 %v2414, %v2415
  %v2417 = vsel %vm1916, %v2292, 0.0
  %v2418 = vadd.f32 %v2416, %v2417
  %v2419 = vsel %vm1916, %v2293, 0.0
  %v2420 = vadd.f32 %v2418, %v2419
  %v2421 = vsel %vm1916, %v2294, 0.0
  %v2422 = vadd.f32 %v2420, %v2421
  %v2423 = vsel %vm1916, %v2295, 0.0
  %v2424 = vadd.f32 %v2422, %v2423
  %v2425 = vsel %vm1916, %v2296, 0.0
  %v2426 = vadd.f32 %v2424, %v2425
  %v2427 = vsel %vm1916, %v2297, 0.0
  %v2428 = vadd.f32 %v2426, %v2427
  %v2429 = vsel %vm1916, %v2298, 0.0
  %v2430 = vadd.f32 %v2428, %v2429
  %v2431 = vsel %vm1916, %v2299, 0.0
  %v2432 = vadd.f32 %v2430, %v2431
  %v2433 = vsel %vm1916, %v2300, 0.0
  %v2434 = vadd.f32 %v2432, %v2433
  %v2435 = vsel %vm1916, %v2301, 0.0
  %v2436 = vadd.f32 %v2434, %v2435
  %v2437 = vsel %vm1916, %v2302, 0.0
  %v2438 = vadd.f32 %v2436, %v2437
  %v2439 = vsel %vm1916, %v2303, 0.0
  %v2440 = vadd.f32 %v2438, %v2439
  %v2441 = vsel %vm1916, %v2304, 0.0
  %v2442 = vadd.f32 %v2440, %v2441
  %v2443 = vsel %vm1916, %v2305, 0.0
  %v2444 = vadd.f32 %v2442, %v2443
  %v2445 = vsel %vm1916, %v2306, 0.0
  %v2446 = vadd.f32 %v2444, %v2445
  %v2447 = vsel %vm1916, %v2307, 0.0
  %v2448 = vadd.f32 %v2446, %v2447
  %v2449 = vsel %vm1916, %v2308, 0.0
  %v2450 = vadd.f32 %v2448, %v2449
  %v2451 = vsel %vm1916, %v2309, 0.0
  %v2452 = vadd.f32 %v2450, %v2451
  %v2453 = vsel %vm1916, %v2310, 0.0
  %v2454 = vadd.f32 %v2452, %v2453
  %v2455 = vsel %vm1916, %v2311, 0.0
  %v2456 = vadd.f32 %v2454, %v2455
  %v2457 = vsel %vm1916, %v2312, 0.0
  %v2458 = vadd.f32 %v2456, %v2457
  %v2459 = vsel %vm1916, %v2313, 0.0
  %v2460 = vadd.f32 %v2458, %v2459
  %v2461 = vsel %vm1916, %v2314, 0.0
  %v2462 = vadd.f32 %v2460, %v2461
  %v2463 = vsel %vm1916, %v2315, 0.0
  %v2464 = vadd.f32 %v2462, %v2463
  %v2465 = vsel %vm1916, %v2316, 0.0
  %v2466 = vadd.f32 %v2464, %v2465
  %v2467 = vsel %vm1916, %v2317, 0.0
  %v2468 = vadd.f32 %v2466, %v2467
  %v2469 = vsel %vm1916, %v2318, 0.0
  %v2470 = vadd.f32 %v2468, %v2469
  %v2471 = vsel %vm1916, %v2319, 0.0
  %v2472 = vadd.f32 %v2470, %v2471
  %v2473 = vsel %vm1916, %v2320, 0.0
  %v2474 = vadd.f32 %v2472, %v2473
  %v2475 = vsel %vm1916, %v2321, 0.0
  %v2476 = vadd.f32 %v2474, %v2475
  %v2477 = vsel %vm1916, %v2322, 0.0
  %v2478 = vadd.f32 %v2476, %v2477
  %v2479 = vsel %vm1916, %v2323, 0.0
  %v2480 = vadd.f32 %v2478, %v2479
  %v2481 = vsel %vm1916, %v2324, 0.0
  %v2482 = vadd.f32 %v2480, %v2481
  %v2483 = vsel %vm1916, %v2325, 0.0
  %v2484 = vadd.f32 %v2482, %v2483
  %v2485 = vsel %vm1916, %v2326, 0.0
  %v2486 = vadd.f32 %v2484, %v2485
  %v2487 = vsel %vm1916, %v2327, 0.0
  %v2488 = vadd.f32 %v2486, %v2487
  %v2489 = vrot.slane %v2488, 4
  %v2490 = vadd.f32 %v2488, %v2489
  %v2491 = vrot.slane %v2490, 2
  %v2492 = vadd.f32 %v2490, %v2491
  %v2493 = vrot.slane %v2492, 1
  %v2494 = vadd.f32 %v2492, %v2493
  %v2495 = vmul.f32 %v2494, 0.001953125
  %v2496 = vadd.f32 %v2495, 1e-05
  %v2497 = vrsqrt.pop %v2496
  %v2498 = vmul.f32 %v2497, %v2496
  %v2499 = vmul.f32 %v2498, %v2497
  %v2500 = vmul.f32 0.5, %v2499
  %v2501 = vsub.f32 1.5, %v2500
  %v2502 = vmul.f32 %v2497, %v2501
  %vm2503 = vweird.f32 %v2496
  %vm2504 = vweird.f32 %v2497
  %vm2505 = vmor %vm2503, %vm2504
  %v2506 = vsel %vm2505, %v2497, %v2502
  %v2507 = vmul.f32 %v2085, %v2506
  %v2508 = vmul.f32 %v2086, %v2506
  %v2509 = vmul.f32 %v2087, %v2506
  %v2510 = vmul.f32 %v2088, %v2506
  %v2511 = vmul.f32 %v2089, %v2506
  %v2512 = vmul.f32 %v2090, %v2506
  %v2513 = vmul.f32 %v2091, %v2506
  %v2514 = vmul.f32 %v2092, %v2506
  %v2515 = vmul.f32 %v2093, %v2506
  %v2516 = vmul.f32 %v2094, %v2506
  %v2517 = vmul.f32 %v2095, %v2506
  %v2518 = vmul.f32 %v2096, %v2506
  %v2519 = vmul.f32 %v2097, %v2506
  %v2520 = vmul.f32 %v2098, %v2506
  %v2521 = vmul.f32 %v2099, %v2506
  %v2522 = vmul.f32 %v2100, %v2506
  %v2523 = vmul.f32 %v2101, %v2506
  %v2524 = vmul.f32 %v2102, %v2506
  %v2525 = vmul.f32 %v2103, %v2506
  %v2526 = vmul.f32 %v2104, %v2506
  %v2527 = vmul.f32 %v2105, %v2506
  %v2528 = vmul.f32 %v2106, %v2506
  %v2529 = vmul.f32 %v2107, %v2506
  %v2530 = vmul.f32 %v2108, %v2506
  %v2531 = vmul.f32 %v2109, %v2506
  %v2532 = vmul.f32 %v2110, %v2506
  %v2533 = vmul.f32 %v2111, %v2506
  %v2534 = vmul.f32 %v2112, %v2506
  %v2535 = vmul.f32 %v2113, %v2506
  %v2536 = vmul.f32 %v2114, %v2506
  %v2537 = vmul.f32 %v2115, %v2506
  %v2538 = vmul.f32 %v2116, %v2506
  %v2539 = vmul.f32 %v2117, %v2506
  %v2540 = vmul.f32 %v2118, %v2506
  %v2541 = vmul.f32 %v2119, %v2506
  %v2542 = vmul.f32 %v2120, %v2506
  %v2543 = vmul.f32 %v2121, %v2506
  %v2544 = vmul.f32 %v2122, %v2506
  %v2545 = vmul.f32 %v2123, %v2506
  %v2546 = vmul.f32 %v2124, %v2506
  %v2547 = vmul.f32 %v2125, %v2506
  %v2548 = vmul.f32 %v2126, %v2506
  %v2549 = vmul.f32 %v2127, %v2506
  %v2550 = vmul.f32 %v2128, %v2506
  %v2551 = vmul.f32 %v2129, %v2506
  %v2552 = vmul.f32 %v2130, %v2506
  %v2553 = vmul.f32 %v2131, %v2506
  %v2554 = vmul.f32 %v2132, %v2506
  %v2555 = vmul.f32 %v2133, %v2506
  %v2556 = vmul.f32 %v2134, %v2506
  %v2557 = vmul.f32 %v2135, %v2506
  %v2558 = vmul.f32 %v2136, %v2506
  %v2559 = vmul.f32 %v2137, %v2506
  %v2560 = vmul.f32 %v2138, %v2506
  %v2561 = vmul.f32 %v2139, %v2506
  %v2562 = vmul.f32 %v2140, %v2506
  %v2563 = vmul.f32 %v2141, %v2506
  %v2564 = vmul.f32 %v2142, %v2506
  %v2565 = vmul.f32 %v2143, %v2506
  %v2566 = vmul.f32 %v2144, %v2506
  %v2567 = vmul.f32 %v2145, %v2506
  %v2568 = vmul.f32 %v2146, %v2506
  %v2569 = vmul.f32 %v2147, %v2506
  %v2570 = vmul.f32 %v2148, %v2506
  %v2571 = vmul.f32 %v2149, %v2506
  %v2572 = vmul.f32 %v2150, %v2506
  %v2573 = vmul.f32 %v2151, %v2506
  %v2574 = vmul.f32 %v2152, %v2506
  %v2575 = vmul.f32 %v2153, %v2506
  %v2576 = vmul.f32 %v2154, %v2506
  %v2577 = vmul.f32 %v2155, %v2506
  %v2578 = vmul.f32 %v2156, %v2506
  %v2579 = vmul.f32 %v2157, %v2506
  %v2580 = vmul.f32 %v2158, %v2506
  %v2581 = vmul.f32 %v2159, %v2506
  %v2582 = vmul.f32 %v2160, %v2506
  %v2583 = vmul.f32 %v2161, %v2506
  %v2584 = vmul.f32 %v2162, %v2506
  %v2585 = vmul.f32 %v2163, %v2506
  %v2586 = vmul.f32 %v2164, %v2506
  %v2587 = vmul.f32 %v2165, %v2506
  %v2589 = vperm.slane %v1428, 0
  %v2591 = vmul.f32 %v2507, %v2589
  %v2592 = vmul.f32 %v2508, %v2589
  %v2593 = vmul.f32 %v2509, %v2589
  %v2594 = vmul.f32 %v2510, %v2589
  %v2595 = vmul.f32 %v2511, %v2589
  %v2596 = vmul.f32 %v2512, %v2589
  %v2597 = vmul.f32 %v2513, %v2589
  %v2598 = vmul.f32 %v2514, %v2589
  %v2599 = vmul.f32 %v2515, %v2589
  %v2600 = vmul.f32 %v2516, %v2589
  %v2601 = vmul.f32 %v2517, %v2589
  %v2602 = vmul.f32 %v2518, %v2589
  %v2603 = vmul.f32 %v2519, %v2589
  %v2604 = vmul.f32 %v2520, %v2589
  %v2605 = vmul.f32 %v2521, %v2589
  %v2606 = vmul.f32 %v2522, %v2589
  %v2607 = vmul.f32 %v2523, %v2589
  %v2608 = vmul.f32 %v2524, %v2589
  %v2609 = vmul.f32 %v2525, %v2589
  %v2610 = vmul.f32 %v2526, %v2589
  %v2611 = vmul.f32 %v2527, %v2589
  %v2612 = vmul.f32 %v2528, %v2589
  %v2613 = vmul.f32 %v2529, %v2589
  %v2614 = vmul.f32 %v2530, %v2589
  %v2615 = vmul.f32 %v2531, %v2589
  %v2616 = vmul.f32 %v2532, %v2589
  %v2617 = vmul.f32 %v2533, %v2589
  %v2618 = vmul.f32 %v2534, %v2589
  %v2619 = vmul.f32 %v2535, %v2589
  %v2620 = vmul.f32 %v2536, %v2589
  %v2621 = vmul.f32 %v2537, %v2589
  %v2622 = vmul.f32 %v2538, %v2589
  %v2623 = vmul.f32 %v2539, %v2589
  %v2624 = vmul.f32 %v2540, %v2589
  %v2625 = vmul.f32 %v2541, %v2589
  %v2626 = vmul.f32 %v2542, %v2589
  %v2627 = vmul.f32 %v2543, %v2589
  %v2628 = vmul.f32 %v2544, %v2589
  %v2629 = vmul.f32 %v2545, %v2589
  %v2630 = vmul.f32 %v2546, %v2589
  %v2631 = vmul.f32 %v2547, %v2589
  %v2632 = vmul.f32 %v2548, %v2589
  %v2633 = vmul.f32 %v2549, %v2589
  %v2634 = vmul.f32 %v2550, %v2589
  %v2635 = vmul.f32 %v2551, %v2589
  %v2636 = vmul.f32 %v2552, %v2589
  %v2637 = vmul.f32 %v2553, %v2589
  %v2638 = vmul.f32 %v2554, %v2589
  %v2639 = vmul.f32 %v2555, %v2589
  %v2640 = vmul.f32 %v2556, %v2589
  %v2641 = vmul.f32 %v2557, %v2589
  %v2642 = vmul.f32 %v2558, %v2589
  %v2643 = vmul.f32 %v2559, %v2589
  %v2644 = vmul.f32 %v2560, %v2589
  %v2645 = vmul.f32 %v2561, %v2589
  %v2646 = vmul.f32 %v2562, %v2589
  %v2647 = vmul.f32 %v2563, %v2589
  %v2648 = vmul.f32 %v2564, %v2589
  %v2649 = vmul.f32 %v2565, %v2589
  %v2650 = vmul.f32 %v2566, %v2589
  %v2651 = vmul.f32 %v2567, %v2589
  %v2652 = vmul.f32 %v2568, %v2589
  %v2653 = vmul.f32 %v2569, %v2589
  %v2654 = vmul.f32 %v2570, %v2589
  %v2655 = vmul.f32 %v2571, %v2589
  %v2656 = vmul.f32 %v2572, %v2589
  %v2657 = vmul.f32 %v2573, %v2589
  %v2658 = vmul.f32 %v2574, %v2589
  %v2659 = vmul.f32 %v2575, %v2589
  %v2660 = vmul.f32 %v2576, %v2589
  %v2661 = vmul.f32 %v2577, %v2589
  %v2662 = vmul.f32 %v2578, %v2589
  %v2663 = vmul.f32 %v2579, %v2589
  %v2664 = vmul.f32 %v2580, %v2589
  %v2665 = vmul.f32 %v2581, %v2589
  %v2666 = vmul.f32 %v2582, %v2589
  %v2667 = vmul.f32 %v2583, %v2589
  %v2668 = vmul.f32 %v2584, %v2589
  %v2669 = vmul.f32 %v2585, %v2589
  %v2670 = vmul.f32 %v2586, %v2589
  %v2671 = vmul.f32 %v2587, %v2589
  %v2673 = vperm.slane %v1429, 0
  %v2675 = vadd.f32 %v2591, %v2673
  %v2676 = vadd.f32 %v2592, %v2673
  %v2677 = vadd.f32 %v2593, %v2673
  %v2678 = vadd.f32 %v2594, %v2673
  %v2679 = vadd.f32 %v2595, %v2673
  %v2680 = vadd.f32 %v2596, %v2673
  %v2681 = vadd.f32 %v2597, %v2673
  %v2682 = vadd.f32 %v2598, %v2673
  %v2683 = vadd.f32 %v2599, %v2673
  %v2684 = vadd.f32 %v2600, %v2673
  %v2685 = vadd.f32 %v2601, %v2673
  %v2686 = vadd.f32 %v2602, %v2673
  %v2687 = vadd.f32 %v2603, %v2673
  %v2688 = vadd.f32 %v2604, %v2673
  %v2689 = vadd.f32 %v2605, %v2673
  %v2690 = vadd.f32 %v2606, %v2673
  %v2691 = vadd.f32 %v2607, %v2673
  %v2692 = vadd.f32 %v2608, %v2673
  %v2693 = vadd.f32 %v2609, %v2673
  %v2694 = vadd.f32 %v2610, %v2673
  %v2695 = vadd.f32 %v2611, %v2673
  %v2696 = vadd.f32 %v2612, %v2673
  %v2697 = vadd.f32 %v2613, %v2673
  %v2698 = vadd.f32 %v2614, %v2673
  %v2699 = vadd.f32 %v2615, %v2673
  %v2700 = vadd.f32 %v2616, %v2673
  %v2701 = vadd.f32 %v2617, %v2673
  %v2702 = vadd.f32 %v2618, %v2673
  %v2703 = vadd.f32 %v2619, %v2673
  %v2704 = vadd.f32 %v2620, %v2673
  %v2705 = vadd.f32 %v2621, %v2673
  %v2706 = vadd.f32 %v2622, %v2673
  %v2707 = vadd.f32 %v2623, %v2673
  %v2708 = vadd.f32 %v2624, %v2673
  %v2709 = vadd.f32 %v2625, %v2673
  %v2710 = vadd.f32 %v2626, %v2673
  %v2711 = vadd.f32 %v2627, %v2673
  %v2712 = vadd.f32 %v2628, %v2673
  %v2713 = vadd.f32 %v2629, %v2673
  %v2714 = vadd.f32 %v2630, %v2673
  %v2715 = vadd.f32 %v2631, %v2673
  %v2716 = vadd.f32 %v2632, %v2673
  %v2717 = vadd.f32 %v2633, %v2673
  %v2718 = vadd.f32 %v2634, %v2673
  %v2719 = vadd.f32 %v2635, %v2673
  %v2720 = vadd.f32 %v2636, %v2673
  %v2721 = vadd.f32 %v2637, %v2673
  %v2722 = vadd.f32 %v2638, %v2673
  %v2723 = vadd.f32 %v2639, %v2673
  %v2724 = vadd.f32 %v2640, %v2673
  %v2725 = vadd.f32 %v2641, %v2673
  %v2726 = vadd.f32 %v2642, %v2673
  %v2727 = vadd.f32 %v2643, %v2673
  %v2728 = vadd.f32 %v2644, %v2673
  %v2729 = vadd.f32 %v2645, %v2673
  %v2730 = vadd.f32 %v2646, %v2673
  %v2731 = vadd.f32 %v2647, %v2673
  %v2732 = vadd.f32 %v2648, %v2673
  %v2733 = vadd.f32 %v2649, %v2673
  %v2734 = vadd.f32 %v2650, %v2673
  %v2735 = vadd.f32 %v2651, %v2673
  %v2736 = vadd.f32 %v2652, %v2673
  %v2737 = vadd.f32 %v2653, %v2673
  %v2738 = vadd.f32 %v2654, %v2673
  %v2739 = vadd.f32 %v2655, %v2673
  %v2740 = vadd.f32 %v2656, %v2673
  %v2741 = vadd.f32 %v2657, %v2673
  %v2742 = vadd.f32 %v2658, %v2673
  %v2743 = vadd.f32 %v2659, %v2673
  %v2744 = vadd.f32 %v2660, %v2673
  %v2745 = vadd.f32 %v2661, %v2673
  %v2746 = vadd.f32 %v2662, %v2673
  %v2747 = vadd.f32 %v2663, %v2673
  %v2748 = vadd.f32 %v2664, %v2673
  %v2749 = vadd.f32 %v2665, %v2673
  %v2750 = vadd.f32 %v2666, %v2673
  %v2751 = vadd.f32 %v2667, %v2673
  %v2752 = vadd.f32 %v2668, %v2673
  %v2753 = vadd.f32 %v2669, %v2673
  %v2754 = vadd.f32 %v2670, %v2673
  %v2755 = vadd.f32 %v2671, %v2673
  %v2756 = vmax.f32 %v2675, 0.0
  %v2757 = vmax.f32 %v2676, 0.0
  %v2758 = vmax.f32 %v2677, 0.0
  %v2759 = vmax.f32 %v2678, 0.0
  %v2760 = vmax.f32 %v2679, 0.0
  %v2761 = vmax.f32 %v2680, 0.0
  %v2762 = vmax.f32 %v2681, 0.0
  %v2763 = vmax.f32 %v2682, 0.0
  %v2764 = vmax.f32 %v2683, 0.0
  %v2765 = vmax.f32 %v2684, 0.0
  %v2766 = vmax.f32 %v2685, 0.0
  %v2767 = vmax.f32 %v2686, 0.0
  %v2768 = vmax.f32 %v2687, 0.0
  %v2769 = vmax.f32 %v2688, 0.0
  %v2770 = vmax.f32 %v2689, 0.0
  %v2771 = vmax.f32 %v2690, 0.0
  %v2772 = vmax.f32 %v2691, 0.0
  %v2773 = vmax.f32 %v2692, 0.0
  %v2774 = vmax.f32 %v2693, 0.0
  %v2775 = vmax.f32 %v2694, 0.0
  %v2776 = vmax.f32 %v2695, 0.0
  %v2777 = vmax.f32 %v2696, 0.0
  %v2778 = vmax.f32 %v2697, 0.0
  %v2779 = vmax.f32 %v2698, 0.0
  %v2780 = vmax.f32 %v2699, 0.0
  %v2781 = vmax.f32 %v2700, 0.0
  %v2782 = vmax.f32 %v2701, 0.0
  %v2783 = vmax.f32 %v2702, 0.0
  %v2784 = vmax.f32 %v2703, 0.0
  %v2785 = vmax.f32 %v2704, 0.0
  %v2786 = vmax.f32 %v2705, 0.0
  %v2787 = vmax.f32 %v2706, 0.0
  %v2788 = vmax.f32 %v2707, 0.0
  %v2789 = vmax.f32 %v2708, 0.0
  %v2790 = vmax.f32 %v2709, 0.0
  %v2791 = vmax.f32 %v2710, 0.0
  %v2792 = vmax.f32 %v2711, 0.0
  %v2793 = vmax.f32 %v2712, 0.0
  %v2794 = vmax.f32 %v2713, 0.0
  %v2795 = vmax.f32 %v2714, 0.0
  %v2796 = vmax.f32 %v2715, 0.0
  %v2797 = vmax.f32 %v2716, 0.0
  %v2798 = vmax.f32 %v2717, 0.0
  %v2799 = vmax.f32 %v2718, 0.0
  %v2800 = vmax.f32 %v2719, 0.0
  %v2801 = vmax.f32 %v2720, 0.0
  %v2802 = vmax.f32 %v2721, 0.0
  %v2803 = vmax.f32 %v2722, 0.0
  %v2804 = vmax.f32 %v2723, 0.0
  %v2805 = vmax.f32 %v2724, 0.0
  %v2806 = vmax.f32 %v2725, 0.0
  %v2807 = vmax.f32 %v2726, 0.0
  %v2808 = vmax.f32 %v2727, 0.0
  %v2809 = vmax.f32 %v2728, 0.0
  %v2810 = vmax.f32 %v2729, 0.0
  %v2811 = vmax.f32 %v2730, 0.0
  %v2812 = vmax.f32 %v2731, 0.0
  %v2813 = vmax.f32 %v2732, 0.0
  %v2814 = vmax.f32 %v2733, 0.0
  %v2815 = vmax.f32 %v2734, 0.0
  %v2816 = vmax.f32 %v2735, 0.0
  %v2817 = vmax.f32 %v2736, 0.0
  %v2818 = vmax.f32 %v2737, 0.0
  %v2819 = vmax.f32 %v2738, 0.0
  %v2820 = vmax.f32 %v2739, 0.0
  %v2821 = vmax.f32 %v2740, 0.0
  %v2822 = vmax.f32 %v2741, 0.0
  %v2823 = vmax.f32 %v2742, 0.0
  %v2824 = vmax.f32 %v2743, 0.0
  %v2825 = vmax.f32 %v2744, 0.0
  %v2826 = vmax.f32 %v2745, 0.0
  %v2827 = vmax.f32 %v2746, 0.0
  %v2828 = vmax.f32 %v2747, 0.0
  %v2829 = vmax.f32 %v2748, 0.0
  %v2830 = vmax.f32 %v2749, 0.0
  %v2831 = vmax.f32 %v2750, 0.0
  %v2832 = vmax.f32 %v2751, 0.0
  %v2833 = vmax.f32 %v2752, 0.0
  %v2834 = vmax.f32 %v2753, 0.0
  %v2835 = vmax.f32 %v2754, 0.0
  %v2836 = vmax.f32 %v2755, 0.0
  %v2837 = vmin.f32 %v2756, 6.0
  %v2838 = vmin.f32 %v2757, 6.0
  %v2839 = vmin.f32 %v2758, 6.0
  %v2840 = vmin.f32 %v2759, 6.0
  %v2841 = vmin.f32 %v2760, 6.0
  %v2842 = vmin.f32 %v2761, 6.0
  %v2843 = vmin.f32 %v2762, 6.0
  %v2844 = vmin.f32 %v2763, 6.0
  %v2845 = vmin.f32 %v2764, 6.0
  %v2846 = vmin.f32 %v2765, 6.0
  %v2847 = vmin.f32 %v2766, 6.0
  %v2848 = vmin.f32 %v2767, 6.0
  %v2849 = vmin.f32 %v2768, 6.0
  %v2850 = vmin.f32 %v2769, 6.0
  %v2851 = vmin.f32 %v2770, 6.0
  %v2852 = vmin.f32 %v2771, 6.0
  %v2853 = vmin.f32 %v2772, 6.0
  %v2854 = vmin.f32 %v2773, 6.0
  %v2855 = vmin.f32 %v2774, 6.0
  %v2856 = vmin.f32 %v2775, 6.0
  %v2857 = vmin.f32 %v2776, 6.0
  %v2858 = vmin.f32 %v2777, 6.0
  %v2859 = vmin.f32 %v2778, 6.0
  %v2860 = vmin.f32 %v2779, 6.0
  %v2861 = vmin.f32 %v2780, 6.0
  %v2862 = vmin.f32 %v2781, 6.0
  %v2863 = vmin.f32 %v2782, 6.0
  %v2864 = vmin.f32 %v2783, 6.0
  %v2865 = vmin.f32 %v2784, 6.0
  %v2866 = vmin.f32 %v2785, 6.0
  %v2867 = vmin.f32 %v2786, 6.0
  %v2868 = vmin.f32 %v2787, 6.0
  %v2869 = vmin.f32 %v2788, 6.0
  %v2870 = vmin.f32 %v2789, 6.0
  %v2871 = vmin.f32 %v2790, 6.0
  %v2872 = vmin.f32 %v2791, 6.0
  %v2873 = vmin.f32 %v2792, 6.0
  %v2874 = vmin.f32 %v2793, 6.0
  %v2875 = vmin.f32 %v2794, 6.0
  %v2876 = vmin.f32 %v2795, 6.0
  %v2877 = vmin.f32 %v2796, 6.0
  %v2878 = vmin.f32 %v2797, 6.0
  %v2879 = vmin.f32 %v2798, 6.0
  %v2880 = vmin.f32 %v2799, 6.0
  %v2881 = vmin.f32 %v2800, 6.0
  %v2882 = vmin.f32 %v2801, 6.0
  %v2883 = vmin.f32 %v2802, 6.0
  %v2884 = vmin.f32 %v2803, 6.0
  %v2885 = vmin.f32 %v2804, 6.0
  %v2886 = vmin.f32 %v2805, 6.0
  %v2887 = vmin.f32 %v2806, 6.0
  %v2888 = vmin.f32 %v2807, 6.0
  %v2889 = vmin.f32 %v2808, 6.0
  %v2890 = vmin.f32 %v2809, 6.0
  %v2891 = vmin.f32 %v2810, 6.0
  %v2892 = vmin.f32 %v2811, 6.0
  %v2893 = vmin.f32 %v2812, 6.0
  %v2894 = vmin.f32 %v2813, 6.0
  %v2895 = vmin.f32 %v2814, 6.0
  %v2896 = vmin.f32 %v2815, 6.0
  %v2897 = vmin.f32 %v2816, 6.0
  %v2898 = vmin.f32 %v2817, 6.0
  %v2899 = vmin.f32 %v2818, 6.0
  %v2900 = vmin.f32 %v2819, 6.0
  %v2901 = vmin.f32 %v2820, 6.0
  %v2902 = vmin.f32 %v2821, 6.0
  %v2903 = vmin.f32 %v2822, 6.0
  %v2904 = vmin.f32 %v2823, 6.0
  %v2905 = vmin.f32 %v2824, 6.0
  %v2906 = vmin.f32 %v2825, 6.0
  %v2907 = vmin.f32 %v2826, 6.0
  %v2908 = vmin.f32 %v2827, 6.0
  %v2909 = vmin.f32 %v2828, 6.0
  %v2910 = vmin.f32 %v2829, 6.0
  %v2911 = vmin.f32 %v2830, 6.0
  %v2912 = vmin.f32 %v2831, 6.0
  %v2913 = vmin.f32 %v2832, 6.0
  %v2914 = vmin.f32 %v2833, 6.0
  %v2915 = vmin.f32 %v2834, 6.0
  %v2916 = vmin.f32 %v2835, 6.0
  %v2917 = vmin.f32 %v2836, 6.0
  %v2918 = vmul.f32 %v2837, %v1433
  %v2919 = vmul.f32 %v2838, %v1438
  %v2920 = vmul.f32 %v2839, %v1443
  %v2921 = vmul.f32 %v2840, %v1448
  %v2922 = vmul.f32 %v2841, %v1453
  %v2923 = vmul.f32 %v2842, %v1458
  %v2924 = vmul.f32 %v2843, %v1463
  %v2925 = vmul.f32 %v2844, %v1468
  %v2926 = vmul.f32 %v2845, %v1473
  %v2927 = vmul.f32 %v2846, %v1478
  %v2928 = vmul.f32 %v2847, %v1483
  %v2929 = vmul.f32 %v2848, %v1488
  %v2930 = vmul.f32 %v2849, %v1493
  %v2931 = vmul.f32 %v2850, %v1498
  %v2932 = vmul.f32 %v2851, %v1503
  %v2933 = vmul.f32 %v2852, %v1508
  %v2934 = vmul.f32 %v2853, %v1513
  %v2935 = vmul.f32 %v2854, %v1518
  %v2936 = vmul.f32 %v2855, %v1523
  %v2937 = vmul.f32 %v2856, %v1528
  %v2938 = vmul.f32 %v2857, %v1533
  %v2939 = vmul.f32 %v2858, %v1538
  %v2940 = vmul.f32 %v2859, %v1543
  %v2941 = vmul.f32 %v2860, %v1548
  %v2942 = vmul.f32 %v2861, %v1553
  %v2943 = vmul.f32 %v2862, %v1558
  %v2944 = vmul.f32 %v2863, %v1563
  %v2945 = vmul.f32 %v2864, %v1568
  %v2946 = vmul.f32 %v2865, %v1573
  %v2947 = vmul.f32 %v2866, %v1578
  %v2948 = vmul.f32 %v2867, %v1583
  %v2949 = vmul.f32 %v2868, %v1588
  %v2950 = vmul.f32 %v2869, %v1593
  %v2951 = vmul.f32 %v2870, %v1598
  %v2952 = vmul.f32 %v2871, %v1603
  %v2953 = vmul.f32 %v2872, %v1608
  %v2954 = vmul.f32 %v2873, %v1613
  %v2955 = vmul.f32 %v2874, %v1618
  %v2956 = vmul.f32 %v2875, %v1623
  %v2957 = vmul.f32 %v2876, %v1628
  %v2958 = vmul.f32 %v2877, %v1633
  %v2959 = vmul.f32 %v2878, %v1638
  %v2960 = vmul.f32 %v2879, %v1643
  %v2961 = vmul.f32 %v2880, %v1648
  %v2962 = vmul.f32 %v2881, %v1653
  %v2963 = vmul.f32 %v2882, %v1658
  %v2964 = vmul.f32 %v2883, %v1663
  %v2965 = vmul.f32 %v2884, %v1668
  %v2966 = vmul.f32 %v2885, %v1673
  %v2967 = vmul.f32 %v2886, %v1678
  %v2968 = vmul.f32 %v2887, %v1683
  %v2969 = vmul.f32 %v2888, %v1688
  %v2970 = vmul.f32 %v2889, %v1693
  %v2971 = vmul.f32 %v2890, %v1698
  %v2972 = vmul.f32 %v2891, %v1703
  %v2973 = vmul.f32 %v2892, %v1708
  %v2974 = vmul.f32 %v2893, %v1713
  %v2975 = vmul.f32 %v2894, %v1718
  %v2976 = vmul.f32 %v2895, %v1723
  %v2977 = vmul.f32 %v2896, %v1728
  %v2978 = vmul.f32 %v2897, %v1733
  %v2979 = vmul.f32 %v2898, %v1738
  %v2980 = vmul.f32 %v2899, %v1743
  %v2981 = vmul.f32 %v2900, %v1748
  %v2982 = vmul.f32 %v2901, %v1753
  %v2983 = vmul.f32 %v2902, %v1758
  %v2984 = vmul.f32 %v2903, %v1763
  %v2985 = vmul.f32 %v2904, %v1768
  %v2986 = vmul.f32 %v2905, %v1773
  %v2987 = vmul.f32 %v2906, %v1778
  %v2988 = vmul.f32 %v2907, %v1783
  %v2989 = vmul.f32 %v2908, %v1788
  %v2990 = vmul.f32 %v2909, %v1793
  %v2991 = vmul.f32 %v2910, %v1798
  %v2992 = vmul.f32 %v2911, %v1803
  %v2993 = vmul.f32 %v2912, %v1808
  %v2994 = vmul.f32 %v2913, %v1813
  %v2995 = vmul.f32 %v2914, %v1818
  %v2996 = vmul.f32 %v2915, %v1823
  %v2997 = vmul.f32 %v2916, %v1828
  %v2998 = vmul.f32 %v2917, %v1833
  %v3080 = vrot.slane %v2918, 2
  %v3081 = vrot.slane %v2918, 4
  %v3082 = vrot.slane %v2918, 6
  %v3083 = vrot.slane %v2919, 2
  %v3084 = vrot.slane %v2919, 4
  %v3085 = vrot.slane %v2919, 6
  %v3086 = vrot.slane %v2920, 2
  %v3087 = vrot.slane %v2920, 4
  %v3088 = vrot.slane %v2920, 6
  %v3089 = vrot.slane %v2921, 2
  %v3090 = vrot.slane %v2921, 4
  %v3091 = vrot.slane %v2921, 6
  %v3092 = vrot.slane %v2922, 2
  %v3093 = vrot.slane %v2922, 4
  %v3094 = vrot.slane %v2922, 6
  %v3095 = vrot.slane %v2923, 2
  %v3096 = vrot.slane %v2923, 4
  %v3097 = vrot.slane %v2923, 6
  %v3098 = vrot.slane %v2924, 2
  %v3099 = vrot.slane %v2924, 4
  %v3100 = vrot.slane %v2924, 6
  %v3101 = vrot.slane %v2925, 2
  %v3102 = vrot.slane %v2925, 4
  %v3103 = vrot.slane %v2925, 6
  %v3104 = vrot.slane %v2926, 2
  %v3105 = vrot.slane %v2926, 4
  %v3106 = vrot.slane %v2926, 6
  %v3107 = vrot.slane %v2927, 2
  %v3108 = vrot.slane %v2927, 4
  %v3109 = vrot.slane %v2927, 6
  %v3110 = vrot.slane %v2928, 2
  %v3111 = vrot.slane %v2928, 4
  %v3112 = vrot.slane %v2928, 6
  %v3113 = vrot.slane %v2929, 2
  %v3114 = vrot.slane %v2929, 4
  %v3115 = vrot.slane %v2929, 6
  %v3116 = vrot.slane %v2930, 2
  %v3117 = vrot.slane %v2930, 4
  %v3118 = vrot.slane %v2930, 6
  %v3119 = vrot.slane %v2931, 2
  %v3120 = vrot.slane %v2931, 4
  %v3121 = vrot.slane %v2931, 6
  %v3122 = vrot.slane %v2932, 2
  %v3123 = vrot.slane %v2932, 4
  %v3124 = vrot.slane %v2932, 6
  %v3125 = vrot.slane %v2933, 2
  %v3126 = vrot.slane %v2933, 4
  %v3127 = vrot.slane %v2933, 6
  %v3128 = vrot.slane %v2934, 2
  %v3129 = vrot.slane %v2934, 4
  %v3130 = vrot.slane %v2934, 6
  %v3131 = vrot.slane %v2935, 2
  %v3132 = vrot.slane %v2935, 4
  %v3133 = vrot.slane %v2935, 6
  %v3134 = vrot.slane %v2936, 2
  %v3135 = vrot.slane %v2936, 4
  %v3136 = vrot.slane %v2936, 6
  %v3137 = vrot.slane %v2937, 2
  %v3138 = vrot.slane %v2937, 4
  %v3139 = vrot.slane %v2937, 6
  %v3140 = vrot.slane %v2938, 2
  %v3141 = vrot.slane %v2938, 4
  %v3142 = vrot.slane %v2938, 6
  %v3143 = vrot.slane %v2939, 2
  %v3144 = vrot.slane %v2939, 4
  %v3145 = vrot.slane %v2939, 6
  %v3146 = vrot.slane %v2940, 2
  %v3147 = vrot.slane %v2940, 4
  %v3148 = vrot.slane %v2940, 6
  %v3149 = vrot.slane %v2941, 2
  %v3150 = vrot.slane %v2941, 4
  %v3151 = vrot.slane %v2941, 6
  %v3152 = vrot.slane %v2942, 2
  %v3153 = vrot.slane %v2942, 4
  %v3154 = vrot.slane %v2942, 6
  %v3155 = vrot.slane %v2943, 2
  %v3156 = vrot.slane %v2943, 4
  %v3157 = vrot.slane %v2943, 6
  %v3158 = vrot.slane %v2944, 2
  %v3159 = vrot.slane %v2944, 4
  %v3160 = vrot.slane %v2944, 6
  %v3161 = vrot.slane %v2945, 2
  %v3162 = vrot.slane %v2945, 4
  %v3163 = vrot.slane %v2945, 6
  %v3164 = vrot.slane %v2946, 2
  %v3165 = vrot.slane %v2946, 4
  %v3166 = vrot.slane %v2946, 6
  %v3167 = vrot.slane %v2947, 2
  %v3168 = vrot.slane %v2947, 4
  %v3169 = vrot.slane %v2947, 6
  %v3170 = vrot.slane %v2948, 2
  %v3171 = vrot.slane %v2948, 4
  %v3172 = vrot.slane %v2948, 6
  %v3173 = vrot.slane %v2949, 2
  %v3174 = vrot.slane %v2949, 4
  %v3175 = vrot.slane %v2949, 6
  %v3176 = vrot.slane %v2950, 2
  %v3177 = vrot.slane %v2950, 4
  %v3178 = vrot.slane %v2950, 6
  %v3179 = vrot.slane %v2951, 2
  %v3180 = vrot.slane %v2951, 4
  %v3181 = vrot.slane %v2951, 6
  %v3182 = vrot.slane %v2952, 2
  %v3183 = vrot.slane %v2952, 4
  %v3184 = vrot.slane %v2952, 6
  %v3185 = vrot.slane %v2953, 2
  %v3186 = vrot.slane %v2953, 4
  %v3187 = vrot.slane %v2953, 6
  %v3188 = vrot.slane %v2954, 2
  %v3189 = vrot.slane %v2954, 4
  %v3190 = vrot.slane %v2954, 6
  %v3191 = vrot.slane %v2955, 2
  %v3192 = vrot.slane %v2955, 4
  %v3193 = vrot.slane %v2955, 6
  %v3194 = vrot.slane %v2956, 2
  %v3195 = vrot.slane %v2956, 4
  %v3196 = vrot.slane %v2956, 6
  %v3197 = vrot.slane %v2957, 2
  %v3198 = vrot.slane %v2957, 4
  %v3199 = vrot.slane %v2957, 6
  %v3200 = vrot.slane %v2958, 2
  %v3201 = vrot.slane %v2958, 4
  %v3202 = vrot.slane %v2958, 6
  %v3203 = vrot.slane %v2959, 2
  %v3204 = vrot.slane %v2959, 4
  %v3205 = vrot.slane %v2959, 6
  %v3206 = vrot.slane %v2960, 2
  %v3207 = vrot.slane %v2960, 4
  %v3208 = vrot.slane %v2960, 6
  %v3209 = vrot.slane %v2961, 2
  %v3210 = vrot.slane %v2961, 4
  %v3211 = vrot.slane %v2961, 6
  %v3212 = vrot.slane %v2962, 2
  %v3213 = vrot.slane %v2962, 4
  %v3214 = vrot.slane %v2962, 6
  %v3215 = vrot.slane %v2963, 2
  %v3216 = vrot.slane %v2963, 4
  %v3217 = vrot.slane %v2963, 6
  %v3218 = vrot.slane %v2964, 2
  %v3219 = vrot.slane %v2964, 4
  %v3220 = vrot.slane %v2964, 6
  %v3221 = vrot.slane %v2965, 2
  %v3222 = vrot.slane %v2965, 4
  %v3223 = vrot.slane %v2965, 6
  %v3224 = vrot.slane %v2966, 2
  %v3225 = vrot.slane %v2966, 4
  %v3226 = vrot.slane %v2966, 6
  %v3227 = vrot.slane %v2967, 2
  %v3228 = vrot.slane %v2967, 4
  %v3229 = vrot.slane %v2967, 6
  %v3230 = vrot.slane %v2968, 2
  %v3231 = vrot.slane %v2968, 4
  %v3232 = vrot.slane %v2968, 6
  %v3233 = vrot.slane %v2969, 2
  %v3234 = vrot.slane %v2969, 4
  %v3235 = vrot.slane %v2969, 6
  %v3236 = vrot.slane %v2970, 2
  %v3237 = vrot.slane %v2970, 4
  %v3238 = vrot.slane %v2970, 6
  %v3239 = vrot.slane %v2971, 2
  %v3240 = vrot.slane %v2971, 4
  %v3241 = vrot.slane %v2971, 6
  %v3242 = vrot.slane %v2972, 2
  %v3243 = vrot.slane %v2972, 4
  %v3244 = vrot.slane %v2972, 6
  %v3245 = vrot.slane %v2973, 2
  %v3246 = vrot.slane %v2973, 4
  %v3247 = vrot.slane %v2973, 6
  %v3248 = vrot.slane %v2974, 2
  %v3249 = vrot.slane %v2974, 4
  %v3250 = vrot.slane %v2974, 6
  %v3251 = vrot.slane %v2975, 2
  %v3252 = vrot.slane %v2975, 4
  %v3253 = vrot.slane %v2975, 6
  %v3254 = vrot.slane %v2976, 2
  %v3255 = vrot.slane %v2976, 4
  %v3256 = vrot.slane %v2976, 6
  %v3257 = vrot.slane %v2977, 2
  %v3258 = vrot.slane %v2977, 4
  %v3259 = vrot.slane %v2977, 6
  %v3260 = vrot.slane %v2978, 2
  %v3261 = vrot.slane %v2978, 4
  %v3262 = vrot.slane %v2978, 6
  %v3263 = vrot.slane %v2979, 2
  %v3264 = vrot.slane %v2979, 4
  %v3265 = vrot.slane %v2979, 6
  %v3266 = vrot.slane %v2980, 2
  %v3267 = vrot.slane %v2980, 4
  %v3268 = vrot.slane %v2980, 6
  %v3269 = vrot.slane %v2981, 2
  %v3270 = vrot.slane %v2981, 4
  %v3271 = vrot.slane %v2981, 6
  %v3272 = vrot.slane %v2982, 2
  %v3273 = vrot.slane %v2982, 4
  %v3274 = vrot.slane %v2982, 6
  %v3275 = vrot.slane %v2983, 2
  %v3276 = vrot.slane %v2983, 4
  %v3277 = vrot.slane %v2983, 6
  %v3278 = vrot.slane %v2984, 2
  %v3279 = vrot.slane %v2984, 4
  %v3280 = vrot.slane %v2984, 6
  %v3281 = vrot.slane %v2985, 2
  %v3282 = vrot.slane %v2985, 4
  %v3283 = vrot.slane %v2985, 6
  %v3284 = vrot.slane %v2986, 2
  %v3285 = vrot.slane %v2986, 4
  %v3286 = vrot.slane %v2986, 6
  %v3287 = vrot.slane %v2987, 2
  %v3288 = vrot.slane %v2987, 4
  %v3289 = vrot.slane %v2987, 6
  %v3290 = vrot.slane %v2988, 2
  %v3291 = vrot.slane %v2988, 4
  %v3292 = vrot.slane %v2988, 6
  %v3293 = vrot.slane %v2989, 2
  %v3294 = vrot.slane %v2989, 4
  %v3295 = vrot.slane %v2989, 6
  %v3296 = vrot.slane %v2990, 2
  %v3297 = vrot.slane %v2990, 4
  %v3298 = vrot.slane %v2990, 6
  %v3299 = vrot.slane %v2991, 2
  %v3300 = vrot.slane %v2991, 4
  %v3301 = vrot.slane %v2991, 6
  %v3302 = vrot.slane %v2992, 2
  %v3303 = vrot.slane %v2992, 4
  %v3304 = vrot.slane %v2992, 6
  %v3305 = vrot.slane %v2993, 2
  %v3306 = vrot.slane %v2993, 4
  %v3307 = vrot.slane %v2993, 6
  %v3308 = vrot.slane %v2994, 2
  %v3309 = vrot.slane %v2994, 4
  %v3310 = vrot.slane %v2994, 6
  %v3311 = vrot.slane %v2995, 2
  %v3312 = vrot.slane %v2995, 4
  %v3313 = vrot.slane %v2995, 6
  %v3314 = vrot.slane %v2996, 2
  %v3315 = vrot.slane %v2996, 4
  %v3316 = vrot.slane %v2996, 6
  %v3317 = vrot.slane %v2997, 2
  %v3318 = vrot.slane %v2997, 4
  %v3319 = vrot.slane %v2997, 6
  %v3320 = vrot.slane %v2998, 2
  %v3321 = vrot.slane %v2998, 4
  %v3322 = vrot.slane %v2998, 6
  %3323 = vst [vmem:[#allocation1] ss:$4 sm:$0xff] %v2918
  %s3324 = scalar_lea.vmem [#allocation1], 1
  %3325 = vst [vmem:[%s3324] ss:$4 sm:$0xff] %v3080
  %s3326 = scalar_lea.vmem [#allocation1], 2
  %3327 = vst [vmem:[%s3326] ss:$4 sm:$0xff] %v3081
  %s3328 = scalar_lea.vmem [#allocation1], 3
  %3329 = vst [vmem:[%s3328] ss:$4 sm:$0xff] %v3082
  %s3330 = scalar_lea.vmem [#allocation1], 32
  %3331 = vst [vmem:[%s3330] ss:$4 sm:$0xff] %v2919
  %s3332 = scalar_lea.vmem [#allocation1], 33
  %3333 = vst [vmem:[%s3332] ss:$4 sm:$0xff] %v3083
  %s3334 = scalar_lea.vmem [#allocation1], 34
  %3335 = vst [vmem:[%s3334] ss:$4 sm:$0xff] %v3084
  %s3336 = scalar_lea.vmem [#allocation1], 35
  %3337 = vst [vmem:[%s3336] ss:$4 sm:$0xff] %v3085
  %v3338 = vld.sshfl [vmem:[#allocation1] sm:$0xff pattern:$0x73625140]
  %v3339 = vld.sshfl [vmem:[#allocation1 + $0x20] sm:$0xff pattern:$0x73625140]
  %3340 = vst [vmem:[#allocation1] ss:$4 sm:$0xff] %v2920
  %v3341 = vld.sshfl [vmem:[#allocation1] sm:$0xff pattern:$0x73625140]
  %3342 = vst [vmem:[%s3330] ss:$4 sm:$0xff] %v3086
  %3343 = vst [vmem:[%s3332] ss:$4 sm:$0xff] %v3087
  %3344 = vst [vmem:[%s3334] ss:$4 sm:$0xff] %v3088
  %3345 = vst [vmem:[%s3336] ss:$4 sm:$0xff] %v2921
  %v3346 = vld.sshfl [vmem:[#allocation1 + $0x20] sm:$0xff pattern:$0x73625140]
  %3347 = vst [vmem:[#allocation1] ss:$4 sm:$0xff] %v3089
  %3348 = vst [vmem:[%s3324] ss:$4 sm:$0xff] %v3090
  %3349 = vst [vmem:[%s3326] ss:$4 sm:$0xff] %v3091
  %3350 = vst [vmem:[%s3328] ss:$4 sm:$0xff] %v2922
  %3351 = vst [vmem:[%s3330] ss:$4 sm:$0xff] %v3092
  %v3352 = vld.sshfl [vmem:[#allocation1] sm:$0xff pattern:$0x73625140]
  %v3353 = vld.sshfl [vmem:[#allocation1 + $0x20] sm:$0xff pattern:$0x73625140]
  %3354 = vst [vmem:[#allocation1] ss:$4 sm:$0xff] %v3093
  %3355 = vst [vmem:[%s3324] ss:$4 sm:$0xff] %v3094
  %3356 = vst [vmem:[%s3326] ss:$4 sm:$0xff] %v2923
  %3357 = vst [vmem:[%s3328] ss:$4 sm:$0xff] %v3095
  %3358 = vst [vmem:[%s3330] ss:$4 sm:$0xff] %v3096
  %3359 = vst [vmem:[%s3332] ss:$4 sm:$0xff] %v3097
  %3360 = vst [vmem:[%s3334] ss:$4 sm:$0xff] %v2924
  %3361 = vst [vmem:[%s3336] ss:$4 sm:$0xff] %v3098
  %v3362 = vld.sshfl [vmem:[#allocation1] sm:$0xff pattern:$0x73625140]
  %v3363 = vld.sshfl [vmem:[#allocation1 + $0x20] sm:$0xff pattern:$0x73625140]
  %3364 = vst [vmem:[#allocation1] ss:$4 sm:$0xff] %v3099
  %v3365 = vld.sshfl [vmem:[#allocation1] sm:$0xff pattern:$0x73625140]
  %3366 = vst [vmem:[%s3330] ss:$4 sm:$0xff] %v3100
  %3367 = vst [vmem:[%s3332] ss:$4 sm:$0xff] %v2925
  %3368 = vst [vmem:[%s3334] ss:$4 sm:$0xff] %v3101
  %3369 = vst [vmem:[%s3336] ss:$4 sm:$0xff] %v3102
  %v3370 = vld.sshfl [vmem:[#allocation1 + $0x20] sm:$0xff pattern:$0x73625140]
  %3371 = vst [vmem:[#allocation1] ss:$4 sm:$0xff] %v3103
  %3372 = vst [vmem:[%s3324] ss:$4 sm:$0xff] %v2926
  %3373 = vst [vmem:[%s3326] ss:$4 sm:$0xff] %v3104
  %3374 = vst [vmem:[%s3328] ss:$4 sm:$0xff] %v3105
  %3375 = vst [vmem:[%s3330] ss:$4 sm:$0xff] %v3106
  %v3376 = vld.sshfl [vmem:[#allocation1] sm:$0xff pattern:$0x73625140]
  %v3377 = vld.sshfl [vmem:[#allocation1 + $0x20] sm:$0xff pattern:$0x73625140]
  %3378 = vst [vmem:[#allocation1] ss:$4 sm:$0xff] %v2927
  %3379 = vst [vmem:[%s3324] ss:$4 sm:$0xff] %v3107
  %3380 = vst [vmem:[%s3326] ss:$4 sm:$0xff] %v3108
  %3381 = vst [vmem:[%s3328] ss:$4 sm:$0xff] %v3109
  %3382 = vst [vmem:[%s3330] ss:$4 sm:$0xff] %v2928
  %3383 = vst [vmem:[%s3332] ss:$4 sm:$0xff] %v3110
  %3384 = vst [vmem:[%s3334] ss:$4 sm:$0xff] %v3111
  %3385 = vst [vmem:[%s3336] ss:$4 sm:$0xff] %v3112
  %v3386 = vld.sshfl [vmem:[#allocation1] sm:$0xff pattern:$0x73625140]
  %v3387 = vld.sshfl [vmem:[#allocation1 + $0x20] sm:$0xff pattern:$0x73625140]
  %3388 = vst [vmem:[#allocation1] ss:$4 sm:$0xff] %v2929
  %v3389 = vld.sshfl [vmem:[#allocation1] sm:$0xff pattern:$0x73625140]
  %3390 = vst [vmem:[%s3330] ss:$4 sm:$0xff] %v3113
  %3391 = vst [vmem:[%s3332] ss:$4 sm:$0xff] %v3114
  %3392 = vst [vmem:[%s3334] ss:$4 sm:$0xff] %v3115
  %3393 = vst [vmem:[%s3336] ss:$4 sm:$0xff] %v2930
  %v3394 = vld.sshfl [vmem:[#allocation1 + $0x20] sm:$0xff pattern:$0x73625140]
  %3395 = vst [vmem:[#allocation1] ss:$4 sm:$0xff] %v3116
  %3396 = vst [vmem:[%s3324] ss:$4 sm:$0xff] %v3117
  %3397 = vst [vmem:[%s3326] ss:$4 sm:$0xff] %v3118
  %3398 = vst [vmem:[%s3328] ss:$4 sm:$0xff] %v2931
  %3399 = vst [vmem:[%s3330] ss:$4 sm:$0xff] %v3119
  %v3400 = vld.sshfl [vmem:[#allocation1] sm:$0xff pattern:$0x73625140]
  %v3401 = vld.sshfl [vmem:[#allocation1 + $0x20] sm:$0xff pattern:$0x73625140]
  %3402 = vst [vmem:[#allocation1] ss:$4 sm:$0xff] %v3120
  %3403 = vst [vmem:[%s3324] ss:$4 sm:$0xff] %v3121
  %3404 = vst [vmem:[%s3326] ss:$4 sm:$0xff] %v2932
  %3405 = vst [vmem:[%s3328] ss:$4 sm:$0xff] %v3122
  %3406 = vst [vmem:[%s3330] ss:$4 sm:$0xff] %v3123
  %3407 = vst [vmem:[%s3332] ss:$4 sm:$0xff] %v3124
  %3408 = vst [vmem:[%s3334] ss:$4 sm:$0xff] %v2933
  %3409 = vst [vmem:[%s3336] ss:$4 sm:$0xff] %v3125
  %v3410 = vld.sshfl [vmem:[#allocation1] sm:$0xff pattern:$0x73625140]
  %v3411 = vld.sshfl [vmem:[#allocation1 + $0x20] sm:$0xff pattern:$0x73625140]
  %3412 = vst [vmem:[#allocation1] ss:$4 sm:$0xff] %v3126
  %v3413 = vld.sshfl [vmem:[#allocation1] sm:$0xff pattern:$0x73625140]
  %3414 = vst [vmem:[%s3330] ss:$4 sm:$0xff] %v3127
  %3415 = vst [vmem:[%s3332] ss:$4 sm:$0xff] %v2934
  %3416 = vst [vmem:[%s3334] ss:$4 sm:$0xff] %v3128
  %3417 = vst [vmem:[%s3336] ss:$4 sm:$0xff] %v3129
  %v3418 = vld.sshfl [vmem:[#allocation1 + $0x20] sm:$0xff pattern:$0x73625140]
  %3419 = vst [vmem:[#allocation1] ss:$4 sm:$0xff] %v3130
  %3420 = vst [vmem:[%s3324] ss:$4 sm:$0xff] %v2935
  %3421 = vst [vmem:[%s3326] ss:$4 sm:$0xff] %v3131
  %3422 = vst [vmem:[%s3328] ss:$4 sm:$0xff] %v3132
  %3423 = vst [vmem:[%s3330] ss:$4 sm:$0xff] %v3133
  %v3424 = vld.sshfl [vmem:[#allocation1] sm:$0xff pattern:$0x73625140]
  %v3425 = vld.sshfl [vmem:[#allocation1 + $0x20] sm:$0xff pattern:$0x73625140]
  %3426 = vst [vmem:[#allocation1] ss:$4 sm:$0xff] %v2936
  %3427 = vst [vmem:[%s3324] ss:$4 sm:$0xff] %v3134
  %3428 = vst [vmem:[%s3326] ss:$4 sm:$0xff] %v3135
  %3429 = vst [vmem:[%s3328] ss:$4 sm:$0xff] %v3136
  %3430 = vst [vmem:[%s3330] ss:$4 sm:$0xff] %v2937
  %3431 = vst [vmem:[%s3332] ss:$4 sm:$0xff] %v3137
  %3432 = vst [vmem:[%s3334] ss:$4 sm:$0xff] %v3138
  %3433 = vst [vmem:[%s3336] ss:$4 sm:$0xff] %v3139
  %v3434 = vld.sshfl [vmem:[#allocation1] sm:$0xff pattern:$0x73625140]
  %v3435 = vld.sshfl [vmem:[#allocation1 + $0x20] sm:$0xff pattern:$0x73625140]
  %3436 = vst [vmem:[#allocation1] ss:$4 sm:$0xff] %v2938
  %v3437 = vld.sshfl [vmem:[#allocation1] sm:$0xff pattern:$0x73625140]
  %3438 = vst [vmem:[%s3330] ss:$4 sm:$0xff] %v3140
  %3439 = vst [vmem:[%s3332] ss:$4 sm:$0xff] %v3141
  %3440 = vst [vmem:[%s3334] ss:$4 sm:$0xff] %v3142
  %3441 = vst [vmem:[%s3336] ss:$4 sm:$0xff] %v2939
  %v3442 = vld.sshfl [vmem:[#allocation1 + $0x20] sm:$0xff pattern:$0x73625140]
  %3443 = vst [vmem:[#allocation1] ss:$4 sm:$0xff] %v3143
  %3444 = vst [vmem:[%s3324] ss:$4 sm:$0xff] %v3144
  %3445 = vst [vmem:[%s3326] ss:$4 sm:$0xff] %v3145
  %3446 = vst [vmem:[%s3328] ss:$4 sm:$0xff] %v2940
  %3447 = vst [vmem:[%s3330] ss:$4 sm:$0xff] %v3146
  %v3448 = vld.sshfl [vmem:[#allocation1] sm:$0xff pattern:$0x73625140]
  %v3449 = vld.sshfl [vmem:[#allocation1 + $0x20] sm:$0xff pattern:$0x73625140]
  %3450 = vst [vmem:[#allocation1] ss:$4 sm:$0xff] %v3147
  %3451 = vst [vmem:[%s3324] ss:$4 sm:$0xff] %v3148
  %3452 = vst [vmem:[%s3326] ss:$4 sm:$0xff] %v2941
  %3453 = vst [vmem:[%s3328] ss:$4 sm:$0xff] %v3149
  %3454 = vst [vmem:[%s3330] ss:$4 sm:$0xff] %v3150
  %3455 = vst [vmem:[%s3332] ss:$4 sm:$0xff] %v3151
  %3456 = vst [vmem:[%s3334] ss:$4 sm:$0xff] %v2942
  %3457 = vst [vmem:[%s3336] ss:$4 sm:$0xff] %v3152
  %v3458 = vld.sshfl [vmem:[#allocation1] sm:$0xff pattern:$0x73625140]
  %v3459 = vld.sshfl [vmem:[#allocation1 + $0x20] sm:$0xff pattern:$0x73625140]
  %3460 = vst [vmem:[#allocation1] ss:$4 sm:$0xff] %v3153
  %v3461 = vld.sshfl [vmem:[#allocation1] sm:$0xff pattern:$0x73625140]
  %3462 = vst [vmem:[%s3330] ss:$4 sm:$0xff] %v3154
  %3463 = vst [vmem:[%s3332] ss:$4 sm:$0xff] %v2943
  %3464 = vst [vmem:[%s3334] ss:$4 sm:$0xff] %v3155
  %3465 = vst [vmem:[%s3336] ss:$4 sm:$0xff] %v3156
  %v3466 = vld.sshfl [vmem:[#allocation1 + $0x20] sm:$0xff pattern:$0x73625140]
  %3467 = vst [vmem:[#allocation1] ss:$4 sm:$0xff] %v3157
  %3468 = vst [vmem:[%s3324] ss:$4 sm:$0xff] %v2944
  %3469 = vst [vmem:[%s3326] ss:$4 sm:$0xff] %v3158
  %3470 = vst [vmem:[%s3328] ss:$4 sm:$0xff] %v3159
  %3471 = vst [vmem:[%s3330] ss:$4 sm:$0xff] %v3160
  %v3472 = vld.sshfl [vmem:[#allocation1] sm:$0xff pattern:$0x73625140]
  %v3473 = vld.sshfl [vmem:[#allocation1 + $0x20] sm:$0xff pattern:$0x73625140]
  %3474 = vst [vmem:[#allocation1] ss:$4 sm:$0xff] %v2945
  %3475 = vst [vmem:[%s3324] ss:$4 sm:$0xff] %v3161
  %3476 = vst [vmem:[%s3326] ss:$4 sm:$0xff] %v3162
  %3477 = vst [vmem:[%s3328] ss:$4 sm:$0xff] %v3163
  %3478 = vst [vmem:[%s3330] ss:$4 sm:$0xff] %v2946
  %3479 = vst [vmem:[%s3332] ss:$4 sm:$0xff] %v3164
  %3480 = vst [vmem:[%s3334] ss:$4 sm:$0xff] %v3165
  %3481 = vst [vmem:[%s3336] ss:$4 sm:$0xff] %v3166
  %v3482 = vld.sshfl [vmem:[#allocation1] sm:$0xff pattern:$0x73625140]
  %v3483 = vld.sshfl [vmem:[#allocation1 + $0x20] sm:$0xff pattern:$0x73625140]
  %3484 = vst [vmem:[#allocation1] ss:$4 sm:$0xff] %v2947
  %v3485 = vld.sshfl [vmem:[#allocation1] sm:$0xff pattern:$0x73625140]
  %3486 = vst [vmem:[%s3330] ss:$4 sm:$0xff] %v3167
  %3487 = vst [vmem:[%s3332] ss:$4 sm:$0xff] %v3168
  %3488 = vst [vmem:[%s3334] ss:$4 sm:$0xff] %v3169
  %3489 = vst [vmem:[%s3336] ss:$4 sm:$0xff] %v2948
  %v3490 = vld.sshfl [vmem:[#allocation1 + $0x20] sm:$0xff pattern:$0x73625140]
  %3491 = vst [vmem:[#allocation1] ss:$4 sm:$0xff] %v3170
  %3492 = vst [vmem:[%s3324] ss:$4 sm:$0xff] %v3171
  %3493 = vst [vmem:[%s3326] ss:$4 sm:$0xff] %v3172
  %3494 = vst [vmem:[%s3328] ss:$4 sm:$0xff] %v2949
  %3495 = vst [vmem:[%s3330] ss:$4 sm:$0xff] %v3173
  %v3496 = vld.sshfl [vmem:[#allocation1] sm:$0xff pattern:$0x73625140]
  %v3497 = vld.sshfl [vmem:[#allocation1 + $0x20] sm:$0xff pattern:$0x73625140]
  %3498 = vst [vmem:[#allocation1] ss:$4 sm:$0xff] %v3174
  %3499 = vst [vmem:[%s3324] ss:$4 sm:$0xff] %v3175
  %3500 = vst [vmem:[%s3326] ss:$4 sm:$0xff] %v2950
  %3501 = vst [vmem:[%s3328] ss:$4 sm:$0xff] %v3176
  %3502 = vst [vmem:[%s3330] ss:$4 sm:$0xff] %v3177
  %3503 = vst [vmem:[%s3332] ss:$4 sm:$0xff] %v3178
  %3504 = vst [vmem:[%s3334] ss:$4 sm:$0xff] %v2951
  %3505 = vst [vmem:[%s3336] ss:$4 sm:$0xff] %v3179
  %v3506 = vld.sshfl [vmem:[#allocation1] sm:$0xff pattern:$0x73625140]
  %v3507 = vld.sshfl [vmem:[#allocation1 + $0x20] sm:$0xff pattern:$0x73625140]
  %3508 = vst [vmem:[#allocation1] ss:$4 sm:$0xff] %v3180
  %v3509 = vld.sshfl [vmem:[#allocation1] sm:$0xff pattern:$0x73625140]
  %3510 = vst [vmem:[%s3330] ss:$4 sm:$0xff] %v3181
  %3511 = vst [vmem:[%s3332] ss:$4 sm:$0xff] %v2952
  %3512 = vst [vmem:[%s3334] ss:$4 sm:$0xff] %v3182
  %3513 = vst [vmem:[%s3336] ss:$4 sm:$0xff] %v3183
  %v3514 = vld.sshfl [vmem:[#allocation1 + $0x20] sm:$0xff pattern:$0x73625140]
  %3515 = vst [vmem:[#allocation1] ss:$4 sm:$0xff] %v3184
  %3516 = vst [vmem:[%s3324] ss:$4 sm:$0xff] %v2953
  %3517 = vst [vmem:[%s3326] ss:$4 sm:$0xff] %v3185
  %3518 = vst [vmem:[%s3328] ss:$4 sm:$0xff] %v3186
  %3519 = vst [vmem:[%s3330] ss:$4 sm:$0xff] %v3187
  %v3520 = vld.sshfl [vmem:[#allocation1] sm:$0xff pattern:$0x73625140]
  %v3521 = vld.sshfl [vmem:[#allocation1 + $0x20] sm:$0xff pattern:$0x73625140]
  %3522 = vst [vmem:[#allocation1] ss:$4 sm:$0xff] %v2954
  %3523 = vst [vmem:[%s3324] ss:$4 sm:$0xff] %v3188
  %3524 = vst [vmem:[%s3326] ss:$4 sm:$0xff] %v3189
  %3525 = vst [vmem:[%s3328] ss:$4 sm:$0xff] %v3190
  %3526 = vst [vmem:[%s3330] ss:$4 sm:$0xff] %v2955
  %3527 = vst [vmem:[%s3332] ss:$4 sm:$0xff] %v3191
  %3528 = vst [vmem:[%s3334] ss:$4 sm:$0xff] %v3192
  %3529 = vst [vmem:[%s3336] ss:$4 sm:$0xff] %v3193
  %v3530 = vld.sshfl [vmem:[#allocation1] sm:$0xff pattern:$0x73625140]
  %v3531 = vld.sshfl [vmem:[#allocation1 + $0x20] sm:$0xff pattern:$0x73625140]
  %3532 = vst [vmem:[#allocation1] ss:$4 sm:$0xff] %v2956
  %v3533 = vld.sshfl [vmem:[#allocation1] sm:$0xff pattern:$0x73625140]
  %3534 = vst [vmem:[%s3330] ss:$4 sm:$0xff] %v3194
  %3535 = vst [vmem:[%s3332] ss:$4 sm:$0xff] %v3195
  %3536 = vst [vmem:[%s3334] ss:$4 sm:$0xff] %v3196
  %3537 = vst [vmem:[%s3336] ss:$4 sm:$0xff] %v2957
  %v3538 = vld.sshfl [vmem:[#allocation1 + $0x20] sm:$0xff pattern:$0x73625140]
  %3539 = vst [vmem:[#allocation1] ss:$4 sm:$0xff] %v3197
  %3540 = vst [vmem:[%s3324] ss:$4 sm:$0xff] %v3198
  %3541 = vst [vmem:[%s3326] ss:$4 sm:$0xff] %v3199
  %3542 = vst [vmem:[%s3328] ss:$4 sm:$0xff] %v2958
  %3543 = vst [vmem:[%s3330] ss:$4 sm:$0xff] %v3200
  %v3544 = vld.sshfl [vmem:[#allocation1] sm:$0xff pattern:$0x73625140]
  %v3545 = vld.sshfl [vmem:[#allocation1 + $0x20] sm:$0xff pattern:$0x73625140]
  %3546 = vst [vmem:[#allocation1] ss:$4 sm:$0xff] %v3201
  %3547 = vst [vmem:[%s3324] ss:$4 sm:$0xff] %v3202
  %3548 = vst [vmem:[%s3326] ss:$4 sm:$0xff] %v2959
  %3549 = vst [vmem:[%s3328] ss:$4 sm:$0xff] %v3203
  %3550 = vst [vmem:[%s3330] ss:$4 sm:$0xff] %v3204
  %3551 = vst [vmem:[%s3332] ss:$4 sm:$0xff] %v3205
  %3552 = vst [vmem:[%s3334] ss:$4 sm:$0xff] %v2960
  %3553 = vst [vmem:[%s3336] ss:$4 sm:$0xff] %v3206
  %v3554 = vld.sshfl [vmem:[#allocation1] sm:$0xff pattern:$0x73625140]
  %v3555 = vld.sshfl [vmem:[#allocation1 + $0x20] sm:$0xff pattern:$0x73625140]
  %3556 = vst [vmem:[#allocation1] ss:$4 sm:$0xff] %v3207
  %v3557 = vld.sshfl [vmem:[#allocation1] sm:$0xff pattern:$0x73625140]
  %3558 = vst [vmem:[%s3330] ss:$4 sm:$0xff] %v3208
  %3559 = vst [vmem:[%s3332] ss:$4 sm:$0xff] %v2961
  %3560 = vst [vmem:[%s3334] ss:$4 sm:$0xff] %v3209
  %3561 = vst [vmem:[%s3336] ss:$4 sm:$0xff] %v3210
  %v3562 = vld.sshfl [vmem:[#allocation1 + $0x20] sm:$0xff pattern:$0x73625140]
  %3563 = vst [vmem:[#allocation1] ss:$4 sm:$0xff] %v3211
  %3564 = vst [vmem:[%s3324] ss:$4 sm:$0xff] %v2962
  %3565 = vst [vmem:[%s3326] ss:$4 sm:$0xff] %v3212
  %3566 = vst [vmem:[%s3328] ss:$4 sm:$0xff] %v3213
  %3567 = vst [vmem:[%s3330] ss:$4 sm:$0xff] %v3214
  %v3568 = vld.sshfl [vmem:[#allocation1] sm:$0xff pattern:$0x73625140]
  %v3569 = vld.sshfl [vmem:[#allocation1 + $0x20] sm:$0xff pattern:$0x73625140]
  %3570 = vst [vmem:[#allocation1] ss:$4 sm:$0xff] %v2963
  %3571 = vst [vmem:[%s3324] ss:$4 sm:$0xff] %v3215
  %3572 = vst [vmem:[%s3326] ss:$4 sm:$0xff] %v3216
  %3573 = vst [vmem:[%s3328] ss:$4 sm:$0xff] %v3217
  %3574 = vst [vmem:[%s3330] ss:$4 sm:$0xff] %v2964
  %3575 = vst [vmem:[%s3332] ss:$4 sm:$0xff] %v3218
  %3576 = vst [vmem:[%s3334] ss:$4 sm:$0xff] %v3219
  %3577 = vst [vmem:[%s3336] ss:$4 sm:$0xff] %v3220
  %v3578 = vld.sshfl [vmem:[#allocation1] sm:$0xff pattern:$0x73625140]
  %v3579 = vld.sshfl [vmem:[#allocation1 + $0x20] sm:$0xff pattern:$0x73625140]
  %3580 = vst [vmem:[#allocation1] ss:$4 sm:$0xff] %v2965
  %v3581 = vld.sshfl [vmem:[#allocation1] sm:$0xff pattern:$0x73625140]
  %3582 = vst [vmem:[%s3330] ss:$4 sm:$0xff] %v3221
  %3583 = vst [vmem:[%s3332] ss:$4 sm:$0xff] %v3222
  %3584 = vst [vmem:[%s3334] ss:$4 sm:$0xff] %v3223
  %3585 = vst [vmem:[%s3336] ss:$4 sm:$0xff] %v2966
  %v3586 = vld.sshfl [vmem:[#allocation1 + $0x20] sm:$0xff pattern:$0x73625140]
  %3587 = vst [vmem:[#allocation1] ss:$4 sm:$0xff] %v3224
  %3588 = vst [vmem:[%s3324] ss:$4 sm:$0xff] %v3225
  %3589 = vst [vmem:[%s3326] ss:$4 sm:$0xff] %v3226
  %3590 = vst [vmem:[%s3328] ss:$4 sm:$0xff] %v2967
  %3591 = vst [vmem:[%s3330] ss:$4 sm:$0xff] %v3227
  %v3592 = vld.sshfl [vmem:[#allocation1] sm:$0xff pattern:$0x73625140]
  %v3593 = vld.sshfl [vmem:[#allocation1 + $0x20] sm:$0xff pattern:$0x73625140]
  %3594 = vst [vmem:[#allocation1] ss:$4 sm:$0xff] %v3228
  %3595 = vst [vmem:[%s3324] ss:$4 sm:$0xff] %v3229
  %3596 = vst [vmem:[%s3326] ss:$4 sm:$0xff] %v2968
  %3597 = vst [vmem:[%s3328] ss:$4 sm:$0xff] %v3230
  %3598 = vst [vmem:[%s3330] ss:$4 sm:$0xff] %v3231
  %3599 = vst [vmem:[%s3332] ss:$4 sm:$0xff] %v3232
  %3600 = vst [vmem:[%s3334] ss:$4 sm:$0xff] %v2969
  %3601 = vst [vmem:[%s3336] ss:$4 sm:$0xff] %v3233
  %v3602 = vld.sshfl [vmem:[#allocation1] sm:$0xff pattern:$0x73625140]
  %v3603 = vld.sshfl [vmem:[#allocation1 + $0x20] sm:$0xff pattern:$0x73625140]
  %3604 = vst [vmem:[#allocation1] ss:$4 sm:$0xff] %v3234
  %v3605 = vld.sshfl [vmem:[#allocation1] sm:$0xff pattern:$0x73625140]
  %3606 = vst [vmem:[%s3330] ss:$4 sm:$0xff] %v3235
  %3607 = vst [vmem:[%s3332] ss:$4 sm:$0xff] %v2970
  %3608 = vst [vmem:[%s3334] ss:$4 sm:$0xff] %v3236
  %3609 = vst [vmem:[%s3336] ss:$4 sm:$0xff] %v3237
  %v3610 = vld.sshfl [vmem:[#allocation1 + $0x20] sm:$0xff pattern:$0x73625140]
  %3611 = vst [vmem:[#allocation1] ss:$4 sm:$0xff] %v3238
  %3612 = vst [vmem:[%s3324] ss:$4 sm:$0xff] %v2971
  %3613 = vst [vmem:[%s3326] ss:$4 sm:$0xff] %v3239
  %3614 = vst [vmem:[%s3328] ss:$4 sm:$0xff] %v3240
  %3615 = vst [vmem:[%s3330] ss:$4 sm:$0xff] %v3241
  %v3616 = vld.sshfl [vmem:[#allocation1] sm:$0xff pattern:$0x73625140]
  %v3617 = vld.sshfl [vmem:[#allocation1 + $0x20] sm:$0xff pattern:$0x73625140]
  %3618 = vst [vmem:[#allocation1] ss:$4 sm:$0xff] %v2972
  %3619 = vst [vmem:[%s3324] ss:$4 sm:$0xff] %v3242
  %3620 = vst [vmem:[%s3326] ss:$4 sm:$0xff] %v3243
  %3621 = vst [vmem:[%s3328] ss:$4 sm:$0xff] %v3244
  %3622 = vst [vmem:[%s3330] ss:$4 sm:$0xff] %v2973
  %3623 = vst [vmem:[%s3332] ss:$4 sm:$0xff] %v3245
  %3624 = vst [vmem:[%s3334] ss:$4 sm:$0xff] %v3246
  %3625 = vst [vmem:[%s3336] ss:$4 sm:$0xff] %v3247
  %v3626 = vld.sshfl [vmem:[#allocation1] sm:$0xff pattern:$0x73625140]
  %v3627 = vld.sshfl [vmem:[#allocation1 + $0x20] sm:$0xff pattern:$0x73625140]
  %3628 = vst [vmem:[#allocation1] ss:$4 sm:$0xff] %v2974
  %v3629 = vld.sshfl [vmem:[#allocation1] sm:$0xff pattern:$0x73625140]
  %3630 = vst [vmem:[%s3330] ss:$4 sm:$0xff] %v3248
  %3631 = vst [vmem:[%s3332] ss:$4 sm:$0xff] %v3249
  %3632 = vst [vmem:[%s3334] ss:$4 sm:$0xff] %v3250
  %3633 = vst [vmem:[%s3336] ss:$4 sm:$0xff] %v2975
  %v3634 = vld.sshfl [vmem:[#allocation1 + $0x20] sm:$0xff pattern:$0x73625140]
  %3635 = vst [vmem:[#allocation1] ss:$4 sm:$0xff] %v3251
  %3636 = vst [vmem:[%s3324] ss:$4 sm:$0xff] %v3252
  %3637 = vst [vmem:[%s3326] ss:$4 sm:$0xff] %v3253
  %3638 = vst [vmem:[%s3328] ss:$4 sm:$0xff] %v2976
  %3639 = vst [vmem:[%s3330] ss:$4 sm:$0xff] %v3254
  %v3640 = vld.sshfl [vmem:[#allocation1] sm:$0xff pattern:$0x73625140]
  %v3641 = vld.sshfl [vmem:[#allocation1 + $0x20] sm:$0xff pattern:$0x73625140]
  %3642 = vst [vmem:[#allocation1] ss:$4 sm:$0xff] %v3255
  %3643 = vst [vmem:[%s3324] ss:$4 sm:$0xff] %v3256
  %3644 = vst [vmem:[%s3326] ss:$4 sm:$0xff] %v2977
  %3645 = vst [vmem:[%s3328] ss:$4 sm:$0xff] %v3257
  %3646 = vst [vmem:[%s3330] ss:$4 sm:$0xff] %v3258
  %3647 = vst [vmem:[%s3332] ss:$4 sm:$0xff] %v3259
  %3648 = vst [vmem:[%s3334] ss:$4 sm:$0xff] %v2978
  %3649 = vst [vmem:[%s3336] ss:$4 sm:$0xff] %v3260
  %v3650 = vld.sshfl [vmem:[#allocation1] sm:$0xff pattern:$0x73625140]
  %v3651 = vld.sshfl [vmem:[#allocation1 + $0x20] sm:$0xff pattern:$0x73625140]
  %3652 = vst [vmem:[#allocation1] ss:$4 sm:$0xff] %v3261
  %v3653 = vld.sshfl [vmem:[#allocation1] sm:$0xff pattern:$0x73625140]
  %3654 = vst [vmem:[%s3330] ss:$4 sm:$0xff] %v3262
  %3655 = vst [vmem:[%s3332] ss:$4 sm:$0xff] %v2979
  %3656 = vst [vmem:[%s3334] ss:$4 sm:$0xff] %v3263
  %3657 = vst [vmem:[%s3336] ss:$4 sm:$0xff] %v3264
  %v3658 = vld.sshfl [vmem:[#allocation1 + $0x20] sm:$0xff pattern:$0x73625140]
  %3659 = vst [vmem:[#allocation1] ss:$4 sm:$0xff] %v3265
  %3660 = vst [vmem:[%s3324] ss:$4 sm:$0xff] %v2980
  %3661 = vst [vmem:[%s3326] ss:$4 sm:$0xff] %v3266
  %3662 = vst [vmem:[%s3328] ss:$4 sm:$0xff] %v3267
  %3663 = vst [vmem:[%s3330] ss:$4 sm:$0xff] %v3268
  %v3664 = vld.sshfl [vmem:[#allocation1] sm:$0xff pattern:$0x73625140]
  %v3665 = vld.sshfl [vmem:[#allocation1 + $0x20] sm:$0xff pattern:$0x73625140]
  %3666 = vst [vmem:[#allocation1] ss:$4 sm:$0xff] %v2981
  %3667 = vst [vmem:[%s3324] ss:$4 sm:$0xff] %v3269
  %3668 = vst [vmem:[%s3326] ss:$4 sm:$0xff] %v3270
  %3669 = vst [vmem:[%s3328] ss:$4 sm:$0xff] %v3271
  %3670 = vst [vmem:[%s3330] ss:$4 sm:$0xff] %v2982
  %3671 = vst [vmem:[%s3332] ss:$4 sm:$0xff] %v3272
  %3672 = vst [vmem:[%s3334] ss:$4 sm:$0xff] %v3273
  %3673 = vst [vmem:[%s3336] ss:$4 sm:$0xff] %v3274
  %v3674 = vld.sshfl [vmem:[#allocation1] sm:$0xff pattern:$0x73625140]
  %v3675 = vld.sshfl [vmem:[#allocation1 + $0x20] sm:$0xff pattern:$0x73625140]
  %3676 = vst [vmem:[#allocation1] ss:$4 sm:$0xff] %v2983
  %v3677 = vld.sshfl [vmem:[#allocation1] sm:$0xff pattern:$0x73625140]
  %3678 = vst [vmem:[%s3330] ss:$4 sm:$0xff] %v3275
  %3679 = vst [vmem:[%s3332] ss:$4 sm:$0xff] %v3276
  %3680 = vst [vmem:[%s3334] ss:$4 sm:$0xff] %v3277
  %3681 = vst [vmem:[%s3336] ss:$4 sm:$0xff] %v2984
  %v3682 = vld.sshfl [vmem:[#allocation1 + $0x20] sm:$0xff pattern:$0x73625140]
  %3683 = vst [vmem:[#allocation1] ss:$4 sm:$0xff] %v3278
  %3684 = vst [vmem:[%s3324] ss:$4 sm:$0xff] %v3279
  %3685 = vst [vmem:[%s3326] ss:$4 sm:$0xff] %v3280
  %3686 = vst [vmem:[%s3328] ss:$4 sm:$0xff] %v2985
  %3687 = vst [vmem:[%s3330] ss:$4 sm:$0xff] %v3281
  %v3688 = vld.sshfl [vmem:[#allocation1] sm:$0xff pattern:$0x73625140]
  %v3689 = vld.sshfl [vmem:[#allocation1 + $0x20] sm:$0xff pattern:$0x73625140]
  %3690 = vst [vmem:[#allocation1] ss:$4 sm:$0xff] %v3282
  %3691 = vst [vmem:[%s3324] ss:$4 sm:$0xff] %v3283
  %3692 = vst [vmem:[%s3326] ss:$4 sm:$0xff] %v2986
  %3693 = vst [vmem:[%s3328] ss:$4 sm:$0xff] %v3284
  %3694 = vst [vmem:[%s3330] ss:$4 sm:$0xff] %v3285
  %3695 = vst [vmem:[%s3332] ss:$4 sm:$0xff] %v3286
  %3696 = vst [vmem:[%s3334] ss:$4 sm:$0xff] %v2987
  %3697 = vst [vmem:[%s3336] ss:$4 sm:$0xff] %v3287
  %v3698 = vld.sshfl [vmem:[#allocation1] sm:$0xff pattern:$0x73625140]
  %v3699 = vld.sshfl [vmem:[#allocation1 + $0x20] sm:$0xff pattern:$0x73625140]
  %3700 = vst [vmem:[#allocation1] ss:$4 sm:$0xff] %v3288
  %v3701 = vld.sshfl [vmem:[#allocation1] sm:$0xff pattern:$0x73625140]
  %3702 = vst [vmem:[%s3330] ss:$4 sm:$0xff] %v3289
  %3703 = vst [vmem:[%s3332] ss:$4 sm:$0xff] %v2988
  %3704 = vst [vmem:[%s3334] ss:$4 sm:$0xff] %v3290
  %3705 = vst [vmem:[%s3336] ss:$4 sm:$0xff] %v3291
  %v3706 = vld.sshfl [vmem:[#allocation1 + $0x20] sm:$0xff pattern:$0x73625140]
  %3707 = vst [vmem:[#allocation1] ss:$4 sm:$0xff] %v3292
  %3708 = vst [vmem:[%s3324] ss:$4 sm:$0xff] %v2989
  %3709 = vst [vmem:[%s3326] ss:$4 sm:$0xff] %v3293
  %3710 = vst [vmem:[%s3328] ss:$4 sm:$0xff] %v3294
  %3711 = vst [vmem:[%s3330] ss:$4 sm:$0xff] %v3295
  %v3712 = vld.sshfl [vmem:[#allocation1] sm:$0xff pattern:$0x73625140]
  %v3713 = vld.sshfl [vmem:[#allocation1 + $0x20] sm:$0xff pattern:$0x73625140]
  %3714 = vst [vmem:[#allocation1] ss:$4 sm:$0xff] %v2990
  %3715 = vst [vmem:[%s3324] ss:$4 sm:$0xff] %v3296
  %3716 = vst [vmem:[%s3326] ss:$4 sm:$0xff] %v3297
  %3717 = vst [vmem:[%s3328] ss:$4 sm:$0xff] %v3298
  %3718 = vst [vmem:[%s3330] ss:$4 sm:$0xff] %v2991
  %3719 = vst [vmem:[%s3332] ss:$4 sm:$0xff] %v3299
  %3720 = vst [vmem:[%s3334] ss:$4 sm:$0xff] %v3300
  %3721 = vst [vmem:[%s3336] ss:$4 sm:$0xff] %v3301
  %v3722 = vld.sshfl [vmem:[#allocation1] sm:$0xff pattern:$0x73625140]
  %v3723 = vld.sshfl [vmem:[#allocation1 + $0x20] sm:$0xff pattern:$0x73625140]
  %3724 = vst [vmem:[#allocation1] ss:$4 sm:$0xff] %v2992
  %v3725 = vld.sshfl [vmem:[#allocation1] sm:$0xff pattern:$0x73625140]
  %3726 = vst [vmem:[%s3330] ss:$4 sm:$0xff] %v3302
  %3727 = vst [vmem:[%s3332] ss:$4 sm:$0xff] %v3303
  %3728 = vst [vmem:[%s3334] ss:$4 sm:$0xff] %v3304
  %3729 = vst [vmem:[%s3336] ss:$4 sm:$0xff] %v2993
  %v3730 = vld.sshfl [vmem:[#allocation1 + $0x20] sm:$0xff pattern:$0x73625140]
  %3731 = vst [vmem:[#allocation1] ss:$4 sm:$0xff] %v3305
  %3732 = vst [vmem:[%s3324] ss:$4 sm:$0xff] %v3306
  %3733 = vst [vmem:[%s3326] ss:$4 sm:$0xff] %v3307
  %3734 = vst [vmem:[%s3328] ss:$4 sm:$0xff] %v2994
  %3735 = vst [vmem:[%s3330] ss:$4 sm:$0xff] %v3308
  %v3736 = vld.sshfl [vmem:[#allocation1] sm:$0xff pattern:$0x73625140]
  %v3737 = vld.sshfl [vmem:[#allocation1 + $0x20] sm:$0xff pattern:$0x73625140]
  %3738 = vst [vmem:[#allocation1] ss:$4 sm:$0xff] %v3309
  %3739 = vst [vmem:[%s3324] ss:$4 sm:$0xff] %v3310
  %3740 = vst [vmem:[%s3326] ss:$4 sm:$0xff] %v2995
  %3741 = vst [vmem:[%s3328] ss:$4 sm:$0xff] %v3311
  %3742 = vst [vmem:[%s3330] ss:$4 sm:$0xff] %v3312
  %3743 = vst [vmem:[%s3332] ss:$4 sm:$0xff] %v3313
  %3744 = vst [vmem:[%s3334] ss:$4 sm:$0xff] %v2996
  %3745 = vst [vmem:[%s3336] ss:$4 sm:$0xff] %v3314
  %v3746 = vld.sshfl [vmem:[#allocation1] sm:$0xff pattern:$0x73625140]
  %v3747 = vld.sshfl [vmem:[#allocation1 + $0x20] sm:$0xff pattern:$0x73625140]
  %3748 = vst [vmem:[#allocation1] ss:$4 sm:$0xff] %v3315
  %v3749 = vld.sshfl [vmem:[#allocation1] sm:$0xff pattern:$0x73625140]
  %3750 = vst [vmem:[%s3330] ss:$4 sm:$0xff] %v3316
  %3751 = vst [vmem:[%s3332] ss:$4 sm:$0xff] %v2997
  %3752 = vst [vmem:[%s3334] ss:$4 sm:$0xff] %v3317
  %3753 = vst [vmem:[%s3336] ss:$4 sm:$0xff] %v3318
  %v3754 = vld.sshfl [vmem:[#allocation1 + $0x20] sm:$0xff pattern:$0x73625140]
  %3755 = vst [vmem:[#allocation1] ss:$4 sm:$0xff] %v3319
  %3756 = vst [vmem:[%s3324] ss:$4 sm:$0xff] %v2998
  %3757 = vst [vmem:[%s3326] ss:$4 sm:$0xff] %v3320
  %3758 = vst [vmem:[%s3328] ss:$4 sm:$0xff] %v3321
  %3759 = vst [vmem:[%s3330] ss:$4 sm:$0xff] %v3322
  %v3760 = vld.sshfl [vmem:[#allocation1] sm:$0xff pattern:$0x73625140]
  %v3761 = vld.sshfl [vmem:[#allocation1 + $0x20] sm:$0xff pattern:$0x73625140]
  %3870 = vst.msk [vmem:[#allocation2] sm:$0xff] %vm1916, %v3338
  %3871 = vst.msk [vmem:[#allocation2 + $0x8] sm:$0xff] %vm1916, %v3339
  %vm3872 = vcmask 386048
  %3873 = vst.msk [vmem:[#allocation2 + $0x10] sm:$0x3] %vm3872, %v3341
  %3874 = vst.msk [vmem:[#allocation2 + $0x18] sm:$0xff] %vm1916, %v3346
  %3875 = vst.msk [vmem:[#allocation2 + $0x20] sm:$0xff] %vm1916, %v3352
  %3876 = vst.msk [vmem:[#allocation2 + $0x28] sm:$0x3] %vm3872, %v3353
  %3877 = vst.msk [vmem:[#allocation2 + $0x30] sm:$0xff] %vm1916, %v3362
  %3878 = vst.msk [vmem:[#allocation2 + $0x38] sm:$0xff] %vm1916, %v3363
  %3879 = vst.msk [vmem:[#allocation2 + $0x40] sm:$0x3] %vm3872, %v3365
  %3880 = vst.msk [vmem:[#allocation2 + $0x48] sm:$0xff] %vm1916, %v3370
  %3881 = vst.msk [vmem:[#allocation2 + $0x50] sm:$0xff] %vm1916, %v3376
  %3882 = vst.msk [vmem:[#allocation2 + $0x58] sm:$0x3] %vm3872, %v3377
  %3883 = vst.msk [vmem:[#allocation2 + $0x60] sm:$0xff] %vm1916, %v3386
  %3884 = vst.msk [vmem:[#allocation2 + $0x68] sm:$0xff] %vm1916, %v3387
  %3885 = vst.msk [vmem:[#allocation2 + $0x70] sm:$0x3] %vm3872, %v3389
  %3886 = vst.msk [vmem:[#allocation2 + $0x78] sm:$0xff] %vm1916, %v3394
  %3887 = vst.msk [vmem:[#allocation2 + $0x80] sm:$0xff] %vm1916, %v3400
  %3888 = vst.msk [vmem:[#allocation2 + $0x88] sm:$0x3] %vm3872, %v3401
  %3889 = vst.msk [vmem:[#allocation2 + $0x90] sm:$0xff] %vm1916, %v3410
  %3890 = vst.msk [vmem:[#allocation2 + $0x98] sm:$0xff] %vm1916, %v3411
  %3891 = vst.msk [vmem:[#allocation2 + $0xa0] sm:$0x3] %vm3872, %v3413
  %3892 = vst.msk [vmem:[#allocation2 + $0xa8] sm:$0xff] %vm1916, %v3418
  %3893 = vst.msk [vmem:[#allocation2 + $0xb0] sm:$0xff] %vm1916, %v3424
  %3894 = vst.msk [vmem:[#allocation2 + $0xb8] sm:$0x3] %vm3872, %v3425
  %3895 = vst.msk [vmem:[#allocation2 + $0xc0] sm:$0xff] %vm1916, %v3434
  %3896 = vst.msk [vmem:[#allocation2 + $0xc8] sm:$0xff] %vm1916, %v3435
  %3897 = vst.msk [vmem:[#allocation2 + $0xd0] sm:$0x3] %vm3872, %v3437
  %3898 = vst.msk [vmem:[#allocation2 + $0xd8] sm:$0xff] %vm1916, %v3442
  %3899 = vst.msk [vmem:[#allocation2 + $0xe0] sm:$0xff] %vm1916, %v3448
  %3900 = vst.msk [vmem:[#allocation2 + $0xe8] sm:$0x3] %vm3872, %v3449
  %3901 = vst.msk [vmem:[#allocation2 + $0xf0] sm:$0xff] %vm1916, %v3458
  %3902 = vst.msk [vmem:[#allocation2 + $0xf8] sm:$0xff] %vm1916, %v3459
  %3903 = vst.msk [vmem:[#allocation2 + $0x100] sm:$0x3] %vm3872, %v3461
  %3904 = vst.msk [vmem:[#allocation2 + $0x108] sm:$0xff] %vm1916, %v3466
  %3905 = vst.msk [vmem:[#allocation2 + $0x110] sm:$0xff] %vm1916, %v3472
  %3906 = vst.msk [vmem:[#allocation2 + $0x118] sm:$0x3] %vm3872, %v3473
  %3907 = vst.msk [vmem:[#allocation2 + $0x120] sm:$0xff] %vm1916, %v3482
  %3908 = vst.msk [vmem:[#allocation2 + $0x128] sm:$0xff] %vm1916, %v3483
  %3909 = vst.msk [vmem:[#allocation2 + $0x130] sm:$0x3] %vm3872, %v3485
  %3910 = vst.msk [vmem:[#allocation2 + $0x138] sm:$0xff] %vm1916, %v3490
  %3911 = vst.msk [vmem:[#allocation2 + $0x140] sm:$0xff] %vm1916, %v3496
  %3912 = vst.msk [vmem:[#allocation2 + $0x148] sm:$0x3] %vm3872, %v3497
  %3913 = vst.msk [vmem:[#allocation2 + $0x150] sm:$0xff] %vm1916, %v3506
  %3914 = vst.msk [vmem:[#allocation2 + $0x158] sm:$0xff] %vm1916, %v3507
  %3915 = vst.msk [vmem:[#allocation2 + $0x160] sm:$0x3] %vm3872, %v3509
  %3916 = vst.msk [vmem:[#allocation2 + $0x168] sm:$0xff] %vm1916, %v3514
  %3917 = vst.msk [vmem:[#allocation2 + $0x170] sm:$0xff] %vm1916, %v3520
  %3918 = vst.msk [vmem:[#allocation2 + $0x178] sm:$0x3] %vm3872, %v3521
  %3919 = vst.msk [vmem:[#allocation2 + $0x180] sm:$0xff] %vm1916, %v3530
  %3920 = vst.msk [vmem:[#allocation2 + $0x188] sm:$0xff] %vm1916, %v3531
  %3921 = vst.msk [vmem:[#allocation2 + $0x190] sm:$0x3] %vm3872, %v3533
  %3922 = vst.msk [vmem:[#allocation2 + $0x198] sm:$0xff] %vm1916, %v3538
  %3923 = vst.msk [vmem:[#allocation2 + $0x1a0] sm:$0xff] %vm1916, %v3544
  %3924 = vst.msk [vmem:[#allocation2 + $0x1a8] sm:$0x3] %vm3872, %v3545
  %3925 = vst.msk [vmem:[#allocation2 + $0x1b0] sm:$0xff] %vm1916, %v3554
  %3926 = vst.msk [vmem:[#allocation2 + $0x1b8] sm:$0xff] %vm1916, %v3555
  %3927 = vst.msk [vmem:[#allocation2 + $0x1c0] sm:$0x3] %vm3872, %v3557
  %3928 = vst.msk [vmem:[#allocation2 + $0x1c8] sm:$0xff] %vm1916, %v3562
  %3929 = vst.msk [vmem:[#allocation2 + $0x1d0] sm:$0xff] %vm1916, %v3568
  %3930 = vst.msk [vmem:[#allocation2 + $0x1d8] sm:$0x3] %vm3872, %v3569
  %3931 = vst.msk [vmem:[#allocation2 + $0x1e0] sm:$0xff] %vm1916, %v3578
  %3932 = vst.msk [vmem:[#allocation2 + $0x1e8] sm:$0xff] %vm1916, %v3579
  %3933 = vst.msk [vmem:[#allocation2 + $0x1f0] sm:$0x3] %vm3872, %v3581
  %3934 = vst.msk [vmem:[#allocation2 + $0x1f8] sm:$0xff] %vm1916, %v3586
  %3935 = vst.msk [vmem:[#allocation2 + $0x200] sm:$0xff] %vm1916, %v3592
  %3936 = vst.msk [vmem:[#allocation2 + $0x208] sm:$0x3] %vm3872, %v3593
  %3937 = vst.msk [vmem:[#allocation2 + $0x210] sm:$0xff] %vm1916, %v3602
  %3938 = vst.msk [vmem:[#allocation2 + $0x218] sm:$0xff] %vm1916, %v3603
  %3939 = vst.msk [vmem:[#allocation2 + $0x220] sm:$0x3] %vm3872, %v3605
  %3940 = vst.msk [vmem:[#allocation2 + $0x228] sm:$0xff] %vm1916, %v3610
  %3941 = vst.msk [vmem:[#allocation2 + $0x230] sm:$0xff] %vm1916, %v3616
  %3942 = vst.msk [vmem:[#allocation2 + $0x238] sm:$0x3] %vm3872, %v3617
  %3943 = vst.msk [vmem:[#allocation2 + $0x240] sm:$0xff] %vm1916, %v3626
  %3944 = vst.msk [vmem:[#allocation2 + $0x248] sm:$0xff] %vm1916, %v3627
  %3945 = vst.msk [vmem:[#allocation2 + $0x250] sm:$0x3] %vm3872, %v3629
  %3946 = vst.msk [vmem:[#allocation2 + $0x258] sm:$0xff] %vm1916, %v3634
  %3947 = vst.msk [vmem:[#allocation2 + $0x260] sm:$0xff] %vm1916, %v3640
  %3948 = vst.msk [vmem:[#allocation2 + $0x268] sm:$0x3] %vm3872, %v3641
  %3949 = vst.msk [vmem:[#allocation2 + $0x270] sm:$0xff] %vm1916, %v3650
  %3950 = vst.msk [vmem:[#allocation2 + $0x278] sm:$0xff] %vm1916, %v3651
  %3951 = vst.msk [vmem:[#allocation2 + $0x280] sm:$0x3] %vm3872, %v3653
  %3952 = vst.msk [vmem:[#allocation2 + $0x288] sm:$0xff] %vm1916, %v3658
  %3953 = vst.msk [vmem:[#allocation2 + $0x290] sm:$0xff] %vm1916, %v3664
  %3954 = vst.msk [vmem:[#allocation2 + $0x298] sm:$0x3] %vm3872, %v3665
  %3955 = vst.msk [vmem:[#allocation2 + $0x2a0] sm:$0xff] %vm1916, %v3674
  %3956 = vst.msk [vmem:[#allocation2 + $0x2a8] sm:$0xff] %vm1916, %v3675
  %3957 = vst.msk [vmem:[#allocation2 + $0x2b0] sm:$0x3] %vm3872, %v3677
  %3958 = vst.msk [vmem:[#allocation2 + $0x2b8] sm:$0xff] %vm1916, %v3682
  %3959 = vst.msk [vmem:[#allocation2 + $0x2c0] sm:$0xff] %vm1916, %v3688
  %3960 = vst.msk [vmem:[#allocation2 + $0x2c8] sm:$0x3] %vm3872, %v3689
  %3961 = vst.msk [vmem:[#allocation2 + $0x2d0] sm:$0xff] %vm1916, %v3698
  %3962 = vst.msk [vmem:[#allocation2 + $0x2d8] sm:$0xff] %vm1916, %v3699
  %3963 = vst.msk [vmem:[#allocation2 + $0x2e0] sm:$0x3] %vm3872, %v3701
  %3964 = vst.msk [vmem:[#allocation2 + $0x2e8] sm:$0xff] %vm1916, %v3706
  %3965 = vst.msk [vmem:[#allocation2 + $0x2f0] sm:$0xff] %vm1916, %v3712
  %3966 = vst.msk [vmem:[#allocation2 + $0x2f8] sm:$0x3] %vm3872, %v3713
  %3967 = vst.msk [vmem:[#allocation2 + $0x300] sm:$0xff] %vm1916, %v3722
  %3968 = vst.msk [vmem:[#allocation2 + $0x308] sm:$0xff] %vm1916, %v3723
  %3969 = vst.msk [vmem:[#allocation2 + $0x310] sm:$0x3] %vm3872, %v3725
  %3970 = vst.msk [vmem:[#allocation2 + $0x318] sm:$0xff] %vm1916, %v3730
  %3971 = vst.msk [vmem:[#allocation2 + $0x320] sm:$0xff] %vm1916, %v3736
  %3972 = vst.msk [vmem:[#allocation2 + $0x328] sm:$0x3] %vm3872, %v3737
  %3973 = vst.msk [vmem:[#allocation2 + $0x330] sm:$0xff] %vm1916, %v3746
  %3974 = vst.msk [vmem:[#allocation2 + $0x338] sm:$0xff] %vm1916, %v3747
  %3975 = vst.msk [vmem:[#allocation2 + $0x340] sm:$0x3] %vm3872, %v3749
  %3976 = vst.msk [vmem:[#allocation2 + $0x348] sm:$0xff] %vm1916, %v3754
  %3977 = vst.msk [vmem:[#allocation2 + $0x350] sm:$0xff] %vm1916, %v3760
  %3978 = vst.msk [vmem:[#allocation2 + $0x358] sm:$0x3] %vm3872, %v3761
  %v3979 = vld [vmem:[%s5] sm:$0xff]
  %v3980 = vld [vmem:[%s5 + $0x8] sm:$0x1]
  %v3981 = vld [vmem:[#allocation2] sm:$0xff]
  %v3982 = vld [vmem:[#allocation2 + $0x8] sm:$0xff]
  %v3983 = vld [vmem:[#allocation2 + $0x18] sm:$0xff]
  %v3984 = vld [vmem:[#allocation2 + $0x20] sm:$0xff]
  %v3985 = vld [vmem:[#allocation2 + $0x30] sm:$0xff]
  %v3986 = vld [vmem:[#allocation2 + $0x38] sm:$0xff]
  %v3987 = vld [vmem:[#allocation2 + $0x48] sm:$0xff]
  %v3988 = vld [vmem:[#allocation2 + $0x50] sm:$0xff]
  %v3989 = vld [vmem:[#allocation2 + $0x60] sm:$0xff]
  %v3990 = vld [vmem:[#allocation2 + $0x68] sm:$0xff]
  %v3991 = vld [vmem:[#allocation2 + $0x78] sm:$0xff]
  %v3992 = vld [vmem:[#allocation2 + $0x80] sm:$0xff]
  %v3993 = vld [vmem:[#allocation2 + $0x90] sm:$0xff]
  %v3994 = vld [vmem:[#allocation2 + $0x98] sm:$0xff]
  %v3995 = vld [vmem:[#allocation2 + $0xa8] sm:$0xff]
  %v3996 = vld [vmem:[#allocation2 + $0xb0] sm:$0xff]
  %v3997 = vld [vmem:[#allocation2 + $0xc0] sm:$0xff]
  %v3998 = vld [vmem:[#allocation2 + $0xc8] sm:$0xff]
  %v3999 = vld [vmem:[#allocation2 + $0xd8] sm:$0xff]
  %v4000 = vld [vmem:[#allocation2 + $0xe0] sm:$0xff]
  %v4001 = vld [vmem:[#allocation2 + $0xf0] sm:$0xff]
  %v4002 = vld [vmem:[#allocation2 + $0xf8] sm:$0xff]
  %v4003 = vld [vmem:[#allocation2 + $0x108] sm:$0xff]
  %v4004 = vld [vmem:[#allocation2 + $0x110] sm:$0xff]
  %v4005 = vld [vmem:[#allocation2 + $0x120] sm:$0xff]
  %v4006 = vld [vmem:[#allocation2 + $0x128] sm:$0xff]
  %v4007 = vld [vmem:[#allocation2 + $0x138] sm:$0xff]
  %v4008 = vld [vmem:[#allocation2 + $0x140] sm:$0xff]
  %v4009 = vld [vmem:[#allocation2 + $0x150] sm:$0xff]
  %v4010 = vld [vmem:[#allocation2 + $0x158] sm:$0xff]
  %v4011 = vld [vmem:[#allocation2 + $0x168] sm:$0xff]
  %v4012 = vld [vmem:[#allocation2 + $0x170] sm:$0xff]
  %v4013 = vld [vmem:[#allocation2 + $0x1b0] sm:$0xff]
  %v4014 = vld [vmem:[#allocation2 + $0x1b8] sm:$0xff]
  %v4015 = vld [vmem:[#allocation2 + $0x1c8] sm:$0xff]
  %v4016 = vld [vmem:[#allocation2 + $0x1d0] sm:$0xff]
  %v4017 = vld [vmem:[#allocation2 + $0x1e0] sm:$0xff]
  %v4018 = vld [vmem:[#allocation2 + $0x1e8] sm:$0xff]
  %v4019 = vld [vmem:[#allocation2 + $0x1f8] sm:$0xff]
  %v4020 = vld [vmem:[#allocation2 + $0x200] sm:$0xff]
  %v4021 = vld [vmem:[#allocation2 + $0x210] sm:$0xff]
  %v4022 = vld [vmem:[#allocation2 + $0x218] sm:$0xff]
  %v4023 = vld [vmem:[#allocation2 + $0x228] sm:$0xff]
  %v4024 = vld [vmem:[#allocation2 + $0x230] sm:$0xff]
  %v4025 = vld [vmem:[#allocation2 + $0x240] sm:$0xff]
  %v4026 = vld [vmem:[#allocation2 + $0x248] sm:$0xff]
  %v4027 = vld [vmem:[#allocation2 + $0x258] sm:$0xff]
  %v4028 = vld [vmem:[#allocation2 + $0x260] sm:$0xff]
  %v4029 = vld [vmem:[#allocation2 + $0x270] sm:$0xff]
  %v4030 = vld [vmem:[#allocation2 + $0x278] sm:$0xff]
  %v4031 = vld [vmem:[#allocation2 + $0x288] sm:$0xff]
  %v4032 = vld [vmem:[#allocation2 + $0x290] sm:$0xff]
  %v4033 = vld [vmem:[#allocation2 + $0x2a0] sm:$0xff]
  %v4034 = vld [vmem:[#allocation2 + $0x2a8] sm:$0xff]
  %v4035 = vld [vmem:[#allocation2 + $0x2b8] sm:$0xff]
  %v4036 = vld [vmem:[#allocation2 + $0x2c0] sm:$0xff]
  %v4037 = vld [vmem:[#allocation2 + $0x2d0] sm:$0xff]
  %v4038 = vld [vmem:[#allocation2 + $0x2d8] sm:$0xff]
  %v4039 = vld [vmem:[#allocation2 + $0x2e8] sm:$0xff]
  %v4040 = vld [vmem:[#allocation2 + $0x2f0] sm:$0xff]
  %v4041 = vld [vmem:[#allocation2 + $0x300] sm:$0xff]
  %v4042 = vld [vmem:[#allocation2 + $0x308] sm:$0xff]
  %v4043 = vld [vmem:[#allocation2 + $0x318] sm:$0xff]
  %v4044 = vld [vmem:[#allocation2 + $0x320] sm:$0xff]
  %v4045 = vperm.slane %v3979, 0
  %v4046 = vmul.f32 %v3981, %v4045
  %v4047 = vmul.f32 %v3982, %v4045
  %v4048 = vmul.f32 %v3983, %v4045
  %v4049 = vmul.f32 %v3984, %v4045
  %v4050 = vmul.f32 %v3985, %v4045
  %v4051 = vmul.f32 %v3986, %v4045
  %v4052 = vmul.f32 %v3987, %v4045
  %v4053 = vmul.f32 %v3988, %v4045
  %v4054 = vmul.f32 %v3989, %v4045
  %v4055 = vmul.f32 %v3990, %v4045
  %v4056 = vmul.f32 %v3991, %v4045
  %v4057 = vmul.f32 %v3992, %v4045
  %v4058 = vmul.f32 %v3993, %v4045
  %v4059 = vmul.f32 %v3994, %v4045
  %v4060 = vmul.f32 %v3995, %v4045
  %v4061 = vmul.f32 %v3996, %v4045
  %v4062 = vmul.f32 %v3997, %v4045
  %v4063 = vmul.f32 %v3998, %v4045
  %v4064 = vmul.f32 %v3999, %v4045
  %v4065 = vmul.f32 %v4000, %v4045
  %v4066 = vmul.f32 %v4001, %v4045
  %v4067 = vmul.f32 %v4002, %v4045
  %v4068 = vmul.f32 %v4003, %v4045
  %v4069 = vmul.f32 %v4004, %v4045
  %v4070 = vmul.f32 %v4005, %v4045
  %v4071 = vmul.f32 %v4006, %v4045
  %v4072 = vmul.f32 %v4007, %v4045
  %v4073 = vmul.f32 %v4008, %v4045
  %v4074 = vmul.f32 %v4009, %v4045
  %v4075 = vmul.f32 %v4010, %v4045
  %v4076 = vmul.f32 %v4011, %v4045
  %v4077 = vmul.f32 %v4012, %v4045
  %v4078 = vmul.f32 %v4013, %v4045
  %v4079 = vmul.f32 %v4014, %v4045
  %v4080 = vmul.f32 %v4015, %v4045
  %v4081 = vmul.f32 %v4016, %v4045
  %v4082 = vmul.f32 %v4017, %v4045
  %v4083 = vmul.f32 %v4018, %v4045
  %v4084 = vmul.f32 %v4019, %v4045
  %v4085 = vmul.f32 %v4020, %v4045
  %v4086 = vmul.f32 %v4021, %v4045
  %v4087 = vmul.f32 %v4022, %v4045
  %v4088 = vmul.f32 %v4023, %v4045
  %v4089 = vmul.f32 %v4024, %v4045
  %v4090 = vmul.f32 %v4025, %v4045
  %v4091 = vmul.f32 %v4026, %v4045
  %v4092 = vmul.f32 %v4027, %v4045
  %v4093 = vmul.f32 %v4028, %v4045
  %v4094 = vmul.f32 %v4029, %v4045
  %v4095 = vmul.f32 %v4030, %v4045
  %v4096 = vmul.f32 %v4031, %v4045
  %v4097 = vmul.f32 %v4032, %v4045
  %v4098 = vmul.f32 %v4033, %v4045
  %v4099 = vmul.f32 %v4034, %v4045
  %v4100 = vmul.f32 %v4035, %v4045
  %v4101 = vmul.f32 %v4036, %v4045
  %v4102 = vmul.f32 %v4037, %v4045
  %v4103 = vmul.f32 %v4038, %v4045
  %v4104 = vmul.f32 %v4039, %v4045
  %v4105 = vmul.f32 %v4040, %v4045
  %v4106 = vmul.f32 %v4041, %v4045
  %v4107 = vmul.f32 %v4042, %v4045
  %v4108 = vmul.f32 %v4043, %v4045
  %v4109 = vmul.f32 %v4044, %v4045
  %v4110 = vadd.f32 %v4046, 0.0
  %v4111 = vadd.f32 %v4047, 0.0
  %v4112 = vadd.f32 %v4048, 0.0
  %v4113 = vadd.f32 %v4049, 0.0
  %v4114 = vadd.f32 %v4050, 0.0
  %v4115 = vadd.f32 %v4051, 0.0
  %v4116 = vadd.f32 %v4052, 0.0
  %v4117 = vadd.f32 %v4053, 0.0
  %v4118 = vadd.f32 %v4054, 0.0
  %v4119 = vadd.f32 %v4055, 0.0
  %v4120 = vadd.f32 %v4056, 0.0
  %v4121 = vadd.f32 %v4057, 0.0
  %v4122 = vadd.f32 %v4058, 0.0
  %v4123 = vadd.f32 %v4059, 0.0
  %v4124 = vadd.f32 %v4060, 0.0
  %v4125 = vadd.f32 %v4061, 0.0
  %v4126 = vadd.f32 %v4062, 0.0
  %v4127 = vadd.f32 %v4063, 0.0
  %v4128 = vadd.f32 %v4064, 0.0
  %v4129 = vadd.f32 %v4065, 0.0
  %v4130 = vadd.f32 %v4066, 0.0
  %v4131 = vadd.f32 %v4067, 0.0
  %v4132 = vadd.f32 %v4068, 0.0
  %v4133 = vadd.f32 %v4069, 0.0
  %v4134 = vadd.f32 %v4070, 0.0
  %v4135 = vadd.f32 %v4071, 0.0
  %v4136 = vadd.f32 %v4072, 0.0
  %v4137 = vadd.f32 %v4073, 0.0
  %v4138 = vadd.f32 %v4074, 0.0
  %v4139 = vadd.f32 %v4075, 0.0
  %v4140 = vadd.f32 %v4076, 0.0
  %v4141 = vadd.f32 %v4077, 0.0
  %v4142 = vadd.f32 %v4078, 0.0
  %v4143 = vadd.f32 %v4079, 0.0
  %v4144 = vadd.f32 %v4080, 0.0
  %v4145 = vadd.f32 %v4081, 0.0
  %v4146 = vadd.f32 %v4082, 0.0
  %v4147 = vadd.f32 %v4083, 0.0
  %v4148 = vadd.f32 %v4084, 0.0
  %v4149 = vadd.f32 %v4085, 0.0
  %v4150 = vadd.f32 %v4086, 0.0
  %v4151 = vadd.f32 %v4087, 0.0
  %v4152 = vadd.f32 %v4088, 0.0
  %v4153 = vadd.f32 %v4089, 0.0
  %v4154 = vadd.f32 %v4090, 0.0
  %v4155 = vadd.f32 %v4091, 0.0
  %v4156 = vadd.f32 %v4092, 0.0
  %v4157 = vadd.f32 %v4093, 0.0
  %v4158 = vadd.f32 %v4094, 0.0
  %v4159 = vadd.f32 %v4095, 0.0
  %v4160 = vadd.f32 %v4096, 0.0
  %v4161 = vadd.f32 %v4097, 0.0
  %v4162 = vadd.f32 %v4098, 0.0
  %v4163 = vadd.f32 %v4099, 0.0
  %v4164 = vadd.f32 %v4100, 0.0
  %v4165 = vadd.f32 %v4101, 0.0
  %v4166 = vadd.f32 %v4102, 0.0
  %v4167 = vadd.f32 %v4103, 0.0
  %v4168 = vadd.f32 %v4104, 0.0
  %v4169 = vadd.f32 %v4105, 0.0
  %v4170 = vadd.f32 %v4106, 0.0
  %v4171 = vadd.f32 %v4107, 0.0
  %v4172 = vadd.f32 %v4108, 0.0
  %v4173 = vadd.f32 %v4109, 0.0
  %v4174 = vld [vmem:[#allocation2 + $0x1] sm:$0xff]
  %v4175 = vld [vmem:[#allocation2 + $0x9] sm:$0xff]
  %v4176 = vld [vmem:[#allocation2 + $0x19] sm:$0xff]
  %v4177 = vld [vmem:[#allocation2 + $0x21] sm:$0xff]
  %v4178 = vld [vmem:[#allocation2 + $0x31] sm:$0xff]
  %v4179 = vld [vmem:[#allocation2 + $0x39] sm:$0xff]
  %v4180 = vld [vmem:[#allocation2 + $0x49] sm:$0xff]
  %v4181 = vld [vmem:[#allocation2 + $0x51] sm:$0xff]
  %v4182 = vld [vmem:[#allocation2 + $0x61] sm:$0xff]
  %v4183 = vld [vmem:[#allocation2 + $0x69] sm:$0xff]
  %v4184 = vld [vmem:[#allocation2 + $0x79] sm:$0xff]
  %v4185 = vld [vmem:[#allocation2 + $0x81] sm:$0xff]
  %v4186 = vld [vmem:[#allocation2 + $0x91] sm:$0xff]
  %v4187 = vld [vmem:[#allocation2 + $0x99] sm:$0xff]
  %v4188 = vld [vmem:[#allocation2 + $0xa9] sm:$0xff]
  %v4189 = vld [vmem:[#allocation2 + $0xb1] sm:$0xff]
  %v4190 = vld [vmem:[#allocation2 + $0xc1] sm:$0xff]
  %v4191 = vld [vmem:[#allocation2 + $0xc9] sm:$0xff]
  %v4192 = vld [vmem:[#allocation2 + $0xd9] sm:$0xff]
  %v4193 = vld [vmem:[#allocation2 + $0xe1] sm:$0xff]
  %v4194 = vld [vmem:[#allocation2 + $0xf1] sm:$0xff]
  %v4195 = vld [vmem:[#allocation2 + $0xf9] sm:$0xff]
  %v4196 = vld [vmem:[#allocation2 + $0x109] sm:$0xff]
  %v4197 = vld [vmem:[#allocation2 + $0x111] sm:$0xff]
  %v4198 = vld [vmem:[#allocation2 + $0x121] sm:$0xff]
  %v4199 = vld [vmem:[#allocation2 + $0x129] sm:$0xff]
  %v4200 = vld [vmem:[#allocation2 + $0x139] sm:$0xff]
  %v4201 = vld [vmem:[#allocation2 + $0x141] sm:$0xff]
  %v4202 = vld [vmem:[#allocation2 + $0x151] sm:$0xff]
  %v4203 = vld [vmem:[#allocation2 + $0x159] sm:$0xff]
  %v4204 = vld [vmem:[#allocation2 + $0x169] sm:$0xff]
  %v4205 = vld [vmem:[#allocation2 + $0x171] sm:$0xff]
  %v4206 = vld [vmem:[#allocation2 + $0x1b1] sm:$0xff]
  %v4207 = vld [vmem:[#allocation2 + $0x1b9] sm:$0xff]
  %v4208 = vld [vmem:[#allocation2 + $0x1c9] sm:$0xff]
  %v4209 = vld [vmem:[#allocation2 + $0x1d1] sm:$0xff]
  %v4210 = vld [vmem:[#allocation2 + $0x1e1] sm:$0xff]
  %v4211 = vld [vmem:[#allocation2 + $0x1e9] sm:$0xff]
  %v4212 = vld [vmem:[#allocation2 + $0x1f9] sm:$0xff]
  %v4213 = vld [vmem:[#allocation2 + $0x201] sm:$0xff]
  %v4214 = vld [vmem:[#allocation2 + $0x211] sm:$0xff]
  %v4215 = vld [vmem:[#allocation2 + $0x219] sm:$0xff]
  %v4216 = vld [vmem:[#allocation2 + $0x229] sm:$0xff]
  %v4217 = vld [vmem:[#allocation2 + $0x231] sm:$0xff]
  %v4218 = vld [vmem:[#allocation2 + $0x241] sm:$0xff]
  %v4219 = vld [vmem:[#allocation2 + $0x249] sm:$0xff]
  %v4220 = vld [vmem:[#allocation2 + $0x259] sm:$0xff]
  %v4221 = vld [vmem:[#allocation2 + $0x261] sm:$0xff]
  %v4222 = vld [vmem:[#allocation2 + $0x271] sm:$0xff]
  %v4223 = vld [vmem:[#allocation2 + $0x279] sm:$0xff]
  %v4224 = vld [vmem:[#allocation2 + $0x289] sm:$0xff]
  %v4225 = vld [vmem:[#allocation2 + $0x291] sm:$0xff]
  %v4226 = vld [vmem:[#allocation2 + $0x2a1] sm:$0xff]
  %v4227 = vld [vmem:[#allocation2 + $0x2a9] sm:$0xff]
  %v4228 = vld [vmem:[#allocation2 + $0x2b9] sm:$0xff]
  %v4229 = vld [vmem:[#allocation2 + $0x2c1] sm:$0xff]
  %v4230 = vld [vmem:[#allocation2 + $0x2d1] sm:$0xff]
  %v4231 = vld [vmem:[#allocation2 + $0x2d9] sm:$0xff]
  %v4232 = vld [vmem:[#allocation2 + $0x2e9] sm:$0xff]
  %v4233 = vld [vmem:[#allocation2 + $0x2f1] sm:$0xff]
  %v4234 = vld [vmem:[#allocation2 + $0x301] sm:$0xff]
  %v4235 = vld [vmem:[#allocation2 + $0x309] sm:$0xff]
  %v4236 = vld [vmem:[#allocation2 + $0x319] sm:$0xff]
  %v4237 = vld [vmem:[#allocation2 + $0x321] sm:$0xff]
  %v4238 = vperm.slane %v3979, 1
  %v4239 = vmul.f32 %v4174, %v4238
  %v4240 = vmul.f32 %v4175, %v4238
  %v4241 = vmul.f32 %v4176, %v4238
  %v4242 = vmul.f32 %v4177, %v4238
  %v4243 = vmul.f32 %v4178, %v4238
  %v4244 = vmul.f32 %v4179, %v4238
  %v4245 = vmul.f32 %v4180, %v4238
  %v4246 = vmul.f32 %v4181, %v4238
  %v4247 = vmul.f32 %v4182, %v4238
  %v4248 = vmul.f32 %v4183, %v4238
  %v4249 = vmul.f32 %v4184, %v4238
  %v4250 = vmul.f32 %v4185, %v4238
  %v4251 = vmul.f32 %v4186, %v4238
  %v4252 = vmul.f32 %v4187, %v4238
  %v4253 = vmul.f32 %v4188, %v4238
  %v4254 = vmul.f32 %v4189, %v4238
  %v4255 = vmul.f32 %v4190, %v4238
  %v4256 = vmul.f32 %v4191, %v4238
  %v4257 = vmul.f32 %v4192, %v4238
  %v4258 = vmul.f32 %v4193, %v4238
  %v4259 = vmul.f32 %v4194, %v4238
  %v4260 = vmul.f32 %v4195, %v4238
  %v4261 = vmul.f32 %v4196, %v4238
  %v4262 = vmul.f32 %v4197, %v4238
  %v4263 = vmul.f32 %v4198, %v4238
  %v4264 = vmul.f32 %v4199, %v4238
  %v4265 = vmul.f32 %v4200, %v4238
  %v4266 = vmul.f32 %v4201, %v4238
  %v4267 = vmul.f32 %v4202, %v4238
  %v4268 = vmul.f32 %v4203, %v4238
  %v4269 = vmul.f32 %v4204, %v4238
  %v4270 = vmul.f32 %v4205, %v4238
  %v4271 = vmul.f32 %v4206, %v4238
  %v4272 = vmul.f32 %v4207, %v4238
  %v4273 = vmul.f32 %v4208, %v4238
  %v4274 = vmul.f32 %v4209, %v4238
  %v4275 = vmul.f32 %v4210, %v4238
  %v4276 = vmul.f32 %v4211, %v4238
  %v4277 = vmul.f32 %v4212, %v4238
  %v4278 = vmul.f32 %v4213, %v4238
  %v4279 = vmul.f32 %v4214, %v4238
  %v4280 = vmul.f32 %v4215, %v4238
  %v4281 = vmul.f32 %v4216, %v4238
  %v4282 = vmul.f32 %v4217, %v4238
  %v4283 = vmul.f32 %v4218, %v4238
  %v4284 = vmul.f32 %v4219, %v4238
  %v4285 = vmul.f32 %v4220, %v4238
  %v4286 = vmul.f32 %v4221, %v4238
  %v4287 = vmul.f32 %v4222, %v4238
  %v4288 = vmul.f32 %v4223, %v4238
  %v4289 = vmul.f32 %v4224, %v4238
  %v4290 = vmul.f32 %v4225, %v4238
  %v4291 = vmul.f32 %v4226, %v4238
  %v4292 = vmul.f32 %v4227, %v4238
  %v4293 = vmul.f32 %v4228, %v4238
  %v4294 = vmul.f32 %v4229, %v4238
  %v4295 = vmul.f32 %v4230, %v4238
  %v4296 = vmul.f32 %v4231, %v4238
  %v4297 = vmul.f32 %v4232, %v4238
  %v4298 = vmul.f32 %v4233, %v4238
  %v4299 = vmul.f32 %v4234, %v4238
  %v4300 = vmul.f32 %v4235, %v4238
  %v4301 = vmul.f32 %v4236, %v4238
  %v4302 = vmul.f32 %v4237, %v4238
  %v4303 = vadd.f32 %v4110, %v4239
  %v4304 = vadd.f32 %v4111, %v4240
  %v4305 = vadd.f32 %v4112, %v4241
  %v4306 = vadd.f32 %v4113, %v4242
  %v4307 = vadd.f32 %v4114, %v4243
  %v4308 = vadd.f32 %v4115, %v4244
  %v4309 = vadd.f32 %v4116, %v4245
  %v4310 = vadd.f32 %v4117, %v4246
  %v4311 = vadd.f32 %v4118, %v4247
  %v4312 = vadd.f32 %v4119, %v4248
  %v4313 = vadd.f32 %v4120, %v4249
  %v4314 = vadd.f32 %v4121, %v4250
  %v4315 = vadd.f32 %v4122, %v4251
  %v4316 = vadd.f32 %v4123, %v4252
  %v4317 = vadd.f32 %v4124, %v4253
  %v4318 = vadd.f32 %v4125, %v4254
  %v4319 = vadd.f32 %v4126, %v4255
  %v4320 = vadd.f32 %v4127, %v4256
  %v4321 = vadd.f32 %v4128, %v4257
  %v4322 = vadd.f32 %v4129, %v4258
  %v4323 = vadd.f32 %v4130, %v4259
  %v4324 = vadd.f32 %v4131, %v4260
  %v4325 = vadd.f32 %v4132, %v4261
  %v4326 = vadd.f32 %v4133, %v4262
  %v4327 = vadd.f32 %v4134, %v4263
  %v4328 = vadd.f32 %v4135, %v4264
  %v4329 = vadd.f32 %v4136, %v4265
  %v4330 = vadd.f32 %v4137, %v4266
  %v4331 = vadd.f32 %v4138, %v4267
  %v4332 = vadd.f32 %v4139, %v4268
  %v4333 = vadd.f32 %v4140, %v4269
  %v4334 = vadd.f32 %v4141, %v4270
  %v4335 = vadd.f32 %v4142, %v4271
  %v4336 = vadd.f32 %v4143, %v4272
  %v4337 = vadd.f32 %v4144, %v4273
  %v4338 = vadd.f32 %v4145, %v4274
  %v4339 = vadd.f32 %v4146, %v4275
  %v4340 = vadd.f32 %v4147, %v4276
  %v4341 = vadd.f32 %v4148, %v4277
  %v4342 = vadd.f32 %v4149, %v4278
  %v4343 = vadd.f32 %v4150, %v4279
  %v4344 = vadd.f32 %v4151, %v4280
  %v4345 = vadd.f32 %v4152, %v4281
  %v4346 = vadd.f32 %v4153, %v4282
  %v4347 = vadd.f32 %v4154, %v4283
  %v4348 = vadd.f32 %v4155, %v4284
  %v4349 = vadd.f32 %v4156, %v4285
  %v4350 = vadd.f32 %v4157, %v4286
  %v4351 = vadd.f32 %v4158, %v4287
  %v4352 = vadd.f32 %v4159, %v4288
  %v4353 = vadd.f32 %v4160, %v4289
  %v4354 = vadd.f32 %v4161, %v4290
  %v4355 = vadd.f32 %v4162, %v4291
  %v4356 = vadd.f32 %v4163, %v4292
  %v4357 = vadd.f32 %v4164, %v4293
  %v4358 = vadd.f32 %v4165, %v4294
  %v4359 = vadd.f32 %v4166, %v4295
  %v4360 = vadd.f32 %v4167, %v4296
  %v4361 = vadd.f32 %v4168, %v4297
  %v4362 = vadd.f32 %v4169, %v4298
  %v4363 = vadd.f32 %v4170, %v4299
  %v4364 = vadd.f32 %v4171, %v4300
  %v4365 = vadd.f32 %v4172, %v4301
  %v4366 = vadd.f32 %v4173, %v4302
  %v4367 = vld [vmem:[#allocation2 + $0x2] sm:$0xff]
  %v4368 = vld [vmem:[#allocation2 + $0xa] sm:$0xff]
  %v4369 = vld [vmem:[#allocation2 + $0x1a] sm:$0xff]
  %v4370 = vld [vmem:[#allocation2 + $0x22] sm:$0xff]
  %v4371 = vld [vmem:[#allocation2 + $0x32] sm:$0xff]
  %v4372 = vld [vmem:[#allocation2 + $0x3a] sm:$0xff]
  %v4373 = vld [vmem:[#allocation2 + $0x4a] sm:$0xff]
  %v4374 = vld [vmem:[#allocation2 + $0x52] sm:$0xff]
  %v4375 = vld [vmem:[#allocation2 + $0x62] sm:$0xff]
  %v4376 = vld [vmem:[#allocation2 + $0x6a] sm:$0xff]
  %v4377 = vld [vmem:[#allocation2 + $0x7a] sm:$0xff]
  %v4378 = vld [vmem:[#allocation2 + $0x82] sm:$0xff]
  %v4379 = vld [vmem:[#allocation2 + $0x92] sm:$0xff]
  %v4380 = vld [vmem:[#allocation2 + $0x9a] sm:$0xff]
  %v4381 = vld [vmem:[#allocation2 + $0xaa] sm:$0xff]
  %v4382 = vld [vmem:[#allocation2 + $0xb2] sm:$0xff]
  %v4383 = vld [vmem:[#allocation2 + $0xc2] sm:$0xff]
  %v4384 = vld [vmem:[#allocation2 + $0xca] sm:$0xff]
  %v4385 = vld [vmem:[#allocation2 + $0xda] sm:$0xff]
  %v4386 = vld [vmem:[#allocation2 + $0xe2] sm:$0xff]
  %v4387 = vld [vmem:[#allocation2 + $0xf2] sm:$0xff]
  %v4388 = vld [vmem:[#allocation2 + $0xfa] sm:$0xff]
  %v4389 = vld [vmem:[#allocation2 + $0x10a] sm:$0xff]
  %v4390 = vld [vmem:[#allocation2 + $0x112] sm:$0xff]
  %v4391 = vld [vmem:[#allocation2 + $0x122] sm:$0xff]
  %v4392 = vld [vmem:[#allocation2 + $0x12a] sm:$0xff]
  %v4393 = vld [vmem:[#allocation2 + $0x13a] sm:$0xff]
  %v4394 = vld [vmem:[#allocation2 + $0x142] sm:$0xff]
  %v4395 = vld [vmem:[#allocation2 + $0x152] sm:$0xff]
  %v4396 = vld [vmem:[#allocation2 + $0x15a] sm:$0xff]
  %v4397 = vld [vmem:[#allocation2 + $0x16a] sm:$0xff]
  %v4398 = vld [vmem:[#allocation2 + $0x172] sm:$0xff]
  %v4399 = vld [vmem:[#allocation2 + $0x1b2] sm:$0xff]
  %v4400 = vld [vmem:[#allocation2 + $0x1ba] sm:$0xff]
  %v4401 = vld [vmem:[#allocation2 + $0x1ca] sm:$0xff]
  %v4402 = vld [vmem:[#allocation2 + $0x1d2] sm:$0xff]
  %v4403 = vld [vmem:[#allocation2 + $0x1e2] sm:$0xff]
  %v4404 = vld [vmem:[#allocation2 + $0x1ea] sm:$0xff]
  %v4405 = vld [vmem:[#allocation2 + $0x1fa] sm:$0xff]
  %v4406 = vld [vmem:[#allocation2 + $0x202] sm:$0xff]
  %v4407 = vld [vmem:[#allocation2 + $0x212] sm:$0xff]
  %v4408 = vld [vmem:[#allocation2 + $0x21a] sm:$0xff]
  %v4409 = vld [vmem:[#allocation2 + $0x22a] sm:$0xff]
  %v4410 = vld [vmem:[#allocation2 + $0x232] sm:$0xff]
  %v4411 = vld [vmem:[#allocation2 + $0x242] sm:$0xff]
  %v4412 = vld [vmem:[#allocation2 + $0x24a] sm:$0xff]
  %v4413 = vld [vmem:[#allocation2 + $0x25a] sm:$0xff]
  %v4414 = vld [vmem:[#allocation2 + $0x262] sm:$0xff]
  %v4415 = vld [vmem:[#allocation2 + $0x272] sm:$0xff]
  %v4416 = vld [vmem:[#allocation2 + $0x27a] sm:$0xff]
  %v4417 = vld [vmem:[#allocation2 + $0x28a] sm:$0xff]
  %v4418 = vld [vmem:[#allocation2 + $0x292] sm:$0xff]
  %v4419 = vld [vmem:[#allocation2 + $0x2a2] sm:$0xff]
  %v4420 = vld [vmem:[#allocation2 + $0x2aa] sm:$0xff]
  %v4421 = vld [vmem:[#allocation2 + $0x2ba] sm:$0xff]
  %v4422 = vld [vmem:[#allocation2 + $0x2c2] sm:$0xff]
  %v4423 = vld [vmem:[#allocation2 + $0x2d2] sm:$0xff]
  %v4424 = vld [vmem:[#allocation2 + $0x2da] sm:$0xff]
  %v4425 = vld [vmem:[#allocation2 + $0x2ea] sm:$0xff]
  %v4426 = vld [vmem:[#allocation2 + $0x2f2] sm:$0xff]
  %v4427 = vld [vmem:[#allocation2 + $0x302] sm:$0xff]
  %v4428 = vld [vmem:[#allocation2 + $0x30a] sm:$0xff]
  %v4429 = vld [vmem:[#allocation2 + $0x31a] sm:$0xff]
  %v4430 = vld [vmem:[#allocation2 + $0x322] sm:$0xff]
  %v4431 = vperm.slane %v3979, 2
  %v4432 = vmul.f32 %v4367, %v4431
  %v4433 = vmul.f32 %v4368, %v4431
  %v4434 = vmul.f32 %v4369, %v4431
  %v4435 = vmul.f32 %v4370, %v4431
  %v4436 = vmul.f32 %v4371, %v4431
  %v4437 = vmul.f32 %v4372, %v4431
  %v4438 = vmul.f32 %v4373, %v4431
  %v4439 = vmul.f32 %v4374, %v4431
  %v4440 = vmul.f32 %v4375, %v4431
  %v4441 = vmul.f32 %v4376, %v4431
  %v4442 = vmul.f32 %v4377, %v4431
  %v4443 = vmul.f32 %v4378, %v4431
  %v4444 = vmul.f32 %v4379, %v4431
  %v4445 = vmul.f32 %v4380, %v4431
  %v4446 = vmul.f32 %v4381, %v4431
  %v4447 = vmul.f32 %v4382, %v4431
  %v4448 = vmul.f32 %v4383, %v4431
  %v4449 = vmul.f32 %v4384, %v4431
  %v4450 = vmul.f32 %v4385, %v4431
  %v4451 = vmul.f32 %v4386, %v4431
  %v4452 = vmul.f32 %v4387, %v4431
  %v4453 = vmul.f32 %v4388, %v4431
  %v4454 = vmul.f32 %v4389, %v4431
  %v4455 = vmul.f32 %v4390, %v4431
  %v4456 = vmul.f32 %v4391, %v4431
  %v4457 = vmul.f32 %v4392, %v4431
  %v4458 = vmul.f32 %v4393, %v4431
  %v4459 = vmul.f32 %v4394, %v4431
  %v4460 = vmul.f32 %v4395, %v4431
  %v4461 = vmul.f32 %v4396, %v4431
  %v4462 = vmul.f32 %v4397, %v4431
  %v4463 = vmul.f32 %v4398, %v4431
  %v4464 = vmul.f32 %v4399, %v4431
  %v4465 = vmul.f32 %v4400, %v4431
  %v4466 = vmul.f32 %v4401, %v4431
  %v4467 = vmul.f32 %v4402, %v4431
  %v4468 = vmul.f32 %v4403, %v4431
  %v4469 = vmul.f32 %v4404, %v4431
  %v4470 = vmul.f32 %v4405, %v4431
  %v4471 = vmul.f32 %v4406, %v4431
  %v4472 = vmul.f32 %v4407, %v4431
  %v4473 = vmul.f32 %v4408, %v4431
  %v4474 = vmul.f32 %v4409, %v4431
  %v4475 = vmul.f32 %v4410, %v4431
  %v4476 = vmul.f32 %v4411, %v4431
  %v4477 = vmul.f32 %v4412, %v4431
  %v4478 = vmul.f32 %v4413, %v4431
  %v4479 = vmul.f32 %v4414, %v4431
  %v4480 = vmul.f32 %v4415, %v4431
  %v4481 = vmul.f32 %v4416, %v4431
  %v4482 = vmul.f32 %v4417, %v4431
  %v4483 = vmul.f32 %v4418, %v4431
  %v4484 = vmul.f32 %v4419, %v4431
  %v4485 = vmul.f32 %v4420, %v4431
  %v4486 = vmul.f32 %v4421, %v4431
  %v4487 = vmul.f32 %v4422, %v4431
  %v4488 = vmul.f32 %v4423, %v4431
  %v4489 = vmul.f32 %v4424, %v4431
  %v4490 = vmul.f32 %v4425, %v4431
  %v4491 = vmul.f32 %v4426, %v4431
  %v4492 = vmul.f32 %v4427, %v4431
  %v4493 = vmul.f32 %v4428, %v4431
  %v4494 = vmul.f32 %v4429, %v4431
  %v4495 = vmul.f32 %v4430, %v4431
  %v4496 = vadd.f32 %v4303, %v4432
  %v4497 = vadd.f32 %v4304, %v4433
  %v4498 = vadd.f32 %v4305, %v4434
  %v4499 = vadd.f32 %v4306, %v4435
  %v4500 = vadd.f32 %v4307, %v4436
  %v4501 = vadd.f32 %v4308, %v4437
  %v4502 = vadd.f32 %v4309, %v4438
  %v4503 = vadd.f32 %v4310, %v4439
  %v4504 = vadd.f32 %v4311, %v4440
  %v4505 = vadd.f32 %v4312, %v4441
  %v4506 = vadd.f32 %v4313, %v4442
  %v4507 = vadd.f32 %v4314, %v4443
  %v4508 = vadd.f32 %v4315, %v4444
  %v4509 = vadd.f32 %v4316, %v4445
  %v4510 = vadd.f32 %v4317, %v4446
  %v4511 = vadd.f32 %v4318, %v4447
  %v4512 = vadd.f32 %v4319, %v4448
  %v4513 = vadd.f32 %v4320, %v4449
  %v4514 = vadd.f32 %v4321, %v4450
  %v4515 = vadd.f32 %v4322, %v4451
  %v4516 = vadd.f32 %v4323, %v4452
  %v4517 = vadd.f32 %v4324, %v4453
  %v4518 = vadd.f32 %v4325, %v4454
  %v4519 = vadd.f32 %v4326, %v4455
  %v4520 = vadd.f32 %v4327, %v4456
  %v4521 = vadd.f32 %v4328, %v4457
  %v4522 = vadd.f32 %v4329, %v4458
  %v4523 = vadd.f32 %v4330, %v4459
  %v4524 = vadd.f32 %v4331, %v4460
  %v4525 = vadd.f32 %v4332, %v4461
  %v4526 = vadd.f32 %v4333, %v4462
  %v4527 = vadd.f32 %v4334, %v4463
  %v4528 = vadd.f32 %v4335, %v4464
  %v4529 = vadd.f32 %v4336, %v4465
  %v4530 = vadd.f32 %v4337, %v4466
  %v4531 = vadd.f32 %v4338, %v4467
  %v4532 = vadd.f32 %v4339, %v4468
  %v4533 = vadd.f32 %v4340, %v4469
  %v4534 = vadd.f32 %v4341, %v4470
  %v4535 = vadd.f32 %v4342, %v4471
  %v4536 = vadd.f32 %v4343, %v4472
  %v4537 = vadd.f32 %v4344, %v4473
  %v4538 = vadd.f32 %v4345, %v4474
  %v4539 = vadd.f32 %v4346, %v4475
  %v4540 = vadd.f32 %v4347, %v4476
  %v4541 = vadd.f32 %v4348, %v4477
  %v4542 = vadd.f32 %v4349, %v4478
  %v4543 = vadd.f32 %v4350, %v4479
  %v4544 = vadd.f32 %v4351, %v4480
  %v4545 = vadd.f32 %v4352, %v4481
  %v4546 = vadd.f32 %v4353, %v4482
  %v4547 = vadd.f32 %v4354, %v4483
  %v4548 = vadd.f32 %v4355, %v4484
  %v4549 = vadd.f32 %v4356, %v4485
  %v4550 = vadd.f32 %v4357, %v4486
  %v4551 = vadd.f32 %v4358, %v4487
  %v4552 = vadd.f32 %v4359, %v4488
  %v4553 = vadd.f32 %v4360, %v4489
  %v4554 = vadd.f32 %v4361, %v4490
  %v4555 = vadd.f32 %v4362, %v4491
  %v4556 = vadd.f32 %v4363, %v4492
  %v4557 = vadd.f32 %v4364, %v4493
  %v4558 = vadd.f32 %v4365, %v4494
  %v4559 = vadd.f32 %v4366, %v4495
  %s4560 = scalar_lea.vmem [#allocation2], 24
  %v4561 = vld [vmem:[%s4560] sm:$0xff]
  %v4562 = vld [vmem:[%s4560 + $0x8] sm:$0xff]
  %v4563 = vld [vmem:[%s4560 + $0x18] sm:$0xff]
  %v4564 = vld [vmem:[%s4560 + $0x20] sm:$0xff]
  %v4565 = vld [vmem:[%s4560 + $0x30] sm:$0xff]
  %v4566 = vld [vmem:[%s4560 + $0x38] sm:$0xff]
  %v4567 = vld [vmem:[%s4560 + $0x48] sm:$0xff]
  %v4568 = vld [vmem:[%s4560 + $0x50] sm:$0xff]
  %v4569 = vld [vmem:[%s4560 + $0x60] sm:$0xff]
  %v4570 = vld [vmem:[%s4560 + $0x68] sm:$0xff]
  %v4571 = vld [vmem:[%s4560 + $0x78] sm:$0xff]
  %v4572 = vld [vmem:[%s4560 + $0x80] sm:$0xff]
  %v4573 = vld [vmem:[%s4560 + $0x90] sm:$0xff]
  %v4574 = vld [vmem:[%s4560 + $0x98] sm:$0xff]
  %v4575 = vld [vmem:[%s4560 + $0xa8] sm:$0xff]
  %v4576 = vld [vmem:[%s4560 + $0xb0] sm:$0xff]
  %v4577 = vld [vmem:[%s4560 + $0xc0] sm:$0xff]
  %v4578 = vld [vmem:[%s4560 + $0xc8] sm:$0xff]
  %v4579 = vld [vmem:[%s4560 + $0xd8] sm:$0xff]
  %v4580 = vld [vmem:[%s4560 + $0xe0] sm:$0xff]
  %v4581 = vld [vmem:[%s4560 + $0xf0] sm:$0xff]
  %v4582 = vld [vmem:[%s4560 + $0xf8] sm:$0xff]
  %v4583 = vld [vmem:[%s4560 + $0x108] sm:$0xff]
  %v4584 = vld [vmem:[%s4560 + $0x110] sm:$0xff]
  %v4585 = vld [vmem:[%s4560 + $0x120] sm:$0xff]
  %v4586 = vld [vmem:[%s4560 + $0x128] sm:$0xff]
  %v4587 = vld [vmem:[%s4560 + $0x138] sm:$0xff]
  %v4588 = vld [vmem:[%s4560 + $0x140] sm:$0xff]
  %v4589 = vld [vmem:[%s4560 + $0x150] sm:$0xff]
  %v4590 = vld [vmem:[%s4560 + $0x158] sm:$0xff]
  %v4591 = vld [vmem:[%s4560 + $0x168] sm:$0xff]
  %v4592 = vld [vmem:[%s4560 + $0x170] sm:$0xff]
  %v4593 = vld [vmem:[%s4560 + $0x1b0] sm:$0xff]
  %v4594 = vld [vmem:[%s4560 + $0x1b8] sm:$0xff]
  %v4595 = vld [vmem:[%s4560 + $0x1c8] sm:$0xff]
  %v4596 = vld [vmem:[%s4560 + $0x1d0] sm:$0xff]
  %v4597 = vld [vmem:[%s4560 + $0x1e0] sm:$0xff]
  %v4598 = vld [vmem:[%s4560 + $0x1e8] sm:$0xff]
  %v4599 = vld [vmem:[%s4560 + $0x1f8] sm:$0xff]
  %v4600 = vld [vmem:[%s4560 + $0x200] sm:$0xff]
  %v4601 = vld [vmem:[%s4560 + $0x210] sm:$0xff]
  %v4602 = vld [vmem:[%s4560 + $0x218] sm:$0xff]
  %v4603 = vld [vmem:[%s4560 + $0x228] sm:$0xff]
  %v4604 = vld [vmem:[%s4560 + $0x230] sm:$0xff]
  %v4605 = vld [vmem:[%s4560 + $0x240] sm:$0xff]
  %v4606 = vld [vmem:[%s4560 + $0x248] sm:$0xff]
  %v4607 = vld [vmem:[%s4560 + $0x258] sm:$0xff]
  %v4608 = vld [vmem:[%s4560 + $0x260] sm:$0xff]
  %v4609 = vld [vmem:[%s4560 + $0x270] sm:$0xff]
  %v4610 = vld [vmem:[%s4560 + $0x278] sm:$0xff]
  %v4611 = vld [vmem:[%s4560 + $0x288] sm:$0xff]
  %v4612 = vld [vmem:[%s4560 + $0x290] sm:$0xff]
  %v4613 = vld [vmem:[%s4560 + $0x2a0] sm:$0xff]
  %v4614 = vld [vmem:[%s4560 + $0x2a8] sm:$0xff]
  %v4615 = vld [vmem:[%s4560 + $0x2b8] sm:$0xff]
  %v4616 = vld [vmem:[%s4560 + $0x2c0] sm:$0xff]
  %v4617 = vld [vmem:[%s4560 + $0x2d0] sm:$0xff]
  %v4618 = vld [vmem:[%s4560 + $0x2d8] sm:$0xff]
  %v4619 = vld [vmem:[%s4560 + $0x2e8] sm:$0xff]
  %v4620 = vld [vmem:[%s4560 + $0x2f0] sm:$0xff]
  %v4621 = vld [vmem:[%s4560 + $0x300] sm:$0xff]
  %v4622 = vld [vmem:[%s4560 + $0x308] sm:$0xff]
  %v4623 = vld [vmem:[%s4560 + $0x318] sm:$0xff]
  %v4624 = vld [vmem:[%s4560 + $0x320] sm:$0xff]
  %v4625 = vperm.slane %v3979, 3
  %v4626 = vmul.f32 %v4561, %v4625
  %v4627 = vmul.f32 %v4562, %v4625
  %v4628 = vmul.f32 %v4563, %v4625
  %v4629 = vmul.f32 %v4564, %v4625
  %v4630 = vmul.f32 %v4565, %v4625
  %v4631 = vmul.f32 %v4566, %v4625
  %v4632 = vmul.f32 %v4567, %v4625
  %v4633 = vmul.f32 %v4568, %v4625
  %v4634 = vmul.f32 %v4569, %v4625
  %v4635 = vmul.f32 %v4570, %v4625
  %v4636 = vmul.f32 %v4571, %v4625
  %v4637 = vmul.f32 %v4572, %v4625
  %v4638 = vmul.f32 %v4573, %v4625
  %v4639 = vmul.f32 %v4574, %v4625
  %v4640 = vmul.f32 %v4575, %v4625
  %v4641 = vmul.f32 %v4576, %v4625
  %v4642 = vmul.f32 %v4577, %v4625
  %v4643 = vmul.f32 %v4578, %v4625
  %v4644 = vmul.f32 %v4579, %v4625
  %v4645 = vmul.f32 %v4580, %v4625
  %v4646 = vmul.f32 %v4581, %v4625
  %v4647 = vmul.f32 %v4582, %v4625
  %v4648 = vmul.f32 %v4583, %v4625
  %v4649 = vmul.f32 %v4584, %v4625
  %v4650 = vmul.f32 %v4585, %v4625
  %v4651 = vmul.f32 %v4586, %v4625
  %v4652 = vmul.f32 %v4587, %v4625
  %v4653 = vmul.f32 %v4588, %v4625
  %v4654 = vmul.f32 %v4589, %v4625
  %v4655 = vmul.f32 %v4590, %v4625
  %v4656 = vmul.f32 %v4591, %v4625
  %v4657 = vmul.f32 %v4592, %v4625
  %v4658 = vmul.f32 %v4593, %v4625
  %v4659 = vmul.f32 %v4594, %v4625
  %v4660 = vmul.f32 %v4595, %v4625
  %v4661 = vmul.f32 %v4596, %v4625
  %v4662 = vmul.f32 %v4597, %v4625
  %v4663 = vmul.f32 %v4598, %v4625
  %v4664 = vmul.f32 %v4599, %v4625
  %v4665 = vmul.f32 %v4600, %v4625
  %v4666 = vmul.f32 %v4601, %v4625
  %v4667 = vmul.f32 %v4602, %v4625
  %v4668 = vmul.f32 %v4603, %v4625
  %v4669 = vmul.f32 %v4604, %v4625
  %v4670 = vmul.f32 %v4605, %v4625
  %v4671 = vmul.f32 %v4606, %v4625
  %v4672 = vmul.f32 %v4607, %v4625
  %v4673 = vmul.f32 %v4608, %v4625
  %v4674 = vmul.f32 %v4609, %v4625
  %v4675 = vmul.f32 %v4610, %v4625
  %v4676 = vmul.f32 %v4611, %v4625
  %v4677 = vmul.f32 %v4612, %v4625
  %v4678 = vmul.f32 %v4613, %v4625
  %v4679 = vmul.f32 %v4614, %v4625
  %v4680 = vmul.f32 %v4615, %v4625
  %v4681 = vmul.f32 %v4616, %v4625
  %v4682 = vmul.f32 %v4617, %v4625
  %v4683 = vmul.f32 %v4618, %v4625
  %v4684 = vmul.f32 %v4619, %v4625
  %v4685 = vmul.f32 %v4620, %v4625
  %v4686 = vmul.f32 %v4621, %v4625
  %v4687 = vmul.f32 %v4622, %v4625
  %v4688 = vmul.f32 %v4623, %v4625
  %v4689 = vmul.f32 %v4624, %v4625
  %v4690 = vadd.f32 %v4496, %v4626
  %v4691 = vadd.f32 %v4497, %v4627
  %v4692 = vadd.f32 %v4498, %v4628
  %v4693 = vadd.f32 %v4499, %v4629
  %v4694 = vadd.f32 %v4500, %v4630
  %v4695 = vadd.f32 %v4501, %v4631
  %v4696 = vadd.f32 %v4502, %v4632
  %v4697 = vadd.f32 %v4503, %v4633
  %v4698 = vadd.f32 %v4504, %v4634
  %v4699 = vadd.f32 %v4505, %v4635
  %v4700 = vadd.f32 %v4506, %v4636
  %v4701 = vadd.f32 %v4507, %v4637
  %v4702 = vadd.f32 %v4508, %v4638
  %v4703 = vadd.f32 %v4509, %v4639
  %v4704 = vadd.f32 %v4510, %v4640
  %v4705 = vadd.f32 %v4511, %v4641
  %v4706 = vadd.f32 %v4512, %v4642
  %v4707 = vadd.f32 %v4513, %v4643
  %v4708 = vadd.f32 %v4514, %v4644
  %v4709 = vadd.f32 %v4515, %v4645
  %v4710 = vadd.f32 %v4516, %v4646
  %v4711 = vadd.f32 %v4517, %v4647
  %v4712 = vadd.f32 %v4518, %v4648
  %v4713 = vadd.f32 %v4519, %v4649
  %v4714 = vadd.f32 %v4520, %v4650
  %v4715 = vadd.f32 %v4521, %v4651
  %v4716 = vadd.f32 %v4522, %v4652
  %v4717 = vadd.f32 %v4523, %v4653
  %v4718 = vadd.f32 %v4524, %v4654
  %v4719 = vadd.f32 %v4525, %v4655
  %v4720 = vadd.f32 %v4526, %v4656
  %v4721 = vadd.f32 %v4527, %v4657
  %v4722 = vadd.f32 %v4528, %v4658
  %v4723 = vadd.f32 %v4529, %v4659
  %v4724 = vadd.f32 %v4530, %v4660
  %v4725 = vadd.f32 %v4531, %v4661
  %v4726 = vadd.f32 %v4532, %v4662
  %v4727 = vadd.f32 %v4533, %v4663
  %v4728 = vadd.f32 %v4534, %v4664
  %v4729 = vadd.f32 %v4535, %v4665
  %v4730 = vadd.f32 %v4536, %v4666
  %v4731 = vadd.f32 %v4537, %v4667
  %v4732 = vadd.f32 %v4538, %v4668
  %v4733 = vadd.f32 %v4539, %v4669
  %v4734 = vadd.f32 %v4540, %v4670
  %v4735 = vadd.f32 %v4541, %v4671
  %v4736 = vadd.f32 %v4542, %v4672
  %v4737 = vadd.f32 %v4543, %v4673
  %v4738 = vadd.f32 %v4544, %v4674
  %v4739 = vadd.f32 %v4545, %v4675
  %v4740 = vadd.f32 %v4546, %v4676
  %v4741 = vadd.f32 %v4547, %v4677
  %v4742 = vadd.f32 %v4548, %v4678
  %v4743 = vadd.f32 %v4549, %v4679
  %v4744 = vadd.f32 %v4550, %v4680
  %v4745 = vadd.f32 %v4551, %v4681
  %v4746 = vadd.f32 %v4552, %v4682
  %v4747 = vadd.f32 %v4553, %v4683
  %v4748 = vadd.f32 %v4554, %v4684
  %v4749 = vadd.f32 %v4555, %v4685
  %v4750 = vadd.f32 %v4556, %v4686
  %v4751 = vadd.f32 %v4557, %v4687
  %v4752 = vadd.f32 %v4558, %v4688
  %v4753 = vadd.f32 %v4559, %v4689
  %v4754 = vld [vmem:[%s4560 + $0x1] sm:$0xff]
  %v4755 = vld [vmem:[%s4560 + $0x9] sm:$0xff]
  %v4756 = vld [vmem:[%s4560 + $0x19] sm:$0xff]
  %v4757 = vld [vmem:[%s4560 + $0x21] sm:$0xff]
  %v4758 = vld [vmem:[%s4560 + $0x31] sm:$0xff]
  %v4759 = vld [vmem:[%s4560 + $0x39] sm:$0xff]
  %v4760 = vld [vmem:[%s4560 + $0x49] sm:$0xff]
  %v4761 = vld [vmem:[%s4560 + $0x51] sm:$0xff]
  %v4762 = vld [vmem:[%s4560 + $0x61] sm:$0xff]
  %v4763 = vld [vmem:[%s4560 + $0x69] sm:$0xff]
  %v4764 = vld [vmem:[%s4560 + $0x79] sm:$0xff]
  %v4765 = vld [vmem:[%s4560 + $0x81] sm:$0xff]
  %v4766 = vld [vmem:[%s4560 + $0x91] sm:$0xff]
  %v4767 = vld [vmem:[%s4560 + $0x99] sm:$0xff]
  %v4768 = vld [vmem:[%s4560 + $0xa9] sm:$0xff]
  %v4769 = vld [vmem:[%s4560 + $0xb1] sm:$0xff]
  %v4770 = vld [vmem:[%s4560 + $0xc1] sm:$0xff]
  %v4771 = vld [vmem:[%s4560 + $0xc9] sm:$0xff]
  %v4772 = vld [vmem:[%s4560 + $0xd9] sm:$0xff]
  %v4773 = vld [vmem:[%s4560 + $0xe1] sm:$0xff]
  %v4774 = vld [vmem:[%s4560 + $0xf1] sm:$0xff]
  %v4775 = vld [vmem:[%s4560 + $0xf9] sm:$0xff]
  %v4776 = vld [vmem:[%s4560 + $0x109] sm:$0xff]
  %v4777 = vld [vmem:[%s4560 + $0x111] sm:$0xff]
  %v4778 = vld [vmem:[%s4560 + $0x121] sm:$0xff]
  %v4779 = vld [vmem:[%s4560 + $0x129] sm:$0xff]
  %v4780 = vld [vmem:[%s4560 + $0x139] sm:$0xff]
  %v4781 = vld [vmem:[%s4560 + $0x141] sm:$0xff]
  %v4782 = vld [vmem:[%s4560 + $0x151] sm:$0xff]
  %v4783 = vld [vmem:[%s4560 + $0x159] sm:$0xff]
  %v4784 = vld [vmem:[%s4560 + $0x169] sm:$0xff]
  %v4785 = vld [vmem:[%s4560 + $0x171] sm:$0xff]
  %v4786 = vld [vmem:[%s4560 + $0x1b1] sm:$0xff]
  %v4787 = vld [vmem:[%s4560 + $0x1b9] sm:$0xff]
  %v4788 = vld [vmem:[%s4560 + $0x1c9] sm:$0xff]
  %v4789 = vld [vmem:[%s4560 + $0x1d1] sm:$0xff]
  %v4790 = vld [vmem:[%s4560 + $0x1e1] sm:$0xff]
  %v4791 = vld [vmem:[%s4560 + $0x1e9] sm:$0xff]
  %v4792 = vld [vmem:[%s4560 + $0x1f9] sm:$0xff]
  %v4793 = vld [vmem:[%s4560 + $0x201] sm:$0xff]
  %v4794 = vld [vmem:[%s4560 + $0x211] sm:$0xff]
  %v4795 = vld [vmem:[%s4560 + $0x219] sm:$0xff]
  %v4796 = vld [vmem:[%s4560 + $0x229] sm:$0xff]
  %v4797 = vld [vmem:[%s4560 + $0x231] sm:$0xff]
  %v4798 = vld [vmem:[%s4560 + $0x241] sm:$0xff]
  %v4799 = vld [vmem:[%s4560 + $0x249] sm:$0xff]
  %v4800 = vld [vmem:[%s4560 + $0x259] sm:$0xff]
  %v4801 = vld [vmem:[%s4560 + $0x261] sm:$0xff]
  %v4802 = vld [vmem:[%s4560 + $0x271] sm:$0xff]
  %v4803 = vld [vmem:[%s4560 + $0x279] sm:$0xff]
  %v4804 = vld [vmem:[%s4560 + $0x289] sm:$0xff]
  %v4805 = vld [vmem:[%s4560 + $0x291] sm:$0xff]
  %v4806 = vld [vmem:[%s4560 + $0x2a1] sm:$0xff]
  %v4807 = vld [vmem:[%s4560 + $0x2a9] sm:$0xff]
  %v4808 = vld [vmem:[%s4560 + $0x2b9] sm:$0xff]
  %v4809 = vld [vmem:[%s4560 + $0x2c1] sm:$0xff]
  %v4810 = vld [vmem:[%s4560 + $0x2d1] sm:$0xff]
  %v4811 = vld [vmem:[%s4560 + $0x2d9] sm:$0xff]
  %v4812 = vld [vmem:[%s4560 + $0x2e9] sm:$0xff]
  %v4813 = vld [vmem:[%s4560 + $0x2f1] sm:$0xff]
  %v4814 = vld [vmem:[%s4560 + $0x301] sm:$0xff]
  %v4815 = vld [vmem:[%s4560 + $0x309] sm:$0xff]
  %v4816 = vld [vmem:[%s4560 + $0x319] sm:$0xff]
  %v4817 = vld [vmem:[%s4560 + $0x321] sm:$0xff]
  %v4818 = vperm.slane %v3979, 4
  %v4819 = vmul.f32 %v4754, %v4818
  %v4820 = vmul.f32 %v4755, %v4818
  %v4821 = vmul.f32 %v4756, %v4818
  %v4822 = vmul.f32 %v4757, %v4818
  %v4823 = vmul.f32 %v4758, %v4818
  %v4824 = vmul.f32 %v4759, %v4818
  %v4825 = vmul.f32 %v4760, %v4818
  %v4826 = vmul.f32 %v4761, %v4818
  %v4827 = vmul.f32 %v4762, %v4818
  %v4828 = vmul.f32 %v4763, %v4818
  %v4829 = vmul.f32 %v4764, %v4818
  %v4830 = vmul.f32 %v4765, %v4818
  %v4831 = vmul.f32 %v4766, %v4818
  %v4832 = vmul.f32 %v4767, %v4818
  %v4833 = vmul.f32 %v4768, %v4818
  %v4834 = vmul.f32 %v4769, %v4818
  %v4835 = vmul.f32 %v4770, %v4818
  %v4836 = vmul.f32 %v4771, %v4818
  %v4837 = vmul.f32 %v4772, %v4818
  %v4838 = vmul.f32 %v4773, %v4818
  %v4839 = vmul.f32 %v4774, %v4818
  %v4840 = vmul.f32 %v4775, %v4818
  %v4841 = vmul.f32 %v4776, %v4818
  %v4842 = vmul.f32 %v4777, %v4818
  %v4843 = vmul.f32 %v4778, %v4818
  %v4844 = vmul.f32 %v4779, %v4818
  %v4845 = vmul.f32 %v4780, %v4818
  %v4846 = vmul.f32 %v4781, %v4818
  %v4847 = vmul.f32 %v4782, %v4818
  %v4848 = vmul.f32 %v4783, %v4818
  %v4849 = vmul.f32 %v4784, %v4818
  %v4850 = vmul.f32 %v4785, %v4818
  %v4851 = vmul.f32 %v4786, %v4818
  %v4852 = vmul.f32 %v4787, %v4818
  %v4853 = vmul.f32 %v4788, %v4818
  %v4854 = vmul.f32 %v4789, %v4818
  %v4855 = vmul.f32 %v4790, %v4818
  %v4856 = vmul.f32 %v4791, %v4818
  %v4857 = vmul.f32 %v4792, %v4818
  %v4858 = vmul.f32 %v4793, %v4818
  %v4859 = vmul.f32 %v4794, %v4818
  %v4860 = vmul.f32 %v4795, %v4818
  %v4861 = vmul.f32 %v4796, %v4818
  %v4862 = vmul.f32 %v4797, %v4818
  %v4863 = vmul.f32 %v4798, %v4818
  %v4864 = vmul.f32 %v4799, %v4818
  %v4865 = vmul.f32 %v4800, %v4818
  %v4866 = vmul.f32 %v4801, %v4818
  %v4867 = vmul.f32 %v4802, %v4818
  %v4868 = vmul.f32 %v4803, %v4818
  %v4869 = vmul.f32 %v4804, %v4818
  %v4870 = vmul.f32 %v4805, %v4818
  %v4871 = vmul.f32 %v4806, %v4818
  %v4872 = vmul.f32 %v4807, %v4818
  %v4873 = vmul.f32 %v4808, %v4818
  %v4874 = vmul.f32 %v4809, %v4818
  %v4875 = vmul.f32 %v4810, %v4818
  %v4876 = vmul.f32 %v4811, %v4818
  %v4877 = vmul.f32 %v4812, %v4818
  %v4878 = vmul.f32 %v4813, %v4818
  %v4879 = vmul.f32 %v4814, %v4818
  %v4880 = vmul.f32 %v4815, %v4818
  %v4881 = vmul.f32 %v4816, %v4818
  %v4882 = vmul.f32 %v4817, %v4818
  %v4883 = vadd.f32 %v4690, %v4819
  %v4884 = vadd.f32 %v4691, %v4820
  %v4885 = vadd.f32 %v4692, %v4821
  %v4886 = vadd.f32 %v4693, %v4822
  %v4887 = vadd.f32 %v4694, %v4823
  %v4888 = vadd.f32 %v4695, %v4824
  %v4889 = vadd.f32 %v4696, %v4825
  %v4890 = vadd.f32 %v4697, %v4826
  %v4891 = vadd.f32 %v4698, %v4827
  %v4892 = vadd.f32 %v4699, %v4828
  %v4893 = vadd.f32 %v4700, %v4829
  %v4894 = vadd.f32 %v4701, %v4830
  %v4895 = vadd.f32 %v4702, %v4831
  %v4896 = vadd.f32 %v4703, %v4832
  %v4897 = vadd.f32 %v4704, %v4833
  %v4898 = vadd.f32 %v4705, %v4834
  %v4899 = vadd.f32 %v4706, %v4835
  %v4900 = vadd.f32 %v4707, %v4836
  %v4901 = vadd.f32 %v4708, %v4837
  %v4902 = vadd.f32 %v4709, %v4838
  %v4903 = vadd.f32 %v4710, %v4839
  %v4904 = vadd.f32 %v4711, %v4840
  %v4905 = vadd.f32 %v4712, %v4841
  %v4906 = vadd.f32 %v4713, %v4842
  %v4907 = vadd.f32 %v4714, %v4843
  %v4908 = vadd.f32 %v4715, %v4844
  %v4909 = vadd.f32 %v4716, %v4845
  %v4910 = vadd.f32 %v4717, %v4846
  %v4911 = vadd.f32 %v4718, %v4847
  %v4912 = vadd.f32 %v4719, %v4848
  %v4913 = vadd.f32 %v4720, %v4849
  %v4914 = vadd.f32 %v4721, %v4850
  %v4915 = vadd.f32 %v4722, %v4851
  %v4916 = vadd.f32 %v4723, %v4852
  %v4917 = vadd.f32 %v4724, %v4853
  %v4918 = vadd.f32 %v4725, %v4854
  %v4919 = vadd.f32 %v4726, %v4855
  %v4920 = vadd.f32 %v4727, %v4856
  %v4921 = vadd.f32 %v4728, %v4857
  %v4922 = vadd.f32 %v4729, %v4858
  %v4923 = vadd.f32 %v4730, %v4859
  %v4924 = vadd.f32 %v4731, %v4860
  %v4925 = vadd.f32 %v4732, %v4861
  %v4926 = vadd.f32 %v4733, %v4862
  %v4927 = vadd.f32 %v4734, %v4863
  %v4928 = vadd.f32 %v4735, %v4864
  %v4929 = vadd.f32 %v4736, %v4865
  %v4930 = vadd.f32 %v4737, %v4866
  %v4931 = vadd.f32 %v4738, %v4867
  %v4932 = vadd.f32 %v4739, %v4868
  %v4933 = vadd.f32 %v4740, %v4869
  %v4934 = vadd.f32 %v4741, %v4870
  %v4935 = vadd.f32 %v4742, %v4871
  %v4936 = vadd.f32 %v4743, %v4872
  %v4937 = vadd.f32 %v4744, %v4873
  %v4938 = vadd.f32 %v4745, %v4874
  %v4939 = vadd.f32 %v4746, %v4875
  %v4940 = vadd.f32 %v4747, %v4876
  %v4941 = vadd.f32 %v4748, %v4877
  %v4942 = vadd.f32 %v4749, %v4878
  %v4943 = vadd.f32 %v4750, %v4879
  %v4944 = vadd.f32 %v4751, %v4880
  %v4945 = vadd.f32 %v4752, %v4881
  %v4946 = vadd.f32 %v4753, %v4882
  %v4947 = vld [vmem:[%s4560 + $0x2] sm:$0xff]
  %v4948 = vld [vmem:[%s4560 + $0xa] sm:$0xff]
  %v4949 = vld [vmem:[%s4560 + $0x1a] sm:$0xff]
  %v4950 = vld [vmem:[%s4560 + $0x22] sm:$0xff]
  %v4951 = vld [vmem:[%s4560 + $0x32] sm:$0xff]
  %v4952 = vld [vmem:[%s4560 + $0x3a] sm:$0xff]
  %v4953 = vld [vmem:[%s4560 + $0x4a] sm:$0xff]
  %v4954 = vld [vmem:[%s4560 + $0x52] sm:$0xff]
  %v4955 = vld [vmem:[%s4560 + $0x62] sm:$0xff]
  %v4956 = vld [vmem:[%s4560 + $0x6a] sm:$0xff]
  %v4957 = vld [vmem:[%s4560 + $0x7a] sm:$0xff]
  %v4958 = vld [vmem:[%s4560 + $0x82] sm:$0xff]
  %v4959 = vld [vmem:[%s4560 + $0x92] sm:$0xff]
  %v4960 = vld [vmem:[%s4560 + $0x9a] sm:$0xff]
  %v4961 = vld [vmem:[%s4560 + $0xaa] sm:$0xff]
  %v4962 = vld [vmem:[%s4560 + $0xb2] sm:$0xff]
  %v4963 = vld [vmem:[%s4560 + $0xc2] sm:$0xff]
  %v4964 = vld [vmem:[%s4560 + $0xca] sm:$0xff]
  %v4965 = vld [vmem:[%s4560 + $0xda] sm:$0xff]
  %v4966 = vld [vmem:[%s4560 + $0xe2] sm:$0xff]
  %v4967 = vld [vmem:[%s4560 + $0xf2] sm:$0xff]
  %v4968 = vld [vmem:[%s4560 + $0xfa] sm:$0xff]
  %v4969 = vld [vmem:[%s4560 + $0x10a] sm:$0xff]
  %v4970 = vld [vmem:[%s4560 + $0x112] sm:$0xff]
  %v4971 = vld [vmem:[%s4560 + $0x122] sm:$0xff]
  %v4972 = vld [vmem:[%s4560 + $0x12a] sm:$0xff]
  %v4973 = vld [vmem:[%s4560 + $0x13a] sm:$0xff]
  %v4974 = vld [vmem:[%s4560 + $0x142] sm:$0xff]
  %v4975 = vld [vmem:[%s4560 + $0x152] sm:$0xff]
  %v4976 = vld [vmem:[%s4560 + $0x15a] sm:$0xff]
  %v4977 = vld [vmem:[%s4560 + $0x16a] sm:$0xff]
  %v4978 = vld [vmem:[%s4560 + $0x172] sm:$0xff]
  %v4979 = vld [vmem:[%s4560 + $0x1b2] sm:$0xff]
  %v4980 = vld [vmem:[%s4560 + $0x1ba] sm:$0xff]
  %v4981 = vld [vmem:[%s4560 + $0x1ca] sm:$0xff]
  %v4982 = vld [vmem:[%s4560 + $0x1d2] sm:$0xff]
  %v4983 = vld [vmem:[%s4560 + $0x1e2] sm:$0xff]
  %v4984 = vld [vmem:[%s4560 + $0x1ea] sm:$0xff]
  %v4985 = vld [vmem:[%s4560 + $0x1fa] sm:$0xff]
  %v4986 = vld [vmem:[%s4560 + $0x202] sm:$0xff]
  %v4987 = vld [vmem:[%s4560 + $0x212] sm:$0xff]
  %v4988 = vld [vmem:[%s4560 + $0x21a] sm:$0xff]
  %v4989 = vld [vmem:[%s4560 + $0x22a] sm:$0xff]
  %v4990 = vld [vmem:[%s4560 + $0x232] sm:$0xff]
  %v4991 = vld [vmem:[%s4560 + $0x242] sm:$0xff]
  %v4992 = vld [vmem:[%s4560 + $0x24a] sm:$0xff]
  %v4993 = vld [vmem:[%s4560 + $0x25a] sm:$0xff]
  %v4994 = vld [vmem:[%s4560 + $0x262] sm:$0xff]
  %v4995 = vld [vmem:[%s4560 + $0x272] sm:$0xff]
  %v4996 = vld [vmem:[%s4560 + $0x27a] sm:$0xff]
  %v4997 = vld [vmem:[%s4560 + $0x28a] sm:$0xff]
  %v4998 = vld [vmem:[%s4560 + $0x292] sm:$0xff]
  %v4999 = vld [vmem:[%s4560 + $0x2a2] sm:$0xff]
  %v5000 = vld [vmem:[%s4560 + $0x2aa] sm:$0xff]
  %v5001 = vld [vmem:[%s4560 + $0x2ba] sm:$0xff]
  %v5002 = vld [vmem:[%s4560 + $0x2c2] sm:$0xff]
  %v5003 = vld [vmem:[%s4560 + $0x2d2] sm:$0xff]
  %v5004 = vld [vmem:[%s4560 + $0x2da] sm:$0xff]
  %v5005 = vld [vmem:[%s4560 + $0x2ea] sm:$0xff]
  %v5006 = vld [vmem:[%s4560 + $0x2f2] sm:$0xff]
  %v5007 = vld [vmem:[%s4560 + $0x302] sm:$0xff]
  %v5008 = vld [vmem:[%s4560 + $0x30a] sm:$0xff]
  %v5009 = vld [vmem:[%s4560 + $0x31a] sm:$0xff]
  %v5010 = vld [vmem:[%s4560 + $0x322] sm:$0xff]
  %v5011 = vperm.slane %v3979, 5
  %v5012 = vmul.f32 %v4947, %v5011
  %v5013 = vmul.f32 %v4948, %v5011
  %v5014 = vmul.f32 %v4949, %v5011
  %v5015 = vmul.f32 %v4950, %v5011
  %v5016 = vmul.f32 %v4951, %v5011
  %v5017 = vmul.f32 %v4952, %v5011
  %v5018 = vmul.f32 %v4953, %v5011
  %v5019 = vmul.f32 %v4954, %v5011
  %v5020 = vmul.f32 %v4955, %v5011
  %v5021 = vmul.f32 %v4956, %v5011
  %v5022 = vmul.f32 %v4957, %v5011
  %v5023 = vmul.f32 %v4958, %v5011
  %v5024 = vmul.f32 %v4959, %v5011
  %v5025 = vmul.f32 %v4960, %v5011
  %v5026 = vmul.f32 %v4961, %v5011
  %v5027 = vmul.f32 %v4962, %v5011
  %v5028 = vmul.f32 %v4963, %v5011
  %v5029 = vmul.f32 %v4964, %v5011
  %v5030 = vmul.f32 %v4965, %v5011
  %v5031 = vmul.f32 %v4966, %v5011
  %v5032 = vmul.f32 %v4967, %v5011
  %v5033 = vmul.f32 %v4968, %v5011
  %v5034 = vmul.f32 %v4969, %v5011
  %v5035 = vmul.f32 %v4970, %v5011
  %v5036 = vmul.f32 %v4971, %v5011
  %v5037 = vmul.f32 %v4972, %v5011
  %v5038 = vmul.f32 %v4973, %v5011
  %v5039 = vmul.f32 %v4974, %v5011
  %v5040 = vmul.f32 %v4975, %v5011
  %v5041 = vmul.f32 %v4976, %v5011
  %v5042 = vmul.f32 %v4977, %v5011
  %v5043 = vmul.f32 %v4978, %v5011
  %v5044 = vmul.f32 %v4979, %v5011
  %v5045 = vmul.f32 %v4980, %v5011
  %v5046 = vmul.f32 %v4981, %v5011
  %v5047 = vmul.f32 %v4982, %v5011
  %v5048 = vmul.f32 %v4983, %v5011
  %v5049 = vmul.f32 %v4984, %v5011
  %v5050 = vmul.f32 %v4985, %v5011
  %v5051 = vmul.f32 %v4986, %v5011
  %v5052 = vmul.f32 %v4987, %v5011
  %v5053 = vmul.f32 %v4988, %v5011
  %v5054 = vmul.f32 %v4989, %v5011
  %v5055 = vmul.f32 %v4990, %v5011
  %v5056 = vmul.f32 %v4991, %v5011
  %v5057 = vmul.f32 %v4992, %v5011
  %v5058 = vmul.f32 %v4993, %v5011
  %v5059 = vmul.f32 %v4994, %v5011
  %v5060 = vmul.f32 %v4995, %v5011
  %v5061 = vmul.f32 %v4996, %v5011
  %v5062 = vmul.f32 %v4997, %v5011
  %v5063 = vmul.f32 %v4998, %v5011
  %v5064 = vmul.f32 %v4999, %v5011
  %v5065 = vmul.f32 %v5000, %v5011
  %v5066 = vmul.f32 %v5001, %v5011
  %v5067 = vmul.f32 %v5002, %v5011
  %v5068 = vmul.f32 %v5003, %v5011
  %v5069 = vmul.f32 %v5004, %v5011
  %v5070 = vmul.f32 %v5005, %v5011
  %v5071 = vmul.f32 %v5006, %v5011
  %v5072 = vmul.f32 %v5007, %v5011
  %v5073 = vmul.f32 %v5008, %v5011
  %v5074 = vmul.f32 %v5009, %v5011
  %v5075 = vmul.f32 %v5010, %v5011
  %v5076 = vadd.f32 %v4883, %v5012
  %v5077 = vadd.f32 %v4884, %v5013
  %v5078 = vadd.f32 %v4885, %v5014
  %v5079 = vadd.f32 %v4886, %v5015
  %v5080 = vadd.f32 %v4887, %v5016
  %v5081 = vadd.f32 %v4888, %v5017
  %v5082 = vadd.f32 %v4889, %v5018
  %v5083 = vadd.f32 %v4890, %v5019
  %v5084 = vadd.f32 %v4891, %v5020
  %v5085 = vadd.f32 %v4892, %v5021
  %v5086 = vadd.f32 %v4893, %v5022
  %v5087 = vadd.f32 %v4894, %v5023
  %v5088 = vadd.f32 %v4895, %v5024
  %v5089 = vadd.f32 %v4896, %v5025
  %v5090 = vadd.f32 %v4897, %v5026
  %v5091 = vadd.f32 %v4898, %v5027
  %v5092 = vadd.f32 %v4899, %v5028
  %v5093 = vadd.f32 %v4900, %v5029
  %v5094 = vadd.f32 %v4901, %v5030
  %v5095 = vadd.f32 %v4902, %v5031
  %v5096 = vadd.f32 %v4903, %v5032
  %v5097 = vadd.f32 %v4904, %v5033
  %v5098 = vadd.f32 %v4905, %v5034
  %v5099 = vadd.f32 %v4906, %v5035
  %v5100 = vadd.f32 %v4907, %v5036
  %v5101 = vadd.f32 %v4908, %v5037
  %v5102 = vadd.f32 %v4909, %v5038
  %v5103 = vadd.f32 %v4910, %v5039
  %v5104 = vadd.f32 %v4911, %v5040
  %v5105 = vadd.f32 %v4912, %v5041
  %v5106 = vadd.f32 %v4913, %v5042
  %v5107 = vadd.f32 %v4914, %v5043
  %v5108 = vadd.f32 %v4915, %v5044
  %v5109 = vadd.f32 %v4916, %v5045
  %v5110 = vadd.f32 %v4917, %v5046
  %v5111 = vadd.f32 %v4918, %v5047
  %v5112 = vadd.f32 %v4919, %v5048
  %v5113 = vadd.f32 %v4920, %v5049
  %v5114 = vadd.f32 %v4921, %v5050
  %v5115 = vadd.f32 %v4922, %v5051
  %v5116 = vadd.f32 %v4923, %v5052
  %v5117 = vadd.f32 %v4924, %v5053
  %v5118 = vadd.f32 %v4925, %v5054
  %v5119 = vadd.f32 %v4926, %v5055
  %v5120 = vadd.f32 %v4927, %v5056
  %v5121 = vadd.f32 %v4928, %v5057
  %v5122 = vadd.f32 %v4929, %v5058
  %v5123 = vadd.f32 %v4930, %v5059
  %v5124 = vadd.f32 %v4931, %v5060
  %v5125 = vadd.f32 %v4932, %v5061
  %v5126 = vadd.f32 %v4933, %v5062
  %v5127 = vadd.f32 %v4934, %v5063
  %v5128 = vadd.f32 %v4935, %v5064
  %v5129 = vadd.f32 %v4936, %v5065
  %v5130 = vadd.f32 %v4937, %v5066
  %v5131 = vadd.f32 %v4938, %v5067
  %v5132 = vadd.f32 %v4939, %v5068
  %v5133 = vadd.f32 %v4940, %v5069
  %v5134 = vadd.f32 %v4941, %v5070
  %v5135 = vadd.f32 %v4942, %v5071
  %v5136 = vadd.f32 %v4943, %v5072
  %v5137 = vadd.f32 %v4944, %v5073
  %v5138 = vadd.f32 %v4945, %v5074
  %v5139 = vadd.f32 %v4946, %v5075
  %s5140 = scalar_lea.vmem [#allocation2], 48
  %v5141 = vld [vmem:[%s5140] sm:$0xff]
  %v5142 = vld [vmem:[%s5140 + $0x8] sm:$0xff]
  %v5143 = vld [vmem:[%s5140 + $0x18] sm:$0xff]
  %v5144 = vld [vmem:[%s5140 + $0x20] sm:$0xff]
  %v5145 = vld [vmem:[%s5140 + $0x30] sm:$0xff]
  %v5146 = vld [vmem:[%s5140 + $0x38] sm:$0xff]
  %v5147 = vld [vmem:[%s5140 + $0x48] sm:$0xff]
  %v5148 = vld [vmem:[%s5140 + $0x50] sm:$0xff]
  %v5149 = vld [vmem:[%s5140 + $0x60] sm:$0xff]
  %v5150 = vld [vmem:[%s5140 + $0x68] sm:$0xff]
  %v5151 = vld [vmem:[%s5140 + $0x78] sm:$0xff]
  %v5152 = vld [vmem:[%s5140 + $0x80] sm:$0xff]
  %v5153 = vld [vmem:[%s5140 + $0x90] sm:$0xff]
  %v5154 = vld [vmem:[%s5140 + $0x98] sm:$0xff]
  %v5155 = vld [vmem:[%s5140 + $0xa8] sm:$0xff]
  %v5156 = vld [vmem:[%s5140 + $0xb0] sm:$0xff]
  %v5157 = vld [vmem:[%s5140 + $0xc0] sm:$0xff]
  %v5158 = vld [vmem:[%s5140 + $0xc8] sm:$0xff]
  %v5159 = vld [vmem:[%s5140 + $0xd8] sm:$0xff]
  %v5160 = vld [vmem:[%s5140 + $0xe0] sm:$0xff]
  %v5161 = vld [vmem:[%s5140 + $0xf0] sm:$0xff]
  %v5162 = vld [vmem:[%s5140 + $0xf8] sm:$0xff]
  %v5163 = vld [vmem:[%s5140 + $0x108] sm:$0xff]
  %v5164 = vld [vmem:[%s5140 + $0x110] sm:$0xff]
  %v5165 = vld [vmem:[%s5140 + $0x120] sm:$0xff]
  %v5166 = vld [vmem:[%s5140 + $0x128] sm:$0xff]
  %v5167 = vld [vmem:[%s5140 + $0x138] sm:$0xff]
  %v5168 = vld [vmem:[%s5140 + $0x140] sm:$0xff]
  %v5169 = vld [vmem:[%s5140 + $0x150] sm:$0xff]
  %v5170 = vld [vmem:[%s5140 + $0x158] sm:$0xff]
  %v5171 = vld [vmem:[%s5140 + $0x168] sm:$0xff]
  %v5172 = vld [vmem:[%s5140 + $0x170] sm:$0xff]
  %v5173 = vld [vmem:[%s5140 + $0x1b0] sm:$0xff]
  %v5174 = vld [vmem:[%s5140 + $0x1b8] sm:$0xff]
  %v5175 = vld [vmem:[%s5140 + $0x1c8] sm:$0xff]
  %v5176 = vld [vmem:[%s5140 + $0x1d0] sm:$0xff]
  %v5177 = vld [vmem:[%s5140 + $0x1e0] sm:$0xff]
  %v5178 = vld [vmem:[%s5140 + $0x1e8] sm:$0xff]
  %v5179 = vld [vmem:[%s5140 + $0x1f8] sm:$0xff]
  %v5180 = vld [vmem:[%s5140 + $0x200] sm:$0xff]
  %v5181 = vld [vmem:[%s5140 + $0x210] sm:$0xff]
  %v5182 = vld [vmem:[%s5140 + $0x218] sm:$0xff]
  %v5183 = vld [vmem:[%s5140 + $0x228] sm:$0xff]
  %v5184 = vld [vmem:[%s5140 + $0x230] sm:$0xff]
  %v5185 = vld [vmem:[%s5140 + $0x240] sm:$0xff]
  %v5186 = vld [vmem:[%s5140 + $0x248] sm:$0xff]
  %v5187 = vld [vmem:[%s5140 + $0x258] sm:$0xff]
  %v5188 = vld [vmem:[%s5140 + $0x260] sm:$0xff]
  %v5189 = vld [vmem:[%s5140 + $0x270] sm:$0xff]
  %v5190 = vld [vmem:[%s5140 + $0x278] sm:$0xff]
  %v5191 = vld [vmem:[%s5140 + $0x288] sm:$0xff]
  %v5192 = vld [vmem:[%s5140 + $0x290] sm:$0xff]
  %v5193 = vld [vmem:[%s5140 + $0x2a0] sm:$0xff]
  %v5194 = vld [vmem:[%s5140 + $0x2a8] sm:$0xff]
  %v5195 = vld [vmem:[%s5140 + $0x2b8] sm:$0xff]
  %v5196 = vld [vmem:[%s5140 + $0x2c0] sm:$0xff]
  %v5197 = vld [vmem:[%s5140 + $0x2d0] sm:$0xff]
  %v5198 = vld [vmem:[%s5140 + $0x2d8] sm:$0xff]
  %v5199 = vld [vmem:[%s5140 + $0x2e8] sm:$0xff]
  %v5200 = vld [vmem:[%s5140 + $0x2f0] sm:$0xff]
  %v5201 = vld [vmem:[%s5140 + $0x300] sm:$0xff]
  %v5202 = vld [vmem:[%s5140 + $0x308] sm:$0xff]
  %v5203 = vld [vmem:[%s5140 + $0x318] sm:$0xff]
  %v5204 = vld [vmem:[%s5140 + $0x320] sm:$0xff]
  %v5205 = vperm.slane %v3979, 6
  %v5206 = vmul.f32 %v5141, %v5205
  %v5207 = vmul.f32 %v5142, %v5205
  %v5208 = vmul.f32 %v5143, %v5205
  %v5209 = vmul.f32 %v5144, %v5205
  %v5210 = vmul.f32 %v5145, %v5205
  %v5211 = vmul.f32 %v5146, %v5205
  %v5212 = vmul.f32 %v5147, %v5205
  %v5213 = vmul.f32 %v5148, %v5205
  %v5214 = vmul.f32 %v5149, %v5205
  %v5215 = vmul.f32 %v5150, %v5205
  %v5216 = vmul.f32 %v5151, %v5205
  %v5217 = vmul.f32 %v5152, %v5205
  %v5218 = vmul.f32 %v5153, %v5205
  %v5219 = vmul.f32 %v5154, %v5205
  %v5220 = vmul.f32 %v5155, %v5205
  %v5221 = vmul.f32 %v5156, %v5205
  %v5222 = vmul.f32 %v5157, %v5205
  %v5223 = vmul.f32 %v5158, %v5205
  %v5224 = vmul.f32 %v5159, %v5205
  %v5225 = vmul.f32 %v5160, %v5205
  %v5226 = vmul.f32 %v5161, %v5205
  %v5227 = vmul.f32 %v5162, %v5205
  %v5228 = vmul.f32 %v5163, %v5205
  %v5229 = vmul.f32 %v5164, %v5205
  %v5230 = vmul.f32 %v5165, %v5205
  %v5231 = vmul.f32 %v5166, %v5205
  %v5232 = vmul.f32 %v5167, %v5205
  %v5233 = vmul.f32 %v5168, %v5205
  %v5234 = vmul.f32 %v5169, %v5205
  %v5235 = vmul.f32 %v5170, %v5205
  %v5236 = vmul.f32 %v5171, %v5205
  %v5237 = vmul.f32 %v5172, %v5205
  %v5238 = vmul.f32 %v5173, %v5205
  %v5239 = vmul.f32 %v5174, %v5205
  %v5240 = vmul.f32 %v5175, %v5205
  %v5241 = vmul.f32 %v5176, %v5205
  %v5242 = vmul.f32 %v5177, %v5205
  %v5243 = vmul.f32 %v5178, %v5205
  %v5244 = vmul.f32 %v5179, %v5205
  %v5245 = vmul.f32 %v5180, %v5205
  %v5246 = vmul.f32 %v5181, %v5205
  %v5247 = vmul.f32 %v5182, %v5205
  %v5248 = vmul.f32 %v5183, %v5205
  %v5249 = vmul.f32 %v5184, %v5205
  %v5250 = vmul.f32 %v5185, %v5205
  %v5251 = vmul.f32 %v5186, %v5205
  %v5252 = vmul.f32 %v5187, %v5205
  %v5253 = vmul.f32 %v5188, %v5205
  %v5254 = vmul.f32 %v5189, %v5205
  %v5255 = vmul.f32 %v5190, %v5205
  %v5256 = vmul.f32 %v5191, %v5205
  %v5257 = vmul.f32 %v5192, %v5205
  %v5258 = vmul.f32 %v5193, %v5205
  %v5259 = vmul.f32 %v5194, %v5205
  %v5260 = vmul.f32 %v5195, %v5205
  %v5261 = vmul.f32 %v5196, %v5205
  %v5262 = vmul.f32 %v5197, %v5205
  %v5263 = vmul.f32 %v5198, %v5205
  %v5264 = vmul.f32 %v5199, %v5205
  %v5265 = vmul.f32 %v5200, %v5205
  %v5266 = vmul.f32 %v5201, %v5205
  %v5267 = vmul.f32 %v5202, %v5205
  %v5268 = vmul.f32 %v5203, %v5205
  %v5269 = vmul.f32 %v5204, %v5205
  %v5270 = vadd.f32 %v5076, %v5206
  %v5271 = vadd.f32 %v5077, %v5207
  %v5272 = vadd.f32 %v5078, %v5208
  %v5273 = vadd.f32 %v5079, %v5209
  %v5274 = vadd.f32 %v5080, %v5210
  %v5275 = vadd.f32 %v5081, %v5211
  %v5276 = vadd.f32 %v5082, %v5212
  %v5277 = vadd.f32 %v5083, %v5213
  %v5278 = vadd.f32 %v5084, %v5214
  %v5279 = vadd.f32 %v5085, %v5215
  %v5280 = vadd.f32 %v5086, %v5216
  %v5281 = vadd.f32 %v5087, %v5217
  %v5282 = vadd.f32 %v5088, %v5218
  %v5283 = vadd.f32 %v5089, %v5219
  %v5284 = vadd.f32 %v5090, %v5220
  %v5285 = vadd.f32 %v5091, %v5221
  %v5286 = vadd.f32 %v5092, %v5222
  %v5287 = vadd.f32 %v5093, %v5223
  %v5288 = vadd.f32 %v5094, %v5224
  %v5289 = vadd.f32 %v5095, %v5225
  %v5290 = vadd.f32 %v5096, %v5226
  %v5291 = vadd.f32 %v5097, %v5227
  %v5292 = vadd.f32 %v5098, %v5228
  %v5293 = vadd.f32 %v5099, %v5229
  %v5294 = vadd.f32 %v5100, %v5230
  %v5295 = vadd.f32 %v5101, %v5231
  %v5296 = vadd.f32 %v5102, %v5232
  %v5297 = vadd.f32 %v5103, %v5233
  %v5298 = vadd.f32 %v5104, %v5234
  %v5299 = vadd.f32 %v5105, %v5235
  %v5300 = vadd.f32 %v5106, %v5236
  %v5301 = vadd.f32 %v5107, %v5237
  %v5302 = vadd.f32 %v5108, %v5238
  %v5303 = vadd.f32 %v5109, %v5239
  %v5304 = vadd.f32 %v5110, %v5240
  %v5305 = vadd.f32 %v5111, %v5241
  %v5306 = vadd.f32 %v5112, %v5242
  %v5307 = vadd.f32 %v5113, %v5243
  %v5308 = vadd.f32 %v5114, %v5244
  %v5309 = vadd.f32 %v5115, %v5245
  %v5310 = vadd.f32 %v5116, %v5246
  %v5311 = vadd.f32 %v5117, %v5247
  %v5312 = vadd.f32 %v5118, %v5248
  %v5313 = vadd.f32 %v5119, %v5249
  %v5314 = vadd.f32 %v5120, %v5250
  %v5315 = vadd.f32 %v5121, %v5251
  %v5316 = vadd.f32 %v5122, %v5252
  %v5317 = vadd.f32 %v5123, %v5253
  %v5318 = vadd.f32 %v5124, %v5254
  %v5319 = vadd.f32 %v5125, %v5255
  %v5320 = vadd.f32 %v5126, %v5256
  %v5321 = vadd.f32 %v5127, %v5257
  %v5322 = vadd.f32 %v5128, %v5258
  %v5323 = vadd.f32 %v5129, %v5259
  %v5324 = vadd.f32 %v5130, %v5260
  %v5325 = vadd.f32 %v5131, %v5261
  %v5326 = vadd.f32 %v5132, %v5262
  %v5327 = vadd.f32 %v5133, %v5263
  %v5328 = vadd.f32 %v5134, %v5264
  %v5329 = vadd.f32 %v5135, %v5265
  %v5330 = vadd.f32 %v5136, %v5266
  %v5331 = vadd.f32 %v5137, %v5267
  %v5332 = vadd.f32 %v5138, %v5268
  %v5333 = vadd.f32 %v5139, %v5269
  %v5334 = vld [vmem:[%s5140 + $0x1] sm:$0xff]
  %v5335 = vld [vmem:[%s5140 + $0x9] sm:$0xff]
  %v5336 = vld [vmem:[%s5140 + $0x19] sm:$0xff]
  %v5337 = vld [vmem:[%s5140 + $0x21] sm:$0xff]
  %v5338 = vld [vmem:[%s5140 + $0x31] sm:$0xff]
  %v5339 = vld [vmem:[%s5140 + $0x39] sm:$0xff]
  %v5340 = vld [vmem:[%s5140 + $0x49] sm:$0xff]
  %v5341 = vld [vmem:[%s5140 + $0x51] sm:$0xff]
  %v5342 = vld [vmem:[%s5140 + $0x61] sm:$0xff]
  %v5343 = vld [vmem:[%s5140 + $0x69] sm:$0xff]
  %v5344 = vld [vmem:[%s5140 + $0x79] sm:$0xff]
  %v5345 = vld [vmem:[%s5140 + $0x81] sm:$0xff]
  %v5346 = vld [vmem:[%s5140 + $0x91] sm:$0xff]
  %v5347 = vld [vmem:[%s5140 + $0x99] sm:$0xff]
  %v5348 = vld [vmem:[%s5140 + $0xa9] sm:$0xff]
  %v5349 = vld [vmem:[%s5140 + $0xb1] sm:$0xff]
  %v5350 = vld [vmem:[%s5140 + $0xc1] sm:$0xff]
  %v5351 = vld [vmem:[%s5140 + $0xc9] sm:$0xff]
  %v5352 = vld [vmem:[%s5140 + $0xd9] sm:$0xff]
  %v5353 = vld [vmem:[%s5140 + $0xe1] sm:$0xff]
  %v5354 = vld [vmem:[%s5140 + $0xf1] sm:$0xff]
  %v5355 = vld [vmem:[%s5140 + $0xf9] sm:$0xff]
  %v5356 = vld [vmem:[%s5140 + $0x109] sm:$0xff]
  %v5357 = vld [vmem:[%s5140 + $0x111] sm:$0xff]
  %v5358 = vld [vmem:[%s5140 + $0x121] sm:$0xff]
  %v5359 = vld [vmem:[%s5140 + $0x129] sm:$0xff]
  %v5360 = vld [vmem:[%s5140 + $0x139] sm:$0xff]
  %v5361 = vld [vmem:[%s5140 + $0x141] sm:$0xff]
  %v5362 = vld [vmem:[%s5140 + $0x151] sm:$0xff]
  %v5363 = vld [vmem:[%s5140 + $0x159] sm:$0xff]
  %v5364 = vld [vmem:[%s5140 + $0x169] sm:$0xff]
  %v5365 = vld [vmem:[%s5140 + $0x171] sm:$0xff]
  %v5366 = vld [vmem:[%s5140 + $0x1b1] sm:$0xff]
  %v5367 = vld [vmem:[%s5140 + $0x1b9] sm:$0xff]
  %v5368 = vld [vmem:[%s5140 + $0x1c9] sm:$0xff]
  %v5369 = vld [vmem:[%s5140 + $0x1d1] sm:$0xff]
  %v5370 = vld [vmem:[%s5140 + $0x1e1] sm:$0xff]
  %v5371 = vld [vmem:[%s5140 + $0x1e9] sm:$0xff]
  %v5372 = vld [vmem:[%s5140 + $0x1f9] sm:$0xff]
  %v5373 = vld [vmem:[%s5140 + $0x201] sm:$0xff]
  %v5374 = vld [vmem:[%s5140 + $0x211] sm:$0xff]
  %v5375 = vld [vmem:[%s5140 + $0x219] sm:$0xff]
  %v5376 = vld [vmem:[%s5140 + $0x229] sm:$0xff]
  %v5377 = vld [vmem:[%s5140 + $0x231] sm:$0xff]
  %v5378 = vld [vmem:[%s5140 + $0x241] sm:$0xff]
  %v5379 = vld [vmem:[%s5140 + $0x249] sm:$0xff]
  %v5380 = vld [vmem:[%s5140 + $0x259] sm:$0xff]
  %v5381 = vld [vmem:[%s5140 + $0x261] sm:$0xff]
  %v5382 = vld [vmem:[%s5140 + $0x271] sm:$0xff]
  %v5383 = vld [vmem:[%s5140 + $0x279] sm:$0xff]
  %v5384 = vld [vmem:[%s5140 + $0x289] sm:$0xff]
  %v5385 = vld [vmem:[%s5140 + $0x291] sm:$0xff]
  %v5386 = vld [vmem:[%s5140 + $0x2a1] sm:$0xff]
  %v5387 = vld [vmem:[%s5140 + $0x2a9] sm:$0xff]
  %v5388 = vld [vmem:[%s5140 + $0x2b9] sm:$0xff]
  %v5389 = vld [vmem:[%s5140 + $0x2c1] sm:$0xff]
  %v5390 = vld [vmem:[%s5140 + $0x2d1] sm:$0xff]
  %v5391 = vld [vmem:[%s5140 + $0x2d9] sm:$0xff]
  %v5392 = vld [vmem:[%s5140 + $0x2e9] sm:$0xff]
  %v5393 = vld [vmem:[%s5140 + $0x2f1] sm:$0xff]
  %v5394 = vld [vmem:[%s5140 + $0x301] sm:$0xff]
  %v5395 = vld [vmem:[%s5140 + $0x309] sm:$0xff]
  %v5396 = vld [vmem:[%s5140 + $0x319] sm:$0xff]
  %v5397 = vld [vmem:[%s5140 + $0x321] sm:$0xff]
  %v5398 = vperm.slane %v3979, 7
  %v5399 = vmul.f32 %v5334, %v5398
  %v5400 = vmul.f32 %v5335, %v5398
  %v5401 = vmul.f32 %v5336, %v5398
  %v5402 = vmul.f32 %v5337, %v5398
  %v5403 = vmul.f32 %v5338, %v5398
  %v5404 = vmul.f32 %v5339, %v5398
  %v5405 = vmul.f32 %v5340, %v5398
  %v5406 = vmul.f32 %v5341, %v5398
  %v5407 = vmul.f32 %v5342, %v5398
  %v5408 = vmul.f32 %v5343, %v5398
  %v5409 = vmul.f32 %v5344, %v5398
  %v5410 = vmul.f32 %v5345, %v5398
  %v5411 = vmul.f32 %v5346, %v5398
  %v5412 = vmul.f32 %v5347, %v5398
  %v5413 = vmul.f32 %v5348, %v5398
  %v5414 = vmul.f32 %v5349, %v5398
  %v5415 = vmul.f32 %v5350, %v5398
  %v5416 = vmul.f32 %v5351, %v5398
  %v5417 = vmul.f32 %v5352, %v5398
  %v5418 = vmul.f32 %v5353, %v5398
  %v5419 = vmul.f32 %v5354, %v5398
  %v5420 = vmul.f32 %v5355, %v5398
  %v5421 = vmul.f32 %v5356, %v5398
  %v5422 = vmul.f32 %v5357, %v5398
  %v5423 = vmul.f32 %v5358, %v5398
  %v5424 = vmul.f32 %v5359, %v5398
  %v5425 = vmul.f32 %v5360, %v5398
  %v5426 = vmul.f32 %v5361, %v5398
  %v5427 = vmul.f32 %v5362, %v5398
  %v5428 = vmul.f32 %v5363, %v5398
  %v5429 = vmul.f32 %v5364, %v5398
  %v5430 = vmul.f32 %v5365, %v5398
  %v5431 = vmul.f32 %v5366, %v5398
  %v5432 = vmul.f32 %v5367, %v5398
  %v5433 = vmul.f32 %v5368, %v5398
  %v5434 = vmul.f32 %v5369, %v5398
  %v5435 = vmul.f32 %v5370, %v5398
  %v5436 = vmul.f32 %v5371, %v5398
  %v5437 = vmul.f32 %v5372, %v5398
  %v5438 = vmul.f32 %v5373, %v5398
  %v5439 = vmul.f32 %v5374, %v5398
  %v5440 = vmul.f32 %v5375, %v5398
  %v5441 = vmul.f32 %v5376, %v5398
  %v5442 = vmul.f32 %v5377, %v5398
  %v5443 = vmul.f32 %v5378, %v5398
  %v5444 = vmul.f32 %v5379, %v5398
  %v5445 = vmul.f32 %v5380, %v5398
  %v5446 = vmul.f32 %v5381, %v5398
  %v5447 = vmul.f32 %v5382, %v5398
  %v5448 = vmul.f32 %v5383, %v5398
  %v5449 = vmul.f32 %v5384, %v5398
  %v5450 = vmul.f32 %v5385, %v5398
  %v5451 = vmul.f32 %v5386, %v5398
  %v5452 = vmul.f32 %v5387, %v5398
  %v5453 = vmul.f32 %v5388, %v5398
  %v5454 = vmul.f32 %v5389, %v5398
  %v5455 = vmul.f32 %v5390, %v5398
  %v5456 = vmul.f32 %v5391, %v5398
  %v5457 = vmul.f32 %v5392, %v5398
  %v5458 = vmul.f32 %v5393, %v5398
  %v5459 = vmul.f32 %v5394, %v5398
  %v5460 = vmul.f32 %v5395, %v5398
  %v5461 = vmul.f32 %v5396, %v5398
  %v5462 = vmul.f32 %v5397, %v5398
  %v5463 = vadd.f32 %v5270, %v5399
  %v5464 = vadd.f32 %v5271, %v5400
  %v5465 = vadd.f32 %v5272, %v5401
  %v5466 = vadd.f32 %v5273, %v5402
  %v5467 = vadd.f32 %v5274, %v5403
  %v5468 = vadd.f32 %v5275, %v5404
  %v5469 = vadd.f32 %v5276, %v5405
  %v5470 = vadd.f32 %v5277, %v5406
  %v5471 = vadd.f32 %v5278, %v5407
  %v5472 = vadd.f32 %v5279, %v5408
  %v5473 = vadd.f32 %v5280, %v5409
  %v5474 = vadd.f32 %v5281, %v5410
  %v5475 = vadd.f32 %v5282, %v5411
  %v5476 = vadd.f32 %v5283, %v5412
  %v5477 = vadd.f32 %v5284, %v5413
  %v5478 = vadd.f32 %v5285, %v5414
  %v5479 = vadd.f32 %v5286, %v5415
  %v5480 = vadd.f32 %v5287, %v5416
  %v5481 = vadd.f32 %v5288, %v5417
  %v5482 = vadd.f32 %v5289, %v5418
  %v5483 = vadd.f32 %v5290, %v5419
  %v5484 = vadd.f32 %v5291, %v5420
  %v5485 = vadd.f32 %v5292, %v5421
  %v5486 = vadd.f32 %v5293, %v5422
  %v5487 = vadd.f32 %v5294, %v5423
  %v5488 = vadd.f32 %v5295, %v5424
  %v5489 = vadd.f32 %v5296, %v5425
  %v5490 = vadd.f32 %v5297, %v5426
  %v5491 = vadd.f32 %v5298, %v5427
  %v5492 = vadd.f32 %v5299, %v5428
  %v5493 = vadd.f32 %v5300, %v5429
  %v5494 = vadd.f32 %v5301, %v5430
  %v5495 = vadd.f32 %v5302, %v5431
  %v5496 = vadd.f32 %v5303, %v5432
  %v5497 = vadd.f32 %v5304, %v5433
  %v5498 = vadd.f32 %v5305, %v5434
  %v5499 = vadd.f32 %v5306, %v5435
  %v5500 = vadd.f32 %v5307, %v5436
  %v5501 = vadd.f32 %v5308, %v5437
  %v5502 = vadd.f32 %v5309, %v5438
  %v5503 = vadd.f32 %v5310, %v5439
  %v5504 = vadd.f32 %v5311, %v5440
  %v5505 = vadd.f32 %v5312, %v5441
  %v5506 = vadd.f32 %v5313, %v5442
  %v5507 = vadd.f32 %v5314, %v5443
  %v5508 = vadd.f32 %v5315, %v5444
  %v5509 = vadd.f32 %v5316, %v5445
  %v5510 = vadd.f32 %v5317, %v5446
  %v5511 = vadd.f32 %v5318, %v5447
  %v5512 = vadd.f32 %v5319, %v5448
  %v5513 = vadd.f32 %v5320, %v5449
  %v5514 = vadd.f32 %v5321, %v5450
  %v5515 = vadd.f32 %v5322, %v5451
  %v5516 = vadd.f32 %v5323, %v5452
  %v5517 = vadd.f32 %v5324, %v5453
  %v5518 = vadd.f32 %v5325, %v5454
  %v5519 = vadd.f32 %v5326, %v5455
  %v5520 = vadd.f32 %v5327, %v5456
  %v5521 = vadd.f32 %v5328, %v5457
  %v5522 = vadd.f32 %v5329, %v5458
  %v5523 = vadd.f32 %v5330, %v5459
  %v5524 = vadd.f32 %v5331, %v5460
  %v5525 = vadd.f32 %v5332, %v5461
  %v5526 = vadd.f32 %v5333, %v5462
  %v5527 = vld [vmem:[%s5140 + $0x2] sm:$0xff]
  %v5528 = vld [vmem:[%s5140 + $0xa] sm:$0xff]
  %v5529 = vld [vmem:[%s5140 + $0x1a] sm:$0xff]
  %v5530 = vld [vmem:[%s5140 + $0x22] sm:$0xff]
  %v5531 = vld [vmem:[%s5140 + $0x32] sm:$0xff]
  %v5532 = vld [vmem:[%s5140 + $0x3a] sm:$0xff]
  %v5533 = vld [vmem:[%s5140 + $0x4a] sm:$0xff]
  %v5534 = vld [vmem:[%s5140 + $0x52] sm:$0xff]
  %v5535 = vld [vmem:[%s5140 + $0x62] sm:$0xff]
  %v5536 = vld [vmem:[%s5140 + $0x6a] sm:$0xff]
  %v5537 = vld [vmem:[%s5140 + $0x7a] sm:$0xff]
  %v5538 = vld [vmem:[%s5140 + $0x82] sm:$0xff]
  %v5539 = vld [vmem:[%s5140 + $0x92] sm:$0xff]
  %v5540 = vld [vmem:[%s5140 + $0x9a] sm:$0xff]
  %v5541 = vld [vmem:[%s5140 + $0xaa] sm:$0xff]
  %v5542 = vld [vmem:[%s5140 + $0xb2] sm:$0xff]
  %v5543 = vld [vmem:[%s5140 + $0xc2] sm:$0xff]
  %v5544 = vld [vmem:[%s5140 + $0xca] sm:$0xff]
  %v5545 = vld [vmem:[%s5140 + $0xda] sm:$0xff]
  %v5546 = vld [vmem:[%s5140 + $0xe2] sm:$0xff]
  %v5547 = vld [vmem:[%s5140 + $0xf2] sm:$0xff]
  %v5548 = vld [vmem:[%s5140 + $0xfa] sm:$0xff]
  %v5549 = vld [vmem:[%s5140 + $0x10a] sm:$0xff]
  %v5550 = vld [vmem:[%s5140 + $0x112] sm:$0xff]
  %v5551 = vld [vmem:[%s5140 + $0x122] sm:$0xff]
  %v5552 = vld [vmem:[%s5140 + $0x12a] sm:$0xff]
  %v5553 = vld [vmem:[%s5140 + $0x13a] sm:$0xff]
  %v5554 = vld [vmem:[%s5140 + $0x142] sm:$0xff]
  %v5555 = vld [vmem:[%s5140 + $0x152] sm:$0xff]
  %v5556 = vld [vmem:[%s5140 + $0x15a] sm:$0xff]
  %v5557 = vld [vmem:[%s5140 + $0x16a] sm:$0xff]
  %v5558 = vld [vmem:[%s5140 + $0x172] sm:$0xff]
  %v5559 = vld [vmem:[%s5140 + $0x1b2] sm:$0xff]
  %v5560 = vld [vmem:[%s5140 + $0x1ba] sm:$0xff]
  %v5561 = vld [vmem:[%s5140 + $0x1ca] sm:$0xff]
  %v5562 = vld [vmem:[%s5140 + $0x1d2] sm:$0xff]
  %v5563 = vld [vmem:[%s5140 + $0x1e2] sm:$0xff]
  %v5564 = vld [vmem:[%s5140 + $0x1ea] sm:$0xff]
  %v5565 = vld [vmem:[%s5140 + $0x1fa] sm:$0xff]
  %v5566 = vld [vmem:[%s5140 + $0x202] sm:$0xff]
  %v5567 = vld [vmem:[%s5140 + $0x212] sm:$0xff]
  %v5568 = vld [vmem:[%s5140 + $0x21a] sm:$0xff]
  %v5569 = vld [vmem:[%s5140 + $0x22a] sm:$0xff]
  %v5570 = vld [vmem:[%s5140 + $0x232] sm:$0xff]
  %v5571 = vld [vmem:[%s5140 + $0x242] sm:$0xff]
  %v5572 = vld [vmem:[%s5140 + $0x24a] sm:$0xff]
  %v5573 = vld [vmem:[%s5140 + $0x25a] sm:$0xff]
  %v5574 = vld [vmem:[%s5140 + $0x262] sm:$0xff]
  %v5575 = vld [vmem:[%s5140 + $0x272] sm:$0xff]
  %v5576 = vld [vmem:[%s5140 + $0x27a] sm:$0xff]
  %v5577 = vld [vmem:[%s5140 + $0x28a] sm:$0xff]
  %v5578 = vld [vmem:[%s5140 + $0x292] sm:$0xff]
  %v5579 = vld [vmem:[%s5140 + $0x2a2] sm:$0xff]
  %v5580 = vld [vmem:[%s5140 + $0x2aa] sm:$0xff]
  %v5581 = vld [vmem:[%s5140 + $0x2ba] sm:$0xff]
  %v5582 = vld [vmem:[%s5140 + $0x2c2] sm:$0xff]
  %v5583 = vld [vmem:[%s5140 + $0x2d2] sm:$0xff]
  %v5584 = vld [vmem:[%s5140 + $0x2da] sm:$0xff]
  %v5585 = vld [vmem:[%s5140 + $0x2ea] sm:$0xff]
  %v5586 = vld [vmem:[%s5140 + $0x2f2] sm:$0xff]
  %v5587 = vld [vmem:[%s5140 + $0x302] sm:$0xff]
  %v5588 = vld [vmem:[%s5140 + $0x30a] sm:$0xff]
  %v5589 = vld [vmem:[%s5140 + $0x31a] sm:$0xff]
  %v5590 = vld [vmem:[%s5140 + $0x322] sm:$0xff]
  %v5591 = vperm.slane %v3980, 0
  %v5592 = vmul.f32 %v5527, %v5591
  %v5593 = vmul.f32 %v5528, %v5591
  %v5594 = vmul.f32 %v5529, %v5591
  %v5595 = vmul.f32 %v5530, %v5591
  %v5596 = vmul.f32 %v5531, %v5591
  %v5597 = vmul.f32 %v5532, %v5591
  %v5598 = vmul.f32 %v5533, %v5591
  %v5599 = vmul.f32 %v5534, %v5591
  %v5600 = vmul.f32 %v5535, %v5591
  %v5601 = vmul.f32 %v5536, %v5591
  %v5602 = vmul.f32 %v5537, %v5591
  %v5603 = vmul.f32 %v5538, %v5591
  %v5604 = vmul.f32 %v5539, %v5591
  %v5605 = vmul.f32 %v5540, %v5591
  %v5606 = vmul.f32 %v5541, %v5591
  %v5607 = vmul.f32 %v5542, %v5591
  %v5608 = vmul.f32 %v5543, %v5591
  %v5609 = vmul.f32 %v5544, %v5591
  %v5610 = vmul.f32 %v5545, %v5591
  %v5611 = vmul.f32 %v5546, %v5591
  %v5612 = vmul.f32 %v5547, %v5591
  %v5613 = vmul.f32 %v5548, %v5591
  %v5614 = vmul.f32 %v5549, %v5591
  %v5615 = vmul.f32 %v5550, %v5591
  %v5616 = vmul.f32 %v5551, %v5591
  %v5617 = vmul.f32 %v5552, %v5591
  %v5618 = vmul.f32 %v5553, %v5591
  %v5619 = vmul.f32 %v5554, %v5591
  %v5620 = vmul.f32 %v5555, %v5591
  %v5621 = vmul.f32 %v5556, %v5591
  %v5622 = vmul.f32 %v5557, %v5591
  %v5623 = vmul.f32 %v5558, %v5591
  %v5624 = vmul.f32 %v5559, %v5591
  %v5625 = vmul.f32 %v5560, %v5591
  %v5626 = vmul.f32 %v5561, %v5591
  %v5627 = vmul.f32 %v5562, %v5591
  %v5628 = vmul.f32 %v5563, %v5591
  %v5629 = vmul.f32 %v5564, %v5591
  %v5630 = vmul.f32 %v5565, %v5591
  %v5631 = vmul.f32 %v5566, %v5591
  %v5632 = vmul.f32 %v5567, %v5591
  %v5633 = vmul.f32 %v5568, %v5591
  %v5634 = vmul.f32 %v5569, %v5591
  %v5635 = vmul.f32 %v5570, %v5591
  %v5636 = vmul.f32 %v5571, %v5591
  %v5637 = vmul.f32 %v5572, %v5591
  %v5638 = vmul.f32 %v5573, %v5591
  %v5639 = vmul.f32 %v5574, %v5591
  %v5640 = vmul.f32 %v5575, %v5591
  %v5641 = vmul.f32 %v5576, %v5591
  %v5642 = vmul.f32 %v5577, %v5591
  %v5643 = vmul.f32 %v5578, %v5591
  %v5644 = vmul.f32 %v5579, %v5591
  %v5645 = vmul.f32 %v5580, %v5591
  %v5646 = vmul.f32 %v5581, %v5591
  %v5647 = vmul.f32 %v5582, %v5591
  %v5648 = vmul.f32 %v5583, %v5591
  %v5649 = vmul.f32 %v5584, %v5591
  %v5650 = vmul.f32 %v5585, %v5591
  %v5651 = vmul.f32 %v5586, %v5591
  %v5652 = vmul.f32 %v5587, %v5591
  %v5653 = vmul.f32 %v5588, %v5591
  %v5654 = vmul.f32 %v5589, %v5591
  %v5655 = vmul.f32 %v5590, %v5591
  %v5656 = vadd.f32 %v5463, %v5592
  %v5657 = vadd.f32 %v5464, %v5593
  %v5658 = vadd.f32 %v5465, %v5594
  %v5659 = vadd.f32 %v5466, %v5595
  %v5660 = vadd.f32 %v5467, %v5596
  %v5661 = vadd.f32 %v5468, %v5597
  %v5662 = vadd.f32 %v5469, %v5598
  %v5663 = vadd.f32 %v5470, %v5599
  %v5664 = vadd.f32 %v5471, %v5600
  %v5665 = vadd.f32 %v5472, %v5601
  %v5666 = vadd.f32 %v5473, %v5602
  %v5667 = vadd.f32 %v5474, %v5603
  %v5668 = vadd.f32 %v5475, %v5604
  %v5669 = vadd.f32 %v5476, %v5605
  %v5670 = vadd.f32 %v5477, %v5606
  %v5671 = vadd.f32 %v5478, %v5607
  %v5672 = vadd.f32 %v5479, %v5608
  %v5673 = vadd.f32 %v5480, %v5609
  %v5674 = vadd.f32 %v5481, %v5610
  %v5675 = vadd.f32 %v5482, %v5611
  %v5676 = vadd.f32 %v5483, %v5612
  %v5677 = vadd.f32 %v5484, %v5613
  %v5678 = vadd.f32 %v5485, %v5614
  %v5679 = vadd.f32 %v5486, %v5615
  %v5680 = vadd.f32 %v5487, %v5616
  %v5681 = vadd.f32 %v5488, %v5617
  %v5682 = vadd.f32 %v5489, %v5618
  %v5683 = vadd.f32 %v5490, %v5619
  %v5684 = vadd.f32 %v5491, %v5620
  %v5685 = vadd.f32 %v5492, %v5621
  %v5686 = vadd.f32 %v5493, %v5622
  %v5687 = vadd.f32 %v5494, %v5623
  %v5688 = vadd.f32 %v5495, %v5624
  %v5689 = vadd.f32 %v5496, %v5625
  %v5690 = vadd.f32 %v5497, %v5626
  %v5691 = vadd.f32 %v5498, %v5627
  %v5692 = vadd.f32 %v5499, %v5628
  %v5693 = vadd.f32 %v5500, %v5629
  %v5694 = vadd.f32 %v5501, %v5630
  %v5695 = vadd.f32 %v5502, %v5631
  %v5696 = vadd.f32 %v5503, %v5632
  %v5697 = vadd.f32 %v5504, %v5633
  %v5698 = vadd.f32 %v5505, %v5634
  %v5699 = vadd.f32 %v5506, %v5635
  %v5700 = vadd.f32 %v5507, %v5636
  %v5701 = vadd.f32 %v5508, %v5637
  %v5702 = vadd.f32 %v5509, %v5638
  %v5703 = vadd.f32 %v5510, %v5639
  %v5704 = vadd.f32 %v5511, %v5640
  %v5705 = vadd.f32 %v5512, %v5641
  %v5706 = vadd.f32 %v5513, %v5642
  %v5707 = vadd.f32 %v5514, %v5643
  %v5708 = vadd.f32 %v5515, %v5644
  %v5709 = vadd.f32 %v5516, %v5645
  %v5710 = vadd.f32 %v5517, %v5646
  %v5711 = vadd.f32 %v5518, %v5647
  %v5712 = vadd.f32 %v5519, %v5648
  %v5713 = vadd.f32 %v5520, %v5649
  %v5714 = vadd.f32 %v5521, %v5650
  %v5715 = vadd.f32 %v5522, %v5651
  %v5716 = vadd.f32 %v5523, %v5652
  %v5717 = vadd.f32 %v5524, %v5653
  %v5718 = vadd.f32 %v5525, %v5654
  %v5719 = vadd.f32 %v5526, %v5655
  %v5720 = vld [vmem:[%s6] sm:$0x1]
  %v5721 = vld [vmem:[%s7] sm:$0x1]
  %v5722 = vsel %vm1916, %v5656, 0.0
  %v5723 = vsel %vm1916, %v5657, 0.0
  %v5724 = vadd.f32 %v5722, %v5723
  %v5725 = vsel %vm1916, %v5658, 0.0
  %v5726 = vadd.f32 %v5724, %v5725
  %v5727 = vsel %vm1916, %v5659, 0.0
  %v5728 = vadd.f32 %v5726, %v5727
  %v5729 = vsel %vm1916, %v5660, 0.0
  %v5730 = vadd.f32 %v5728, %v5729
  %v5731 = vsel %vm1916, %v5661, 0.0
  %v5732 = vadd.f32 %v5730, %v5731
  %v5733 = vsel %vm1916, %v5662, 0.0
  %v5734 = vadd.f32 %v5732, %v5733
  %v5735 = vsel %vm1916, %v5663, 0.0
  %v5736 = vadd.f32 %v5734, %v5735
  %v5737 = vsel %vm1916, %v5664, 0.0
  %v5738 = vadd.f32 %v5736, %v5737
  %v5739 = vsel %vm1916, %v5665, 0.0
  %v5740 = vadd.f32 %v5738, %v5739
  %v5741 = vsel %vm1916, %v5666, 0.0
  %v5742 = vadd.f32 %v5740, %v5741
  %v5743 = vsel %vm1916, %v5667, 0.0
  %v5744 = vadd.f32 %v5742, %v5743
  %v5745 = vsel %vm1916, %v5668, 0.0
  %v5746 = vadd.f32 %v5744, %v5745
  %v5747 = vsel %vm1916, %v5669, 0.0
  %v5748 = vadd.f32 %v5746, %v5747
  %v5749 = vsel %vm1916, %v5670, 0.0
  %v5750 = vadd.f32 %v5748, %v5749
  %v5751 = vsel %vm1916, %v5671, 0.0
  %v5752 = vadd.f32 %v5750, %v5751
  %v5753 = vsel %vm1916, %v5672, 0.0
  %v5754 = vadd.f32 %v5752, %v5753
  %v5755 = vsel %vm1916, %v5673, 0.0
  %v5756 = vadd.f32 %v5754, %v5755
  %v5757 = vsel %vm1916, %v5674, 0.0
  %v5758 = vadd.f32 %v5756, %v5757
  %v5759 = vsel %vm1916, %v5675, 0.0
  %v5760 = vadd.f32 %v5758, %v5759
  %v5761 = vsel %vm1916, %v5676, 0.0
  %v5762 = vadd.f32 %v5760, %v5761
  %v5763 = vsel %vm1916, %v5677, 0.0
  %v5764 = vadd.f32 %v5762, %v5763
  %v5765 = vsel %vm1916, %v5678, 0.0
  %v5766 = vadd.f32 %v5764, %v5765
  %v5767 = vsel %vm1916, %v5679, 0.0
  %v5768 = vadd.f32 %v5766, %v5767
  %v5769 = vsel %vm1916, %v5680, 0.0
  %v5770 = vadd.f32 %v5768, %v5769
  %v5771 = vsel %vm1916, %v5681, 0.0
  %v5772 = vadd.f32 %v5770, %v5771
  %v5773 = vsel %vm1916, %v5682, 0.0
  %v5774 = vadd.f32 %v5772, %v5773
  %v5775 = vsel %vm1916, %v5683, 0.0
  %v5776 = vadd.f32 %v5774, %v5775
  %v5777 = vsel %vm1916, %v5684, 0.0
  %v5778 = vadd.f32 %v5776, %v5777
  %v5779 = vsel %vm1916, %v5685, 0.0
  %v5780 = vadd.f32 %v5778, %v5779
  %v5781 = vsel %vm1916, %v5686, 0.0
  %v5782 = vadd.f32 %v5780, %v5781
  %v5783 = vsel %vm1916, %v5687, 0.0
  %v5784 = vadd.f32 %v5782, %v5783
  %v5785 = vsel %vm1916, %v5688, 0.0
  %v5786 = vadd.f32 %v5784, %v5785
  %v5787 = vsel %vm1916, %v5689, 0.0
  %v5788 = vadd.f32 %v5786, %v5787
  %v5789 = vsel %vm1916, %v5690, 0.0
  %v5790 = vadd.f32 %v5788, %v5789
  %v5791 = vsel %vm1916, %v5691, 0.0
  %v5792 = vadd.f32 %v5790, %v5791
  %v5793 = vsel %vm1916, %v5692, 0.0
  %v5794 = vadd.f32 %v5792, %v5793
  %v5795 = vsel %vm1916, %v5693, 0.0
  %v5796 = vadd.f32 %v5794, %v5795
  %v5797 = vsel %vm1916, %v5694, 0.0
  %v5798 = vadd.f32 %v5796, %v5797
  %v5799 = vsel %vm1916, %v5695, 0.0
  %v5800 = vadd.f32 %v5798, %v5799
  %v5801 = vsel %vm1916, %v5696, 0.0
  %v5802 = vadd.f32 %v5800, %v5801
  %v5803 = vsel %vm1916, %v5697, 0.0
  %v5804 = vadd.f32 %v5802, %v5803
  %v5805 = vsel %vm1916, %v5698, 0.0
  %v5806 = vadd.f32 %v5804, %v5805
  %v5807 = vsel %vm1916, %v5699, 0.0
  %v5808 = vadd.f32 %v5806, %v5807
  %v5809 = vsel %vm1916, %v5700, 0.0
  %v5810 = vadd.f32 %v5808, %v5809
  %v5811 = vsel %vm1916, %v5701, 0.0
  %v5812 = vadd.f32 %v5810, %v5811
  %v5813 = vsel %vm1916, %v5702, 0.0
  %v5814 = vadd.f32 %v5812, %v5813
  %v5815 = vsel %vm1916, %v5703, 0.0
  %v5816 = vadd.f32 %v5814, %v5815
  %v5817 = vsel %vm1916, %v5704, 0.0
  %v5818 = vadd.f32 %v5816, %v5817
  %v5819 = vsel %vm1916, %v5705, 0.0
  %v5820 = vadd.f32 %v5818, %v5819
  %v5821 = vsel %vm1916, %v5706, 0.0
  %v5822 = vadd.f32 %v5820, %v5821
  %v5823 = vsel %vm1916, %v5707, 0.0
  %v5824 = vadd.f32 %v5822, %v5823
  %v5825 = vsel %vm1916, %v5708, 0.0
  %v5826 = vadd.f32 %v5824, %v5825
  %v5827 = vsel %vm1916, %v5709, 0.0
  %v5828 = vadd.f32 %v5826, %v5827
  %v5829 = vsel %vm1916, %v5710, 0.0
  %v5830 = vadd.f32 %v5828, %v5829
  %v5831 = vsel %vm1916, %v5711, 0.0
  %v5832 = vadd.f32 %v5830, %v5831
  %v5833 = vsel %vm1916, %v5712, 0.0
  %v5834 = vadd.f32 %v5832, %v5833
  %v5835 = vsel %vm1916, %v5713, 0.0
  %v5836 = vadd.f32 %v5834, %v5835
  %v5837 = vsel %vm1916, %v5714, 0.0
  %v5838 = vadd.f32 %v5836, %v5837
  %v5839 = vsel %vm1916, %v5715, 0.0
  %v5840 = vadd.f32 %v5838, %v5839
  %v5841 = vsel %vm1916, %v5716, 0.0
  %v5842 = vadd.f32 %v5840, %v5841
  %v5843 = vsel %vm1916, %v5717, 0.0
  %v5844 = vadd.f32 %v5842, %v5843
  %v5845 = vsel %vm1916, %v5718, 0.0
  %v5846 = vadd.f32 %v5844, %v5845
  %v5847 = vsel %vm1916, %v5719, 0.0
  %v5848 = vadd.f32 %v5846, %v5847
  %v5849 = vrot.slane %v5848, 4
  %v5850 = vadd.f32 %v5848, %v5849
  %v5851 = vrot.slane %v5850, 2
  %v5852 = vadd.f32 %v5850, %v5851
  %v5853 = vrot.slane %v5852, 1
  %v5854 = vadd.f32 %v5852, %v5853
  %v5855 = vrcp.pop 512.0
  %v5856 = vmul.f32 512.0, %v5855
  %v5857 = vsub.f32 1.0, %v5856
  %v5858 = vmul.f32 %v5855, %v5857
  %v5859 = vadd.f32 %v5855, %v5858
  %vm5860 = vweird.f32 %v5855
  %v5861 = vsel %vm5860, %v5855, %v5859
  %v5862 = vmul.f32 %v5854, %v5861
  %v5863 = vsub.f32 %v5656, %v5862
  %v5864 = vsub.f32 %v5657, %v5862
  %v5865 = vsub.f32 %v5658, %v5862
  %v5866 = vsub.f32 %v5659, %v5862
  %v5867 = vsub.f32 %v5660, %v5862
  %v5868 = vsub.f32 %v5661, %v5862
  %v5869 = vsub.f32 %v5662, %v5862
  %v5870 = vsub.f32 %v5663, %v5862
  %v5871 = vsub.f32 %v5664, %v5862
  %v5872 = vsub.f32 %v5665, %v5862
  %v5873 = vsub.f32 %v5666, %v5862
  %v5874 = vsub.f32 %v5667, %v5862
  %v5875 = vsub.f32 %v5668, %v5862
  %v5876 = vsub.f32 %v5669, %v5862
  %v5877 = vsub.f32 %v5670, %v5862
  %v5878 = vsub.f32 %v5671, %v5862
  %v5879 = vsub.f32 %v5672, %v5862
  %v5880 = vsub.f32 %v5673, %v5862
  %v5881 = vsub.f32 %v5674, %v5862
  %v5882 = vsub.f32 %v5675, %v5862
  %v5883 = vsub.f32 %v5676, %v5862
  %v5884 = vsub.f32 %v5677, %v5862
  %v5885 = vsub.f32 %v5678, %v5862
  %v5886 = vsub.f32 %v5679, %v5862
  %v5887 = vsub.f32 %v5680, %v5862
  %v5888 = vsub.f32 %v5681, %v5862
  %v5889 = vsub.f32 %v5682, %v5862
  %v5890 = vsub.f32 %v5683, %v5862
  %v5891 = vsub.f32 %v5684, %v5862
  %v5892 = vsub.f32 %v5685, %v5862
  %v5893 = vsub.f32 %v5686, %v5862
  %v5894 = vsub.f32 %v5687, %v5862
  %v5895 = vsub.f32 %v5688, %v5862
  %v5896 = vsub.f32 %v5689, %v5862
  %v5897 = vsub.f32 %v5690, %v5862
  %v5898 = vsub.f32 %v5691, %v5862
  %v5899 = vsub.f32 %v5692, %v5862
  %v5900 = vsub.f32 %v5693, %v5862
  %v5901 = vsub.f32 %v5694, %v5862
  %v5902 = vsub.f32 %v5695, %v5862
  %v5903 = vsub.f32 %v5696, %v5862
  %v5904 = vsub.f32 %v5697, %v5862
  %v5905 = vsub.f32 %v5698, %v5862
  %v5906 = vsub.f32 %v5699, %v5862
  %v5907 = vsub.f32 %v5700, %v5862
  %v5908 = vsub.f32 %v5701, %v5862
  %v5909 = vsub.f32 %v5702, %v5862
  %v5910 = vsub.f32 %v5703, %v5862
  %v5911 = vsub.f32 %v5704, %v5862
  %v5912 = vsub.f32 %v5705, %v5862
  %v5913 = vsub.f32 %v5706, %v5862
  %v5914 = vsub.f32 %v5707, %v5862
  %v5915 = vsub.f32 %v5708, %v5862
  %v5916 = vsub.f32 %v5709, %v5862
  %v5917 = vsub.f32 %v5710, %v5862
  %v5918 = vsub.f32 %v5711, %v5862
  %v5919 = vsub.f32 %v5712, %v5862
  %v5920 = vsub.f32 %v5713, %v5862
  %v5921 = vsub.f32 %v5714, %v5862
  %v5922 = vsub.f32 %v5715, %v5862
  %v5923 = vsub.f32 %v5716, %v5862
  %v5924 = vsub.f32 %v5717, %v5862
  %v5925 = vsub.f32 %v5718, %v5862
  %v5926 = vsub.f32 %v5719, %v5862
  %v5927 = vmul.f32 %v5863, %v5863
  %v5928 = vmul.f32 %v5864, %v5864
  %v5929 = vmul.f32 %v5865, %v5865
  %v5930 = vmul.f32 %v5866, %v5866
  %v5931 = vmul.f32 %v5867, %v5867
  %v5932 = vmul.f32 %v5868, %v5868
  %v5933 = vmul.f32 %v5869, %v5869
  %v5934 = vmul.f32 %v5870, %v5870
  %v5935 = vmul.f32 %v5871, %v5871
  %v5936 = vmul.f32 %v5872, %v5872
  %v5937 = vmul.f32 %v5873, %v5873
  %v5938 = vmul.f32 %v5874, %v5874
  %v5939 = vmul.f32 %v5875, %v5875
  %v5940 = vmul.f32 %v5876, %v5876
  %v5941 = vmul.f32 %v5877, %v5877
  %v5942 = vmul.f32 %v5878, %v5878
  %v5943 = vmul.f32 %v5879, %v5879
  %v5944 = vmul.f32 %v5880, %v5880
  %v5945 = vmul.f32 %v5881, %v5881
  %v5946 = vmul.f32 %v5882, %v5882
  %v5947 = vmul.f32 %v5883, %v5883
  %v5948 = vmul.f32 %v5884, %v5884
  %v5949 = vmul.f32 %v5885, %v5885
  %v5950 = vmul.f32 %v5886, %v5886
  %v5951 = vmul.f32 %v5887, %v5887
  %v5952 = vmul.f32 %v5888, %v5888
  %v5953 = vmul.f32 %v5889, %v5889
  %v5954 = vmul.f32 %v5890, %v5890
  %v5955 = vmul.f32 %v5891, %v5891
  %v5956 = vmul.f32 %v5892, %v5892
  %v5957 = vmul.f32 %v5893, %v5893
  %v5958 = vmul.f32 %v5894, %v5894
  %v5959 = vmul.f32 %v5895, %v5895
  %v5960 = vmul.f32 %v5896, %v5896
  %v5961 = vmul.f32 %v5897, %v5897
  %v5962 = vmul.f32 %v5898, %v5898
  %v5963 = vmul.f32 %v5899, %v5899
  %v5964 = vmul.f32 %v5900, %v5900
  %v5965 = vmul.f32 %v5901, %v5901
  %v5966 = vmul.f32 %v5902, %v5902
  %v5967 = vmul.f32 %v5903, %v5903
  %v5968 = vmul.f32 %v5904, %v5904
  %v5969 = vmul.f32 %v5905, %v5905
  %v5970 = vmul.f32 %v5906, %v5906
  %v5971 = vmul.f32 %v5907, %v5907
  %v5972 = vmul.f32 %v5908, %v5908
  %v5973 = vmul.f32 %v5909, %v5909
  %v5974 = vmul.f32 %v5910, %v5910
  %v5975 = vmul.f32 %v5911, %v5911
  %v5976 = vmul.f32 %v5912, %v5912
  %v5977 = vmul.f32 %v5913, %v5913
  %v5978 = vmul.f32 %v5914, %v5914
  %v5979 = vmul.f32 %v5915, %v5915
  %v5980 = vmul.f32 %v5916, %v5916
  %v5981 = vmul.f32 %v5917, %v5917
  %v5982 = vmul.f32 %v5918, %v5918
  %v5983 = vmul.f32 %v5919, %v5919
  %v5984 = vmul.f32 %v5920, %v5920
  %v5985 = vmul.f32 %v5921, %v5921
  %v5986 = vmul.f32 %v5922, %v5922
  %v5987 = vmul.f32 %v5923, %v5923
  %v5988 = vmul.f32 %v5924, %v5924
  %v5989 = vmul.f32 %v5925, %v5925
  %v5990 = vmul.f32 %v5926, %v5926
  %v5991 = vsel %vm1916, %v5927, 0.0
  %v5992 = vsel %vm1916, %v5928, 0.0
  %v5993 = vadd.f32 %v5991, %v5992
  %v5994 = vsel %vm1916, %v5929, 0.0
  %v5995 = vadd.f32 %v5993, %v5994
  %v5996 = vsel %vm1916, %v5930, 0.0
  %v5997 = vadd.f32 %v5995, %v5996
  %v5998 = vsel %vm1916, %v5931, 0.0
  %v5999 = vadd.f32 %v5997, %v5998
  %v6000 = vsel %vm1916, %v5932, 0.0
  %v6001 = vadd.f32 %v5999, %v6000
  %v6002 = vsel %vm1916, %v5933, 0.0
  %v6003 = vadd.f32 %v6001, %v6002
  %v6004 = vsel %vm1916, %v5934, 0.0
  %v6005 = vadd.f32 %v6003, %v6004
  %v6006 = vsel %vm1916, %v5935, 0.0
  %v6007 = vadd.f32 %v6005, %v6006
  %v6008 = vsel %vm1916, %v5936, 0.0
  %v6009 = vadd.f32 %v6007, %v6008
  %v6010 = vsel %vm1916, %v5937, 0.0
  %v6011 = vadd.f32 %v6009, %v6010
  %v6012 = vsel %vm1916, %v5938, 0.0
  %v6013 = vadd.f32 %v6011, %v6012
  %v6014 = vsel %vm1916, %v5939, 0.0
  %v6015 = vadd.f32 %v6013, %v6014
  %v6016 = vsel %vm1916, %v5940, 0.0
  %v6017 = vadd.f32 %v6015, %v6016
  %v6018 = vsel %vm1916, %v5941, 0.0
  %v6019 = vadd.f32 %v6017, %v6018
  %v6020 = vsel %vm1916, %v5942, 0.0
  %v6021 = vadd.f32 %v6019, %v6020
  %v6022 = vsel %vm1916, %v5943, 0.0
  %v6023 = vadd.f32 %v6021, %v6022
  %v6024 = vsel %vm1916, %v5944, 0.0
  %v6025 = vadd.f32 %v6023, %v6024
  %v6026 = vsel %vm1916, %v5945, 0.0
  %v6027 = vadd.f32 %v6025, %v6026
  %v6028 = vsel %vm1916, %v5946, 0.0
  %v6029 = vadd.f32 %v6027, %v6028
  %v6030 = vsel %vm1916, %v5947, 0.0
  %v6031 = vadd.f32 %v6029, %v6030
  %v6032 = vsel %vm1916, %v5948, 0.0
  %v6033 = vadd.f32 %v6031, %v6032
  %v6034 = vsel %vm1916, %v5949, 0.0
  %v6035 = vadd.f32 %v6033, %v6034
  %v6036 = vsel %vm1916, %v5950, 0.0
  %v6037 = vadd.f32 %v6035, %v6036
  %v6038 = vsel %vm1916, %v5951, 0.0
  %v6039 = vadd.f32 %v6037, %v6038
  %v6040 = vsel %vm1916, %v5952, 0.0
  %v6041 = vadd.f32 %v6039, %v6040
  %v6042 = vsel %vm1916, %v5953, 0.0
  %v6043 = vadd.f32 %v6041, %v6042
  %v6044 = vsel %vm1916, %v5954, 0.0
  %v6045 = vadd.f32 %v6043, %v6044
  %v6046 = vsel %vm1916, %v5955, 0.0
  %v6047 = vadd.f32 %v6045, %v6046
  %v6048 = vsel %vm1916, %v5956, 0.0
  %v6049 = vadd.f32 %v6047, %v6048
  %v6050 = vsel %vm1916, %v5957, 0.0
  %v6051 = vadd.f32 %v6049, %v6050
  %v6052 = vsel %vm1916, %v5958, 0.0
  %v6053 = vadd.f32 %v6051, %v6052
  %v6054 = vsel %vm1916, %v5959, 0.0
  %v6055 = vadd.f32 %v6053, %v6054
  %v6056 = vsel %vm1916, %v5960, 0.0
  %v6057 = vadd.f32 %v6055, %v6056
  %v6058 = vsel %vm1916, %v5961, 0.0
  %v6059 = vadd.f32 %v6057, %v6058
  %v6060 = vsel %vm1916, %v5962, 0.0
  %v6061 = vadd.f32 %v6059, %v6060
  %v6062 = vsel %vm1916, %v5963, 0.0
  %v6063 = vadd.f32 %v6061, %v6062
  %v6064 = vsel %vm1916, %v5964, 0.0
  %v6065 = vadd.f32 %v6063, %v6064
  %v6066 = vsel %vm1916, %v5965, 0.0
  %v6067 = vadd.f32 %v6065, %v6066
  %v6068 = vsel %vm1916, %v5966, 0.0
  %v6069 = vadd.f32 %v6067, %v6068
  %v6070 = vsel %vm1916, %v5967, 0.0
  %v6071 = vadd.f32 %v6069, %v6070
  %v6072 = vsel %vm1916, %v5968, 0.0
  %v6073 = vadd.f32 %v6071, %v6072
  %v6074 = vsel %vm1916, %v5969, 0.0
  %v6075 = vadd.f32 %v6073, %v6074
  %v6076 = vsel %vm1916, %v5970, 0.0
  %v6077 = vadd.f32 %v6075, %v6076
  %v6078 = vsel %vm1916, %v5971, 0.0
  %v6079 = vadd.f32 %v6077, %v6078
  %v6080 = vsel %vm1916, %v5972, 0.0
  %v6081 = vadd.f32 %v6079, %v6080
  %v6082 = vsel %vm1916, %v5973, 0.0
  %v6083 = vadd.f32 %v6081, %v6082
  %v6084 = vsel %vm1916, %v5974, 0.0
  %v6085 = vadd.f32 %v6083, %v6084
  %v6086 = vsel %vm1916, %v5975, 0.0
  %v6087 = vadd.f32 %v6085, %v6086
  %v6088 = vsel %vm1916, %v5976, 0.0
  %v6089 = vadd.f32 %v6087, %v6088
  %v6090 = vsel %vm1916, %v5977, 0.0
  %v6091 = vadd.f32 %v6089, %v6090
  %v6092 = vsel %vm1916, %v5978, 0.0
  %v6093 = vadd.f32 %v6091, %v6092
  %v6094 = vsel %vm1916, %v5979, 0.0
  %v6095 = vadd.f32 %v6093, %v6094
  %v6096 = vsel %vm1916, %v5980, 0.0
  %v6097 = vadd.f32 %v6095, %v6096
  %v6098 = vsel %vm1916, %v5981, 0.0
  %v6099 = vadd.f32 %v6097, %v6098
  %v6100 = vsel %vm1916, %v5982, 0.0
  %v6101 = vadd.f32 %v6099, %v6100
  %v6102 = vsel %vm1916, %v5983, 0.0
  %v6103 = vadd.f32 %v6101, %v6102
  %v6104 = vsel %vm1916, %v5984, 0.0
  %v6105 = vadd.f32 %v6103, %v6104
  %v6106 = vsel %vm1916, %v5985, 0.0
  %v6107 = vadd.f32 %v6105, %v6106
  %v6108 = vsel %vm1916, %v5986, 0.0
  %v6109 = vadd.f32 %v6107, %v6108
  %v6110 = vsel %vm1916, %v5987, 0.0
  %v6111 = vadd.f32 %v6109, %v6110
  %v6112 = vsel %vm1916, %v5988, 0.0
  %v6113 = vadd.f32 %v6111, %v6112
  %v6114 = vsel %vm1916, %v5989, 0.0
  %v6115 = vadd.f32 %v6113, %v6114
  %v6116 = vsel %vm1916, %v5990, 0.0
  %v6117 = vadd.f32 %v6115, %v6116
  %v6118 = vrot.slane %v6117, 4
  %v6119 = vadd.f32 %v6117, %v6118
  %v6120 = vrot.slane %v6119, 2
  %v6121 = vadd.f32 %v6119, %v6120
  %v6122 = vrot.slane %v6121, 1
  %v6123 = vadd.f32 %v6121, %v6122
  %v6124 = vmul.f32 %v6123, %v5861
  %v6125 = vadd.f32 %v6124, 1e-05
  %v6126 = vrsqrt.pop %v6125
  %v6127 = vmul.f32 %v6126, %v6125
  %v6128 = vmul.f32 %v6127, %v6126
  %v6129 = vmul.f32 0.5, %v6128
  %v6130 = vsub.f32 1.5, %v6129
  %v6131 = vmul.f32 %v6126, %v6130
  %vm6132 = vweird.f32 %v6125
  %vm6133 = vweird.f32 %v6126
  %vm6134 = vmor %vm6132, %vm6133
  %v6135 = vsel %vm6134, %v6126, %v6131
  %v6136 = vmul.f32 %v5863, %v6135
  %v6137 = vmul.f32 %v5864, %v6135
  %v6138 = vmul.f32 %v5865, %v6135
  %v6139 = vmul.f32 %v5866, %v6135
  %v6140 = vmul.f32 %v5867, %v6135
  %v6141 = vmul.f32 %v5868, %v6135
  %v6142 = vmul.f32 %v5869, %v6135
  %v6143 = vmul.f32 %v5870, %v6135
  %v6144 = vmul.f32 %v5871, %v6135
  %v6145 = vmul.f32 %v5872, %v6135
  %v6146 = vmul.f32 %v5873, %v6135
  %v6147 = vmul.f32 %v5874, %v6135
  %v6148 = vmul.f32 %v5875, %v6135
  %v6149 = vmul.f32 %v5876, %v6135
  %v6150 = vmul.f32 %v5877, %v6135
  %v6151 = vmul.f32 %v5878, %v6135
  %v6152 = vmul.f32 %v5879, %v6135
  %v6153 = vmul.f32 %v5880, %v6135
  %v6154 = vmul.f32 %v5881, %v6135
  %v6155 = vmul.f32 %v5882, %v6135
  %v6156 = vmul.f32 %v5883, %v6135
  %v6157 = vmul.f32 %v5884, %v6135
  %v6158 = vmul.f32 %v5885, %v6135
  %v6159 = vmul.f32 %v5886, %v6135
  %v6160 = vmul.f32 %v5887, %v6135
  %v6161 = vmul.f32 %v5888, %v6135
  %v6162 = vmul.f32 %v5889, %v6135
  %v6163 = vmul.f32 %v5890, %v6135
  %v6164 = vmul.f32 %v5891, %v6135
  %v6165 = vmul.f32 %v5892, %v6135
  %v6166 = vmul.f32 %v5893, %v6135
  %v6167 = vmul.f32 %v5894, %v6135
  %v6168 = vmul.f32 %v5895, %v6135
  %v6169 = vmul.f32 %v5896, %v6135
  %v6170 = vmul.f32 %v5897, %v6135
  %v6171 = vmul.f32 %v5898, %v6135
  %v6172 = vmul.f32 %v5899, %v6135
  %v6173 = vmul.f32 %v5900, %v6135
  %v6174 = vmul.f32 %v5901, %v6135
  %v6175 = vmul.f32 %v5902, %v6135
  %v6176 = vmul.f32 %v5903, %v6135
  %v6177 = vmul.f32 %v5904, %v6135
  %v6178 = vmul.f32 %v5905, %v6135
  %v6179 = vmul.f32 %v5906, %v6135
  %v6180 = vmul.f32 %v5907, %v6135
  %v6181 = vmul.f32 %v5908, %v6135
  %v6182 = vmul.f32 %v5909, %v6135
  %v6183 = vmul.f32 %v5910, %v6135
  %v6184 = vmul.f32 %v5911, %v6135
  %v6185 = vmul.f32 %v5912, %v6135
  %v6186 = vmul.f32 %v5913, %v6135
  %v6187 = vmul.f32 %v5914, %v6135
  %v6188 = vmul.f32 %v5915, %v6135
  %v6189 = vmul.f32 %v5916, %v6135
  %v6190 = vmul.f32 %v5917, %v6135
  %v6191 = vmul.f32 %v5918, %v6135
  %v6192 = vmul.f32 %v5919, %v6135
  %v6193 = vmul.f32 %v5920, %v6135
  %v6194 = vmul.f32 %v5921, %v6135
  %v6195 = vmul.f32 %v5922, %v6135
  %v6196 = vmul.f32 %v5923, %v6135
  %v6197 = vmul.f32 %v5924, %v6135
  %v6198 = vmul.f32 %v5925, %v6135
  %v6199 = vmul.f32 %v5926, %v6135
  %v6201 = vperm.slane %v5720, 0
  %v6203 = vmul.f32 %v6136, %v6201
  %v6204 = vmul.f32 %v6137, %v6201
  %v6205 = vmul.f32 %v6138, %v6201
  %v6206 = vmul.f32 %v6139, %v6201
  %v6207 = vmul.f32 %v6140, %v6201
  %v6208 = vmul.f32 %v6141, %v6201
  %v6209 = vmul.f32 %v6142, %v6201
  %v6210 = vmul.f32 %v6143, %v6201
  %v6211 = vmul.f32 %v6144, %v6201
  %v6212 = vmul.f32 %v6145, %v6201
  %v6213 = vmul.f32 %v6146, %v6201
  %v6214 = vmul.f32 %v6147, %v6201
  %v6215 = vmul.f32 %v6148, %v6201
  %v6216 = vmul.f32 %v6149, %v6201
  %v6217 = vmul.f32 %v6150, %v6201
  %v6218 = vmul.f32 %v6151, %v6201
  %v6219 = vmul.f32 %v6152, %v6201
  %v6220 = vmul.f32 %v6153, %v6201
  %v6221 = vmul.f32 %v6154, %v6201
  %v6222 = vmul.f32 %v6155, %v6201
  %v6223 = vmul.f32 %v6156, %v6201
  %v6224 = vmul.f32 %v6157, %v6201
  %v6225 = vmul.f32 %v6158, %v6201
  %v6226 = vmul.f32 %v6159, %v6201
  %v6227 = vmul.f32 %v6160, %v6201
  %v6228 = vmul.f32 %v6161, %v6201
  %v6229 = vmul.f32 %v6162, %v6201
  %v6230 = vmul.f32 %v6163, %v6201
  %v6231 = vmul.f32 %v6164, %v6201
  %v6232 = vmul.f32 %v6165, %v6201
  %v6233 = vmul.f32 %v6166, %v6201
  %v6234 = vmul.f32 %v6167, %v6201
  %v6235 = vmul.f32 %v6168, %v6201
  %v6236 = vmul.f32 %v6169, %v6201
  %v6237 = vmul.f32 %v6170, %v6201
  %v6238 = vmul.f32 %v6171, %v6201
  %v6239 = vmul.f32 %v6172, %v6201
  %v6240 = vmul.f32 %v6173, %v6201
  %v6241 = vmul.f32 %v6174, %v6201
  %v6242 = vmul.f32 %v6175, %v6201
  %v6243 = vmul.f32 %v6176, %v6201
  %v6244 = vmul.f32 %v6177, %v6201
  %v6245 = vmul.f32 %v6178, %v6201
  %v6246 = vmul.f32 %v6179, %v6201
  %v6247 = vmul.f32 %v6180, %v6201
  %v6248 = vmul.f32 %v6181, %v6201
  %v6249 = vmul.f32 %v6182, %v6201
  %v6250 = vmul.f32 %v6183, %v6201
  %v6251 = vmul.f32 %v6184, %v6201
  %v6252 = vmul.f32 %v6185, %v6201
  %v6253 = vmul.f32 %v6186, %v6201
  %v6254 = vmul.f32 %v6187, %v6201
  %v6255 = vmul.f32 %v6188, %v6201
  %v6256 = vmul.f32 %v6189, %v6201
  %v6257 = vmul.f32 %v6190, %v6201
  %v6258 = vmul.f32 %v6191, %v6201
  %v6259 = vmul.f32 %v6192, %v6201
  %v6260 = vmul.f32 %v6193, %v6201
  %v6261 = vmul.f32 %v6194, %v6201
  %v6262 = vmul.f32 %v6195, %v6201
  %v6263 = vmul.f32 %v6196, %v6201
  %v6264 = vmul.f32 %v6197, %v6201
  %v6265 = vmul.f32 %v6198, %v6201
  %v6266 = vmul.f32 %v6199, %v6201
  %v6268 = vperm.slane %v5721, 0
  %v6270 = vadd.f32 %v6203, %v6268
  %v6271 = vadd.f32 %v6204, %v6268
  %v6272 = vadd.f32 %v6205, %v6268
  %v6273 = vadd.f32 %v6206, %v6268
  %v6274 = vadd.f32 %v6207, %v6268
  %v6275 = vadd.f32 %v6208, %v6268
  %v6276 = vadd.f32 %v6209, %v6268
  %v6277 = vadd.f32 %v6210, %v6268
  %v6278 = vadd.f32 %v6211, %v6268
  %v6279 = vadd.f32 %v6212, %v6268
  %v6280 = vadd.f32 %v6213, %v6268
  %v6281 = vadd.f32 %v6214, %v6268
  %v6282 = vadd.f32 %v6215, %v6268
  %v6283 = vadd.f32 %v6216, %v6268
  %v6284 = vadd.f32 %v6217, %v6268
  %v6285 = vadd.f32 %v6218, %v6268
  %v6286 = vadd.f32 %v6219, %v6268
  %v6287 = vadd.f32 %v6220, %v6268
  %v6288 = vadd.f32 %v6221, %v6268
  %v6289 = vadd.f32 %v6222, %v6268
  %v6290 = vadd.f32 %v6223, %v6268
  %v6291 = vadd.f32 %v6224, %v6268
  %v6292 = vadd.f32 %v6225, %v6268
  %v6293 = vadd.f32 %v6226, %v6268
  %v6294 = vadd.f32 %v6227, %v6268
  %v6295 = vadd.f32 %v6228, %v6268
  %v6296 = vadd.f32 %v6229, %v6268
  %v6297 = vadd.f32 %v6230, %v6268
  %v6298 = vadd.f32 %v6231, %v6268
  %v6299 = vadd.f32 %v6232, %v6268
  %v6300 = vadd.f32 %v6233, %v6268
  %v6301 = vadd.f32 %v6234, %v6268
  %v6302 = vadd.f32 %v6235, %v6268
  %v6303 = vadd.f32 %v6236, %v6268
  %v6304 = vadd.f32 %v6237, %v6268
  %v6305 = vadd.f32 %v6238, %v6268
  %v6306 = vadd.f32 %v6239, %v6268
  %v6307 = vadd.f32 %v6240, %v6268
  %v6308 = vadd.f32 %v6241, %v6268
  %v6309 = vadd.f32 %v6242, %v6268
  %v6310 = vadd.f32 %v6243, %v6268
  %v6311 = vadd.f32 %v6244, %v6268
  %v6312 = vadd.f32 %v6245, %v6268
  %v6313 = vadd.f32 %v6246, %v6268
  %v6314 = vadd.f32 %v6247, %v6268
  %v6315 = vadd.f32 %v6248, %v6268
  %v6316 = vadd.f32 %v6249, %v6268
  %v6317 = vadd.f32 %v6250, %v6268
  %v6318 = vadd.f32 %v6251, %v6268
  %v6319 = vadd.f32 %v6252, %v6268
  %v6320 = vadd.f32 %v6253, %v6268
  %v6321 = vadd.f32 %v6254, %v6268
  %v6322 = vadd.f32 %v6255, %v6268
  %v6323 = vadd.f32 %v6256, %v6268
  %v6324 = vadd.f32 %v6257, %v6268
  %v6325 = vadd.f32 %v6258, %v6268
  %v6326 = vadd.f32 %v6259, %v6268
  %v6327 = vadd.f32 %v6260, %v6268
  %v6328 = vadd.f32 %v6261, %v6268
  %v6329 = vadd.f32 %v6262, %v6268
  %v6330 = vadd.f32 %v6263, %v6268
  %v6331 = vadd.f32 %v6264, %v6268
  %v6332 = vadd.f32 %v6265, %v6268
  %v6333 = vadd.f32 %v6266, %v6268
  %v6334 = vmax.f32 %v6270, 0.0
  %v6335 = vmax.f32 %v6271, 0.0
  %v6336 = vmax.f32 %v6272, 0.0
  %v6337 = vmax.f32 %v6273, 0.0
  %v6338 = vmax.f32 %v6274, 0.0
  %v6339 = vmax.f32 %v6275, 0.0
  %v6340 = vmax.f32 %v6276, 0.0
  %v6341 = vmax.f32 %v6277, 0.0
  %v6342 = vmax.f32 %v6278, 0.0
  %v6343 = vmax.f32 %v6279, 0.0
  %v6344 = vmax.f32 %v6280, 0.0
  %v6345 = vmax.f32 %v6281, 0.0
  %v6346 = vmax.f32 %v6282, 0.0
  %v6347 = vmax.f32 %v6283, 0.0
  %v6348 = vmax.f32 %v6284, 0.0
  %v6349 = vmax.f32 %v6285, 0.0
  %v6350 = vmax.f32 %v6286, 0.0
  %v6351 = vmax.f32 %v6287, 0.0
  %v6352 = vmax.f32 %v6288, 0.0
  %v6353 = vmax.f32 %v6289, 0.0
  %v6354 = vmax.f32 %v6290, 0.0
  %v6355 = vmax.f32 %v6291, 0.0
  %v6356 = vmax.f32 %v6292, 0.0
  %v6357 = vmax.f32 %v6293, 0.0
  %v6358 = vmax.f32 %v6294, 0.0
  %v6359 = vmax.f32 %v6295, 0.0
  %v6360 = vmax.f32 %v6296, 0.0
  %v6361 = vmax.f32 %v6297, 0.0
  %v6362 = vmax.f32 %v6298, 0.0
  %v6363 = vmax.f32 %v6299, 0.0
  %v6364 = vmax.f32 %v6300, 0.0
  %v6365 = vmax.f32 %v6301, 0.0
  %v6366 = vmax.f32 %v6302, 0.0
  %v6367 = vmax.f32 %v6303, 0.0
  %v6368 = vmax.f32 %v6304, 0.0
  %v6369 = vmax.f32 %v6305, 0.0
  %v6370 = vmax.f32 %v6306, 0.0
  %v6371 = vmax.f32 %v6307, 0.0
  %v6372 = vmax.f32 %v6308, 0.0
  %v6373 = vmax.f32 %v6309, 0.0
  %v6374 = vmax.f32 %v6310, 0.0
  %v6375 = vmax.f32 %v6311, 0.0
  %v6376 = vmax.f32 %v6312, 0.0
  %v6377 = vmax.f32 %v6313, 0.0
  %v6378 = vmax.f32 %v6314, 0.0
  %v6379 = vmax.f32 %v6315, 0.0
  %v6380 = vmax.f32 %v6316, 0.0
  %v6381 = vmax.f32 %v6317, 0.0
  %v6382 = vmax.f32 %v6318, 0.0
  %v6383 = vmax.f32 %v6319, 0.0
  %v6384 = vmax.f32 %v6320, 0.0
  %v6385 = vmax.f32 %v6321, 0.0
  %v6386 = vmax.f32 %v6322, 0.0
  %v6387 = vmax.f32 %v6323, 0.0
  %v6388 = vmax.f32 %v6324, 0.0
  %v6389 = vmax.f32 %v6325, 0.0
  %v6390 = vmax.f32 %v6326, 0.0
  %v6391 = vmax.f32 %v6327, 0.0
  %v6392 = vmax.f32 %v6328, 0.0
  %v6393 = vmax.f32 %v6329, 0.0
  %v6394 = vmax.f32 %v6330, 0.0
  %v6395 = vmax.f32 %v6331, 0.0
  %v6396 = vmax.f32 %v6332, 0.0
  %v6397 = vmax.f32 %v6333, 0.0
  %v6398 = vmin.f32 %v6334, 6.0
  %v6399 = vmin.f32 %v6335, 6.0
  %v6400 = vmin.f32 %v6336, 6.0
  %v6401 = vmin.f32 %v6337, 6.0
  %v6402 = vmin.f32 %v6338, 6.0
  %v6403 = vmin.f32 %v6339, 6.0
  %v6404 = vmin.f32 %v6340, 6.0
  %v6405 = vmin.f32 %v6341, 6.0
  %v6406 = vmin.f32 %v6342, 6.0
  %v6407 = vmin.f32 %v6343, 6.0
  %v6408 = vmin.f32 %v6344, 6.0
  %v6409 = vmin.f32 %v6345, 6.0
  %v6410 = vmin.f32 %v6346, 6.0
  %v6411 = vmin.f32 %v6347, 6.0
  %v6412 = vmin.f32 %v6348, 6.0
  %v6413 = vmin.f32 %v6349, 6.0
  %v6414 = vmin.f32 %v6350, 6.0
  %v6415 = vmin.f32 %v6351, 6.0
  %v6416 = vmin.f32 %v6352, 6.0
  %v6417 = vmin.f32 %v6353, 6.0
  %v6418 = vmin.f32 %v6354, 6.0
  %v6419 = vmin.f32 %v6355, 6.0
  %v6420 = vmin.f32 %v6356, 6.0
  %v6421 = vmin.f32 %v6357, 6.0
  %v6422 = vmin.f32 %v6358, 6.0
  %v6423 = vmin.f32 %v6359, 6.0
  %v6424 = vmin.f32 %v6360, 6.0
  %v6425 = vmin.f32 %v6361, 6.0
  %v6426 = vmin.f32 %v6362, 6.0
  %v6427 = vmin.f32 %v6363, 6.0
  %v6428 = vmin.f32 %v6364, 6.0
  %v6429 = vmin.f32 %v6365, 6.0
  %v6430 = vmin.f32 %v6366, 6.0
  %v6431 = vmin.f32 %v6367, 6.0
  %v6432 = vmin.f32 %v6368, 6.0
  %v6433 = vmin.f32 %v6369, 6.0
  %v6434 = vmin.f32 %v6370, 6.0
  %v6435 = vmin.f32 %v6371, 6.0
  %v6436 = vmin.f32 %v6372, 6.0
  %v6437 = vmin.f32 %v6373, 6.0
  %v6438 = vmin.f32 %v6374, 6.0
  %v6439 = vmin.f32 %v6375, 6.0
  %v6440 = vmin.f32 %v6376, 6.0
  %v6441 = vmin.f32 %v6377, 6.0
  %v6442 = vmin.f32 %v6378, 6.0
  %v6443 = vmin.f32 %v6379, 6.0
  %v6444 = vmin.f32 %v6380, 6.0
  %v6445 = vmin.f32 %v6381, 6.0
  %v6446 = vmin.f32 %v6382, 6.0
  %v6447 = vmin.f32 %v6383, 6.0
  %v6448 = vmin.f32 %v6384, 6.0
  %v6449 = vmin.f32 %v6385, 6.0
  %v6450 = vmin.f32 %v6386, 6.0
  %v6451 = vmin.f32 %v6387, 6.0
  %v6452 = vmin.f32 %v6388, 6.0
  %v6453 = vmin.f32 %v6389, 6.0
  %v6454 = vmin.f32 %v6390, 6.0
  %v6455 = vmin.f32 %v6391, 6.0
  %v6456 = vmin.f32 %v6392, 6.0
  %v6457 = vmin.f32 %v6393, 6.0
  %v6458 = vmin.f32 %v6394, 6.0
  %v6459 = vmin.f32 %v6395, 6.0
  %v6460 = vmin.f32 %v6396, 6.0
  %v6461 = vmin.f32 %v6397, 6.0
  %v6462 = vpack.c.bf16 %v6399, %v6398
  %v6463 = vpack.c.bf16 %v6401, %v6400
  %v6464 = vpack.c.bf16 %v6403, %v6402
  %v6465 = vpack.c.bf16 %v6405, %v6404
  %v6466 = vpack.c.bf16 %v6407, %v6406
  %v6467 = vpack.c.bf16 %v6409, %v6408
  %v6468 = vpack.c.bf16 %v6411, %v6410
  %v6469 = vpack.c.bf16 %v6413, %v6412
  %v6470 = vpack.c.bf16 %v6415, %v6414
  %v6471 = vpack.c.bf16 %v6417, %v6416
  %v6472 = vpack.c.bf16 %v6419, %v6418
  %v6473 = vpack.c.bf16 %v6421, %v6420
  %v6474 = vpack.c.bf16 %v6423, %v6422
  %v6475 = vpack.c.bf16 %v6425, %v6424
  %v6476 = vpack.c.bf16 %v6427, %v6426
  %v6477 = vpack.c.bf16 %v6429, %v6428
  %v6478 = vpack.c.bf16 %v6431, %v6430
  %v6479 = vpack.c.bf16 %v6433, %v6432
  %v6480 = vpack.c.bf16 %v6435, %v6434
  %v6481 = vpack.c.bf16 %v6437, %v6436
  %v6482 = vpack.c.bf16 %v6439, %v6438
  %v6483 = vpack.c.bf16 %v6441, %v6440
  %v6484 = vpack.c.bf16 %v6443, %v6442
  %v6485 = vpack.c.bf16 %v6445, %v6444
  %v6486 = vpack.c.bf16 %v6447, %v6446
  %v6487 = vpack.c.bf16 %v6449, %v6448
  %v6488 = vpack.c.bf16 %v6451, %v6450
  %v6489 = vpack.c.bf16 %v6453, %v6452
  %v6490 = vpack.c.bf16 %v6455, %v6454
  %v6491 = vpack.c.bf16 %v6457, %v6456
  %v6492 = vpack.c.bf16 %v6459, %v6458
  %v6493 = vpack.c.bf16 %v6461, %v6460
  %v6494 = vld [vmem:[%s8] sm:$0xf]
  %v6495 = vld [vmem:[%s8 + $0x4] sm:$0xf]
  %v6496 = vld [vmem:[%s8 + $0x8] sm:$0xf]
  %v6497 = vld [vmem:[%s8 + $0xc] sm:$0xf]
  %v6498 = vld [vmem:[%s8 + $0x10] sm:$0xf]
  %v6499 = vld [vmem:[%s8 + $0x14] sm:$0xf]
  %v6506 = vunpack.c.l.b16 %v6494
  %v6507 = vunpack.c.l.b16 %v6495
  %v6508 = vunpack.c.l.b16 %v6496
  %v6509 = vunpack.c.l.b16 %v6497
  %v6510 = vunpack.c.l.b16 %v6498
  %v6511 = vunpack.c.l.b16 %v6499
  %v6512 = vpack.c.b16 %v6507, %v6506
  %v6513 = vpack.c.b16 %v6509, %v6508
  %v6514 = vpack.c.b16 %v6511, %v6510
  %v6519 = vsel %vm1916, %v6462, 0
  %v6522 = vsel %vm1916, %v6463, 0
  %v6525 = vsel %vm1916, %v6464, 0
  %v6528 = vsel %vm1916, %v6465, 0
  %v6531 = vsel %vm1916, %v6466, 0
  %v6534 = vsel %vm1916, %v6467, 0
  %v6537 = vsel %vm1916, %v6468, 0
  %v6540 = vsel %vm1916, %v6469, 0
  %v6543 = vsel %vm1916, %v6470, 0
  %v6546 = vsel %vm1916, %v6471, 0
  %v6549 = vsel %vm1916, %v6472, 0
  %v6552 = vsel %vm1916, %v6473, 0
  %v6555 = vsel %vm1916, %v6474, 0
  %v6558 = vsel %vm1916, %v6475, 0
  %v6561 = vsel %vm1916, %v6476, 0
  %v6564 = vsel %vm1916, %v6477, 0
  %v6567 = vsel %vm1916, %v6478, 0
  %v6570 = vsel %vm1916, %v6479, 0
  %v6573 = vsel %vm1916, %v6480, 0
  %v6576 = vsel %vm1916, %v6481, 0
  %v6579 = vsel %vm1916, %v6482, 0
  %v6582 = vsel %vm1916, %v6483, 0
  %v6585 = vsel %vm1916, %v6484, 0
  %v6588 = vsel %vm1916, %v6485, 0
  %v6591 = vsel %vm1916, %v6486, 0
  %v6594 = vsel %vm1916, %v6487, 0
  %v6597 = vsel %vm1916, %v6488, 0
  %v6600 = vsel %vm1916, %v6489, 0
  %v6603 = vsel %vm1916, %v6490, 0
  %v6606 = vsel %vm1916, %v6491, 0
  %v6609 = vsel %vm1916, %v6492, 0
  %v6612 = vsel %vm1916, %v6493, 0
  %6614 = vmatpush.bf16.msra.mxu0 0
  %6615 = vmatpush.bf16.msra.mxu0 0
  %6616 = vmatpush.bf16.msra.mxu0 0
  %6617 = vmatpush.bf16.msra.mxu0 0
  %6618 = vmatpush.bf16.msra.mxu0 0
  %6619 = vmatpush.bf16.msra.mxu0 %v6514
  %6620 = vmatpush.bf16.msra.mxu0 %v6513
  %6621 = vmatpush.bf16.msra.mxu0 %v6512
  %6622 = vmatmul.bf16.gmra.mxu0 %v6519
  %v6623 = vpop.f32.mrf.mxu0
  %v6624 = vadd.f32 0.0, %v6623
  %v6625 = vpop.f32.mrf.mxu0
  %v6626 = vadd.f32 0.0, %v6625
  %6627 = vmatmul.bf16.gmra.mxu0 %v6522
  %v6628 = vpop.f32.mrf.mxu0
  %v6629 = vadd.f32 0.0, %v6628
  %v6630 = vpop.f32.mrf.mxu0
  %v6631 = vadd.f32 0.0, %v6630
  %6632 = vmatmul.bf16.gmra.mxu0 %v6525
  %v6633 = vpop.f32.mrf.mxu0
  %v6634 = vadd.f32 0.0, %v6633
  %v6635 = vpop.f32.mrf.mxu0
  %v6636 = vadd.f32 0.0, %v6635
  %6637 = vmatmul.bf16.gmra.mxu0 %v6528
  %v6638 = vpop.f32.mrf.mxu0
  %v6639 = vadd.f32 0.0, %v6638
  %v6640 = vpop.f32.mrf.mxu0
  %v6641 = vadd.f32 0.0, %v6640
  %6642 = vmatmul.bf16.gmra.mxu0 %v6531
  %v6643 = vpop.f32.mrf.mxu0
  %v6644 = vadd.f32 0.0, %v6643
  %v6645 = vpop.f32.mrf.mxu0
  %v6646 = vadd.f32 0.0, %v6645
  %6647 = vmatmul.bf16.gmra.mxu0 %v6534
  %v6648 = vpop.f32.mrf.mxu0
  %v6649 = vadd.f32 0.0, %v6648
  %v6650 = vpop.f32.mrf.mxu0
  %v6651 = vadd.f32 0.0, %v6650
  %6652 = vmatmul.bf16.gmra.mxu0 %v6537
  %v6653 = vpop.f32.mrf.mxu0
  %v6654 = vadd.f32 0.0, %v6653
  %v6655 = vpop.f32.mrf.mxu0
  %v6656 = vadd.f32 0.0, %v6655
  %6657 = vmatmul.bf16.gmra.mxu0 %v6540
  %v6658 = vpop.f32.mrf.mxu0
  %v6659 = vadd.f32 0.0, %v6658
  %v6660 = vpop.f32.mrf.mxu0
  %v6661 = vadd.f32 0.0, %v6660
  %6662 = vmatmul.bf16.gmra.mxu0 %v6543
  %v6663 = vpop.f32.mrf.mxu0
  %v6664 = vadd.f32 0.0, %v6663
  %v6665 = vpop.f32.mrf.mxu0
  %v6666 = vadd.f32 0.0, %v6665
  %6667 = vmatmul.bf16.gmra.mxu0 %v6546
  %v6668 = vpop.f32.mrf.mxu0
  %v6669 = vadd.f32 0.0, %v6668
  %v6670 = vpop.f32.mrf.mxu0
  %v6671 = vadd.f32 0.0, %v6670
  %6672 = vmatmul.bf16.gmra.mxu0 %v6549
  %v6673 = vpop.f32.mrf.mxu0
  %v6674 = vadd.f32 0.0, %v6673
  %v6675 = vpop.f32.mrf.mxu0
  %v6676 = vadd.f32 0.0, %v6675
  %6677 = vmatmul.bf16.gmra.mxu0 %v6552
  %v6678 = vpop.f32.mrf.mxu0
  %v6679 = vadd.f32 0.0, %v6678
  %v6680 = vpop.f32.mrf.mxu0
  %v6681 = vadd.f32 0.0, %v6680
  %6682 = vmatmul.bf16.gmra.mxu0 %v6555
  %v6683 = vpop.f32.mrf.mxu0
  %v6684 = vadd.f32 0.0, %v6683
  %v6685 = vpop.f32.mrf.mxu0
  %v6686 = vadd.f32 0.0, %v6685
  %6687 = vmatmul.bf16.gmra.mxu0 %v6558
  %v6688 = vpop.f32.mrf.mxu0
  %v6689 = vadd.f32 0.0, %v6688
  %v6690 = vpop.f32.mrf.mxu0
  %v6691 = vadd.f32 0.0, %v6690
  %6692 = vmatmul.bf16.gmra.mxu0 %v6561
  %v6693 = vpop.f32.mrf.mxu0
  %v6694 = vadd.f32 0.0, %v6693
  %v6695 = vpop.f32.mrf.mxu0
  %v6696 = vadd.f32 0.0, %v6695
  %6697 = vmatmul.bf16.gmra.mxu0 %v6564
  %v6698 = vpop.f32.mrf.mxu0
  %v6699 = vadd.f32 0.0, %v6698
  %v6700 = vpop.f32.mrf.mxu0
  %v6701 = vadd.f32 0.0, %v6700
  %6702 = vmatmul.bf16.gmra.mxu0 %v6567
  %v6703 = vpop.f32.mrf.mxu0
  %v6704 = vadd.f32 0.0, %v6703
  %v6705 = vpop.f32.mrf.mxu0
  %v6706 = vadd.f32 0.0, %v6705
  %6707 = vmatmul.bf16.gmra.mxu0 %v6570
  %v6708 = vpop.f32.mrf.mxu0
  %v6709 = vadd.f32 0.0, %v6708
  %v6710 = vpop.f32.mrf.mxu0
  %v6711 = vadd.f32 0.0, %v6710
  %6712 = vmatmul.bf16.gmra.mxu0 %v6573
  %v6713 = vpop.f32.mrf.mxu0
  %v6714 = vadd.f32 0.0, %v6713
  %v6715 = vpop.f32.mrf.mxu0
  %v6716 = vadd.f32 0.0, %v6715
  %6717 = vmatmul.bf16.gmra.mxu0 %v6576
  %v6718 = vpop.f32.mrf.mxu0
  %v6719 = vadd.f32 0.0, %v6718
  %v6720 = vpop.f32.mrf.mxu0
  %v6721 = vadd.f32 0.0, %v6720
  %6722 = vmatmul.bf16.gmra.mxu0 %v6579
  %v6723 = vpop.f32.mrf.mxu0
  %v6724 = vadd.f32 0.0, %v6723
  %v6725 = vpop.f32.mrf.mxu0
  %v6726 = vadd.f32 0.0, %v6725
  %6727 = vmatmul.bf16.gmra.mxu0 %v6582
  %v6728 = vpop.f32.mrf.mxu0
  %v6729 = vadd.f32 0.0, %v6728
  %v6730 = vpop.f32.mrf.mxu0
  %v6731 = vadd.f32 0.0, %v6730
  %6732 = vmatmul.bf16.gmra.mxu0 %v6585
  %v6733 = vpop.f32.mrf.mxu0
  %v6734 = vadd.f32 0.0, %v6733
  %v6735 = vpop.f32.mrf.mxu0
  %v6736 = vadd.f32 0.0, %v6735
  %6737 = vmatmul.bf16.gmra.mxu0 %v6588
  %v6738 = vpop.f32.mrf.mxu0
  %v6739 = vadd.f32 0.0, %v6738
  %v6740 = vpop.f32.mrf.mxu0
  %v6741 = vadd.f32 0.0, %v6740
  %6742 = vmatmul.bf16.gmra.mxu0 %v6591
  %v6743 = vpop.f32.mrf.mxu0
  %v6744 = vadd.f32 0.0, %v6743
  %v6745 = vpop.f32.mrf.mxu0
  %v6746 = vadd.f32 0.0, %v6745
  %6747 = vmatmul.bf16.gmra.mxu0 %v6594
  %v6748 = vpop.f32.mrf.mxu0
  %v6749 = vadd.f32 0.0, %v6748
  %v6750 = vpop.f32.mrf.mxu0
  %v6751 = vadd.f32 0.0, %v6750
  %6752 = vmatmul.bf16.gmra.mxu0 %v6597
  %v6753 = vpop.f32.mrf.mxu0
  %v6754 = vadd.f32 0.0, %v6753
  %v6755 = vpop.f32.mrf.mxu0
  %v6756 = vadd.f32 0.0, %v6755
  %6757 = vmatmul.bf16.gmra.mxu0 %v6600
  %v6758 = vpop.f32.mrf.mxu0
  %v6759 = vadd.f32 0.0, %v6758
  %v6760 = vpop.f32.mrf.mxu0
  %v6761 = vadd.f32 0.0, %v6760
  %6762 = vmatmul.bf16.gmra.mxu0 %v6603
  %v6763 = vpop.f32.mrf.mxu0
  %v6764 = vadd.f32 0.0, %v6763
  %v6765 = vpop.f32.mrf.mxu0
  %v6766 = vadd.f32 0.0, %v6765
  %6767 = vmatmul.bf16.gmra.mxu0 %v6606
  %v6768 = vpop.f32.mrf.mxu0
  %v6769 = vadd.f32 0.0, %v6768
  %v6770 = vpop.f32.mrf.mxu0
  %v6771 = vadd.f32 0.0, %v6770
  %6772 = vmatmul.bf16.gmra.mxu0 %v6609
  %v6773 = vpop.f32.mrf.mxu0
  %v6774 = vadd.f32 0.0, %v6773
  %v6775 = vpop.f32.mrf.mxu0
  %v6776 = vadd.f32 0.0, %v6775
  %6777 = vmatmul.bf16.gmra.mxu0 %v6612
  %v6778 = vpop.f32.mrf.mxu0
  %v6779 = vadd.f32 0.0, %v6778
  %v6780 = vpop.f32.mrf.mxu0
  %v6781 = vadd.f32 0.0, %v6780
  %6782 = vdwg.mxu0
  %v6783 = vld [vmem:[%s9] sm:$0x1]
  %v6784 = vld [vmem:[%s10] sm:$0x1]
  %v6785 = vsel %vm1006, %v6624, 0.0
  %v6786 = vsel %vm1006, %v6626, 0.0
  %v6787 = vadd.f32 %v6785, %v6786
  %v6788 = vsel %vm1006, %v6629, 0.0
  %v6789 = vadd.f32 %v6787, %v6788
  %v6790 = vsel %vm1006, %v6631, 0.0
  %v6791 = vadd.f32 %v6789, %v6790
  %v6792 = vsel %vm1006, %v6634, 0.0
  %v6793 = vadd.f32 %v6791, %v6792
  %v6794 = vsel %vm1006, %v6636, 0.0
  %v6795 = vadd.f32 %v6793, %v6794
  %v6796 = vsel %vm1006, %v6639, 0.0
  %v6797 = vadd.f32 %v6795, %v6796
  %v6798 = vsel %vm1006, %v6641, 0.0
  %v6799 = vadd.f32 %v6797, %v6798
  %v6800 = vsel %vm1006, %v6644, 0.0
  %v6801 = vadd.f32 %v6799, %v6800
  %v6802 = vsel %vm1006, %v6646, 0.0
  %v6803 = vadd.f32 %v6801, %v6802
  %v6804 = vsel %vm1006, %v6649, 0.0
  %v6805 = vadd.f32 %v6803, %v6804
  %v6806 = vsel %vm1006, %v6651, 0.0
  %v6807 = vadd.f32 %v6805, %v6806
  %v6808 = vsel %vm1006, %v6654, 0.0
  %v6809 = vadd.f32 %v6807, %v6808
  %v6810 = vsel %vm1006, %v6656, 0.0
  %v6811 = vadd.f32 %v6809, %v6810
  %v6812 = vsel %vm1006, %v6659, 0.0
  %v6813 = vadd.f32 %v6811, %v6812
  %v6814 = vsel %vm1006, %v6661, 0.0
  %v6815 = vadd.f32 %v6813, %v6814
  %v6816 = vsel %vm1006, %v6664, 0.0
  %v6817 = vadd.f32 %v6815, %v6816
  %v6818 = vsel %vm1006, %v6666, 0.0
  %v6819 = vadd.f32 %v6817, %v6818
  %v6820 = vsel %vm1006, %v6669, 0.0
  %v6821 = vadd.f32 %v6819, %v6820
  %v6822 = vsel %vm1006, %v6671, 0.0
  %v6823 = vadd.f32 %v6821, %v6822
  %v6824 = vsel %vm1006, %v6674, 0.0
  %v6825 = vadd.f32 %v6823, %v6824
  %v6826 = vsel %vm1006, %v6676, 0.0
  %v6827 = vadd.f32 %v6825, %v6826
  %v6828 = vsel %vm1006, %v6679, 0.0
  %v6829 = vadd.f32 %v6827, %v6828
  %v6830 = vsel %vm1006, %v6681, 0.0
  %v6831 = vadd.f32 %v6829, %v6830
  %v6832 = vsel %vm1006, %v6684, 0.0
  %v6833 = vadd.f32 %v6831, %v6832
  %v6834 = vsel %vm1006, %v6686, 0.0
  %v6835 = vadd.f32 %v6833, %v6834
  %v6836 = vsel %vm1006, %v6689, 0.0
  %v6837 = vadd.f32 %v6835, %v6836
  %v6838 = vsel %vm1006, %v6691, 0.0
  %v6839 = vadd.f32 %v6837, %v6838
  %v6840 = vsel %vm1006, %v6694, 0.0
  %v6841 = vadd.f32 %v6839, %v6840
  %v6842 = vsel %vm1006, %v6696, 0.0
  %v6843 = vadd.f32 %v6841, %v6842
  %v6844 = vsel %vm1006, %v6699, 0.0
  %v6845 = vadd.f32 %v6843, %v6844
  %v6846 = vsel %vm1006, %v6701, 0.0
  %v6847 = vadd.f32 %v6845, %v6846
  %v6848 = vsel %vm1006, %v6704, 0.0
  %v6849 = vadd.f32 %v6847, %v6848
  %v6850 = vsel %vm1006, %v6706, 0.0
  %v6851 = vadd.f32 %v6849, %v6850
  %v6852 = vsel %vm1006, %v6709, 0.0
  %v6853 = vadd.f32 %v6851, %v6852
  %v6854 = vsel %vm1006, %v6711, 0.0
  %v6855 = vadd.f32 %v6853, %v6854
  %v6856 = vsel %vm1006, %v6714, 0.0
  %v6857 = vadd.f32 %v6855, %v6856
  %v6858 = vsel %vm1006, %v6716, 0.0
  %v6859 = vadd.f32 %v6857, %v6858
  %v6860 = vsel %vm1006, %v6719, 0.0
  %v6861 = vadd.f32 %v6859, %v6860
  %v6862 = vsel %vm1006, %v6721, 0.0
  %v6863 = vadd.f32 %v6861, %v6862
  %v6864 = vsel %vm1006, %v6724, 0.0
  %v6865 = vadd.f32 %v6863, %v6864
  %v6866 = vsel %vm1006, %v6726, 0.0
  %v6867 = vadd.f32 %v6865, %v6866
  %v6868 = vsel %vm1006, %v6729, 0.0
  %v6869 = vadd.f32 %v6867, %v6868
  %v6870 = vsel %vm1006, %v6731, 0.0
  %v6871 = vadd.f32 %v6869, %v6870
  %v6872 = vsel %vm1006, %v6734, 0.0
  %v6873 = vadd.f32 %v6871, %v6872
  %v6874 = vsel %vm1006, %v6736, 0.0
  %v6875 = vadd.f32 %v6873, %v6874
  %v6876 = vsel %vm1006, %v6739, 0.0
  %v6877 = vadd.f32 %v6875, %v6876
  %v6878 = vsel %vm1006, %v6741, 0.0
  %v6879 = vadd.f32 %v6877, %v6878
  %v6880 = vsel %vm1006, %v6744, 0.0
  %v6881 = vadd.f32 %v6879, %v6880
  %v6882 = vsel %vm1006, %v6746, 0.0
  %v6883 = vadd.f32 %v6881, %v6882
  %v6884 = vsel %vm1006, %v6749, 0.0
  %v6885 = vadd.f32 %v6883, %v6884
  %v6886 = vsel %vm1006, %v6751, 0.0
  %v6887 = vadd.f32 %v6885, %v6886
  %v6888 = vsel %vm1006, %v6754, 0.0
  %v6889 = vadd.f32 %v6887, %v6888
  %v6890 = vsel %vm1006, %v6756, 0.0
  %v6891 = vadd.f32 %v6889, %v6890
  %v6892 = vsel %vm1006, %v6759, 0.0
  %v6893 = vadd.f32 %v6891, %v6892
  %v6894 = vsel %vm1006, %v6761, 0.0
  %v6895 = vadd.f32 %v6893, %v6894
  %v6896 = vsel %vm1006, %v6764, 0.0
  %v6897 = vadd.f32 %v6895, %v6896
  %v6898 = vsel %vm1006, %v6766, 0.0
  %v6899 = vadd.f32 %v6897, %v6898
  %v6900 = vsel %vm1006, %v6769, 0.0
  %v6901 = vadd.f32 %v6899, %v6900
  %v6902 = vsel %vm1006, %v6771, 0.0
  %v6903 = vadd.f32 %v6901, %v6902
  %v6904 = vsel %vm1006, %v6774, 0.0
  %v6905 = vadd.f32 %v6903, %v6904
  %v6906 = vsel %vm1006, %v6776, 0.0
  %v6907 = vadd.f32 %v6905, %v6906
  %v6908 = vsel %vm1006, %v6779, 0.0
  %v6909 = vadd.f32 %v6907, %v6908
  %v6910 = vsel %vm1006, %v6781, 0.0
  %v6911 = vadd.f32 %v6909, %v6910
  %v6912 = vrot.slane %v6911, 4
  %v6913 = vadd.f32 %v6911, %v6912
  %v6914 = vrot.slane %v6913, 2
  %v6915 = vadd.f32 %v6913, %v6914
  %v6916 = vrot.slane %v6915, 1
  %v6917 = vadd.f32 %v6915, %v6916
  %v6918 = vmul.f32 %v6917, %v5861
  %v6919 = vsub.f32 %v6624, %v6918
  %v6920 = vsub.f32 %v6626, %v6918
  %v6921 = vsub.f32 %v6629, %v6918
  %v6922 = vsub.f32 %v6631, %v6918
  %v6923 = vsub.f32 %v6634, %v6918
  %v6924 = vsub.f32 %v6636, %v6918
  %v6925 = vsub.f32 %v6639, %v6918
  %v6926 = vsub.f32 %v6641, %v6918
  %v6927 = vsub.f32 %v6644, %v6918
  %v6928 = vsub.f32 %v6646, %v6918
  %v6929 = vsub.f32 %v6649, %v6918
  %v6930 = vsub.f32 %v6651, %v6918
  %v6931 = vsub.f32 %v6654, %v6918
  %v6932 = vsub.f32 %v6656, %v6918
  %v6933 = vsub.f32 %v6659, %v6918
  %v6934 = vsub.f32 %v6661, %v6918
  %v6935 = vsub.f32 %v6664, %v6918
  %v6936 = vsub.f32 %v6666, %v6918
  %v6937 = vsub.f32 %v6669, %v6918
  %v6938 = vsub.f32 %v6671, %v6918
  %v6939 = vsub.f32 %v6674, %v6918
  %v6940 = vsub.f32 %v6676, %v6918
  %v6941 = vsub.f32 %v6679, %v6918
  %v6942 = vsub.f32 %v6681, %v6918
  %v6943 = vsub.f32 %v6684, %v6918
  %v6944 = vsub.f32 %v6686, %v6918
  %v6945 = vsub.f32 %v6689, %v6918
  %v6946 = vsub.f32 %v6691, %v6918
  %v6947 = vsub.f32 %v6694, %v6918
  %v6948 = vsub.f32 %v6696, %v6918
  %v6949 = vsub.f32 %v6699, %v6918
  %v6950 = vsub.f32 %v6701, %v6918
  %v6951 = vsub.f32 %v6704, %v6918
  %v6952 = vsub.f32 %v6706, %v6918
  %v6953 = vsub.f32 %v6709, %v6918
  %v6954 = vsub.f32 %v6711, %v6918
  %v6955 = vsub.f32 %v6714, %v6918
  %v6956 = vsub.f32 %v6716, %v6918
  %v6957 = vsub.f32 %v6719, %v6918
  %v6958 = vsub.f32 %v6721, %v6918
  %v6959 = vsub.f32 %v6724, %v6918
  %v6960 = vsub.f32 %v6726, %v6918
  %v6961 = vsub.f32 %v6729, %v6918
  %v6962 = vsub.f32 %v6731, %v6918
  %v6963 = vsub.f32 %v6734, %v6918
  %v6964 = vsub.f32 %v6736, %v6918
  %v6965 = vsub.f32 %v6739, %v6918
  %v6966 = vsub.f32 %v6741, %v6918
  %v6967 = vsub.f32 %v6744, %v6918
  %v6968 = vsub.f32 %v6746, %v6918
  %v6969 = vsub.f32 %v6749, %v6918
  %v6970 = vsub.f32 %v6751, %v6918
  %v6971 = vsub.f32 %v6754, %v6918
  %v6972 = vsub.f32 %v6756, %v6918
  %v6973 = vsub.f32 %v6759, %v6918
  %v6974 = vsub.f32 %v6761, %v6918
  %v6975 = vsub.f32 %v6764, %v6918
  %v6976 = vsub.f32 %v6766, %v6918
  %v6977 = vsub.f32 %v6769, %v6918
  %v6978 = vsub.f32 %v6771, %v6918
  %v6979 = vsub.f32 %v6774, %v6918
  %v6980 = vsub.f32 %v6776, %v6918
  %v6981 = vsub.f32 %v6779, %v6918
  %v6982 = vsub.f32 %v6781, %v6918
  %v6983 = vmul.f32 %v6919, %v6919
  %v6984 = vmul.f32 %v6920, %v6920
  %v6985 = vmul.f32 %v6921, %v6921
  %v6986 = vmul.f32 %v6922, %v6922
  %v6987 = vmul.f32 %v6923, %v6923
  %v6988 = vmul.f32 %v6924, %v6924
  %v6989 = vmul.f32 %v6925, %v6925
  %v6990 = vmul.f32 %v6926, %v6926
  %v6991 = vmul.f32 %v6927, %v6927
  %v6992 = vmul.f32 %v6928, %v6928
  %v6993 = vmul.f32 %v6929, %v6929
  %v6994 = vmul.f32 %v6930, %v6930
  %v6995 = vmul.f32 %v6931, %v6931
  %v6996 = vmul.f32 %v6932, %v6932
  %v6997 = vmul.f32 %v6933, %v6933
  %v6998 = vmul.f32 %v6934, %v6934
  %v6999 = vmul.f32 %v6935, %v6935
  %v7000 = vmul.f32 %v6936, %v6936
  %v7001 = vmul.f32 %v6937, %v6937
  %v7002 = vmul.f32 %v6938, %v6938
  %v7003 = vmul.f32 %v6939, %v6939
  %v7004 = vmul.f32 %v6940, %v6940
  %v7005 = vmul.f32 %v6941, %v6941
  %v7006 = vmul.f32 %v6942, %v6942
  %v7007 = vmul.f32 %v6943, %v6943
  %v7008 = vmul.f32 %v6944, %v6944
  %v7009 = vmul.f32 %v6945, %v6945
  %v7010 = vmul.f32 %v6946, %v6946
  %v7011 = vmul.f32 %v6947, %v6947
  %v7012 = vmul.f32 %v6948, %v6948
  %v7013 = vmul.f32 %v6949, %v6949
  %v7014 = vmul.f32 %v6950, %v6950
  %v7015 = vmul.f32 %v6951, %v6951
  %v7016 = vmul.f32 %v6952, %v6952
  %v7017 = vmul.f32 %v6953, %v6953
  %v7018 = vmul.f32 %v6954, %v6954
  %v7019 = vmul.f32 %v6955, %v6955
  %v7020 = vmul.f32 %v6956, %v6956
  %v7021 = vmul.f32 %v6957, %v6957
  %v7022 = vmul.f32 %v6958, %v6958
  %v7023 = vmul.f32 %v6959, %v6959
  %v7024 = vmul.f32 %v6960, %v6960
  %v7025 = vmul.f32 %v6961, %v6961
  %v7026 = vmul.f32 %v6962, %v6962
  %v7027 = vmul.f32 %v6963, %v6963
  %v7028 = vmul.f32 %v6964, %v6964
  %v7029 = vmul.f32 %v6965, %v6965
  %v7030 = vmul.f32 %v6966, %v6966
  %v7031 = vmul.f32 %v6967, %v6967
  %v7032 = vmul.f32 %v6968, %v6968
  %v7033 = vmul.f32 %v6969, %v6969
  %v7034 = vmul.f32 %v6970, %v6970
  %v7035 = vmul.f32 %v6971, %v6971
  %v7036 = vmul.f32 %v6972, %v6972
  %v7037 = vmul.f32 %v6973, %v6973
  %v7038 = vmul.f32 %v6974, %v6974
  %v7039 = vmul.f32 %v6975, %v6975
  %v7040 = vmul.f32 %v6976, %v6976
  %v7041 = vmul.f32 %v6977, %v6977
  %v7042 = vmul.f32 %v6978, %v6978
  %v7043 = vmul.f32 %v6979, %v6979
  %v7044 = vmul.f32 %v6980, %v6980
  %v7045 = vmul.f32 %v6981, %v6981
  %v7046 = vmul.f32 %v6982, %v6982
  %v7047 = vsel %vm1006, %v6983, 0.0
  %v7048 = vsel %vm1006, %v6984, 0.0
  %v7049 = vadd.f32 %v7047, %v7048
  %v7050 = vsel %vm1006, %v6985, 0.0
  %v7051 = vadd.f32 %v7049, %v7050
  %v7052 = vsel %vm1006, %v6986, 0.0
  %v7053 = vadd.f32 %v7051, %v7052
  %v7054 = vsel %vm1006, %v6987, 0.0
  %v7055 = vadd.f32 %v7053, %v7054
  %v7056 = vsel %vm1006, %v6988, 0.0
  %v7057 = vadd.f32 %v7055, %v7056
  %v7058 = vsel %vm1006, %v6989, 0.0
  %v7059 = vadd.f32 %v7057, %v7058
  %v7060 = vsel %vm1006, %v6990, 0.0
  %v7061 = vadd.f32 %v7059, %v7060
  %v7062 = vsel %vm1006, %v6991, 0.0
  %v7063 = vadd.f32 %v7061, %v7062
  %v7064 = vsel %vm1006, %v6992, 0.0
  %v7065 = vadd.f32 %v7063, %v7064
  %v7066 = vsel %vm1006, %v6993, 0.0
  %v7067 = vadd.f32 %v7065, %v7066
  %v7068 = vsel %vm1006, %v6994, 0.0
  %v7069 = vadd.f32 %v7067, %v7068
  %v7070 = vsel %vm1006, %v6995, 0.0
  %v7071 = vadd.f32 %v7069, %v7070
  %v7072 = vsel %vm1006, %v6996, 0.0
  %v7073 = vadd.f32 %v7071, %v7072
  %v7074 = vsel %vm1006, %v6997, 0.0
  %v7075 = vadd.f32 %v7073, %v7074
  %v7076 = vsel %vm1006, %v6998, 0.0
  %v7077 = vadd.f32 %v7075, %v7076
  %v7078 = vsel %vm1006, %v6999, 0.0
  %v7079 = vadd.f32 %v7077, %v7078
  %v7080 = vsel %vm1006, %v7000, 0.0
  %v7081 = vadd.f32 %v7079, %v7080
  %v7082 = vsel %vm1006, %v7001, 0.0
  %v7083 = vadd.f32 %v7081, %v7082
  %v7084 = vsel %vm1006, %v7002, 0.0
  %v7085 = vadd.f32 %v7083, %v7084
  %v7086 = vsel %vm1006, %v7003, 0.0
  %v7087 = vadd.f32 %v7085, %v7086
  %v7088 = vsel %vm1006, %v7004, 0.0
  %v7089 = vadd.f32 %v7087, %v7088
  %v7090 = vsel %vm1006, %v7005, 0.0
  %v7091 = vadd.f32 %v7089, %v7090
  %v7092 = vsel %vm1006, %v7006, 0.0
  %v7093 = vadd.f32 %v7091, %v7092
  %v7094 = vsel %vm1006, %v7007, 0.0
  %v7095 = vadd.f32 %v7093, %v7094
  %v7096 = vsel %vm1006, %v7008, 0.0
  %v7097 = vadd.f32 %v7095, %v7096
  %v7098 = vsel %vm1006, %v7009, 0.0
  %v7099 = vadd.f32 %v7097, %v7098
  %v7100 = vsel %vm1006, %v7010, 0.0
  %v7101 = vadd.f32 %v7099, %v7100
  %v7102 = vsel %vm1006, %v7011, 0.0
  %v7103 = vadd.f32 %v7101, %v7102
  %v7104 = vsel %vm1006, %v7012, 0.0
  %v7105 = vadd.f32 %v7103, %v7104
  %v7106 = vsel %vm1006, %v7013, 0.0
  %v7107 = vadd.f32 %v7105, %v7106
  %v7108 = vsel %vm1006, %v7014, 0.0
  %v7109 = vadd.f32 %v7107, %v7108
  %v7110 = vsel %vm1006, %v7015, 0.0
  %v7111 = vadd.f32 %v7109, %v7110
  %v7112 = vsel %vm1006, %v7016, 0.0
  %v7113 = vadd.f32 %v7111, %v7112
  %v7114 = vsel %vm1006, %v7017, 0.0
  %v7115 = vadd.f32 %v7113, %v7114
  %v7116 = vsel %vm1006, %v7018, 0.0
  %v7117 = vadd.f32 %v7115, %v7116
  %v7118 = vsel %vm1006, %v7019, 0.0
  %v7119 = vadd.f32 %v7117, %v7118
  %v7120 = vsel %vm1006, %v7020, 0.0
  %v7121 = vadd.f32 %v7119, %v7120
  %v7122 = vsel %vm1006, %v7021, 0.0
  %v7123 = vadd.f32 %v7121, %v7122
  %v7124 = vsel %vm1006, %v7022, 0.0
  %v7125 = vadd.f32 %v7123, %v7124
  %v7126 = vsel %vm1006, %v7023, 0.0
  %v7127 = vadd.f32 %v7125, %v7126
  %v7128 = vsel %vm1006, %v7024, 0.0
  %v7129 = vadd.f32 %v7127, %v7128
  %v7130 = vsel %vm1006, %v7025, 0.0
  %v7131 = vadd.f32 %v7129, %v7130
  %v7132 = vsel %vm1006, %v7026, 0.0
  %v7133 = vadd.f32 %v7131, %v7132
  %v7134 = vsel %vm1006, %v7027, 0.0
  %v7135 = vadd.f32 %v7133, %v7134
  %v7136 = vsel %vm1006, %v7028, 0.0
  %v7137 = vadd.f32 %v7135, %v7136
  %v7138 = vsel %vm1006, %v7029, 0.0
  %v7139 = vadd.f32 %v7137, %v7138
  %v7140 = vsel %vm1006, %v7030, 0.0
  %v7141 = vadd.f32 %v7139, %v7140
  %v7142 = vsel %vm1006, %v7031, 0.0
  %v7143 = vadd.f32 %v7141, %v7142
  %v7144 = vsel %vm1006, %v7032, 0.0
  %v7145 = vadd.f32 %v7143, %v7144
  %v7146 = vsel %vm1006, %v7033, 0.0
  %v7147 = vadd.f32 %v7145, %v7146
  %v7148 = vsel %vm1006, %v7034, 0.0
  %v7149 = vadd.f32 %v7147, %v7148
  %v7150 = vsel %vm1006, %v7035, 0.0
  %v7151 = vadd.f32 %v7149, %v7150
  %v7152 = vsel %vm1006, %v7036, 0.0
  %v7153 = vadd.f32 %v7151, %v7152
  %v7154 = vsel %vm1006, %v7037, 0.0
  %v7155 = vadd.f32 %v7153, %v7154
  %v7156 = vsel %vm1006, %v7038, 0.0
  %v7157 = vadd.f32 %v7155, %v7156
  %v7158 = vsel %vm1006, %v7039, 0.0
  %v7159 = vadd.f32 %v7157, %v7158
  %v7160 = vsel %vm1006, %v7040, 0.0
  %v7161 = vadd.f32 %v7159, %v7160
  %v7162 = vsel %vm1006, %v7041, 0.0
  %v7163 = vadd.f32 %v7161, %v7162
  %v7164 = vsel %vm1006, %v7042, 0.0
  %v7165 = vadd.f32 %v7163, %v7164
  %v7166 = vsel %vm1006, %v7043, 0.0
  %v7167 = vadd.f32 %v7165, %v7166
  %v7168 = vsel %vm1006, %v7044, 0.0
  %v7169 = vadd.f32 %v7167, %v7168
  %v7170 = vsel %vm1006, %v7045, 0.0
  %v7171 = vadd.f32 %v7169, %v7170
  %v7172 = vsel %vm1006, %v7046, 0.0
  %v7173 = vadd.f32 %v7171, %v7172
  %v7174 = vrot.slane %v7173, 4
  %v7175 = vadd.f32 %v7173, %v7174
  %v7176 = vrot.slane %v7175, 2
  %v7177 = vadd.f32 %v7175, %v7176
  %v7178 = vrot.slane %v7177, 1
  %v7179 = vadd.f32 %v7177, %v7178
  %v7180 = vmul.f32 %v7179, %v5861
  %v7181 = vadd.f32 %v7180, 1e-05
  %v7182 = vrsqrt.pop %v7181
  %v7183 = vmul.f32 %v7182, %v7181
  %v7184 = vmul.f32 %v7183, %v7182
  %v7185 = vmul.f32 0.5, %v7184
  %v7186 = vsub.f32 1.5, %v7185
  %v7187 = vmul.f32 %v7182, %v7186
  %vm7188 = vweird.f32 %v7181
  %vm7189 = vweird.f32 %v7182
  %vm7190 = vmor %vm7188, %vm7189
  %v7191 = vsel %vm7190, %v7182, %v7187
  %v7192 = vmul.f32 %v6919, %v7191
  %v7193 = vmul.f32 %v6920, %v7191
  %v7194 = vmul.f32 %v6921, %v7191
  %v7195 = vmul.f32 %v6922, %v7191
  %v7196 = vmul.f32 %v6923, %v7191
  %v7197 = vmul.f32 %v6924, %v7191
  %v7198 = vmul.f32 %v6925, %v7191
  %v7199 = vmul.f32 %v6926, %v7191
  %v7200 = vmul.f32 %v6927, %v7191
  %v7201 = vmul.f32 %v6928, %v7191
  %v7202 = vmul.f32 %v6929, %v7191
  %v7203 = vmul.f32 %v6930, %v7191
  %v7204 = vmul.f32 %v6931, %v7191
  %v7205 = vmul.f32 %v6932, %v7191
  %v7206 = vmul.f32 %v6933, %v7191
  %v7207 = vmul.f32 %v6934, %v7191
  %v7208 = vmul.f32 %v6935, %v7191
  %v7209 = vmul.f32 %v6936, %v7191
  %v7210 = vmul.f32 %v6937, %v7191
  %v7211 = vmul.f32 %v6938, %v7191
  %v7212 = vmul.f32 %v6939, %v7191
  %v7213 = vmul.f32 %v6940, %v7191
  %v7214 = vmul.f32 %v6941, %v7191
  %v7215 = vmul.f32 %v6942, %v7191
  %v7216 = vmul.f32 %v6943, %v7191
  %v7217 = vmul.f32 %v6944, %v7191
  %v7218 = vmul.f32 %v6945, %v7191
  %v7219 = vmul.f32 %v6946, %v7191
  %v7220 = vmul.f32 %v6947, %v7191
  %v7221 = vmul.f32 %v6948, %v7191
  %v7222 = vmul.f32 %v6949, %v7191
  %v7223 = vmul.f32 %v6950, %v7191
  %v7224 = vmul.f32 %v6951, %v7191
  %v7225 = vmul.f32 %v6952, %v7191
  %v7226 = vmul.f32 %v6953, %v7191
  %v7227 = vmul.f32 %v6954, %v7191
  %v7228 = vmul.f32 %v6955, %v7191
  %v7229 = vmul.f32 %v6956, %v7191
  %v7230 = vmul.f32 %v6957, %v7191
  %v7231 = vmul.f32 %v6958, %v7191
  %v7232 = vmul.f32 %v6959, %v7191
  %v7233 = vmul.f32 %v6960, %v7191
  %v7234 = vmul.f32 %v6961, %v7191
  %v7235 = vmul.f32 %v6962, %v7191
  %v7236 = vmul.f32 %v6963, %v7191
  %v7237 = vmul.f32 %v6964, %v7191
  %v7238 = vmul.f32 %v6965, %v7191
  %v7239 = vmul.f32 %v6966, %v7191
  %v7240 = vmul.f32 %v6967, %v7191
  %v7241 = vmul.f32 %v6968, %v7191
  %v7242 = vmul.f32 %v6969, %v7191
  %v7243 = vmul.f32 %v6970, %v7191
  %v7244 = vmul.f32 %v6971, %v7191
  %v7245 = vmul.f32 %v6972, %v7191
  %v7246 = vmul.f32 %v6973, %v7191
  %v7247 = vmul.f32 %v6974, %v7191
  %v7248 = vmul.f32 %v6975, %v7191
  %v7249 = vmul.f32 %v6976, %v7191
  %v7250 = vmul.f32 %v6977, %v7191
  %v7251 = vmul.f32 %v6978, %v7191
  %v7252 = vmul.f32 %v6979, %v7191
  %v7253 = vmul.f32 %v6980, %v7191
  %v7254 = vmul.f32 %v6981, %v7191
  %v7255 = vmul.f32 %v6982, %v7191
  %v7257 = vperm.slane %v6783, 0
  %v7259 = vmul.f32 %v7192, %v7257
  %v7260 = vmul.f32 %v7193, %v7257
  %v7261 = vmul.f32 %v7194, %v7257
  %v7262 = vmul.f32 %v7195, %v7257
  %v7263 = vmul.f32 %v7196, %v7257
  %v7264 = vmul.f32 %v7197, %v7257
  %v7265 = vmul.f32 %v7198, %v7257
  %v7266 = vmul.f32 %v7199, %v7257
  %v7267 = vmul.f32 %v7200, %v7257
  %v7268 = vmul.f32 %v7201, %v7257
  %v7269 = vmul.f32 %v7202, %v7257
  %v7270 = vmul.f32 %v7203, %v7257
  %v7271 = vmul.f32 %v7204, %v7257
  %v7272 = vmul.f32 %v7205, %v7257
  %v7273 = vmul.f32 %v7206, %v7257
  %v7274 = vmul.f32 %v7207, %v7257
  %v7275 = vmul.f32 %v7208, %v7257
  %v7276 = vmul.f32 %v7209, %v7257
  %v7277 = vmul.f32 %v7210, %v7257
  %v7278 = vmul.f32 %v7211, %v7257
  %v7279 = vmul.f32 %v7212, %v7257
  %v7280 = vmul.f32 %v7213, %v7257
  %v7281 = vmul.f32 %v7214, %v7257
  %v7282 = vmul.f32 %v7215, %v7257
  %v7283 = vmul.f32 %v7216, %v7257
  %v7284 = vmul.f32 %v7217, %v7257
  %v7285 = vmul.f32 %v7218, %v7257
  %v7286 = vmul.f32 %v7219, %v7257
  %v7287 = vmul.f32 %v7220, %v7257
  %v7288 = vmul.f32 %v7221, %v7257
  %v7289 = vmul.f32 %v7222, %v7257
  %v7290 = vmul.f32 %v7223, %v7257
  %v7291 = vmul.f32 %v7224, %v7257
  %v7292 = vmul.f32 %v7225, %v7257
  %v7293 = vmul.f32 %v7226, %v7257
  %v7294 = vmul.f32 %v7227, %v7257
  %v7295 = vmul.f32 %v7228, %v7257
  %v7296 = vmul.f32 %v7229, %v7257
  %v7297 = vmul.f32 %v7230, %v7257
  %v7298 = vmul.f32 %v7231, %v7257
  %v7299 = vmul.f32 %v7232, %v7257
  %v7300 = vmul.f32 %v7233, %v7257
  %v7301 = vmul.f32 %v7234, %v7257
  %v7302 = vmul.f32 %v7235, %v7257
  %v7303 = vmul.f32 %v7236, %v7257
  %v7304 = vmul.f32 %v7237, %v7257
  %v7305 = vmul.f32 %v7238, %v7257
  %v7306 = vmul.f32 %v7239, %v7257
  %v7307 = vmul.f32 %v7240, %v7257
  %v7308 = vmul.f32 %v7241, %v7257
  %v7309 = vmul.f32 %v7242, %v7257
  %v7310 = vmul.f32 %v7243, %v7257
  %v7311 = vmul.f32 %v7244, %v7257
  %v7312 = vmul.f32 %v7245, %v7257
  %v7313 = vmul.f32 %v7246, %v7257
  %v7314 = vmul.f32 %v7247, %v7257
  %v7315 = vmul.f32 %v7248, %v7257
  %v7316 = vmul.f32 %v7249, %v7257
  %v7317 = vmul.f32 %v7250, %v7257
  %v7318 = vmul.f32 %v7251, %v7257
  %v7319 = vmul.f32 %v7252, %v7257
  %v7320 = vmul.f32 %v7253, %v7257
  %v7321 = vmul.f32 %v7254, %v7257
  %v7322 = vmul.f32 %v7255, %v7257
  %v7324 = vperm.slane %v6784, 0
  %v7326 = vadd.f32 %v7259, %v7324
  %v7327 = vadd.f32 %v7260, %v7324
  %v7328 = vadd.f32 %v7261, %v7324
  %v7329 = vadd.f32 %v7262, %v7324
  %v7330 = vadd.f32 %v7263, %v7324
  %v7331 = vadd.f32 %v7264, %v7324
  %v7332 = vadd.f32 %v7265, %v7324
  %v7333 = vadd.f32 %v7266, %v7324
  %v7334 = vadd.f32 %v7267, %v7324
  %v7335 = vadd.f32 %v7268, %v7324
  %v7336 = vadd.f32 %v7269, %v7324
  %v7337 = vadd.f32 %v7270, %v7324
  %v7338 = vadd.f32 %v7271, %v7324
  %v7339 = vadd.f32 %v7272, %v7324
  %v7340 = vadd.f32 %v7273, %v7324
  %v7341 = vadd.f32 %v7274, %v7324
  %v7342 = vadd.f32 %v7275, %v7324
  %v7343 = vadd.f32 %v7276, %v7324
  %v7344 = vadd.f32 %v7277, %v7324
  %v7345 = vadd.f32 %v7278, %v7324
  %v7346 = vadd.f32 %v7279, %v7324
  %v7347 = vadd.f32 %v7280, %v7324
  %v7348 = vadd.f32 %v7281, %v7324
  %v7349 = vadd.f32 %v7282, %v7324
  %v7350 = vadd.f32 %v7283, %v7324
  %v7351 = vadd.f32 %v7284, %v7324
  %v7352 = vadd.f32 %v7285, %v7324
  %v7353 = vadd.f32 %v7286, %v7324
  %v7354 = vadd.f32 %v7287, %v7324
  %v7355 = vadd.f32 %v7288, %v7324
  %v7356 = vadd.f32 %v7289, %v7324
  %v7357 = vadd.f32 %v7290, %v7324
  %v7358 = vadd.f32 %v7291, %v7324
  %v7359 = vadd.f32 %v7292, %v7324
  %v7360 = vadd.f32 %v7293, %v7324
  %v7361 = vadd.f32 %v7294, %v7324
  %v7362 = vadd.f32 %v7295, %v7324
  %v7363 = vadd.f32 %v7296, %v7324
  %v7364 = vadd.f32 %v7297, %v7324
  %v7365 = vadd.f32 %v7298, %v7324
  %v7366 = vadd.f32 %v7299, %v7324
  %v7367 = vadd.f32 %v7300, %v7324
  %v7368 = vadd.f32 %v7301, %v7324
  %v7369 = vadd.f32 %v7302, %v7324
  %v7370 = vadd.f32 %v7303, %v7324
  %v7371 = vadd.f32 %v7304, %v7324
  %v7372 = vadd.f32 %v7305, %v7324
  %v7373 = vadd.f32 %v7306, %v7324
  %v7374 = vadd.f32 %v7307, %v7324
  %v7375 = vadd.f32 %v7308, %v7324
  %v7376 = vadd.f32 %v7309, %v7324
  %v7377 = vadd.f32 %v7310, %v7324
  %v7378 = vadd.f32 %v7311, %v7324
  %v7379 = vadd.f32 %v7312, %v7324
  %v7380 = vadd.f32 %v7313, %v7324
  %v7381 = vadd.f32 %v7314, %v7324
  %v7382 = vadd.f32 %v7315, %v7324
  %v7383 = vadd.f32 %v7316, %v7324
  %v7384 = vadd.f32 %v7317, %v7324
  %v7385 = vadd.f32 %v7318, %v7324
  %v7386 = vadd.f32 %v7319, %v7324
  %v7387 = vadd.f32 %v7320, %v7324
  %v7388 = vadd.f32 %v7321, %v7324
  %v7389 = vadd.f32 %v7322, %v7324
  %s7390 = scalar_lea.vmem %s0, 24
  %v7391 = vld [vmem:[%s7390 + $0x1] sm:$0xff]
  %v7392 = vld [vmem:[%s7390 + $0x9] sm:$0xff]
  %v7393 = vld [vmem:[%s7390 + $0x19] sm:$0xff]
  %v7394 = vld [vmem:[%s7390 + $0x21] sm:$0xff]
  %v7395 = vld [vmem:[%s7390 + $0x31] sm:$0xff]
  %v7396 = vld [vmem:[%s7390 + $0x39] sm:$0xff]
  %v7397 = vld [vmem:[%s7390 + $0x49] sm:$0xff]
  %v7398 = vld [vmem:[%s7390 + $0x51] sm:$0xff]
  %v7399 = vld [vmem:[%s7390 + $0x61] sm:$0xff]
  %v7400 = vld [vmem:[%s7390 + $0x69] sm:$0xff]
  %v7401 = vld [vmem:[%s7390 + $0x79] sm:$0xff]
  %v7402 = vld [vmem:[%s7390 + $0x81] sm:$0xff]
  %v7403 = vld [vmem:[%s7390 + $0x91] sm:$0xff]
  %v7404 = vld [vmem:[%s7390 + $0x99] sm:$0xff]
  %v7405 = vld [vmem:[%s7390 + $0xa9] sm:$0xff]
  %v7406 = vld [vmem:[%s7390 + $0xb1] sm:$0xff]
  %v7407 = vld [vmem:[%s7390 + $0xc1] sm:$0xff]
  %v7408 = vld [vmem:[%s7390 + $0xc9] sm:$0xff]
  %v7409 = vld [vmem:[%s7390 + $0xd9] sm:$0xff]
  %v7410 = vld [vmem:[%s7390 + $0xe1] sm:$0xff]
  %v7411 = vld [vmem:[%s7390 + $0xf1] sm:$0xff]
  %v7412 = vld [vmem:[%s7390 + $0xf9] sm:$0xff]
  %v7413 = vld [vmem:[%s7390 + $0x109] sm:$0xff]
  %v7414 = vld [vmem:[%s7390 + $0x111] sm:$0xff]
  %v7415 = vld [vmem:[%s7390 + $0x121] sm:$0xff]
  %v7416 = vld [vmem:[%s7390 + $0x129] sm:$0xff]
  %v7417 = vld [vmem:[%s7390 + $0x139] sm:$0xff]
  %v7418 = vld [vmem:[%s7390 + $0x141] sm:$0xff]
  %v7419 = vld [vmem:[%s7390 + $0x151] sm:$0xff]
  %v7420 = vld [vmem:[%s7390 + $0x159] sm:$0xff]
  %v7421 = vld [vmem:[%s7390 + $0x169] sm:$0xff]
  %v7422 = vld [vmem:[%s7390 + $0x171] sm:$0xff]
  %v7423 = vld [vmem:[%s7390 + $0x1b1] sm:$0xff]
  %v7424 = vld [vmem:[%s7390 + $0x1b9] sm:$0xff]
  %v7425 = vld [vmem:[%s7390 + $0x1c9] sm:$0xff]
  %v7426 = vld [vmem:[%s7390 + $0x1d1] sm:$0xff]
  %v7427 = vld [vmem:[%s7390 + $0x1e1] sm:$0xff]
  %v7428 = vld [vmem:[%s7390 + $0x1e9] sm:$0xff]
  %v7429 = vld [vmem:[%s7390 + $0x1f9] sm:$0xff]
  %v7430 = vld [vmem:[%s7390 + $0x201] sm:$0xff]
  %v7431 = vld [vmem:[%s7390 + $0x211] sm:$0xff]
  %v7432 = vld [vmem:[%s7390 + $0x219] sm:$0xff]
  %v7433 = vld [vmem:[%s7390 + $0x229] sm:$0xff]
  %v7434 = vld [vmem:[%s7390 + $0x231] sm:$0xff]
  %v7435 = vld [vmem:[%s7390 + $0x241] sm:$0xff]
  %v7436 = vld [vmem:[%s7390 + $0x249] sm:$0xff]
  %v7437 = vld [vmem:[%s7390 + $0x259] sm:$0xff]
  %v7438 = vld [vmem:[%s7390 + $0x261] sm:$0xff]
  %v7439 = vld [vmem:[%s7390 + $0x271] sm:$0xff]
  %v7440 = vld [vmem:[%s7390 + $0x279] sm:$0xff]
  %v7441 = vld [vmem:[%s7390 + $0x289] sm:$0xff]
  %v7442 = vld [vmem:[%s7390 + $0x291] sm:$0xff]
  %v7443 = vld [vmem:[%s7390 + $0x2a1] sm:$0xff]
  %v7444 = vld [vmem:[%s7390 + $0x2a9] sm:$0xff]
  %v7445 = vld [vmem:[%s7390 + $0x2b9] sm:$0xff]
  %v7446 = vld [vmem:[%s7390 + $0x2c1] sm:$0xff]
  %v7447 = vld [vmem:[%s7390 + $0x2d1] sm:$0xff]
  %v7448 = vld [vmem:[%s7390 + $0x2d9] sm:$0xff]
  %v7449 = vld [vmem:[%s7390 + $0x2e9] sm:$0xff]
  %v7450 = vld [vmem:[%s7390 + $0x2f1] sm:$0xff]
  %v7451 = vld [vmem:[%s7390 + $0x301] sm:$0xff]
  %v7452 = vld [vmem:[%s7390 + $0x309] sm:$0xff]
  %v7453 = vld [vmem:[%s7390 + $0x319] sm:$0xff]
  %v7454 = vld [vmem:[%s7390 + $0x321] sm:$0xff]
  %v7455 = vadd.f32 %v7326, %v7391
  %v7456 = vadd.f32 %v7327, %v7392
  %v7457 = vadd.f32 %v7328, %v7393
  %v7458 = vadd.f32 %v7329, %v7394
  %v7459 = vadd.f32 %v7330, %v7395
  %v7460 = vadd.f32 %v7331, %v7396
  %v7461 = vadd.f32 %v7332, %v7397
  %v7462 = vadd.f32 %v7333, %v7398
  %v7463 = vadd.f32 %v7334, %v7399
  %v7464 = vadd.f32 %v7335, %v7400
  %v7465 = vadd.f32 %v7336, %v7401
  %v7466 = vadd.f32 %v7337, %v7402
  %v7467 = vadd.f32 %v7338, %v7403
  %v7468 = vadd.f32 %v7339, %v7404
  %v7469 = vadd.f32 %v7340, %v7405
  %v7470 = vadd.f32 %v7341, %v7406
  %v7471 = vadd.f32 %v7342, %v7407
  %v7472 = vadd.f32 %v7343, %v7408
  %v7473 = vadd.f32 %v7344, %v7409
  %v7474 = vadd.f32 %v7345, %v7410
  %v7475 = vadd.f32 %v7346, %v7411
  %v7476 = vadd.f32 %v7347, %v7412
  %v7477 = vadd.f32 %v7348, %v7413
  %v7478 = vadd.f32 %v7349, %v7414
  %v7479 = vadd.f32 %v7350, %v7415
  %v7480 = vadd.f32 %v7351, %v7416
  %v7481 = vadd.f32 %v7352, %v7417
  %v7482 = vadd.f32 %v7353, %v7418
  %v7483 = vadd.f32 %v7354, %v7419
  %v7484 = vadd.f32 %v7355, %v7420
  %v7485 = vadd.f32 %v7356, %v7421
  %v7486 = vadd.f32 %v7357, %v7422
  %v7487 = vadd.f32 %v7358, %v7423
  %v7488 = vadd.f32 %v7359, %v7424
  %v7489 = vadd.f32 %v7360, %v7425
  %v7490 = vadd.f32 %v7361, %v7426
  %v7491 = vadd.f32 %v7362, %v7427
  %v7492 = vadd.f32 %v7363, %v7428
  %v7493 = vadd.f32 %v7364, %v7429
  %v7494 = vadd.f32 %v7365, %v7430
  %v7495 = vadd.f32 %v7366, %v7431
  %v7496 = vadd.f32 %v7367, %v7432
  %v7497 = vadd.f32 %v7368, %v7433
  %v7498 = vadd.f32 %v7369, %v7434
  %v7499 = vadd.f32 %v7370, %v7435
  %v7500 = vadd.f32 %v7371, %v7436
  %v7501 = vadd.f32 %v7372, %v7437
  %v7502 = vadd.f32 %v7373, %v7438
  %v7503 = vadd.f32 %v7374, %v7439
  %v7504 = vadd.f32 %v7375, %v7440
  %v7505 = vadd.f32 %v7376, %v7441
  %v7506 = vadd.f32 %v7377, %v7442
  %v7507 = vadd.f32 %v7378, %v7443
  %v7508 = vadd.f32 %v7379, %v7444
  %v7509 = vadd.f32 %v7380, %v7445
  %v7510 = vadd.f32 %v7381, %v7446
  %v7511 = vadd.f32 %v7382, %v7447
  %v7512 = vadd.f32 %v7383, %v7448
  %v7513 = vadd.f32 %v7384, %v7449
  %v7514 = vadd.f32 %v7385, %v7450
  %v7515 = vadd.f32 %v7386, %v7451
  %v7516 = vadd.f32 %v7387, %v7452
  %v7517 = vadd.f32 %v7388, %v7453
  %v7518 = vadd.f32 %v7389, %v7454
  %7519 = vst.msk [vmem:[%s11] sm:$0xff] %vm1006, %v7455
  %7520 = vst.msk [vmem:[%s11 + $0x8] sm:$0xff] %vm1006, %v7456
  %7521 = vst.msk [vmem:[%s11 + $0x10] sm:$0xff] %vm1006, %v7457
  %7522 = vst.msk [vmem:[%s11 + $0x18] sm:$0xff] %vm1006, %v7458
  %7523 = vst.msk [vmem:[%s11 + $0x20] sm:$0xff] %vm1006, %v7459
  %7524 = vst.msk [vmem:[%s11 + $0x28] sm:$0xff] %vm1006, %v7460
  %7525 = vst.msk [vmem:[%s11 + $0x30] sm:$0xff] %vm1006, %v7461
  %7526 = vst.msk [vmem:[%s11 + $0x38] sm:$0xff] %vm1006, %v7462
  %7527 = vst.msk [vmem:[%s11 + $0x40] sm:$0xff] %vm1006, %v7463
  %7528 = vst.msk [vmem:[%s11 + $0x48] sm:$0xff] %vm1006, %v7464
  %7529 = vst.msk [vmem:[%s11 + $0x50] sm:$0xff] %vm1006, %v7465
  %7530 = vst.msk [vmem:[%s11 + $0x58] sm:$0xff] %vm1006, %v7466
  %7531 = vst.msk [vmem:[%s11 + $0x60] sm:$0xff] %vm1006, %v7467
  %7532 = vst.msk [vmem:[%s11 + $0x68] sm:$0xff] %vm1006, %v7468
  %7533 = vst.msk [vmem:[%s11 + $0x70] sm:$0xff] %vm1006, %v7469
  %7534 = vst.msk [vmem:[%s11 + $0x78] sm:$0xff] %vm1006, %v7470
  %7535 = vst.msk [vmem:[%s11 + $0x80] sm:$0xff] %vm1006, %v7471
  %7536 = vst.msk [vmem:[%s11 + $0x88] sm:$0xff] %vm1006, %v7472
  %7537 = vst.msk [vmem:[%s11 + $0x90] sm:$0xff] %vm1006, %v7473
  %7538 = vst.msk [vmem:[%s11 + $0x98] sm:$0xff] %vm1006, %v7474
  %7539 = vst.msk [vmem:[%s11 + $0xa0] sm:$0xff] %vm1006, %v7475
  %7540 = vst.msk [vmem:[%s11 + $0xa8] sm:$0xff] %vm1006, %v7476
  %7541 = vst.msk [vmem:[%s11 + $0xb0] sm:$0xff] %vm1006, %v7477
  %7542 = vst.msk [vmem:[%s11 + $0xb8] sm:$0xff] %vm1006, %v7478
  %7543 = vst.msk [vmem:[%s11 + $0xc0] sm:$0xff] %vm1006, %v7479
  %7544 = vst.msk [vmem:[%s11 + $0xc8] sm:$0xff] %vm1006, %v7480
  %7545 = vst.msk [vmem:[%s11 + $0xd0] sm:$0xff] %vm1006, %v7481
  %7546 = vst.msk [vmem:[%s11 + $0xd8] sm:$0xff] %vm1006, %v7482
  %7547 = vst.msk [vmem:[%s11 + $0xe0] sm:$0xff] %vm1006, %v7483
  %7548 = vst.msk [vmem:[%s11 + $0xe8] sm:$0xff] %vm1006, %v7484
  %7549 = vst.msk [vmem:[%s11 + $0xf0] sm:$0xff] %vm1006, %v7485
  %7550 = vst.msk [vmem:[%s11 + $0xf8] sm:$0xff] %vm1006, %v7486
  %7551 = vst.msk [vmem:[%s11 + $0x100] sm:$0xff] %vm1006, %v7487
  %7552 = vst.msk [vmem:[%s11 + $0x108] sm:$0xff] %vm1006, %v7488
  %7553 = vst.msk [vmem:[%s11 + $0x110] sm:$0xff] %vm1006, %v7489
  %7554 = vst.msk [vmem:[%s11 + $0x118] sm:$0xff] %vm1006, %v7490
  %7555 = vst.msk [vmem:[%s11 + $0x120] sm:$0xff] %vm1006, %v7491
  %7556 = vst.msk [vmem:[%s11 + $0x128] sm:$0xff] %vm1006, %v7492
  %7557 = vst.msk [vmem:[%s11 + $0x130] sm:$0xff] %vm1006, %v7493
  %7558 = vst.msk [vmem:[%s11 + $0x138] sm:$0xff] %vm1006, %v7494
  %7559 = vst.msk [vmem:[%s11 + $0x140] sm:$0xff] %vm1006, %v7495
  %7560 = vst.msk [vmem:[%s11 + $0x148] sm:$0xff] %vm1006, %v7496
  %7561 = vst.msk [vmem:[%s11 + $0x150] sm:$0xff] %vm1006, %v7497
  %7562 = vst.msk [vmem:[%s11 + $0x158] sm:$0xff] %vm1006, %v7498
  %7563 = vst.msk [vmem:[%s11 + $0x160] sm:$0xff] %vm1006, %v7499
  %7564 = vst.msk [vmem:[%s11 + $0x168] sm:$0xff] %vm1006, %v7500
  %7565 = vst.msk [vmem:[%s11 + $0x170] sm:$0xff] %vm1006, %v7501
  %7566 = vst.msk [vmem:[%s11 + $0x178] sm:$0xff] %vm1006, %v7502
  %7567 = vst.msk [vmem:[%s11 + $0x180] sm:$0xff] %vm1006, %v7503
  %7568 = vst.msk [vmem:[%s11 + $0x188] sm:$0xff] %vm1006, %v7504
  %7569 = vst.msk [vmem:[%s11 + $0x190] sm:$0xff] %vm1006, %v7505
  %7570 = vst.msk [vmem:[%s11 + $0x198] sm:$0xff] %vm1006, %v7506
  %7571 = vst.msk [vmem:[%s11 + $0x1a0] sm:$0xff] %vm1006, %v7507
  %7572 = vst.msk [vmem:[%s11 + $0x1a8] sm:$0xff] %vm1006, %v7508
  %7573 = vst.msk [vmem:[%s11 + $0x1b0] sm:$0xff] %vm1006, %v7509
  %7574 = vst.msk [vmem:[%s11 + $0x1b8] sm:$0xff] %vm1006, %v7510
  %7575 = vst.msk [vmem:[%s11 + $0x1c0] sm:$0xff] %vm1006, %v7511
  %7576 = vst.msk [vmem:[%s11 + $0x1c8] sm:$0xff] %vm1006, %v7512
  %7577 = vst.msk [vmem:[%s11 + $0x1d0] sm:$0xff] %vm1006, %v7513
  %7578 = vst.msk [vmem:[%s11 + $0x1d8] sm:$0xff] %vm1006, %v7514
  %7579 = vst.msk [vmem:[%s11 + $0x1e0] sm:$0xff] %vm1006, %v7515
  %7580 = vst.msk [vmem:[%s11 + $0x1e8] sm:$0xff] %vm1006, %v7516
  %7581 = vst.msk [vmem:[%s11 + $0x1f0] sm:$0xff] %vm1006, %v7517
  %7582 = vst.msk [vmem:[%s11 + $0x1f8] sm:$0xff] %vm1006, %v7518
  // Predicated region
  $region46: #{inverted_residual_forward.1} parent=0 // pred_check
    _
  $region47: #{inverted_residual_forward.1} parent=0 // pred_check_branch
    %7584 = sbr.rel (0) target = $region49
  $region48: #{inverted_residual_forward.1} parent=0 // pred_region
    _
  $region49: #{inverted_residual_forward.1} parent=0 // pred_fallthru
    _
  // Predicated region
  $region50: #{inverted_residual_forward.1} parent=0 // pred_check
    _
  $region51: #{inverted_residual_forward.1} parent=0 // pred_check_branch
    %7586 = sbr.rel (0) target = $region53
  $region52: #{inverted_residual_forward.1} parent=0 // pred_region
    _
  $region53: #{inverted_residual_forward.1} parent=0 // pred_fallthru
    _

</llo_original>
